<compile_context>
chip_gen: v6e
topology: v6e:2x2x1
jax: 0.10.0
libtpu: 0.0.40
codegen_flags: <defaults>
</compile_context>

<pallas_src>
import functools

import jax
import jax.numpy as jnp
import numpy as np
from jax.experimental import pallas as pl
from jax.experimental.pallas import tpu as pltpu

EPS = 1e-3  # BatchNorm2d eps=0.001


def _round_up(v, m):
    return ((v + m - 1) // m) * m


def _pool_selectors(n, h, w):
    """0/1 phase-selection matrices + border masks for pad(1)+MaxPool2d(2).

    Pooled output pixel q=(n,oi,oj) of phase k=(di,dj) reads padded coordinate
    (2*oi+di, 2*oj+dj).  Interior coordinates select one input pixel (a 1 in
    G[k]); border coordinates (zero padding of the conv) are flagged in B[k]
    and filled with the per-channel constant relu(b') inside the kernel.
    Pixel axes are padded to multiples of 128 so all matmuls are (8,128)
    aligned and all stores are full-lane.
    """
    hp, wp = h + 2, w + 2
    ho, wo = hp // 2, wp // 2
    p_in, p_out = n * h * w, n * ho * wo
    p_in_pad, p_out_pad = _round_up(p_in, 128), _round_up(p_out, 128)
    G = np.zeros((4, p_in_pad, p_out_pad), np.float32)
    B = np.zeros((4, 1, p_out_pad), np.float32)
    for k, (di, dj) in enumerate(((0, 0), (0, 1), (1, 0), (1, 1))):
        for nn in range(n):
            for oi in range(ho):
                for oj in range(wo):
                    q = (nn * ho + oi) * wo + oj
                    i, j = 2 * oi + di - 1, 2 * oj + dj - 1
                    if 0 <= i < h and 0 <= j < w:
                        G[k, (nn * h + i) * w + j, q] = 1.0
                    else:
                        B[k, 0, q] = 1.0
    return G, B


def _chain_kernel(*refs, stage_meta):
    """All 4 EncMod stages fused: conv1x1 + BN(train) + ReLU + border + pool2.

    refs = (x_ref, [w_ref, pcp_ref, g_ref, bm_ref] * 4, o_ref); everything is
    VMEM-resident and there is no grid (single invocation).
    """
    o_ref = refs[-1]
    x = refs[0][...]                                    # (Cin0, P0_pad) f32
    for s, (cin, p_total, c_stat) in enumerate(stage_meta):
        w_ref, pcp_ref, g_ref, bm_ref = refs[1 + 4 * s: 1 + 4 * (s + 1)]
        wmat = w_ref[...]                               # (Cout, Cin)
        pcp = pcp_ref[...]                              # (Cout, 3) = [b, gamma, beta]
        bias, gamma, beta = pcp[:, 0:1], pcp[:, 1:2], pcp[:, 2:3]

        # 1x1 conv as a VPU broadcast-FMA pairwise tree over Cin (<=16): exact
        # f32, lane-dense, no MXU contraction padded from <=16 up to 128.
        terms = [wmat[:, c:c + 1] * x[c:c + 1, :] for c in range(cin)]
        while len(terms) > 1:
            nxt = [terms[i] + terms[i + 1] for i in range(0, len(terms) - 1, 2)]
            if len(terms) % 2:
                nxt.append(terms[-1])
            terms = nxt
        y = terms[0] + bias                             # (Cout, P_pad)

        # Train-mode BN batch statistics over the *padded* conv output.  Both
        # zero-pad border pixels and zero lane-padding columns have y == bias,
        # so they enter the moments analytically via
        # c_stat = n_border_pixels - n_lane_padding (may be negative).
        inv_n = 1.0 / p_total
        mean = (jnp.sum(y, axis=1, keepdims=True) + c_stat * bias) * inv_n
        d = y - mean
        db = bias - mean
        var = (jnp.sum(d * d, axis=1, keepdims=True) + c_stat * (db * db)) * inv_n
        # rsqrt + one Newton step -> full f32 accuracy regardless of how the
        # EUP approximation is lowered (keeps us close to the XLA reference).
        v = var + EPS
        r = jax.lax.rsqrt(v)
        r = r * (1.5 - 0.5 * v * r * r)
        scale = gamma * r
        z = jnp.maximum(d * scale + beta, 0.0)          # interior (+pad) pixels
        zb = jnp.maximum(db * scale + beta, 0.0)        # zero-pad border value

        # Fused border fill + MaxPool2d(2): max over the four 2x2 phases, each
        # a 0/1 column-selection matmul plus the border constant.  The bf16
        # hi/lo split keeps the selection exact even if the f32 MXU path
        # truncates its data operand to bf16.
        z_hi = z.astype(jnp.bfloat16).astype(jnp.float32)
        z_lo = z - z_hi
        pooled = None
        for k in range(4):
            g = g_ref[k]                                # (P_pad, Po_pad) 0/1
            phi = (jnp.dot(z_hi, g, preferred_element_type=jnp.float32)
                   + jnp.dot(z_lo, g, preferred_element_type=jnp.float32)
                   + zb * bm_ref[k])                    # (Cout, Po_pad)
            pooled = phi if pooled is None else jnp.maximum(pooled, phi)
        x = pooled                                      # next stage's input
    o_ref[...] = x


def encoder_subtrack_d_forward(x, params):
    """EncoderSubTrackD forward, single fused Pallas call.

    x: (N, Cin0, H, W) f32; params: list of (w (Cout,Cin), b, gamma, beta).
    Returns (N, Cout_last, H_out, W_out).
    """
    N, c0, H, W = x.shape

    stage_meta, const_inputs = [], []
    flops = transcendentals = bytes_accessed = 0
    h, w_sp, cin = H, W, c0
    for (wmat, b, gamma, beta) in params:
        cout = wmat.shape[0]
        hp, wp = h + 2, w_sp + 2
        ho, wo = hp // 2, wp // 2
        p_in = N * h * w_sp
        p_in_pad = _round_up(p_in, 128)
        p_out_pad = _round_up(N * ho * wo, 128)
        p_total = N * hp * wp
        c_stat = N * (hp * wp - h * w_sp) - (p_in_pad - p_in)
        G, B = _pool_selectors(N, h, w_sp)
        # TODO(synk): the all-in-VMEM selection matrices scale as P*Po; large
        # spatial inputs need a tiled per-stage streaming variant instead.
        assert G.nbytes <= 16 * 1024 * 1024, "input too large for fused-VMEM path"
        pcp = jnp.stack([b, gamma, beta], axis=1).astype(jnp.float32)  # (Cout,3)
        const_inputs += [wmat.astype(jnp.float32), pcp, jnp.asarray(G), jnp.asarray(B)]
        stage_meta.append((cin, p_total, c_stat))
        flops += 2 * cout * cin * p_in_pad + 12 * cout * p_in_pad
        flops += 16 * cout * p_in_pad * p_out_pad + 8 * cout * p_out_pad
        transcendentals += cout
        bytes_accessed += 4 * (wmat.size + pcp.size + G.size + B.size)
        h, w_sp, cin = ho, wo, cout

    cout_last = cin
    p_out_last = N * h * w_sp
    p_out_pad_last = _round_up(p_out_last, 128)

    # Lane-dense (Cin0, P0_pad) input slab.  For Cin0==1 the transpose is a
    # free reshape; the zero lane padding is accounted for through c_stat.
    p0 = N * H * W
    p0_pad = _round_up(p0, 128)
    x2 = jnp.transpose(x, (1, 0, 2, 3)).reshape(c0, p0).astype(jnp.float32)
    x2 = jnp.pad(x2, ((0, 0), (0, p0_pad - p0)))
    bytes_accessed += 4 * (x2.size + cout_last * p_out_pad_last)

    kernel = functools.partial(_chain_kernel, stage_meta=tuple(stage_meta))
    vmem_spec = pl.BlockSpec(memory_space=pltpu.MemorySpace.VMEM)
    out_flat = pl.pallas_call(
        kernel,
        out_shape=jax.ShapeDtypeStruct((cout_last, p_out_pad_last), jnp.float32),
        in_specs=[vmem_spec] * (1 + len(const_inputs)),
        out_specs=vmem_spec,
        compiler_params=pltpu.CompilerParams(
            # Actual working set is ~4 MiB (selection matrices dominate);
            # 16 MiB leaves generous compiler headroom on v5e/v6e/v7x.
            vmem_limit_bytes=16 * 1024 * 1024,
        ),
        cost_estimate=pl.CostEstimate(
            flops=int(flops),
            transcendentals=int(transcendentals),
            bytes_accessed=int(bytes_accessed),
        ),
    )(x2, *const_inputs)

    out = out_flat[:, :p_out_last].reshape(cout_last, N, h, w_sp)
    return jnp.transpose(out, (1, 0, 2, 3))


# ----------------------------- reference path -------------------------------
def _maxpool2(x):
    """MaxPool2d(kernel=2, stride=2), floor semantics, NCHW (reference only)."""
    n, c, h, w = x.shape
    hc, wc = (h // 2) * 2, (w // 2) * 2
    xc = x[:, :, :hc, :wc].reshape(n, c, hc // 2, 2, wc // 2, 2)
    return jnp.max(xc, axis=(3, 5))


def _reference_encmod(x, w, b, gamma, beta):
    xp = jnp.pad(x, ((0, 0), (0, 0), (1, 1), (1, 1)))
    y = jnp.einsum("nchw,oc->nohw", xp, w) + b[None, :, None, None]
    mean = y.mean(axis=(0, 2, 3), keepdims=True)
    var = ((y - mean) ** 2).mean(axis=(0, 2, 3), keepdims=True)  # biased (train-mode BN)
    yn = (y - mean) * jax.lax.rsqrt(var + EPS)
    yn = yn * gamma[None, :, None, None] + beta[None, :, None, None]
    return _maxpool2(jnp.maximum(yn, 0.0))


def _reference_forward(x, params):
    for (w, b, g, be) in params:
        x = _reference_encmod(x, w, b, g, be)
    return x


# ----------------------------- parameter init -------------------------------
def init_params(key):
    """Deterministic PyTorch-style init for the 4 EncMod stages."""
    chans = [(1, 4), (4, 8), (8, 16), (16, 32)]  # EncMod(1 or 2**(i+1), 2**(i+2))
    params = []
    for cin, cout in chans:
        key, kw, kb, kg, kbe = jax.random.split(key, 5)
        bound = 1.0 / (cin ** 0.5)                # k=1 -> fan_in = Cin
        w = jax.random.uniform(kw, (cout, cin), minval=-bound, maxval=bound, dtype=jnp.float32)
        b = jax.random.uniform(kb, (cout,), minval=-bound, maxval=bound, dtype=jnp.float32)
        g = jax.random.uniform(kg, (cout,), minval=0.5, maxval=1.5, dtype=jnp.float32)
        be = 0.1 * jax.random.normal(kbe, (cout,), dtype=jnp.float32)
        params.append((w, b, g, be))
    return params


if __name__ == "__main__":
    N, H, W = 2, 16, 16

    key = jax.random.PRNGKey(0)
    kx, kp = jax.random.split(key)
    x = jax.random.normal(kx, (N, 1, H, W), dtype=jnp.float32)
    params = init_params(kp)

    fwd = jax.jit(encoder_subtrack_d_forward)
    out = jax.block_until_ready(fwd(x, params))

    ref = _reference_forward(x, params)
    # (2,1,16,16) -> (2,4,9,9) -> (2,8,5,5) -> (2,16,3,3) -> (2,32,2,2)
    assert out.shape == (N, 32, 2, 2), out.shape
    assert ref.shape == out.shape, ref.shape
    assert jnp.allclose(out, ref, atol=1e-3, rtol=1e-3), float(jnp.max(jnp.abs(out - ref)))

    print("KERNEL_OK")
</pallas_src>

<mosaic_0001>
module attributes {stable_mosaic.version = 11 : i64} {
  func.func @_chain_kernel(%arg0: memref<1x512xf32, #tpu.memory_space<vmem>>, %arg1: memref<4x1xf32, #tpu.memory_space<vmem>>, %arg2: memref<4x3xf32, #tpu.memory_space<vmem>>, %arg3: memref<4x512x256xf32, #tpu.memory_space<vmem>>, %arg4: memref<4x1x256xf32, #tpu.memory_space<vmem>>, %arg5: memref<8x4xf32, #tpu.memory_space<vmem>>, %arg6: memref<8x3xf32, #tpu.memory_space<vmem>>, %arg7: memref<4x256x128xf32, #tpu.memory_space<vmem>>, %arg8: memref<4x1x128xf32, #tpu.memory_space<vmem>>, %arg9: memref<16x8xf32, #tpu.memory_space<vmem>>, %arg10: memref<16x3xf32, #tpu.memory_space<vmem>>, %arg11: memref<4x128x128xf32, #tpu.memory_space<vmem>>, %arg12: memref<4x1x128xf32, #tpu.memory_space<vmem>>, %arg13: memref<32x16xf32, #tpu.memory_space<vmem>>, %arg14: memref<32x3xf32, #tpu.memory_space<vmem>>, %arg15: memref<4x128x128xf32, #tpu.memory_space<vmem>>, %arg16: memref<4x1x128xf32, #tpu.memory_space<vmem>>, %arg17: memref<32x128xf32, #tpu.memory_space<vmem>>) attributes {dimension_semantics = [], scalar_prefetch = 0 : i64, scratch_operands = 0 : i64, tpu.core_type = #tpu.core_type<tc>} {
    %c0 = arith.constant 0 : index
    %c0_0 = arith.constant 0 : index
    %0 = vector.load %arg0[%c0, %c0_0] : memref<1x512xf32, #tpu.memory_space<vmem>>, vector<1x512xf32>
    %c0_1 = arith.constant 0 : index
    %c0_2 = arith.constant 0 : index
    %1 = vector.load %arg1[%c0_1, %c0_2] : memref<4x1xf32, #tpu.memory_space<vmem>>, vector<4x1xf32>
    %c0_3 = arith.constant 0 : index
    %c0_4 = arith.constant 0 : index
    %2 = vector.load %arg2[%c0_3, %c0_4] : memref<4x3xf32, #tpu.memory_space<vmem>>, vector<4x3xf32>
    %3 = vector.extract_strided_slice %2 {offsets = [0, 0], sizes = [4, 1], strides = [1, 1]} : vector<4x3xf32> to vector<4x1xf32>
    %4 = vector.extract_strided_slice %2 {offsets = [0, 1], sizes = [4, 1], strides = [1, 1]} : vector<4x3xf32> to vector<4x1xf32>
    %5 = vector.extract_strided_slice %2 {offsets = [0, 2], sizes = [4, 1], strides = [1, 1]} : vector<4x3xf32> to vector<4x1xf32>
    %6 = vector.broadcast %1 : vector<4x1xf32> to vector<4x512xf32>
    %7 = vector.broadcast %0 : vector<1x512xf32> to vector<4x512xf32>
    %8 = arith.mulf %6, %7 : vector<4x512xf32>
    %9 = vector.broadcast %3 : vector<4x1xf32> to vector<4x512xf32>
    %10 = arith.addf %8, %9 : vector<4x512xf32>
    %cst = arith.constant dense<0.000000e+00> : vector<4xf32>
    %11 = vector.multi_reduction <add>, %10, %cst [1] : vector<4x512xf32> to vector<4xf32>
    %12 = vector.shape_cast %11 : vector<4xf32> to vector<4x1xf32>
    %cst_5 = arith.constant 1.360000e+02 : f32
    %13 = vector.broadcast %cst_5 : f32 to vector<4x1xf32>
    %14 = arith.mulf %13, %3 : vector<4x1xf32>
    %15 = arith.addf %12, %14 : vector<4x1xf32>
    %cst_6 = arith.constant 0.00154320989 : f32
    %16 = vector.broadcast %cst_6 : f32 to vector<4x1xf32>
    %17 = arith.mulf %15, %16 : vector<4x1xf32>
    %18 = vector.broadcast %17 : vector<4x1xf32> to vector<4x512xf32>
    %19 = arith.subf %10, %18 : vector<4x512xf32>
    %20 = arith.subf %3, %17 : vector<4x1xf32>
    %21 = arith.mulf %19, %19 : vector<4x512xf32>
    %cst_7 = arith.constant dense<0.000000e+00> : vector<4xf32>
    %22 = vector.multi_reduction <add>, %21, %cst_7 [1] : vector<4x512xf32> to vector<4xf32>
    %23 = vector.shape_cast %22 : vector<4xf32> to vector<4x1xf32>
    %24 = arith.mulf %20, %20 : vector<4x1xf32>
    %cst_8 = arith.constant 1.360000e+02 : f32
    %25 = vector.broadcast %cst_8 : f32 to vector<4x1xf32>
    %26 = arith.mulf %25, %24 : vector<4x1xf32>
    %27 = arith.addf %23, %26 : vector<4x1xf32>
    %cst_9 = arith.constant 0.00154320989 : f32
    %28 = vector.broadcast %cst_9 : f32 to vector<4x1xf32>
    %29 = arith.mulf %27, %28 : vector<4x1xf32>
    %cst_10 = arith.constant 1.000000e-03 : f32
    %30 = vector.broadcast %cst_10 : f32 to vector<4x1xf32>
    %31 = arith.addf %29, %30 : vector<4x1xf32>
    %32 = math.rsqrt %31 : vector<4x1xf32>
    %cst_11 = arith.constant 5.000000e-01 : f32
    %33 = vector.broadcast %cst_11 : f32 to vector<4x1xf32>
    %34 = arith.mulf %33, %31 : vector<4x1xf32>
    %35 = arith.mulf %34, %32 : vector<4x1xf32>
    %36 = arith.mulf %35, %32 : vector<4x1xf32>
    %cst_12 = arith.constant 1.500000e+00 : f32
    %37 = vector.broadcast %cst_12 : f32 to vector<4x1xf32>
    %38 = arith.subf %37, %36 : vector<4x1xf32>
    %39 = arith.mulf %32, %38 : vector<4x1xf32>
    %40 = arith.mulf %4, %39 : vector<4x1xf32>
    %41 = vector.broadcast %40 : vector<4x1xf32> to vector<4x512xf32>
    %42 = arith.mulf %19, %41 : vector<4x512xf32>
    %43 = vector.broadcast %5 : vector<4x1xf32> to vector<4x512xf32>
    %44 = arith.addf %42, %43 : vector<4x512xf32>
    %cst_13 = arith.constant 0.000000e+00 : f32
    %45 = vector.broadcast %cst_13 : f32 to vector<4x512xf32>
    %46 = arith.maximumf %44, %45 : vector<4x512xf32>
    %47 = arith.mulf %20, %40 : vector<4x1xf32>
    %48 = arith.addf %47, %5 : vector<4x1xf32>
    %cst_14 = arith.constant 0.000000e+00 : f32
    %49 = vector.broadcast %cst_14 : f32 to vector<4x1xf32>
    %50 = arith.maximumf %48, %49 : vector<4x1xf32>
    %51 = arith.truncf %46 : vector<4x512xf32> to vector<4x512xbf16>
    %52 = arith.extf %51 : vector<4x512xbf16> to vector<4x512xf32>
    %53 = arith.subf %46, %52 : vector<4x512xf32>
    %c0_15 = arith.constant 0 : index
    %c0_16 = arith.constant 0 : index
    %c0_17 = arith.constant 0 : index
    %54 = vector.load %arg3[%c0_15, %c0_16, %c0_17] : memref<4x512x256xf32, #tpu.memory_space<vmem>>, vector<1x512x256xf32>
    %55 = vector.shape_cast %54 : vector<1x512x256xf32> to vector<512x256xf32>
    %cst_18 = arith.constant dense<0.000000e+00> : vector<4x256xf32>
    %56 = tpu.matmul %52, %55, %cst_18 {dimension_numbers = #tpu.dot_dimension_numbers<[1], [0], [0], [1], [0, 0, 1, 1], [], []>} : vector<4x512xf32>, vector<512x256xf32>, vector<4x256xf32> -> vector<4x256xf32>
    %cst_19 = arith.constant dense<0.000000e+00> : vector<4x256xf32>
    %57 = tpu.matmul %53, %55, %cst_19 {dimension_numbers = #tpu.dot_dimension_numbers<[1], [0], [0], [1], [0, 0, 1, 1], [], []>} : vector<4x512xf32>, vector<512x256xf32>, vector<4x256xf32> -> vector<4x256xf32>
    %58 = arith.addf %56, %57 : vector<4x256xf32>
    %c0_20 = arith.constant 0 : index
    %c0_21 = arith.constant 0 : index
    %c0_22 = arith.constant 0 : index
    %59 = vector.load %arg4[%c0_20, %c0_21, %c0_22] : memref<4x1x256xf32, #tpu.memory_space<vmem>>, vector<1x1x256xf32>
    %60 = vector.shape_cast %59 : vector<1x1x256xf32> to vector<1x256xf32>
    %61 = vector.broadcast %50 : vector<4x1xf32> to vector<4x256xf32>
    %62 = vector.broadcast %60 : vector<1x256xf32> to vector<4x256xf32>
    %63 = arith.mulf %61, %62 : vector<4x256xf32>
    %64 = arith.addf %58, %63 : vector<4x256xf32>
    %c1 = arith.constant 1 : index
    %c0_23 = arith.constant 0 : index
    %c0_24 = arith.constant 0 : index
    %65 = vector.load %arg3[%c1, %c0_23, %c0_24] : memref<4x512x256xf32, #tpu.memory_space<vmem>>, vector<1x512x256xf32>
    %66 = vector.shape_cast %65 : vector<1x512x256xf32> to vector<512x256xf32>
    %cst_25 = arith.constant dense<0.000000e+00> : vector<4x256xf32>
    %67 = tpu.matmul %52, %66, %cst_25 {dimension_numbers = #tpu.dot_dimension_numbers<[1], [0], [0], [1], [0, 0, 1, 1], [], []>} : vector<4x512xf32>, vector<512x256xf32>, vector<4x256xf32> -> vector<4x256xf32>
    %cst_26 = arith.constant dense<0.000000e+00> : vector<4x256xf32>
    %68 = tpu.matmul %53, %66, %cst_26 {dimension_numbers = #tpu.dot_dimension_numbers<[1], [0], [0], [1], [0, 0, 1, 1], [], []>} : vector<4x512xf32>, vector<512x256xf32>, vector<4x256xf32> -> vector<4x256xf32>
    %69 = arith.addf %67, %68 : vector<4x256xf32>
    %c1_27 = arith.constant 1 : index
    %c0_28 = arith.constant 0 : index
    %c0_29 = arith.constant 0 : index
    %70 = vector.load %arg4[%c1_27, %c0_28, %c0_29] : memref<4x1x256xf32, #tpu.memory_space<vmem>>, vector<1x1x256xf32>
    %71 = vector.shape_cast %70 : vector<1x1x256xf32> to vector<1x256xf32>
    %72 = vector.broadcast %50 : vector<4x1xf32> to vector<4x256xf32>
    %73 = vector.broadcast %71 : vector<1x256xf32> to vector<4x256xf32>
    %74 = arith.mulf %72, %73 : vector<4x256xf32>
    %75 = arith.addf %69, %74 : vector<4x256xf32>
    %76 = arith.maximumf %64, %75 : vector<4x256xf32>
    %c2 = arith.constant 2 : index
    %c0_30 = arith.constant 0 : index
    %c0_31 = arith.constant 0 : index
    %77 = vector.load %arg3[%c2, %c0_30, %c0_31] : memref<4x512x256xf32, #tpu.memory_space<vmem>>, vector<1x512x256xf32>
    %78 = vector.shape_cast %77 : vector<1x512x256xf32> to vector<512x256xf32>
    %cst_32 = arith.constant dense<0.000000e+00> : vector<4x256xf32>
    %79 = tpu.matmul %52, %78, %cst_32 {dimension_numbers = #tpu.dot_dimension_numbers<[1], [0], [0], [1], [0, 0, 1, 1], [], []>} : vector<4x512xf32>, vector<512x256xf32>, vector<4x256xf32> -> vector<4x256xf32>
    %cst_33 = arith.constant dense<0.000000e+00> : vector<4x256xf32>
    %80 = tpu.matmul %53, %78, %cst_33 {dimension_numbers = #tpu.dot_dimension_numbers<[1], [0], [0], [1], [0, 0, 1, 1], [], []>} : vector<4x512xf32>, vector<512x256xf32>, vector<4x256xf32> -> vector<4x256xf32>
    %81 = arith.addf %79, %80 : vector<4x256xf32>
    %c2_34 = arith.constant 2 : index
    %c0_35 = arith.constant 0 : index
    %c0_36 = arith.constant 0 : index
    %82 = vector.load %arg4[%c2_34, %c0_35, %c0_36] : memref<4x1x256xf32, #tpu.memory_space<vmem>>, vector<1x1x256xf32>
    %83 = vector.shape_cast %82 : vector<1x1x256xf32> to vector<1x256xf32>
    %84 = vector.broadcast %50 : vector<4x1xf32> to vector<4x256xf32>
    %85 = vector.broadcast %83 : vector<1x256xf32> to vector<4x256xf32>
    %86 = arith.mulf %84, %85 : vector<4x256xf32>
    %87 = arith.addf %81, %86 : vector<4x256xf32>
    %88 = arith.maximumf %76, %87 : vector<4x256xf32>
    %c3 = arith.constant 3 : index
    %c0_37 = arith.constant 0 : index
    %c0_38 = arith.constant 0 : index
    %89 = vector.load %arg3[%c3, %c0_37, %c0_38] : memref<4x512x256xf32, #tpu.memory_space<vmem>>, vector<1x512x256xf32>
    %90 = vector.shape_cast %89 : vector<1x512x256xf32> to vector<512x256xf32>
    %cst_39 = arith.constant dense<0.000000e+00> : vector<4x256xf32>
    %91 = tpu.matmul %52, %90, %cst_39 {dimension_numbers = #tpu.dot_dimension_numbers<[1], [0], [0], [1], [0, 0, 1, 1], [], []>} : vector<4x512xf32>, vector<512x256xf32>, vector<4x256xf32> -> vector<4x256xf32>
    %cst_40 = arith.constant dense<0.000000e+00> : vector<4x256xf32>
    %92 = tpu.matmul %53, %90, %cst_40 {dimension_numbers = #tpu.dot_dimension_numbers<[1], [0], [0], [1], [0, 0, 1, 1], [], []>} : vector<4x512xf32>, vector<512x256xf32>, vector<4x256xf32> -> vector<4x256xf32>
    %93 = arith.addf %91, %92 : vector<4x256xf32>
    %c3_41 = arith.constant 3 : index
    %c0_42 = arith.constant 0 : index
    %c0_43 = arith.constant 0 : index
    %94 = vector.load %arg4[%c3_41, %c0_42, %c0_43] : memref<4x1x256xf32, #tpu.memory_space<vmem>>, vector<1x1x256xf32>
    %95 = vector.shape_cast %94 : vector<1x1x256xf32> to vector<1x256xf32>
    %96 = vector.broadcast %50 : vector<4x1xf32> to vector<4x256xf32>
    %97 = vector.broadcast %95 : vector<1x256xf32> to vector<4x256xf32>
    %98 = arith.mulf %96, %97 : vector<4x256xf32>
    %99 = arith.addf %93, %98 : vector<4x256xf32>
    %100 = arith.maximumf %88, %99 : vector<4x256xf32>
    %c0_44 = arith.constant 0 : index
    %c0_45 = arith.constant 0 : index
    %101 = vector.load %arg5[%c0_44, %c0_45] : memref<8x4xf32, #tpu.memory_space<vmem>>, vector<8x4xf32>
    %c0_46 = arith.constant 0 : index
    %c0_47 = arith.constant 0 : index
    %102 = vector.load %arg6[%c0_46, %c0_47] : memref<8x3xf32, #tpu.memory_space<vmem>>, vector<8x3xf32>
    %103 = vector.extract_strided_slice %102 {offsets = [0, 0], sizes = [8, 1], strides = [1, 1]} : vector<8x3xf32> to vector<8x1xf32>
    %104 = vector.extract_strided_slice %102 {offsets = [0, 1], sizes = [8, 1], strides = [1, 1]} : vector<8x3xf32> to vector<8x1xf32>
    %105 = vector.extract_strided_slice %102 {offsets = [0, 2], sizes = [8, 1], strides = [1, 1]} : vector<8x3xf32> to vector<8x1xf32>
    %106 = vector.extract_strided_slice %101 {offsets = [0, 0], sizes = [8, 1], strides = [1, 1]} : vector<8x4xf32> to vector<8x1xf32>
    %107 = vector.extract_strided_slice %100 {offsets = [0, 0], sizes = [1, 256], strides = [1, 1]} : vector<4x256xf32> to vector<1x256xf32>
    %108 = vector.broadcast %106 : vector<8x1xf32> to vector<8x256xf32>
    %109 = vector.broadcast %107 : vector<1x256xf32> to vector<8x256xf32>
    %110 = arith.mulf %108, %109 : vector<8x256xf32>
    %111 = vector.extract_strided_slice %101 {offsets = [0, 1], sizes = [8, 1], strides = [1, 1]} : vector<8x4xf32> to vector<8x1xf32>
    %112 = vector.extract_strided_slice %100 {offsets = [1, 0], sizes = [1, 256], strides = [1, 1]} : vector<4x256xf32> to vector<1x256xf32>
    %113 = vector.broadcast %111 : vector<8x1xf32> to vector<8x256xf32>
    %114 = vector.broadcast %112 : vector<1x256xf32> to vector<8x256xf32>
    %115 = arith.mulf %113, %114 : vector<8x256xf32>
    %116 = vector.extract_strided_slice %101 {offsets = [0, 2], sizes = [8, 1], strides = [1, 1]} : vector<8x4xf32> to vector<8x1xf32>
    %117 = vector.extract_strided_slice %100 {offsets = [2, 0], sizes = [1, 256], strides = [1, 1]} : vector<4x256xf32> to vector<1x256xf32>
    %118 = vector.broadcast %116 : vector<8x1xf32> to vector<8x256xf32>
    %119 = vector.broadcast %117 : vector<1x256xf32> to vector<8x256xf32>
    %120 = arith.mulf %118, %119 : vector<8x256xf32>
    %121 = vector.extract_strided_slice %101 {offsets = [0, 3], sizes = [8, 1], strides = [1, 1]} : vector<8x4xf32> to vector<8x1xf32>
    %122 = vector.extract_strided_slice %100 {offsets = [3, 0], sizes = [1, 256], strides = [1, 1]} : vector<4x256xf32> to vector<1x256xf32>
    %123 = vector.broadcast %121 : vector<8x1xf32> to vector<8x256xf32>
    %124 = vector.broadcast %122 : vector<1x256xf32> to vector<8x256xf32>
    %125 = arith.mulf %123, %124 : vector<8x256xf32>
    %126 = arith.addf %110, %115 : vector<8x256xf32>
    %127 = arith.addf %120, %125 : vector<8x256xf32>
    %128 = arith.addf %126, %127 : vector<8x256xf32>
    %129 = vector.broadcast %103 : vector<8x1xf32> to vector<8x256xf32>
    %130 = arith.addf %128, %129 : vector<8x256xf32>
    %cst_48 = arith.constant dense<0.000000e+00> : vector<8xf32>
    %131 = vector.multi_reduction <add>, %130, %cst_48 [1] : vector<8x256xf32> to vector<8xf32>
    %132 = vector.shape_cast %131 : vector<8xf32> to vector<8x1xf32>
    %cst_49 = arith.constant -1.400000e+01 : f32
    %133 = vector.broadcast %cst_49 : f32 to vector<8x1xf32>
    %134 = arith.mulf %133, %103 : vector<8x1xf32>
    %135 = arith.addf %132, %134 : vector<8x1xf32>
    %cst_50 = arith.constant 0.00413223123 : f32
    %136 = vector.broadcast %cst_50 : f32 to vector<8x1xf32>
    %137 = arith.mulf %135, %136 : vector<8x1xf32>
    %138 = vector.broadcast %137 : vector<8x1xf32> to vector<8x256xf32>
    %139 = arith.subf %130, %138 : vector<8x256xf32>
    %140 = arith.subf %103, %137 : vector<8x1xf32>
    %141 = arith.mulf %139, %139 : vector<8x256xf32>
    %cst_51 = arith.constant dense<0.000000e+00> : vector<8xf32>
    %142 = vector.multi_reduction <add>, %141, %cst_51 [1] : vector<8x256xf32> to vector<8xf32>
    %143 = vector.shape_cast %142 : vector<8xf32> to vector<8x1xf32>
    %144 = arith.mulf %140, %140 : vector<8x1xf32>
    %cst_52 = arith.constant -1.400000e+01 : f32
    %145 = vector.broadcast %cst_52 : f32 to vector<8x1xf32>
    %146 = arith.mulf %145, %144 : vector<8x1xf32>
    %147 = arith.addf %143, %146 : vector<8x1xf32>
    %cst_53 = arith.constant 0.00413223123 : f32
    %148 = vector.broadcast %cst_53 : f32 to vector<8x1xf32>
    %149 = arith.mulf %147, %148 : vector<8x1xf32>
    %cst_54 = arith.constant 1.000000e-03 : f32
    %150 = vector.broadcast %cst_54 : f32 to vector<8x1xf32>
    %151 = arith.addf %149, %150 : vector<8x1xf32>
    %152 = math.rsqrt %151 : vector<8x1xf32>
    %cst_55 = arith.constant 5.000000e-01 : f32
    %153 = vector.broadcast %cst_55 : f32 to vector<8x1xf32>
    %154 = arith.mulf %153, %151 : vector<8x1xf32>
    %155 = arith.mulf %154, %152 : vector<8x1xf32>
    %156 = arith.mulf %155, %152 : vector<8x1xf32>
    %cst_56 = arith.constant 1.500000e+00 : f32
    %157 = vector.broadcast %cst_56 : f32 to vector<8x1xf32>
    %158 = arith.subf %157, %156 : vector<8x1xf32>
    %159 = arith.mulf %152, %158 : vector<8x1xf32>
    %160 = arith.mulf %104, %159 : vector<8x1xf32>
    %161 = vector.broadcast %160 : vector<8x1xf32> to vector<8x256xf32>
    %162 = arith.mulf %139, %161 : vector<8x256xf32>
    %163 = vector.broadcast %105 : vector<8x1xf32> to vector<8x256xf32>
    %164 = arith.addf %162, %163 : vector<8x256xf32>
    %cst_57 = arith.constant 0.000000e+00 : f32
    %165 = vector.broadcast %cst_57 : f32 to vector<8x256xf32>
    %166 = arith.maximumf %164, %165 : vector<8x256xf32>
    %167 = arith.mulf %140, %160 : vector<8x1xf32>
    %168 = arith.addf %167, %105 : vector<8x1xf32>
    %cst_58 = arith.constant 0.000000e+00 : f32
    %169 = vector.broadcast %cst_58 : f32 to vector<8x1xf32>
    %170 = arith.maximumf %168, %169 : vector<8x1xf32>
    %171 = arith.truncf %166 : vector<8x256xf32> to vector<8x256xbf16>
    %172 = arith.extf %171 : vector<8x256xbf16> to vector<8x256xf32>
    %173 = arith.subf %166, %172 : vector<8x256xf32>
    %c0_59 = arith.constant 0 : index
    %c0_60 = arith.constant 0 : index
    %c0_61 = arith.constant 0 : index
    %174 = vector.load %arg7[%c0_59, %c0_60, %c0_61] : memref<4x256x128xf32, #tpu.memory_space<vmem>>, vector<1x256x128xf32>
    %175 = vector.shape_cast %174 : vector<1x256x128xf32> to vector<256x128xf32>
    %cst_62 = arith.constant dense<0.000000e+00> : vector<8x128xf32>
    %176 = tpu.matmul %172, %175, %cst_62 {dimension_numbers = #tpu.dot_dimension_numbers<[1], [0], [0], [1], [0, 0, 1, 1], [], []>} : vector<8x256xf32>, vector<256x128xf32>, vector<8x128xf32> -> vector<8x128xf32>
    %cst_63 = arith.constant dense<0.000000e+00> : vector<8x128xf32>
    %177 = tpu.matmul %173, %175, %cst_63 {dimension_numbers = #tpu.dot_dimension_numbers<[1], [0], [0], [1], [0, 0, 1, 1], [], []>} : vector<8x256xf32>, vector<256x128xf32>, vector<8x128xf32> -> vector<8x128xf32>
    %178 = arith.addf %176, %177 : vector<8x128xf32>
    %c0_64 = arith.constant 0 : index
    %c0_65 = arith.constant 0 : index
    %c0_66 = arith.constant 0 : index
    %179 = vector.load %arg8[%c0_64, %c0_65, %c0_66] : memref<4x1x128xf32, #tpu.memory_space<vmem>>, vector<1x1x128xf32>
    %180 = vector.shape_cast %179 : vector<1x1x128xf32> to vector<1x128xf32>
    %181 = vector.broadcast %170 : vector<8x1xf32> to vector<8x128xf32>
    %182 = vector.broadcast %180 : vector<1x128xf32> to vector<8x128xf32>
    %183 = arith.mulf %181, %182 : vector<8x128xf32>
    %184 = arith.addf %178, %183 : vector<8x128xf32>
    %c1_67 = arith.constant 1 : index
    %c0_68 = arith.constant 0 : index
    %c0_69 = arith.constant 0 : index
    %185 = vector.load %arg7[%c1_67, %c0_68, %c0_69] : memref<4x256x128xf32, #tpu.memory_space<vmem>>, vector<1x256x128xf32>
    %186 = vector.shape_cast %185 : vector<1x256x128xf32> to vector<256x128xf32>
    %cst_70 = arith.constant dense<0.000000e+00> : vector<8x128xf32>
    %187 = tpu.matmul %172, %186, %cst_70 {dimension_numbers = #tpu.dot_dimension_numbers<[1], [0], [0], [1], [0, 0, 1, 1], [], []>} : vector<8x256xf32>, vector<256x128xf32>, vector<8x128xf32> -> vector<8x128xf32>
    %cst_71 = arith.constant dense<0.000000e+00> : vector<8x128xf32>
    %188 = tpu.matmul %173, %186, %cst_71 {dimension_numbers = #tpu.dot_dimension_numbers<[1], [0], [0], [1], [0, 0, 1, 1], [], []>} : vector<8x256xf32>, vector<256x128xf32>, vector<8x128xf32> -> vector<8x128xf32>
    %189 = arith.addf %187, %188 : vector<8x128xf32>
    %c1_72 = arith.constant 1 : index
    %c0_73 = arith.constant 0 : index
    %c0_74 = arith.constant 0 : index
    %190 = vector.load %arg8[%c1_72, %c0_73, %c0_74] : memref<4x1x128xf32, #tpu.memory_space<vmem>>, vector<1x1x128xf32>
    %191 = vector.shape_cast %190 : vector<1x1x128xf32> to vector<1x128xf32>
    %192 = vector.broadcast %170 : vector<8x1xf32> to vector<8x128xf32>
    %193 = vector.broadcast %191 : vector<1x128xf32> to vector<8x128xf32>
    %194 = arith.mulf %192, %193 : vector<8x128xf32>
    %195 = arith.addf %189, %194 : vector<8x128xf32>
    %196 = arith.maximumf %184, %195 : vector<8x128xf32>
    %c2_75 = arith.constant 2 : index
    %c0_76 = arith.constant 0 : index
    %c0_77 = arith.constant 0 : index
    %197 = vector.load %arg7[%c2_75, %c0_76, %c0_77] : memref<4x256x128xf32, #tpu.memory_space<vmem>>, vector<1x256x128xf32>
    %198 = vector.shape_cast %197 : vector<1x256x128xf32> to vector<256x128xf32>
    %cst_78 = arith.constant dense<0.000000e+00> : vector<8x128xf32>
    %199 = tpu.matmul %172, %198, %cst_78 {dimension_numbers = #tpu.dot_dimension_numbers<[1], [0], [0], [1], [0, 0, 1, 1], [], []>} : vector<8x256xf32>, vector<256x128xf32>, vector<8x128xf32> -> vector<8x128xf32>
    %cst_79 = arith.constant dense<0.000000e+00> : vector<8x128xf32>
    %200 = tpu.matmul %173, %198, %cst_79 {dimension_numbers = #tpu.dot_dimension_numbers<[1], [0], [0], [1], [0, 0, 1, 1], [], []>} : vector<8x256xf32>, vector<256x128xf32>, vector<8x128xf32> -> vector<8x128xf32>
    %201 = arith.addf %199, %200 : vector<8x128xf32>
    %c2_80 = arith.constant 2 : index
    %c0_81 = arith.constant 0 : index
    %c0_82 = arith.constant 0 : index
    %202 = vector.load %arg8[%c2_80, %c0_81, %c0_82] : memref<4x1x128xf32, #tpu.memory_space<vmem>>, vector<1x1x128xf32>
    %203 = vector.shape_cast %202 : vector<1x1x128xf32> to vector<1x128xf32>
    %204 = vector.broadcast %170 : vector<8x1xf32> to vector<8x128xf32>
    %205 = vector.broadcast %203 : vector<1x128xf32> to vector<8x128xf32>
    %206 = arith.mulf %204, %205 : vector<8x128xf32>
    %207 = arith.addf %201, %206 : vector<8x128xf32>
    %208 = arith.maximumf %196, %207 : vector<8x128xf32>
    %c3_83 = arith.constant 3 : index
    %c0_84 = arith.constant 0 : index
    %c0_85 = arith.constant 0 : index
    %209 = vector.load %arg7[%c3_83, %c0_84, %c0_85] : memref<4x256x128xf32, #tpu.memory_space<vmem>>, vector<1x256x128xf32>
    %210 = vector.shape_cast %209 : vector<1x256x128xf32> to vector<256x128xf32>
    %cst_86 = arith.constant dense<0.000000e+00> : vector<8x128xf32>
    %211 = tpu.matmul %172, %210, %cst_86 {dimension_numbers = #tpu.dot_dimension_numbers<[1], [0], [0], [1], [0, 0, 1, 1], [], []>} : vector<8x256xf32>, vector<256x128xf32>, vector<8x128xf32> -> vector<8x128xf32>
    %cst_87 = arith.constant dense<0.000000e+00> : vector<8x128xf32>
    %212 = tpu.matmul %173, %210, %cst_87 {dimension_numbers = #tpu.dot_dimension_numbers<[1], [0], [0], [1], [0, 0, 1, 1], [], []>} : vector<8x256xf32>, vector<256x128xf32>, vector<8x128xf32> -> vector<8x128xf32>
    %213 = arith.addf %211, %212 : vector<8x128xf32>
    %c3_88 = arith.constant 3 : index
    %c0_89 = arith.constant 0 : index
    %c0_90 = arith.constant 0 : index
    %214 = vector.load %arg8[%c3_88, %c0_89, %c0_90] : memref<4x1x128xf32, #tpu.memory_space<vmem>>, vector<1x1x128xf32>
    %215 = vector.shape_cast %214 : vector<1x1x128xf32> to vector<1x128xf32>
    %216 = vector.broadcast %170 : vector<8x1xf32> to vector<8x128xf32>
    %217 = vector.broadcast %215 : vector<1x128xf32> to vector<8x128xf32>
    %218 = arith.mulf %216, %217 : vector<8x128xf32>
    %219 = arith.addf %213, %218 : vector<8x128xf32>
    %220 = arith.maximumf %208, %219 : vector<8x128xf32>
    %c0_91 = arith.constant 0 : index
    %c0_92 = arith.constant 0 : index
    %221 = vector.load %arg9[%c0_91, %c0_92] : memref<16x8xf32, #tpu.memory_space<vmem>>, vector<16x8xf32>
    %c0_93 = arith.constant 0 : index
    %c0_94 = arith.constant 0 : index
    %222 = vector.load %arg10[%c0_93, %c0_94] : memref<16x3xf32, #tpu.memory_space<vmem>>, vector<16x3xf32>
    %223 = vector.extract_strided_slice %222 {offsets = [0, 0], sizes = [16, 1], strides = [1, 1]} : vector<16x3xf32> to vector<16x1xf32>
    %224 = vector.extract_strided_slice %222 {offsets = [0, 1], sizes = [16, 1], strides = [1, 1]} : vector<16x3xf32> to vector<16x1xf32>
    %225 = vector.extract_strided_slice %222 {offsets = [0, 2], sizes = [16, 1], strides = [1, 1]} : vector<16x3xf32> to vector<16x1xf32>
    %226 = vector.extract_strided_slice %221 {offsets = [0, 0], sizes = [16, 1], strides = [1, 1]} : vector<16x8xf32> to vector<16x1xf32>
    %227 = vector.extract_strided_slice %220 {offsets = [0, 0], sizes = [1, 128], strides = [1, 1]} : vector<8x128xf32> to vector<1x128xf32>
    %228 = vector.broadcast %226 : vector<16x1xf32> to vector<16x128xf32>
    %229 = vector.broadcast %227 : vector<1x128xf32> to vector<16x128xf32>
    %230 = arith.mulf %228, %229 : vector<16x128xf32>
    %231 = vector.extract_strided_slice %221 {offsets = [0, 1], sizes = [16, 1], strides = [1, 1]} : vector<16x8xf32> to vector<16x1xf32>
    %232 = vector.extract_strided_slice %220 {offsets = [1, 0], sizes = [1, 128], strides = [1, 1]} : vector<8x128xf32> to vector<1x128xf32>
    %233 = vector.broadcast %231 : vector<16x1xf32> to vector<16x128xf32>
    %234 = vector.broadcast %232 : vector<1x128xf32> to vector<16x128xf32>
    %235 = arith.mulf %233, %234 : vector<16x128xf32>
    %236 = vector.extract_strided_slice %221 {offsets = [0, 2], sizes = [16, 1], strides = [1, 1]} : vector<16x8xf32> to vector<16x1xf32>
    %237 = vector.extract_strided_slice %220 {offsets = [2, 0], sizes = [1, 128], strides = [1, 1]} : vector<8x128xf32> to vector<1x128xf32>
    %238 = vector.broadcast %236 : vector<16x1xf32> to vector<16x128xf32>
    %239 = vector.broadcast %237 : vector<1x128xf32> to vector<16x128xf32>
    %240 = arith.mulf %238, %239 : vector<16x128xf32>
    %241 = vector.extract_strided_slice %221 {offsets = [0, 3], sizes = [16, 1], strides = [1, 1]} : vector<16x8xf32> to vector<16x1xf32>
    %242 = vector.extract_strided_slice %220 {offsets = [3, 0], sizes = [1, 128], strides = [1, 1]} : vector<8x128xf32> to vector<1x128xf32>
    %243 = vector.broadcast %241 : vector<16x1xf32> to vector<16x128xf32>
    %244 = vector.broadcast %242 : vector<1x128xf32> to vector<16x128xf32>
    %245 = arith.mulf %243, %244 : vector<16x128xf32>
    %246 = vector.extract_strided_slice %221 {offsets = [0, 4], sizes = [16, 1], strides = [1, 1]} : vector<16x8xf32> to vector<16x1xf32>
    %247 = vector.extract_strided_slice %220 {offsets = [4, 0], sizes = [1, 128], strides = [1, 1]} : vector<8x128xf32> to vector<1x128xf32>
    %248 = vector.broadcast %246 : vector<16x1xf32> to vector<16x128xf32>
    %249 = vector.broadcast %247 : vector<1x128xf32> to vector<16x128xf32>
    %250 = arith.mulf %248, %249 : vector<16x128xf32>
    %251 = vector.extract_strided_slice %221 {offsets = [0, 5], sizes = [16, 1], strides = [1, 1]} : vector<16x8xf32> to vector<16x1xf32>
    %252 = vector.extract_strided_slice %220 {offsets = [5, 0], sizes = [1, 128], strides = [1, 1]} : vector<8x128xf32> to vector<1x128xf32>
    %253 = vector.broadcast %251 : vector<16x1xf32> to vector<16x128xf32>
    %254 = vector.broadcast %252 : vector<1x128xf32> to vector<16x128xf32>
    %255 = arith.mulf %253, %254 : vector<16x128xf32>
    %256 = vector.extract_strided_slice %221 {offsets = [0, 6], sizes = [16, 1], strides = [1, 1]} : vector<16x8xf32> to vector<16x1xf32>
    %257 = vector.extract_strided_slice %220 {offsets = [6, 0], sizes = [1, 128], strides = [1, 1]} : vector<8x128xf32> to vector<1x128xf32>
    %258 = vector.broadcast %256 : vector<16x1xf32> to vector<16x128xf32>
    %259 = vector.broadcast %257 : vector<1x128xf32> to vector<16x128xf32>
    %260 = arith.mulf %258, %259 : vector<16x128xf32>
    %261 = vector.extract_strided_slice %221 {offsets = [0, 7], sizes = [16, 1], strides = [1, 1]} : vector<16x8xf32> to vector<16x1xf32>
    %262 = vector.extract_strided_slice %220 {offsets = [7, 0], sizes = [1, 128], strides = [1, 1]} : vector<8x128xf32> to vector<1x128xf32>
    %263 = vector.broadcast %261 : vector<16x1xf32> to vector<16x128xf32>
    %264 = vector.broadcast %262 : vector<1x128xf32> to vector<16x128xf32>
    %265 = arith.mulf %263, %264 : vector<16x128xf32>
    %266 = arith.addf %230, %235 : vector<16x128xf32>
    %267 = arith.addf %240, %245 : vector<16x128xf32>
    %268 = arith.addf %250, %255 : vector<16x128xf32>
    %269 = arith.addf %260, %265 : vector<16x128xf32>
    %270 = arith.addf %266, %267 : vector<16x128xf32>
    %271 = arith.addf %268, %269 : vector<16x128xf32>
    %272 = arith.addf %270, %271 : vector<16x128xf32>
    %273 = vector.broadcast %223 : vector<16x1xf32> to vector<16x128xf32>
    %274 = arith.addf %272, %273 : vector<16x128xf32>
    %cst_95 = arith.constant dense<0.000000e+00> : vector<16xf32>
    %275 = vector.multi_reduction <add>, %274, %cst_95 [1] : vector<16x128xf32> to vector<16xf32>
    %276 = vector.shape_cast %275 : vector<16xf32> to vector<16x1xf32>
    %cst_96 = arith.constant -3.000000e+01 : f32
    %277 = vector.broadcast %cst_96 : f32 to vector<16x1xf32>
    %278 = arith.mulf %277, %223 : vector<16x1xf32>
    %279 = arith.addf %276, %278 : vector<16x1xf32>
    %cst_97 = arith.constant 0.0102040814 : f32
    %280 = vector.broadcast %cst_97 : f32 to vector<16x1xf32>
    %281 = arith.mulf %279, %280 : vector<16x1xf32>
    %282 = vector.broadcast %281 : vector<16x1xf32> to vector<16x128xf32>
    %283 = arith.subf %274, %282 : vector<16x128xf32>
    %284 = arith.subf %223, %281 : vector<16x1xf32>
    %285 = arith.mulf %283, %283 : vector<16x128xf32>
    %cst_98 = arith.constant dense<0.000000e+00> : vector<16xf32>
    %286 = vector.multi_reduction <add>, %285, %cst_98 [1] : vector<16x128xf32> to vector<16xf32>
    %287 = vector.shape_cast %286 : vector<16xf32> to vector<16x1xf32>
    %288 = arith.mulf %284, %284 : vector<16x1xf32>
    %cst_99 = arith.constant -3.000000e+01 : f32
    %289 = vector.broadcast %cst_99 : f32 to vector<16x1xf32>
    %290 = arith.mulf %289, %288 : vector<16x1xf32>
    %291 = arith.addf %287, %290 : vector<16x1xf32>
    %cst_100 = arith.constant 0.0102040814 : f32
    %292 = vector.broadcast %cst_100 : f32 to vector<16x1xf32>
    %293 = arith.mulf %291, %292 : vector<16x1xf32>
    %cst_101 = arith.constant 1.000000e-03 : f32
    %294 = vector.broadcast %cst_101 : f32 to vector<16x1xf32>
    %295 = arith.addf %293, %294 : vector<16x1xf32>
    %296 = math.rsqrt %295 : vector<16x1xf32>
    %cst_102 = arith.constant 5.000000e-01 : f32
    %297 = vector.broadcast %cst_102 : f32 to vector<16x1xf32>
    %298 = arith.mulf %297, %295 : vector<16x1xf32>
    %299 = arith.mulf %298, %296 : vector<16x1xf32>
    %300 = arith.mulf %299, %296 : vector<16x1xf32>
    %cst_103 = arith.constant 1.500000e+00 : f32
    %301 = vector.broadcast %cst_103 : f32 to vector<16x1xf32>
    %302 = arith.subf %301, %300 : vector<16x1xf32>
    %303 = arith.mulf %296, %302 : vector<16x1xf32>
    %304 = arith.mulf %224, %303 : vector<16x1xf32>
    %305 = vector.broadcast %304 : vector<16x1xf32> to vector<16x128xf32>
    %306 = arith.mulf %283, %305 : vector<16x128xf32>
    %307 = vector.broadcast %225 : vector<16x1xf32> to vector<16x128xf32>
    %308 = arith.addf %306, %307 : vector<16x128xf32>
    %cst_104 = arith.constant 0.000000e+00 : f32
    %309 = vector.broadcast %cst_104 : f32 to vector<16x128xf32>
    %310 = arith.maximumf %308, %309 : vector<16x128xf32>
    %311 = arith.mulf %284, %304 : vector<16x1xf32>
    %312 = arith.addf %311, %225 : vector<16x1xf32>
    %cst_105 = arith.constant 0.000000e+00 : f32
    %313 = vector.broadcast %cst_105 : f32 to vector<16x1xf32>
    %314 = arith.maximumf %312, %313 : vector<16x1xf32>
    %315 = arith.truncf %310 : vector<16x128xf32> to vector<16x128xbf16>
    %316 = arith.extf %315 : vector<16x128xbf16> to vector<16x128xf32>
    %317 = arith.subf %310, %316 : vector<16x128xf32>
    %c0_106 = arith.constant 0 : index
    %c0_107 = arith.constant 0 : index
    %c0_108 = arith.constant 0 : index
    %318 = vector.load %arg11[%c0_106, %c0_107, %c0_108] : memref<4x128x128xf32, #tpu.memory_space<vmem>>, vector<1x128x128xf32>
    %319 = vector.shape_cast %318 : vector<1x128x128xf32> to vector<128x128xf32>
    %cst_109 = arith.constant dense<0.000000e+00> : vector<16x128xf32>
    %320 = tpu.matmul %316, %319, %cst_109 {dimension_numbers = #tpu.dot_dimension_numbers<[1], [0], [0], [1], [0, 0, 1, 1], [], []>} : vector<16x128xf32>, vector<128x128xf32>, vector<16x128xf32> -> vector<16x128xf32>
    %cst_110 = arith.constant dense<0.000000e+00> : vector<16x128xf32>
    %321 = tpu.matmul %317, %319, %cst_110 {dimension_numbers = #tpu.dot_dimension_numbers<[1], [0], [0], [1], [0, 0, 1, 1], [], []>} : vector<16x128xf32>, vector<128x128xf32>, vector<16x128xf32> -> vector<16x128xf32>
    %322 = arith.addf %320, %321 : vector<16x128xf32>
    %c0_111 = arith.constant 0 : index
    %c0_112 = arith.constant 0 : index
    %c0_113 = arith.constant 0 : index
    %323 = vector.load %arg12[%c0_111, %c0_112, %c0_113] : memref<4x1x128xf32, #tpu.memory_space<vmem>>, vector<1x1x128xf32>
    %324 = vector.shape_cast %323 : vector<1x1x128xf32> to vector<1x128xf32>
    %325 = vector.broadcast %314 : vector<16x1xf32> to vector<16x128xf32>
    %326 = vector.broadcast %324 : vector<1x128xf32> to vector<16x128xf32>
    %327 = arith.mulf %325, %326 : vector<16x128xf32>
    %328 = arith.addf %322, %327 : vector<16x128xf32>
    %c1_114 = arith.constant 1 : index
    %c0_115 = arith.constant 0 : index
    %c0_116 = arith.constant 0 : index
    %329 = vector.load %arg11[%c1_114, %c0_115, %c0_116] : memref<4x128x128xf32, #tpu.memory_space<vmem>>, vector<1x128x128xf32>
    %330 = vector.shape_cast %329 : vector<1x128x128xf32> to vector<128x128xf32>
    %cst_117 = arith.constant dense<0.000000e+00> : vector<16x128xf32>
    %331 = tpu.matmul %316, %330, %cst_117 {dimension_numbers = #tpu.dot_dimension_numbers<[1], [0], [0], [1], [0, 0, 1, 1], [], []>} : vector<16x128xf32>, vector<128x128xf32>, vector<16x128xf32> -> vector<16x128xf32>
    %cst_118 = arith.constant dense<0.000000e+00> : vector<16x128xf32>
    %332 = tpu.matmul %317, %330, %cst_118 {dimension_numbers = #tpu.dot_dimension_numbers<[1], [0], [0], [1], [0, 0, 1, 1], [], []>} : vector<16x128xf32>, vector<128x128xf32>, vector<16x128xf32> -> vector<16x128xf32>
    %333 = arith.addf %331, %332 : vector<16x128xf32>
    %c1_119 = arith.constant 1 : index
    %c0_120 = arith.constant 0 : index
    %c0_121 = arith.constant 0 : index
    %334 = vector.load %arg12[%c1_119, %c0_120, %c0_121] : memref<4x1x128xf32, #tpu.memory_space<vmem>>, vector<1x1x128xf32>
    %335 = vector.shape_cast %334 : vector<1x1x128xf32> to vector<1x128xf32>
    %336 = vector.broadcast %314 : vector<16x1xf32> to vector<16x128xf32>
    %337 = vector.broadcast %335 : vector<1x128xf32> to vector<16x128xf32>
    %338 = arith.mulf %336, %337 : vector<16x128xf32>
    %339 = arith.addf %333, %338 : vector<16x128xf32>
    %340 = arith.maximumf %328, %339 : vector<16x128xf32>
    %c2_122 = arith.constant 2 : index
    %c0_123 = arith.constant 0 : index
    %c0_124 = arith.constant 0 : index
    %341 = vector.load %arg11[%c2_122, %c0_123, %c0_124] : memref<4x128x128xf32, #tpu.memory_space<vmem>>, vector<1x128x128xf32>
    %342 = vector.shape_cast %341 : vector<1x128x128xf32> to vector<128x128xf32>
    %cst_125 = arith.constant dense<0.000000e+00> : vector<16x128xf32>
    %343 = tpu.matmul %316, %342, %cst_125 {dimension_numbers = #tpu.dot_dimension_numbers<[1], [0], [0], [1], [0, 0, 1, 1], [], []>} : vector<16x128xf32>, vector<128x128xf32>, vector<16x128xf32> -> vector<16x128xf32>
    %cst_126 = arith.constant dense<0.000000e+00> : vector<16x128xf32>
    %344 = tpu.matmul %317, %342, %cst_126 {dimension_numbers = #tpu.dot_dimension_numbers<[1], [0], [0], [1], [0, 0, 1, 1], [], []>} : vector<16x128xf32>, vector<128x128xf32>, vector<16x128xf32> -> vector<16x128xf32>
    %345 = arith.addf %343, %344 : vector<16x128xf32>
    %c2_127 = arith.constant 2 : index
    %c0_128 = arith.constant 0 : index
    %c0_129 = arith.constant 0 : index
    %346 = vector.load %arg12[%c2_127, %c0_128, %c0_129] : memref<4x1x128xf32, #tpu.memory_space<vmem>>, vector<1x1x128xf32>
    %347 = vector.shape_cast %346 : vector<1x1x128xf32> to vector<1x128xf32>
    %348 = vector.broadcast %314 : vector<16x1xf32> to vector<16x128xf32>
    %349 = vector.broadcast %347 : vector<1x128xf32> to vector<16x128xf32>
    %350 = arith.mulf %348, %349 : vector<16x128xf32>
    %351 = arith.addf %345, %350 : vector<16x128xf32>
    %352 = arith.maximumf %340, %351 : vector<16x128xf32>
    %c3_130 = arith.constant 3 : index
    %c0_131 = arith.constant 0 : index
    %c0_132 = arith.constant 0 : index
    %353 = vector.load %arg11[%c3_130, %c0_131, %c0_132] : memref<4x128x128xf32, #tpu.memory_space<vmem>>, vector<1x128x128xf32>
    %354 = vector.shape_cast %353 : vector<1x128x128xf32> to vector<128x128xf32>
    %cst_133 = arith.constant dense<0.000000e+00> : vector<16x128xf32>
    %355 = tpu.matmul %316, %354, %cst_133 {dimension_numbers = #tpu.dot_dimension_numbers<[1], [0], [0], [1], [0, 0, 1, 1], [], []>} : vector<16x128xf32>, vector<128x128xf32>, vector<16x128xf32> -> vector<16x128xf32>
    %cst_134 = arith.constant dense<0.000000e+00> : vector<16x128xf32>
    %356 = tpu.matmul %317, %354, %cst_134 {dimension_numbers = #tpu.dot_dimension_numbers<[1], [0], [0], [1], [0, 0, 1, 1], [], []>} : vector<16x128xf32>, vector<128x128xf32>, vector<16x128xf32> -> vector<16x128xf32>
    %357 = arith.addf %355, %356 : vector<16x128xf32>
    %c3_135 = arith.constant 3 : index
    %c0_136 = arith.constant 0 : index
    %c0_137 = arith.constant 0 : index
    %358 = vector.load %arg12[%c3_135, %c0_136, %c0_137] : memref<4x1x128xf32, #tpu.memory_space<vmem>>, vector<1x1x128xf32>
    %359 = vector.shape_cast %358 : vector<1x1x128xf32> to vector<1x128xf32>
    %360 = vector.broadcast %314 : vector<16x1xf32> to vector<16x128xf32>
    %361 = vector.broadcast %359 : vector<1x128xf32> to vector<16x128xf32>
    %362 = arith.mulf %360, %361 : vector<16x128xf32>
    %363 = arith.addf %357, %362 : vector<16x128xf32>
    %364 = arith.maximumf %352, %363 : vector<16x128xf32>
    %c0_138 = arith.constant 0 : index
    %c0_139 = arith.constant 0 : index
    %365 = vector.load %arg13[%c0_138, %c0_139] : memref<32x16xf32, #tpu.memory_space<vmem>>, vector<32x16xf32>
    %c0_140 = arith.constant 0 : index
    %c0_141 = arith.constant 0 : index
    %366 = vector.load %arg14[%c0_140, %c0_141] : memref<32x3xf32, #tpu.memory_space<vmem>>, vector<32x3xf32>
    %367 = vector.extract_strided_slice %366 {offsets = [0, 0], sizes = [32, 1], strides = [1, 1]} : vector<32x3xf32> to vector<32x1xf32>
    %368 = vector.extract_strided_slice %366 {offsets = [0, 1], sizes = [32, 1], strides = [1, 1]} : vector<32x3xf32> to vector<32x1xf32>
    %369 = vector.extract_strided_slice %366 {offsets = [0, 2], sizes = [32, 1], strides = [1, 1]} : vector<32x3xf32> to vector<32x1xf32>
    %370 = vector.extract_strided_slice %365 {offsets = [0, 0], sizes = [32, 1], strides = [1, 1]} : vector<32x16xf32> to vector<32x1xf32>
    %371 = vector.extract_strided_slice %364 {offsets = [0, 0], sizes = [1, 128], strides = [1, 1]} : vector<16x128xf32> to vector<1x128xf32>
    %372 = vector.broadcast %370 : vector<32x1xf32> to vector<32x128xf32>
    %373 = vector.broadcast %371 : vector<1x128xf32> to vector<32x128xf32>
    %374 = arith.mulf %372, %373 : vector<32x128xf32>
    %375 = vector.extract_strided_slice %365 {offsets = [0, 1], sizes = [32, 1], strides = [1, 1]} : vector<32x16xf32> to vector<32x1xf32>
    %376 = vector.extract_strided_slice %364 {offsets = [1, 0], sizes = [1, 128], strides = [1, 1]} : vector<16x128xf32> to vector<1x128xf32>
    %377 = vector.broadcast %375 : vector<32x1xf32> to vector<32x128xf32>
    %378 = vector.broadcast %376 : vector<1x128xf32> to vector<32x128xf32>
    %379 = arith.mulf %377, %378 : vector<32x128xf32>
    %380 = vector.extract_strided_slice %365 {offsets = [0, 2], sizes = [32, 1], strides = [1, 1]} : vector<32x16xf32> to vector<32x1xf32>
    %381 = vector.extract_strided_slice %364 {offsets = [2, 0], sizes = [1, 128], strides = [1, 1]} : vector<16x128xf32> to vector<1x128xf32>
    %382 = vector.broadcast %380 : vector<32x1xf32> to vector<32x128xf32>
    %383 = vector.broadcast %381 : vector<1x128xf32> to vector<32x128xf32>
    %384 = arith.mulf %382, %383 : vector<32x128xf32>
    %385 = vector.extract_strided_slice %365 {offsets = [0, 3], sizes = [32, 1], strides = [1, 1]} : vector<32x16xf32> to vector<32x1xf32>
    %386 = vector.extract_strided_slice %364 {offsets = [3, 0], sizes = [1, 128], strides = [1, 1]} : vector<16x128xf32> to vector<1x128xf32>
    %387 = vector.broadcast %385 : vector<32x1xf32> to vector<32x128xf32>
    %388 = vector.broadcast %386 : vector<1x128xf32> to vector<32x128xf32>
    %389 = arith.mulf %387, %388 : vector<32x128xf32>
    %390 = vector.extract_strided_slice %365 {offsets = [0, 4], sizes = [32, 1], strides = [1, 1]} : vector<32x16xf32> to vector<32x1xf32>
    %391 = vector.extract_strided_slice %364 {offsets = [4, 0], sizes = [1, 128], strides = [1, 1]} : vector<16x128xf32> to vector<1x128xf32>
    %392 = vector.broadcast %390 : vector<32x1xf32> to vector<32x128xf32>
    %393 = vector.broadcast %391 : vector<1x128xf32> to vector<32x128xf32>
    %394 = arith.mulf %392, %393 : vector<32x128xf32>
    %395 = vector.extract_strided_slice %365 {offsets = [0, 5], sizes = [32, 1], strides = [1, 1]} : vector<32x16xf32> to vector<32x1xf32>
    %396 = vector.extract_strided_slice %364 {offsets = [5, 0], sizes = [1, 128], strides = [1, 1]} : vector<16x128xf32> to vector<1x128xf32>
    %397 = vector.broadcast %395 : vector<32x1xf32> to vector<32x128xf32>
    %398 = vector.broadcast %396 : vector<1x128xf32> to vector<32x128xf32>
    %399 = arith.mulf %397, %398 : vector<32x128xf32>
    %400 = vector.extract_strided_slice %365 {offsets = [0, 6], sizes = [32, 1], strides = [1, 1]} : vector<32x16xf32> to vector<32x1xf32>
    %401 = vector.extract_strided_slice %364 {offsets = [6, 0], sizes = [1, 128], strides = [1, 1]} : vector<16x128xf32> to vector<1x128xf32>
    %402 = vector.broadcast %400 : vector<32x1xf32> to vector<32x128xf32>
    %403 = vector.broadcast %401 : vector<1x128xf32> to vector<32x128xf32>
    %404 = arith.mulf %402, %403 : vector<32x128xf32>
    %405 = vector.extract_strided_slice %365 {offsets = [0, 7], sizes = [32, 1], strides = [1, 1]} : vector<32x16xf32> to vector<32x1xf32>
    %406 = vector.extract_strided_slice %364 {offsets = [7, 0], sizes = [1, 128], strides = [1, 1]} : vector<16x128xf32> to vector<1x128xf32>
    %407 = vector.broadcast %405 : vector<32x1xf32> to vector<32x128xf32>
    %408 = vector.broadcast %406 : vector<1x128xf32> to vector<32x128xf32>
    %409 = arith.mulf %407, %408 : vector<32x128xf32>
    %410 = vector.extract_strided_slice %365 {offsets = [0, 8], sizes = [32, 1], strides = [1, 1]} : vector<32x16xf32> to vector<32x1xf32>
    %411 = vector.extract_strided_slice %364 {offsets = [8, 0], sizes = [1, 128], strides = [1, 1]} : vector<16x128xf32> to vector<1x128xf32>
    %412 = vector.broadcast %410 : vector<32x1xf32> to vector<32x128xf32>
    %413 = vector.broadcast %411 : vector<1x128xf32> to vector<32x128xf32>
    %414 = arith.mulf %412, %413 : vector<32x128xf32>
    %415 = vector.extract_strided_slice %365 {offsets = [0, 9], sizes = [32, 1], strides = [1, 1]} : vector<32x16xf32> to vector<32x1xf32>
    %416 = vector.extract_strided_slice %364 {offsets = [9, 0], sizes = [1, 128], strides = [1, 1]} : vector<16x128xf32> to vector<1x128xf32>
    %417 = vector.broadcast %415 : vector<32x1xf32> to vector<32x128xf32>
    %418 = vector.broadcast %416 : vector<1x128xf32> to vector<32x128xf32>
    %419 = arith.mulf %417, %418 : vector<32x128xf32>
    %420 = vector.extract_strided_slice %365 {offsets = [0, 10], sizes = [32, 1], strides = [1, 1]} : vector<32x16xf32> to vector<32x1xf32>
    %421 = vector.extract_strided_slice %364 {offsets = [10, 0], sizes = [1, 128], strides = [1, 1]} : vector<16x128xf32> to vector<1x128xf32>
    %422 = vector.broadcast %420 : vector<32x1xf32> to vector<32x128xf32>
    %423 = vector.broadcast %421 : vector<1x128xf32> to vector<32x128xf32>
    %424 = arith.mulf %422, %423 : vector<32x128xf32>
    %425 = vector.extract_strided_slice %365 {offsets = [0, 11], sizes = [32, 1], strides = [1, 1]} : vector<32x16xf32> to vector<32x1xf32>
    %426 = vector.extract_strided_slice %364 {offsets = [11, 0], sizes = [1, 128], strides = [1, 1]} : vector<16x128xf32> to vector<1x128xf32>
    %427 = vector.broadcast %425 : vector<32x1xf32> to vector<32x128xf32>
    %428 = vector.broadcast %426 : vector<1x128xf32> to vector<32x128xf32>
    %429 = arith.mulf %427, %428 : vector<32x128xf32>
    %430 = vector.extract_strided_slice %365 {offsets = [0, 12], sizes = [32, 1], strides = [1, 1]} : vector<32x16xf32> to vector<32x1xf32>
    %431 = vector.extract_strided_slice %364 {offsets = [12, 0], sizes = [1, 128], strides = [1, 1]} : vector<16x128xf32> to vector<1x128xf32>
    %432 = vector.broadcast %430 : vector<32x1xf32> to vector<32x128xf32>
    %433 = vector.broadcast %431 : vector<1x128xf32> to vector<32x128xf32>
    %434 = arith.mulf %432, %433 : vector<32x128xf32>
    %435 = vector.extract_strided_slice %365 {offsets = [0, 13], sizes = [32, 1], strides = [1, 1]} : vector<32x16xf32> to vector<32x1xf32>
    %436 = vector.extract_strided_slice %364 {offsets = [13, 0], sizes = [1, 128], strides = [1, 1]} : vector<16x128xf32> to vector<1x128xf32>
    %437 = vector.broadcast %435 : vector<32x1xf32> to vector<32x128xf32>
    %438 = vector.broadcast %436 : vector<1x128xf32> to vector<32x128xf32>
    %439 = arith.mulf %437, %438 : vector<32x128xf32>
    %440 = vector.extract_strided_slice %365 {offsets = [0, 14], sizes = [32, 1], strides = [1, 1]} : vector<32x16xf32> to vector<32x1xf32>
    %441 = vector.extract_strided_slice %364 {offsets = [14, 0], sizes = [1, 128], strides = [1, 1]} : vector<16x128xf32> to vector<1x128xf32>
    %442 = vector.broadcast %440 : vector<32x1xf32> to vector<32x128xf32>
    %443 = vector.broadcast %441 : vector<1x128xf32> to vector<32x128xf32>
    %444 = arith.mulf %442, %443 : vector<32x128xf32>
    %445 = vector.extract_strided_slice %365 {offsets = [0, 15], sizes = [32, 1], strides = [1, 1]} : vector<32x16xf32> to vector<32x1xf32>
    %446 = vector.extract_strided_slice %364 {offsets = [15, 0], sizes = [1, 128], strides = [1, 1]} : vector<16x128xf32> to vector<1x128xf32>
    %447 = vector.broadcast %445 : vector<32x1xf32> to vector<32x128xf32>
    %448 = vector.broadcast %446 : vector<1x128xf32> to vector<32x128xf32>
    %449 = arith.mulf %447, %448 : vector<32x128xf32>
    %450 = arith.addf %374, %379 : vector<32x128xf32>
    %451 = arith.addf %384, %389 : vector<32x128xf32>
    %452 = arith.addf %394, %399 : vector<32x128xf32>
    %453 = arith.addf %404, %409 : vector<32x128xf32>
    %454 = arith.addf %414, %419 : vector<32x128xf32>
    %455 = arith.addf %424, %429 : vector<32x128xf32>
    %456 = arith.addf %434, %439 : vector<32x128xf32>
    %457 = arith.addf %444, %449 : vector<32x128xf32>
    %458 = arith.addf %450, %451 : vector<32x128xf32>
    %459 = arith.addf %452, %453 : vector<32x128xf32>
    %460 = arith.addf %454, %455 : vector<32x128xf32>
    %461 = arith.addf %456, %457 : vector<32x128xf32>
    %462 = arith.addf %458, %459 : vector<32x128xf32>
    %463 = arith.addf %460, %461 : vector<32x128xf32>
    %464 = arith.addf %462, %463 : vector<32x128xf32>
    %465 = vector.broadcast %367 : vector<32x1xf32> to vector<32x128xf32>
    %466 = arith.addf %464, %465 : vector<32x128xf32>
    %cst_142 = arith.constant dense<0.000000e+00> : vector<32xf32>
    %467 = vector.multi_reduction <add>, %466, %cst_142 [1] : vector<32x128xf32> to vector<32xf32>
    %468 = vector.shape_cast %467 : vector<32xf32> to vector<32x1xf32>
    %cst_143 = arith.constant -7.800000e+01 : f32
    %469 = vector.broadcast %cst_143 : f32 to vector<32x1xf32>
    %470 = arith.mulf %469, %367 : vector<32x1xf32>
    %471 = arith.addf %468, %470 : vector<32x1xf32>
    %cst_144 = arith.constant 2.000000e-02 : f32
    %472 = vector.broadcast %cst_144 : f32 to vector<32x1xf32>
    %473 = arith.mulf %471, %472 : vector<32x1xf32>
    %474 = vector.broadcast %473 : vector<32x1xf32> to vector<32x128xf32>
    %475 = arith.subf %466, %474 : vector<32x128xf32>
    %476 = arith.subf %367, %473 : vector<32x1xf32>
    %477 = arith.mulf %475, %475 : vector<32x128xf32>
    %cst_145 = arith.constant dense<0.000000e+00> : vector<32xf32>
    %478 = vector.multi_reduction <add>, %477, %cst_145 [1] : vector<32x128xf32> to vector<32xf32>
    %479 = vector.shape_cast %478 : vector<32xf32> to vector<32x1xf32>
    %480 = arith.mulf %476, %476 : vector<32x1xf32>
    %cst_146 = arith.constant -7.800000e+01 : f32
    %481 = vector.broadcast %cst_146 : f32 to vector<32x1xf32>
    %482 = arith.mulf %481, %480 : vector<32x1xf32>
    %483 = arith.addf %479, %482 : vector<32x1xf32>
    %cst_147 = arith.constant 2.000000e-02 : f32
    %484 = vector.broadcast %cst_147 : f32 to vector<32x1xf32>
    %485 = arith.mulf %483, %484 : vector<32x1xf32>
    %cst_148 = arith.constant 1.000000e-03 : f32
    %486 = vector.broadcast %cst_148 : f32 to vector<32x1xf32>
    %487 = arith.addf %485, %486 : vector<32x1xf32>
    %488 = math.rsqrt %487 : vector<32x1xf32>
    %cst_149 = arith.constant 5.000000e-01 : f32
    %489 = vector.broadcast %cst_149 : f32 to vector<32x1xf32>
    %490 = arith.mulf %489, %487 : vector<32x1xf32>
    %491 = arith.mulf %490, %488 : vector<32x1xf32>
    %492 = arith.mulf %491, %488 : vector<32x1xf32>
    %cst_150 = arith.constant 1.500000e+00 : f32
    %493 = vector.broadcast %cst_150 : f32 to vector<32x1xf32>
    %494 = arith.subf %493, %492 : vector<32x1xf32>
    %495 = arith.mulf %488, %494 : vector<32x1xf32>
    %496 = arith.mulf %368, %495 : vector<32x1xf32>
    %497 = vector.broadcast %496 : vector<32x1xf32> to vector<32x128xf32>
    %498 = arith.mulf %475, %497 : vector<32x128xf32>
    %499 = vector.broadcast %369 : vector<32x1xf32> to vector<32x128xf32>
    %500 = arith.addf %498, %499 : vector<32x128xf32>
    %cst_151 = arith.constant 0.000000e+00 : f32
    %501 = vector.broadcast %cst_151 : f32 to vector<32x128xf32>
    %502 = arith.maximumf %500, %501 : vector<32x128xf32>
    %503 = arith.mulf %476, %496 : vector<32x1xf32>
    %504 = arith.addf %503, %369 : vector<32x1xf32>
    %cst_152 = arith.constant 0.000000e+00 : f32
    %505 = vector.broadcast %cst_152 : f32 to vector<32x1xf32>
    %506 = arith.maximumf %504, %505 : vector<32x1xf32>
    %507 = arith.truncf %502 : vector<32x128xf32> to vector<32x128xbf16>
    %508 = arith.extf %507 : vector<32x128xbf16> to vector<32x128xf32>
    %509 = arith.subf %502, %508 : vector<32x128xf32>
    %c0_153 = arith.constant 0 : index
    %c0_154 = arith.constant 0 : index
    %c0_155 = arith.constant 0 : index
    %510 = vector.load %arg15[%c0_153, %c0_154, %c0_155] : memref<4x128x128xf32, #tpu.memory_space<vmem>>, vector<1x128x128xf32>
    %511 = vector.shape_cast %510 : vector<1x128x128xf32> to vector<128x128xf32>
    %cst_156 = arith.constant dense<0.000000e+00> : vector<32x128xf32>
    %512 = tpu.matmul %508, %511, %cst_156 {dimension_numbers = #tpu.dot_dimension_numbers<[1], [0], [0], [1], [0, 0, 1, 1], [], []>} : vector<32x128xf32>, vector<128x128xf32>, vector<32x128xf32> -> vector<32x128xf32>
    %cst_157 = arith.constant dense<0.000000e+00> : vector<32x128xf32>
    %513 = tpu.matmul %509, %511, %cst_157 {dimension_numbers = #tpu.dot_dimension_numbers<[1], [0], [0], [1], [0, 0, 1, 1], [], []>} : vector<32x128xf32>, vector<128x128xf32>, vector<32x128xf32> -> vector<32x128xf32>
    %514 = arith.addf %512, %513 : vector<32x128xf32>
    %c0_158 = arith.constant 0 : index
    %c0_159 = arith.constant 0 : index
    %c0_160 = arith.constant 0 : index
    %515 = vector.load %arg16[%c0_158, %c0_159, %c0_160] : memref<4x1x128xf32, #tpu.memory_space<vmem>>, vector<1x1x128xf32>
    %516 = vector.shape_cast %515 : vector<1x1x128xf32> to vector<1x128xf32>
    %517 = vector.broadcast %506 : vector<32x1xf32> to vector<32x128xf32>
    %518 = vector.broadcast %516 : vector<1x128xf32> to vector<32x128xf32>
    %519 = arith.mulf %517, %518 : vector<32x128xf32>
    %520 = arith.addf %514, %519 : vector<32x128xf32>
    %c1_161 = arith.constant 1 : index
    %c0_162 = arith.constant 0 : index
    %c0_163 = arith.constant 0 : index
    %521 = vector.load %arg15[%c1_161, %c0_162, %c0_163] : memref<4x128x128xf32, #tpu.memory_space<vmem>>, vector<1x128x128xf32>
    %522 = vector.shape_cast %521 : vector<1x128x128xf32> to vector<128x128xf32>
    %cst_164 = arith.constant dense<0.000000e+00> : vector<32x128xf32>
    %523 = tpu.matmul %508, %522, %cst_164 {dimension_numbers = #tpu.dot_dimension_numbers<[1], [0], [0], [1], [0, 0, 1, 1], [], []>} : vector<32x128xf32>, vector<128x128xf32>, vector<32x128xf32> -> vector<32x128xf32>
    %cst_165 = arith.constant dense<0.000000e+00> : vector<32x128xf32>
    %524 = tpu.matmul %509, %522, %cst_165 {dimension_numbers = #tpu.dot_dimension_numbers<[1], [0], [0], [1], [0, 0, 1, 1], [], []>} : vector<32x128xf32>, vector<128x128xf32>, vector<32x128xf32> -> vector<32x128xf32>
    %525 = arith.addf %523, %524 : vector<32x128xf32>
    %c1_166 = arith.constant 1 : index
    %c0_167 = arith.constant 0 : index
    %c0_168 = arith.constant 0 : index
    %526 = vector.load %arg16[%c1_166, %c0_167, %c0_168] : memref<4x1x128xf32, #tpu.memory_space<vmem>>, vector<1x1x128xf32>
    %527 = vector.shape_cast %526 : vector<1x1x128xf32> to vector<1x128xf32>
    %528 = vector.broadcast %506 : vector<32x1xf32> to vector<32x128xf32>
    %529 = vector.broadcast %527 : vector<1x128xf32> to vector<32x128xf32>
    %530 = arith.mulf %528, %529 : vector<32x128xf32>
    %531 = arith.addf %525, %530 : vector<32x128xf32>
    %532 = arith.maximumf %520, %531 : vector<32x128xf32>
    %c2_169 = arith.constant 2 : index
    %c0_170 = arith.constant 0 : index
    %c0_171 = arith.constant 0 : index
    %533 = vector.load %arg15[%c2_169, %c0_170, %c0_171] : memref<4x128x128xf32, #tpu.memory_space<vmem>>, vector<1x128x128xf32>
    %534 = vector.shape_cast %533 : vector<1x128x128xf32> to vector<128x128xf32>
    %cst_172 = arith.constant dense<0.000000e+00> : vector<32x128xf32>
    %535 = tpu.matmul %508, %534, %cst_172 {dimension_numbers = #tpu.dot_dimension_numbers<[1], [0], [0], [1], [0, 0, 1, 1], [], []>} : vector<32x128xf32>, vector<128x128xf32>, vector<32x128xf32> -> vector<32x128xf32>
    %cst_173 = arith.constant dense<0.000000e+00> : vector<32x128xf32>
    %536 = tpu.matmul %509, %534, %cst_173 {dimension_numbers = #tpu.dot_dimension_numbers<[1], [0], [0], [1], [0, 0, 1, 1], [], []>} : vector<32x128xf32>, vector<128x128xf32>, vector<32x128xf32> -> vector<32x128xf32>
    %537 = arith.addf %535, %536 : vector<32x128xf32>
    %c2_174 = arith.constant 2 : index
    %c0_175 = arith.constant 0 : index
    %c0_176 = arith.constant 0 : index
    %538 = vector.load %arg16[%c2_174, %c0_175, %c0_176] : memref<4x1x128xf32, #tpu.memory_space<vmem>>, vector<1x1x128xf32>
    %539 = vector.shape_cast %538 : vector<1x1x128xf32> to vector<1x128xf32>
    %540 = vector.broadcast %506 : vector<32x1xf32> to vector<32x128xf32>
    %541 = vector.broadcast %539 : vector<1x128xf32> to vector<32x128xf32>
    %542 = arith.mulf %540, %541 : vector<32x128xf32>
    %543 = arith.addf %537, %542 : vector<32x128xf32>
    %544 = arith.maximumf %532, %543 : vector<32x128xf32>
    %c3_177 = arith.constant 3 : index
    %c0_178 = arith.constant 0 : index
    %c0_179 = arith.constant 0 : index
    %545 = vector.load %arg15[%c3_177, %c0_178, %c0_179] : memref<4x128x128xf32, #tpu.memory_space<vmem>>, vector<1x128x128xf32>
    %546 = vector.shape_cast %545 : vector<1x128x128xf32> to vector<128x128xf32>
    %cst_180 = arith.constant dense<0.000000e+00> : vector<32x128xf32>
    %547 = tpu.matmul %508, %546, %cst_180 {dimension_numbers = #tpu.dot_dimension_numbers<[1], [0], [0], [1], [0, 0, 1, 1], [], []>} : vector<32x128xf32>, vector<128x128xf32>, vector<32x128xf32> -> vector<32x128xf32>
    %cst_181 = arith.constant dense<0.000000e+00> : vector<32x128xf32>
    %548 = tpu.matmul %509, %546, %cst_181 {dimension_numbers = #tpu.dot_dimension_numbers<[1], [0], [0], [1], [0, 0, 1, 1], [], []>} : vector<32x128xf32>, vector<128x128xf32>, vector<32x128xf32> -> vector<32x128xf32>
    %549 = arith.addf %547, %548 : vector<32x128xf32>
    %c3_182 = arith.constant 3 : index
    %c0_183 = arith.constant 0 : index
    %c0_184 = arith.constant 0 : index
    %550 = vector.load %arg16[%c3_182, %c0_183, %c0_184] : memref<4x1x128xf32, #tpu.memory_space<vmem>>, vector<1x1x128xf32>
    %551 = vector.shape_cast %550 : vector<1x1x128xf32> to vector<1x128xf32>
    %552 = vector.broadcast %506 : vector<32x1xf32> to vector<32x128xf32>
    %553 = vector.broadcast %551 : vector<1x128xf32> to vector<32x128xf32>
    %554 = arith.mulf %552, %553 : vector<32x128xf32>
    %555 = arith.addf %549, %554 : vector<32x128xf32>
    %556 = arith.maximumf %544, %555 : vector<32x128xf32>
    %c0_185 = arith.constant 0 : index
    %c0_186 = arith.constant 0 : index
    %557 = vector.load %arg17[%c0_185, %c0_186] : memref<32x128xf32, #tpu.memory_space<vmem>>, vector<32x128xf32>
    tpu.vector_store %arg17[%c0_185, %c0_186], %556 {strides = array<i32>} : memref<32x128xf32, #tpu.memory_space<vmem>>, vector<32x128xf32>,
    return
  }
}

</mosaic_0001>

<llo_original>
// kernel: encoder_subtrack_d_forward.1
$region0: #{encoder_subtrack_d_forward.1}
  #allocation0 [shape = 'u32[]', space=smem, size = 0x4, offset = 0x4, fixed_abs, tag = 'smem constant byte address 0x4 - core index']
  #allocation1 [shape = 'u32[144,128]{1,0:T(1,128)}', space=vmem, size = 0x12000, scoped, tag = 'internal scratch']
  %s0 = inlined_call_operand.vmem [shape: f32[1,512], index: 0, kind: input, shape index: {}]
  %s1 = inlined_call_operand.vmem [shape: f32[4,1], index: 1, kind: input, shape index: {}]
  %s2 = inlined_call_operand.vmem [shape: f32[4,3], index: 2, kind: input, shape index: {}]
  %s3 = inlined_call_operand.hbm [shape: f32[4,512,256], index: 3, kind: input, shape index: {}]
  %s4 = inlined_call_operand.hbm [shape: f32[4,1,256], index: 4, kind: input, shape index: {}]
  %s5 = inlined_call_operand.vmem [shape: f32[8,4], index: 5, kind: input, shape index: {}]
  %s6 = inlined_call_operand.vmem [shape: f32[8,3], index: 6, kind: input, shape index: {}]
  %s7 = inlined_call_operand.hbm [shape: f32[4,256,128], index: 7, kind: input, shape index: {}]
  %s8 = inlined_call_operand.hbm [shape: f32[4,1,128], index: 8, kind: input, shape index: {}]
  %s9 = inlined_call_operand.vmem [shape: f32[16,8], index: 9, kind: input, shape index: {}]
  %s10 = inlined_call_operand.vmem [shape: f32[16,3], index: 10, kind: input, shape index: {}]
  %s11 = inlined_call_operand.hbm [shape: f32[4,128,128], index: 11, kind: input, shape index: {}]
  %s12 = inlined_call_operand.hbm [shape: f32[4,1,128], index: 12, kind: input, shape index: {}]
  %s13 = inlined_call_operand.vmem [shape: f32[32,16], index: 13, kind: input, shape index: {}]
  %s14 = inlined_call_operand.vmem [shape: f32[32,3], index: 14, kind: input, shape index: {}]
  %s15 = inlined_call_operand.hbm [shape: f32[4,128,128], index: 15, kind: input, shape index: {}]
  %s16 = inlined_call_operand.hbm [shape: f32[4,1,128], index: 16, kind: input, shape index: {}]
  %s17 = inlined_call_operand.vmem [shape: f32[32,128], index: 17, kind: output, shape index: {}]
  %s18 = sld [smem:[#allocation0]]
  $region110: #{encoder_subtrack_d_forward.1} parent=0
    _
  %s20 = ssub.s32 1, %s18
  %s21 = scalar_select 0, %s20, %s18
  $region1: #{encoder_subtrack_d_forward.1} parent=0
    #allocation2 [shape = 'u8[2097152]{0}', space=vmem, size = 0x200000, scoped, tag = 'input window, operand 3, single buffered']
    #allocation3 [shape = 's32[1]{0}', space=sflag, size = 0x4, scoped, tag = 'scoped memory for encoder_subtrack_d_forward.1']
    #allocation4 [shape = 'u8[4096]{0}', space=vmem, size = 0x1000, scoped, tag = 'input window, operand 4, single buffered']
    #allocation5 [shape = 's32[1]{0}', space=sflag, size = 0x4, scoped, tag = 'scoped memory for encoder_subtrack_d_forward.1']
    #allocation6 [shape = 'u8[524288]{0}', space=vmem, size = 0x80000, scoped, tag = 'input window, operand 7, single buffered']
    #allocation7 [shape = 'u8[2048]{0}', space=vmem, size = 0x800, scoped, tag = 'input window, operand 8, single buffered']
    #allocation8 [shape = 's32[1]{0}', space=sflag, size = 0x4, scoped, tag = 'scoped memory for encoder_subtrack_d_forward.1']
    #allocation9 [shape = 'u8[262144]{0}', space=vmem, size = 0x40000, scoped, tag = 'input window, operand 11, single buffered']
    #allocation10 [shape = 'u8[2048]{0}', space=vmem, size = 0x800, scoped, tag = 'input window, operand 12, single buffered']
    #allocation11 [shape = 's32[1]{0}', space=sflag, size = 0x4, scoped, tag = 'scoped memory for encoder_subtrack_d_forward.1']
    #allocation12 [shape = 'u8[262144]{0}', space=vmem, size = 0x40000, scoped, tag = 'input window, operand 15, single buffered']
    #allocation13 [shape = 'u8[2048]{0}', space=vmem, size = 0x800, scoped, tag = 'input window, operand 16, single buffered']
    #allocation14 [shape = 's32[1]{0}', space=sflag, size = 0x4, scoped, tag = 'scoped memory for encoder_subtrack_d_forward.1']
    %22 = vsyncpa [#allocation3], 0
    %23 = vsyncpa [#allocation5], 0
    %24 = vsyncpa [#allocation8], 0
    %25 = vsyncpa [#allocation11], 0
    %26 = vsyncpa [#allocation14], 0
    // Predicated region
    $region2: #{encoder_subtrack_d_forward.1} parent=1 // pred_check
      _
    $region3: #{encoder_subtrack_d_forward.1} parent=1 // pred_check_branch
      %28 = sbr.rel (0) target = $region5
    $region4: #{encoder_subtrack_d_forward.1} parent=1 // pred_region
      _
    $region5: #{encoder_subtrack_d_forward.1} parent=1 // pred_fallthru
      _
    // Predicated region
    $region6: #{encoder_subtrack_d_forward.1} parent=1 // pred_check
      _
    $region7: #{encoder_subtrack_d_forward.1} parent=1 // pred_check_branch
      %30 = sbr.rel (0) target = $region9
    $region8: #{encoder_subtrack_d_forward.1} parent=1 // pred_region
      _
    $region9: #{encoder_subtrack_d_forward.1} parent=1 // pred_fallthru
      _
    // Predicated region
    $region10: #{encoder_subtrack_d_forward.1} parent=1 // pred_check
      _
    $region11: #{encoder_subtrack_d_forward.1} parent=1 // pred_check_branch
      %32 = sbr.rel (0) target = $region13
    $region12: #{encoder_subtrack_d_forward.1} parent=1 // pred_region
      _
    $region13: #{encoder_subtrack_d_forward.1} parent=1 // pred_fallthru
      _
    // Predicated region
    $region14: #{encoder_subtrack_d_forward.1} parent=1 // pred_check
      _
    $region15: #{encoder_subtrack_d_forward.1} parent=1 // pred_check_branch
      %34 = sbr.rel (0) target = $region17
    $region16: #{encoder_subtrack_d_forward.1} parent=1 // pred_region
      %s36 = ssub.s32 65536, 65536
      %37 = vsyncadd [#allocation3], %s36
      %s38 = sshll.u32 [#allocation2], 4
      %s39 = int_to_ptr.vmem [resolvable:$true] %s38
      %44 = dma.hbm_to_vmem [thread:$0]  %s3, 65536, %s39, [#allocation3], 256, 256, 16
    $region17: #{encoder_subtrack_d_forward.1} parent=1 // pred_fallthru
      _
    // Predicated region
    $region18: #{encoder_subtrack_d_forward.1} parent=1 // pred_check
      _
    $region19: #{encoder_subtrack_d_forward.1} parent=1 // pred_check_branch
      %46 = sbr.rel (0) target = $region21
    $region20: #{encoder_subtrack_d_forward.1} parent=1 // pred_region
      %s48 = ssub.s32 128, 128
      %49 = vsyncadd [#allocation5], %s48
      %s50 = sshll.u32 [#allocation4], 4
      %s51 = int_to_ptr.vmem [resolvable:$true] %s50
      %56 = dma.hbm_to_vmem [thread:$0]  %s4, 128, %s51, [#allocation5], 32, 32, 2
    $region21: #{encoder_subtrack_d_forward.1} parent=1 // pred_fallthru
      _
    // Predicated region
    $region22: #{encoder_subtrack_d_forward.1} parent=1 // pred_check
      _
    $region23: #{encoder_subtrack_d_forward.1} parent=1 // pred_check_branch
      %58 = sbr.rel (0) target = $region25
    $region24: #{encoder_subtrack_d_forward.1} parent=1 // pred_region
      _
    $region25: #{encoder_subtrack_d_forward.1} parent=1 // pred_fallthru
      _
    // Predicated region
    $region26: #{encoder_subtrack_d_forward.1} parent=1 // pred_check
      _
    $region27: #{encoder_subtrack_d_forward.1} parent=1 // pred_check_branch
      %60 = sbr.rel (0) target = $region29
    $region28: #{encoder_subtrack_d_forward.1} parent=1 // pred_region
      _
    $region29: #{encoder_subtrack_d_forward.1} parent=1 // pred_fallthru
      _
    // Predicated region
    $region30: #{encoder_subtrack_d_forward.1} parent=1 // pred_check
      _
    $region31: #{encoder_subtrack_d_forward.1} parent=1 // pred_check_branch
      %62 = sbr.rel (0) target = $region33
    $region32: #{encoder_subtrack_d_forward.1} parent=1 // pred_region
      %s64 = ssub.s32 16384, 16384
      %65 = vsyncadd [#allocation5], %s64
      %s66 = sshll.u32 [#allocation6], 4
      %s67 = int_to_ptr.vmem [resolvable:$true] %s66
      %72 = dma.hbm_to_vmem [thread:$0]  %s7, 16384, %s67, [#allocation5], 128, 128, 8
    $region33: #{encoder_subtrack_d_forward.1} parent=1 // pred_fallthru
      _
    // Predicated region
    $region34: #{encoder_subtrack_d_forward.1} parent=1 // pred_check
      _
    $region35: #{encoder_subtrack_d_forward.1} parent=1 // pred_check_branch
      %74 = sbr.rel (0) target = $region37
    $region36: #{encoder_subtrack_d_forward.1} parent=1 // pred_region
      %s76 = ssub.s32 64, 64
      %77 = vsyncadd [#allocation8], %s76
      %s78 = sshll.u32 [#allocation7], 4
      %s79 = int_to_ptr.vmem [resolvable:$true] %s78
      %84 = dma.hbm_to_vmem [thread:$0]  %s8, 64, %s79, [#allocation8], 16, 16, 1
    $region37: #{encoder_subtrack_d_forward.1} parent=1 // pred_fallthru
      _
    // Predicated region
    $region38: #{encoder_subtrack_d_forward.1} parent=1 // pred_check
      _
    $region39: #{encoder_subtrack_d_forward.1} parent=1 // pred_check_branch
      %86 = sbr.rel (0) target = $region41
    $region40: #{encoder_subtrack_d_forward.1} parent=1 // pred_region
      _
    $region41: #{encoder_subtrack_d_forward.1} parent=1 // pred_fallthru
      _
    // Predicated region
    $region42: #{encoder_subtrack_d_forward.1} parent=1 // pred_check
      _
    $region43: #{encoder_subtrack_d_forward.1} parent=1 // pred_check_branch
      %88 = sbr.rel (0) target = $region45
    $region44: #{encoder_subtrack_d_forward.1} parent=1 // pred_region
      _
    $region45: #{encoder_subtrack_d_forward.1} parent=1 // pred_fallthru
      _
    // Predicated region
    $region46: #{encoder_subtrack_d_forward.1} parent=1 // pred_check
      _
    $region47: #{encoder_subtrack_d_forward.1} parent=1 // pred_check_branch
      %90 = sbr.rel (0) target = $region49
    $region48: #{encoder_subtrack_d_forward.1} parent=1 // pred_region
      %s92 = ssub.s32 8192, 8192
      %93 = vsyncadd [#allocation8], %s92
      %s94 = sshll.u32 [#allocation9], 4
      %s95 = int_to_ptr.vmem [resolvable:$true] %s94
      %100 = dma.hbm_to_vmem [thread:$0]  %s11, 8192, %s95, [#allocation8], 128, 128, 8
    $region49: #{encoder_subtrack_d_forward.1} parent=1 // pred_fallthru
      _
    // Predicated region
    $region50: #{encoder_subtrack_d_forward.1} parent=1 // pred_check
      _
    $region51: #{encoder_subtrack_d_forward.1} parent=1 // pred_check_branch
      %102 = sbr.rel (0) target = $region53
    $region52: #{encoder_subtrack_d_forward.1} parent=1 // pred_region
      %s104 = ssub.s32 64, 64
      %105 = vsyncadd [#allocation11], %s104
      %s106 = sshll.u32 [#allocation10], 4
      %s107 = int_to_ptr.vmem [resolvable:$true] %s106
      %112 = dma.hbm_to_vmem [thread:$0]  %s12, 64, %s107, [#allocation11], 16, 16, 1
    $region53: #{encoder_subtrack_d_forward.1} parent=1 // pred_fallthru
      _
    // Predicated region
    $region54: #{encoder_subtrack_d_forward.1} parent=1 // pred_check
      _
    $region55: #{encoder_subtrack_d_forward.1} parent=1 // pred_check_branch
      %114 = sbr.rel (0) target = $region57
    $region56: #{encoder_subtrack_d_forward.1} parent=1 // pred_region
      _
    $region57: #{encoder_subtrack_d_forward.1} parent=1 // pred_fallthru
      _
    // Predicated region
    $region58: #{encoder_subtrack_d_forward.1} parent=1 // pred_check
      _
    $region59: #{encoder_subtrack_d_forward.1} parent=1 // pred_check_branch
      %116 = sbr.rel (0) target = $region61
    $region60: #{encoder_subtrack_d_forward.1} parent=1 // pred_region
      _
    $region61: #{encoder_subtrack_d_forward.1} parent=1 // pred_fallthru
      _
    // Predicated region
    $region62: #{encoder_subtrack_d_forward.1} parent=1 // pred_check
      _
    $region63: #{encoder_subtrack_d_forward.1} parent=1 // pred_check_branch
      %118 = sbr.rel (0) target = $region65
    $region64: #{encoder_subtrack_d_forward.1} parent=1 // pred_region
      %s120 = ssub.s32 8192, 8192
      %121 = vsyncadd [#allocation11], %s120
      %s122 = sshll.u32 [#allocation12], 4
      %s123 = int_to_ptr.vmem [resolvable:$true] %s122
      %128 = dma.hbm_to_vmem [thread:$0]  %s15, 8192, %s123, [#allocation11], 128, 128, 8
    $region65: #{encoder_subtrack_d_forward.1} parent=1 // pred_fallthru
      _
    // Predicated region
    $region66: #{encoder_subtrack_d_forward.1} parent=1 // pred_check
      _
    $region67: #{encoder_subtrack_d_forward.1} parent=1 // pred_check_branch
      %130 = sbr.rel (0) target = $region69
    $region68: #{encoder_subtrack_d_forward.1} parent=1 // pred_region
      %s132 = ssub.s32 64, 64
      %133 = vsyncadd [#allocation14], %s132
      %s134 = sshll.u32 [#allocation13], 4
      %s135 = int_to_ptr.vmem [resolvable:$true] %s134
      %140 = dma.hbm_to_vmem [thread:$0]  %s16, 64, %s135, [#allocation14], 16, 16, 1
    $region69: #{encoder_subtrack_d_forward.1} parent=1 // pred_fallthru
      _
    // Predicated region
    $region70: #{encoder_subtrack_d_forward.1} parent=1 // pred_check
      _
    $region71: #{encoder_subtrack_d_forward.1} parent=1 // pred_check_branch
      %142 = sbr.rel (0) target = $region73
    $region72: #{encoder_subtrack_d_forward.1} parent=1 // pred_region
      %143 = dma.done [#allocation3], 65536
    $region73: #{encoder_subtrack_d_forward.1} parent=1 // pred_fallthru
      _
    // Predicated region
    $region74: #{encoder_subtrack_d_forward.1} parent=1 // pred_check
      _
    $region75: #{encoder_subtrack_d_forward.1} parent=1 // pred_check_branch
      %145 = sbr.rel (0) target = $region77
    $region76: #{encoder_subtrack_d_forward.1} parent=1 // pred_region
      %146 = dma.done [#allocation5], 128
    $region77: #{encoder_subtrack_d_forward.1} parent=1 // pred_fallthru
      _
    // Predicated region
    $region78: #{encoder_subtrack_d_forward.1} parent=1 // pred_check
      _
    $region79: #{encoder_subtrack_d_forward.1} parent=1 // pred_check_branch
      %148 = sbr.rel (0) target = $region81
    $region80: #{encoder_subtrack_d_forward.1} parent=1 // pred_region
      %149 = dma.done [#allocation5], 16384
    $region81: #{encoder_subtrack_d_forward.1} parent=1 // pred_fallthru
      _
    // Predicated region
    $region82: #{encoder_subtrack_d_forward.1} parent=1 // pred_check
      _
    $region83: #{encoder_subtrack_d_forward.1} parent=1 // pred_check_branch
      %151 = sbr.rel (0) target = $region85
    $region84: #{encoder_subtrack_d_forward.1} parent=1 // pred_region
      %152 = dma.done [#allocation8], 64
    $region85: #{encoder_subtrack_d_forward.1} parent=1 // pred_fallthru
      _
    // Predicated region
    $region86: #{encoder_subtrack_d_forward.1} parent=1 // pred_check
      _
    $region87: #{encoder_subtrack_d_forward.1} parent=1 // pred_check_branch
      %154 = sbr.rel (0) target = $region89
    $region88: #{encoder_subtrack_d_forward.1} parent=1 // pred_region
      %155 = dma.done [#allocation8], 8192
    $region89: #{encoder_subtrack_d_forward.1} parent=1 // pred_fallthru
      _
    // Predicated region
    $region90: #{encoder_subtrack_d_forward.1} parent=1 // pred_check
      _
    $region91: #{encoder_subtrack_d_forward.1} parent=1 // pred_check_branch
      %157 = sbr.rel (0) target = $region93
    $region92: #{encoder_subtrack_d_forward.1} parent=1 // pred_region
      %158 = dma.done [#allocation11], 64
    $region93: #{encoder_subtrack_d_forward.1} parent=1 // pred_fallthru
      _
    // Predicated region
    $region94: #{encoder_subtrack_d_forward.1} parent=1 // pred_check
      _
    $region95: #{encoder_subtrack_d_forward.1} parent=1 // pred_check_branch
      %160 = sbr.rel (0) target = $region97
    $region96: #{encoder_subtrack_d_forward.1} parent=1 // pred_region
      %161 = dma.done [#allocation11], 8192
    $region97: #{encoder_subtrack_d_forward.1} parent=1 // pred_fallthru
      _
    // Predicated region
    $region98: #{encoder_subtrack_d_forward.1} parent=1 // pred_check
      _
    $region99: #{encoder_subtrack_d_forward.1} parent=1 // pred_check_branch
      %163 = sbr.rel (0) target = $region101
    $region100: #{encoder_subtrack_d_forward.1} parent=1 // pred_region
      %164 = dma.done [#allocation14], 64
    $region101: #{encoder_subtrack_d_forward.1} parent=1 // pred_fallthru
      _
    %v165 = vld [vmem:[%s0] sm:$0xf]
    %v166 = vld [vmem:[%s1] sm:$0xf]
    %v167 = vld [vmem:[%s2] sm:$0xf]
    %169 = vset.pattern.permute.xlu0 0
    %170 = vperm.xlu0 %169, %v166
    %v171 = vpop.permute.xlu0 %170
    %v174 = vlaneseq
    %v175 = vshrl.u32 %v174, 7
    %v176 = vsub.s32 0, %v175
    %v177 = vrot.slane %v165, %v176
    %v178 = vlaneseq
    %v179 = vshrl.u32 %v178, 7
    %v180 = vsub.s32 1, %v179
    %v181 = vrot.slane %v165, %v180
    %v182 = vlaneseq
    %v183 = vshrl.u32 %v182, 7
    %v184 = vsub.s32 2, %v183
    %v185 = vrot.slane %v165, %v184
    %v186 = vlaneseq
    %v187 = vshrl.u32 %v186, 7
    %v188 = vsub.s32 3, %v187
    %v189 = vrot.slane %v165, %v188
    %v194 = vmul.f32 %v171, %v177
    %v195 = vmul.f32 %v171, %v181
    %v196 = vmul.f32 %v171, %v185
    %v197 = vmul.f32 %v171, %v189
    %199 = vset.pattern.permute.xlu0 0
    %200 = vperm.xlu0 %199, %v167
    %v201 = vpop.permute.xlu0 %200
    %v203 = vadd.f32 %v194, %v201
    %v204 = vadd.f32 %v195, %v201
    %v205 = vadd.f32 %v196, %v201
    %v206 = vadd.f32 %v197, %v201
    %vm207 = vcmask 1043456
    %v208 = vsel %vm207, %v203, 0.0
    %v209 = vsel %vm207, %v204, 0.0
    %v210 = vadd.f32 %v208, %v209
    %v211 = vsel %vm207, %v205, 0.0
    %v212 = vadd.f32 %v210, %v211
    %v213 = vsel %vm207, %v206, 0.0
    %v214 = vadd.f32 %v212, %v213
    %215 = vadd.xlane.f32.xlu0 %v214
    %v216 = vpop.xlane.xlu0 %215
    %v217 = vmul.f32 %v167, 136.0
    %v218 = vadd.f32 %v216, %v217
    %v219 = vmul.f32 %v218, 0.0015432099
    %221 = vset.pattern.permute.xlu0 0
    %222 = vperm.xlu0 %221, %v219
    %v223 = vpop.permute.xlu0 %222
    %v225 = vsub.f32 %v203, %v223
    %v226 = vsub.f32 %v204, %v223
    %v227 = vsub.f32 %v205, %v223
    %v228 = vsub.f32 %v206, %v223
    %v229 = vsub.f32 %v167, %v219
    %v230 = vmul.f32 %v225, %v225
    %v231 = vmul.f32 %v226, %v226
    %v232 = vmul.f32 %v227, %v227
    %v233 = vmul.f32 %v228, %v228
    %v234 = vsel %vm207, %v230, 0.0
    %v235 = vsel %vm207, %v231, 0.0
    %v236 = vadd.f32 %v234, %v235
    %v237 = vsel %vm207, %v232, 0.0
    %v238 = vadd.f32 %v236, %v237
    %v239 = vsel %vm207, %v233, 0.0
    %v240 = vadd.f32 %v238, %v239
    %241 = vadd.xlane.f32.xlu0 %v240
    %v242 = vpop.xlane.xlu0 %241
    %v243 = vmul.f32 %v229, %v229
    %v244 = vmul.f32 %v243, 136.0
    %v245 = vadd.f32 %v242, %v244
    %v246 = vmul.f32 %v245, 0.0015432099
    %v247 = vadd.f32 %v246, 0.001
    %v248 = vrsqrt.pop %v247
    %v249 = vmul.f32 %v247, 0.5
    %v250 = vmul.f32 %v249, %v248
    %v251 = vmul.f32 %v250, %v248
    %v252 = vsub.f32 1.5, %v251
    %v253 = vmul.f32 %v248, %v252
    %255 = vrot.lane.b32.xlu0 %v253, 1
    %v256 = vpop.permute.xlu0 %255
    %v258 = vmul.f32 %v167, %v256
    %260 = vset.pattern.permute.xlu0 1
    %261 = vperm.xlu0 %260, %v258
    %v262 = vpop.permute.xlu0 %261
    %v264 = vmul.f32 %v225, %v262
    %v265 = vmul.f32 %v226, %v262
    %v266 = vmul.f32 %v227, %v262
    %v267 = vmul.f32 %v228, %v262
    %268 = vset.pattern.permute.xlu0 2
    %269 = vperm.xlu0 %268, %v167
    %v270 = vpop.permute.xlu0 %269
    %v272 = vadd.f32 %v264, %v270
    %v273 = vadd.f32 %v265, %v270
    %v274 = vadd.f32 %v266, %v270
    %v275 = vadd.f32 %v267, %v270
    %v276 = vmax.f32 %v272, 0.0
    %v277 = vmax.f32 %v273, 0.0
    %v278 = vmax.f32 %v274, 0.0
    %v279 = vmax.f32 %v275, 0.0
    %280 = vrot.lane.b32.xlu0 %v258, 127
    %v281 = vpop.permute.xlu0 %280
    %v283 = vmul.f32 %v229, %v281
    %284 = vrot.lane.b32.xlu0 %v167, 126
    %v285 = vpop.permute.xlu0 %284
    %v287 = vadd.f32 %v283, %v285
    %v288 = vmax.f32 %v287, 0.0
    %v289 = vpack.c.bf16 %v276, %v276
    %v290 = vpack.c.bf16 %v277, %v277
    %v291 = vpack.c.bf16 %v278, %v278
    %v292 = vpack.c.bf16 %v279, %v279
    %v293 = vunpack.c.l.bf16 %v289
    %v294 = vunpack.c.l.bf16 %v290
    %v295 = vunpack.c.l.bf16 %v291
    %v296 = vunpack.c.l.bf16 %v292
    %v297 = vsub.f32 %v276, %v293
    %v298 = vsub.f32 %v277, %v294
    %v299 = vsub.f32 %v278, %v295
    %v300 = vsub.f32 %v279, %v296
    %v301 = vld [vmem:[#allocation2] sm:$0xff]
    %v302 = vld [vmem:[#allocation2 + $0x8] sm:$0xff]
    %v303 = vld [vmem:[#allocation2 + $0x10] sm:$0xff]
    %v304 = vld [vmem:[#allocation2 + $0x18] sm:$0xff]
    %v305 = vld [vmem:[#allocation2 + $0x20] sm:$0xff]
    %v306 = vld [vmem:[#allocation2 + $0x28] sm:$0xff]
    %v307 = vld [vmem:[#allocation2 + $0x30] sm:$0xff]
    %v308 = vld [vmem:[#allocation2 + $0x38] sm:$0xff]
    %v309 = vld [vmem:[#allocation2 + $0x40] sm:$0xff]
    %v310 = vld [vmem:[#allocation2 + $0x48] sm:$0xff]
    %v311 = vld [vmem:[#allocation2 + $0x50] sm:$0xff]
    %v312 = vld [vmem:[#allocation2 + $0x58] sm:$0xff]
    %v313 = vld [vmem:[#allocation2 + $0x60] sm:$0xff]
    %v314 = vld [vmem:[#allocation2 + $0x68] sm:$0xff]
    %v315 = vld [vmem:[#allocation2 + $0x70] sm:$0xff]
    %v316 = vld [vmem:[#allocation2 + $0x78] sm:$0xff]
    %v317 = vld [vmem:[#allocation2 + $0x80] sm:$0xff]
    %v318 = vld [vmem:[#allocation2 + $0x88] sm:$0xff]
    %v319 = vld [vmem:[#allocation2 + $0x90] sm:$0xff]
    %v320 = vld [vmem:[#allocation2 + $0x98] sm:$0xff]
    %v321 = vld [vmem:[#allocation2 + $0xa0] sm:$0xff]
    %v322 = vld [vmem:[#allocation2 + $0xa8] sm:$0xff]
    %v323 = vld [vmem:[#allocation2 + $0xb0] sm:$0xff]
    %v324 = vld [vmem:[#allocation2 + $0xb8] sm:$0xff]
    %v325 = vld [vmem:[#allocation2 + $0xc0] sm:$0xff]
    %v326 = vld [vmem:[#allocation2 + $0xc8] sm:$0xff]
    %v327 = vld [vmem:[#allocation2 + $0xd0] sm:$0xff]
    %v328 = vld [vmem:[#allocation2 + $0xd8] sm:$0xff]
    %v329 = vld [vmem:[#allocation2 + $0xe0] sm:$0xff]
    %v330 = vld [vmem:[#allocation2 + $0xe8] sm:$0xff]
    %v331 = vld [vmem:[#allocation2 + $0xf0] sm:$0xff]
    %v332 = vld [vmem:[#allocation2 + $0xf8] sm:$0xff]
    %v333 = vld [vmem:[#allocation2 + $0x100] sm:$0xff]
    %v334 = vld [vmem:[#allocation2 + $0x108] sm:$0xff]
    %v335 = vld [vmem:[#allocation2 + $0x110] sm:$0xff]
    %v336 = vld [vmem:[#allocation2 + $0x118] sm:$0xff]
    %v337 = vld [vmem:[#allocation2 + $0x120] sm:$0xff]
    %v338 = vld [vmem:[#allocation2 + $0x128] sm:$0xff]
    %v339 = vld [vmem:[#allocation2 + $0x130] sm:$0xff]
    %v340 = vld [vmem:[#allocation2 + $0x138] sm:$0xff]
    %v341 = vld [vmem:[#allocation2 + $0x140] sm:$0xff]
    %v342 = vld [vmem:[#allocation2 + $0x148] sm:$0xff]
    %v343 = vld [vmem:[#allocation2 + $0x150] sm:$0xff]
    %v344 = vld [vmem:[#allocation2 + $0x158] sm:$0xff]
    %v345 = vld [vmem:[#allocation2 + $0x160] sm:$0xff]
    %v346 = vld [vmem:[#allocation2 + $0x168] sm:$0xff]
    %v347 = vld [vmem:[#allocation2 + $0x170] sm:$0xff]
    %v348 = vld [vmem:[#allocation2 + $0x178] sm:$0xff]
    %v349 = vld [vmem:[#allocation2 + $0x180] sm:$0xff]
    %v350 = vld [vmem:[#allocation2 + $0x188] sm:$0xff]
    %v351 = vld [vmem:[#allocation2 + $0x190] sm:$0xff]
    %v352 = vld [vmem:[#allocation2 + $0x198] sm:$0xff]
    %v353 = vld [vmem:[#allocation2 + $0x1a0] sm:$0xff]
    %v354 = vld [vmem:[#allocation2 + $0x1a8] sm:$0xff]
    %v355 = vld [vmem:[#allocation2 + $0x1b0] sm:$0xff]
    %v356 = vld [vmem:[#allocation2 + $0x1b8] sm:$0xff]
    %v357 = vld [vmem:[#allocation2 + $0x1c0] sm:$0xff]
    %v358 = vld [vmem:[#allocation2 + $0x1c8] sm:$0xff]
    %v359 = vld [vmem:[#allocation2 + $0x1d0] sm:$0xff]
    %v360 = vld [vmem:[#allocation2 + $0x1d8] sm:$0xff]
    %v361 = vld [vmem:[#allocation2 + $0x1e0] sm:$0xff]
    %v362 = vld [vmem:[#allocation2 + $0x1e8] sm:$0xff]
    %v363 = vld [vmem:[#allocation2 + $0x1f0] sm:$0xff]
    %v364 = vld [vmem:[#allocation2 + $0x1f8] sm:$0xff]
    %v365 = vld [vmem:[#allocation2 + $0x200] sm:$0xff]
    %v366 = vld [vmem:[#allocation2 + $0x208] sm:$0xff]
    %v367 = vld [vmem:[#allocation2 + $0x210] sm:$0xff]
    %v368 = vld [vmem:[#allocation2 + $0x218] sm:$0xff]
    %v369 = vld [vmem:[#allocation2 + $0x220] sm:$0xff]
    %v370 = vld [vmem:[#allocation2 + $0x228] sm:$0xff]
    %v371 = vld [vmem:[#allocation2 + $0x230] sm:$0xff]
    %v372 = vld [vmem:[#allocation2 + $0x238] sm:$0xff]
    %v373 = vld [vmem:[#allocation2 + $0x240] sm:$0xff]
    %v374 = vld [vmem:[#allocation2 + $0x248] sm:$0xff]
    %v375 = vld [vmem:[#allocation2 + $0x250] sm:$0xff]
    %v376 = vld [vmem:[#allocation2 + $0x258] sm:$0xff]
    %v377 = vld [vmem:[#allocation2 + $0x260] sm:$0xff]
    %v378 = vld [vmem:[#allocation2 + $0x268] sm:$0xff]
    %v379 = vld [vmem:[#allocation2 + $0x270] sm:$0xff]
    %v380 = vld [vmem:[#allocation2 + $0x278] sm:$0xff]
    %v381 = vld [vmem:[#allocation2 + $0x280] sm:$0xff]
    %v382 = vld [vmem:[#allocation2 + $0x288] sm:$0xff]
    %v383 = vld [vmem:[#allocation2 + $0x290] sm:$0xff]
    %v384 = vld [vmem:[#allocation2 + $0x298] sm:$0xff]
    %v385 = vld [vmem:[#allocation2 + $0x2a0] sm:$0xff]
    %v386 = vld [vmem:[#allocation2 + $0x2a8] sm:$0xff]
    %v387 = vld [vmem:[#allocation2 + $0x2b0] sm:$0xff]
    %v388 = vld [vmem:[#allocation2 + $0x2b8] sm:$0xff]
    %v389 = vld [vmem:[#allocation2 + $0x2c0] sm:$0xff]
    %v390 = vld [vmem:[#allocation2 + $0x2c8] sm:$0xff]
    %v391 = vld [vmem:[#allocation2 + $0x2d0] sm:$0xff]
    %v392 = vld [vmem:[#allocation2 + $0x2d8] sm:$0xff]
    %v393 = vld [vmem:[#allocation2 + $0x2e0] sm:$0xff]
    %v394 = vld [vmem:[#allocation2 + $0x2e8] sm:$0xff]
    %v395 = vld [vmem:[#allocation2 + $0x2f0] sm:$0xff]
    %v396 = vld [vmem:[#allocation2 + $0x2f8] sm:$0xff]
    %v397 = vld [vmem:[#allocation2 + $0x300] sm:$0xff]
    %v398 = vld [vmem:[#allocation2 + $0x308] sm:$0xff]
    %v399 = vld [vmem:[#allocation2 + $0x310] sm:$0xff]
    %v400 = vld [vmem:[#allocation2 + $0x318] sm:$0xff]
    %v401 = vld [vmem:[#allocation2 + $0x320] sm:$0xff]
    %v402 = vld [vmem:[#allocation2 + $0x328] sm:$0xff]
    %v403 = vld [vmem:[#allocation2 + $0x330] sm:$0xff]
    %v404 = vld [vmem:[#allocation2 + $0x338] sm:$0xff]
    %v405 = vld [vmem:[#allocation2 + $0x340] sm:$0xff]
    %v406 = vld [vmem:[#allocation2 + $0x348] sm:$0xff]
    %v407 = vld [vmem:[#allocation2 + $0x350] sm:$0xff]
    %v408 = vld [vmem:[#allocation2 + $0x358] sm:$0xff]
    %v409 = vld [vmem:[#allocation2 + $0x360] sm:$0xff]
    %v410 = vld [vmem:[#allocation2 + $0x368] sm:$0xff]
    %v411 = vld [vmem:[#allocation2 + $0x370] sm:$0xff]
    %v412 = vld [vmem:[#allocation2 + $0x378] sm:$0xff]
    %v413 = vld [vmem:[#allocation2 + $0x380] sm:$0xff]
    %v414 = vld [vmem:[#allocation2 + $0x388] sm:$0xff]
    %v415 = vld [vmem:[#allocation2 + $0x390] sm:$0xff]
    %v416 = vld [vmem:[#allocation2 + $0x398] sm:$0xff]
    %v417 = vld [vmem:[#allocation2 + $0x3a0] sm:$0xff]
    %v418 = vld [vmem:[#allocation2 + $0x3a8] sm:$0xff]
    %v419 = vld [vmem:[#allocation2 + $0x3b0] sm:$0xff]
    %v420 = vld [vmem:[#allocation2 + $0x3b8] sm:$0xff]
    %v421 = vld [vmem:[#allocation2 + $0x3c0] sm:$0xff]
    %v422 = vld [vmem:[#allocation2 + $0x3c8] sm:$0xff]
    %v423 = vld [vmem:[#allocation2 + $0x3d0] sm:$0xff]
    %v424 = vld [vmem:[#allocation2 + $0x3d8] sm:$0xff]
    %v425 = vld [vmem:[#allocation2 + $0x3e0] sm:$0xff]
    %v426 = vld [vmem:[#allocation2 + $0x3e8] sm:$0xff]
    %v427 = vld [vmem:[#allocation2 + $0x3f0] sm:$0xff]
    %v428 = vld [vmem:[#allocation2 + $0x3f8] sm:$0xff]
    %429 = vmatprep.subr.mxu0 %v332
    %430 = vmatpush1.msra.mxu0 %v331
    %431 = vmatprep.subr.mxu0 %v330
    %432 = vmatpush1.msra.mxu0 %v329
    %433 = vmatprep.subr.mxu0 %v328
    %434 = vmatpush1.msra.mxu0 %v327
    %435 = vmatprep.subr.mxu0 %v326
    %436 = vmatpush1.msra.mxu0 %v325
    %437 = vmatprep.subr.mxu0 %v324
    %438 = vmatpush1.msra.mxu0 %v323
    %439 = vmatprep.subr.mxu0 %v322
    %440 = vmatpush1.msra.mxu0 %v321
    %441 = vmatprep.subr.mxu0 %v320
    %442 = vmatpush1.msra.mxu0 %v319
    %443 = vmatprep.subr.mxu0 %v318
    %444 = vmatpush1.msra.mxu0 %v317
    %445 = vmatprep.subr.mxu0 %v316
    %446 = vmatpush1.msra.mxu0 %v315
    %447 = vmatprep.subr.mxu0 %v314
    %448 = vmatpush1.msra.mxu0 %v313
    %449 = vmatprep.subr.mxu0 %v312
    %450 = vmatpush1.msra.mxu0 %v311
    %451 = vmatprep.subr.mxu0 %v310
    %452 = vmatpush1.msra.mxu0 %v309
    %453 = vmatprep.subr.mxu0 %v308
    %454 = vmatpush1.msra.mxu0 %v307
    %455 = vmatprep.subr.mxu0 %v306
    %456 = vmatpush1.msra.mxu0 %v305
    %457 = vmatprep.subr.mxu0 %v304
    %458 = vmatpush1.msra.mxu0 %v303
    %459 = vmatprep.subr.mxu0 %v302
    %460 = vmatpush1.msra.mxu0 %v301
    %461 = vmatprep.subr.mxu0 %v364
    %462 = vmatpush2.msra.mxu0 %v363
    %463 = vmatprep.subr.mxu0 %v362
    %464 = vmatpush2.msra.mxu0 %v361
    %465 = vmatprep.subr.mxu0 %v360
    %466 = vmatpush2.msra.mxu0 %v359
    %467 = vmatprep.subr.mxu0 %v358
    %468 = vmatpush2.msra.mxu0 %v357
    %469 = vmatprep.subr.mxu0 %v356
    %470 = vmatpush2.msra.mxu0 %v355
    %471 = vmatprep.subr.mxu0 %v354
    %472 = vmatpush2.msra.mxu0 %v353
    %473 = vmatprep.subr.mxu0 %v352
    %474 = vmatpush2.msra.mxu0 %v351
    %475 = vmatprep.subr.mxu0 %v350
    %476 = vmatpush2.msra.mxu0 %v349
    %477 = vmatprep.subr.mxu0 %v348
    %478 = vmatpush2.msra.mxu0 %v347
    %479 = vmatprep.subr.mxu0 %v346
    %480 = vmatpush2.msra.mxu0 %v345
    %481 = vmatprep.subr.mxu0 %v344
    %482 = vmatpush2.msra.mxu0 %v343
    %483 = vmatprep.subr.mxu0 %v342
    %484 = vmatpush2.msra.mxu0 %v341
    %485 = vmatprep.subr.mxu0 %v340
    %486 = vmatpush2.msra.mxu0 %v339
    %487 = vmatprep.subr.mxu0 %v338
    %488 = vmatpush2.msra.mxu0 %v337
    %489 = vmatprep.subr.mxu0 %v336
    %490 = vmatpush2.msra.mxu0 %v335
    %491 = vmatprep.subr.mxu0 %v334
    %492 = vmatpush2.msra.mxu0 %v333
    %493 = vmatprep.mubr.f32.mxu0 %v298
    %494 = vmatmul.mubr.f32.gmra.mxu0 %v297
    %v495 = vpop.f32.mrf.mxu0
    %v496 = vadd.f32 0.0, %v495
    %v497 = vpop.f32.mrf.mxu0
    %v498 = vadd.f32 0.0, %v497
    %499 = vdwg.mxu0
    %500 = vmatprep.subr.mxu0 %v396
    %501 = vmatpush1.msra.mxu0 %v395
    %502 = vmatprep.subr.mxu0 %v394
    %503 = vmatpush1.msra.mxu0 %v393
    %504 = vmatprep.subr.mxu0 %v392
    %505 = vmatpush1.msra.mxu0 %v391
    %506 = vmatprep.subr.mxu0 %v390
    %507 = vmatpush1.msra.mxu0 %v389
    %508 = vmatprep.subr.mxu0 %v388
    %509 = vmatpush1.msra.mxu0 %v387
    %510 = vmatprep.subr.mxu0 %v386
    %511 = vmatpush1.msra.mxu0 %v385
    %512 = vmatprep.subr.mxu0 %v384
    %513 = vmatpush1.msra.mxu0 %v383
    %514 = vmatprep.subr.mxu0 %v382
    %515 = vmatpush1.msra.mxu0 %v381
    %516 = vmatprep.subr.mxu0 %v380
    %517 = vmatpush1.msra.mxu0 %v379
    %518 = vmatprep.subr.mxu0 %v378
    %519 = vmatpush1.msra.mxu0 %v377
    %520 = vmatprep.subr.mxu0 %v376
    %521 = vmatpush1.msra.mxu0 %v375
    %522 = vmatprep.subr.mxu0 %v374
    %523 = vmatpush1.msra.mxu0 %v373
    %524 = vmatprep.subr.mxu0 %v372
    %525 = vmatpush1.msra.mxu0 %v371
    %526 = vmatprep.subr.mxu0 %v370
    %527 = vmatpush1.msra.mxu0 %v369
    %528 = vmatprep.subr.mxu0 %v368
    %529 = vmatpush1.msra.mxu0 %v367
    %530 = vmatprep.subr.mxu0 %v366
    %531 = vmatpush1.msra.mxu0 %v365
    %532 = vmatprep.subr.mxu0 %v428
    %533 = vmatpush2.msra.mxu0 %v427
    %534 = vmatprep.subr.mxu0 %v426
    %535 = vmatpush2.msra.mxu0 %v425
    %536 = vmatprep.subr.mxu0 %v424
    %537 = vmatpush2.msra.mxu0 %v423
    %538 = vmatprep.subr.mxu0 %v422
    %539 = vmatpush2.msra.mxu0 %v421
    %540 = vmatprep.subr.mxu0 %v420
    %541 = vmatpush2.msra.mxu0 %v419
    %542 = vmatprep.subr.mxu0 %v418
    %543 = vmatpush2.msra.mxu0 %v417
    %544 = vmatprep.subr.mxu0 %v416
    %545 = vmatpush2.msra.mxu0 %v415
    %546 = vmatprep.subr.mxu0 %v414
    %547 = vmatpush2.msra.mxu0 %v413
    %548 = vmatprep.subr.mxu0 %v412
    %549 = vmatpush2.msra.mxu0 %v411
    %550 = vmatprep.subr.mxu0 %v410
    %551 = vmatpush2.msra.mxu0 %v409
    %552 = vmatprep.subr.mxu0 %v408
    %553 = vmatpush2.msra.mxu0 %v407
    %554 = vmatprep.subr.mxu0 %v406
    %555 = vmatpush2.msra.mxu0 %v405
    %556 = vmatprep.subr.mxu0 %v404
    %557 = vmatpush2.msra.mxu0 %v403
    %558 = vmatprep.subr.mxu0 %v402
    %559 = vmatpush2.msra.mxu0 %v401
    %560 = vmatprep.subr.mxu0 %v400
    %561 = vmatpush2.msra.mxu0 %v399
    %562 = vmatprep.subr.mxu0 %v398
    %563 = vmatpush2.msra.mxu0 %v397
    %564 = vmatprep.mubr.f32.mxu0 %v300
    %565 = vmatmul.mubr.f32.gmra.mxu0 %v299
    %v566 = vpop.f32.mrf.mxu0
    %v567 = vadd.f32 %v496, %v566
    %v568 = vpop.f32.mrf.mxu0
    %v569 = vadd.f32 %v498, %v568
    %570 = vdwg.mxu0
    %571 = vmatprep.subr.mxu0 %v332
    %572 = vmatpush1.msra.mxu0 %v331
    %573 = vmatprep.subr.mxu0 %v330
    %574 = vmatpush1.msra.mxu0 %v329
    %575 = vmatprep.subr.mxu0 %v328
    %576 = vmatpush1.msra.mxu0 %v327
    %577 = vmatprep.subr.mxu0 %v326
    %578 = vmatpush1.msra.mxu0 %v325
    %579 = vmatprep.subr.mxu0 %v324
    %580 = vmatpush1.msra.mxu0 %v323
    %581 = vmatprep.subr.mxu0 %v322
    %582 = vmatpush1.msra.mxu0 %v321
    %583 = vmatprep.subr.mxu0 %v320
    %584 = vmatpush1.msra.mxu0 %v319
    %585 = vmatprep.subr.mxu0 %v318
    %586 = vmatpush1.msra.mxu0 %v317
    %587 = vmatprep.subr.mxu0 %v316
    %588 = vmatpush1.msra.mxu0 %v315
    %589 = vmatprep.subr.mxu0 %v314
    %590 = vmatpush1.msra.mxu0 %v313
    %591 = vmatprep.subr.mxu0 %v312
    %592 = vmatpush1.msra.mxu0 %v311
    %593 = vmatprep.subr.mxu0 %v310
    %594 = vmatpush1.msra.mxu0 %v309
    %595 = vmatprep.subr.mxu0 %v308
    %596 = vmatpush1.msra.mxu0 %v307
    %597 = vmatprep.subr.mxu0 %v306
    %598 = vmatpush1.msra.mxu0 %v305
    %599 = vmatprep.subr.mxu0 %v304
    %600 = vmatpush1.msra.mxu0 %v303
    %601 = vmatprep.subr.mxu0 %v302
    %602 = vmatpush1.msra.mxu0 %v301
    %603 = vmatprep.subr.mxu0 %v364
    %604 = vmatpush2.msra.mxu0 %v363
    %605 = vmatprep.subr.mxu0 %v362
    %606 = vmatpush2.msra.mxu0 %v361
    %607 = vmatprep.subr.mxu0 %v360
    %608 = vmatpush2.msra.mxu0 %v359
    %609 = vmatprep.subr.mxu0 %v358
    %610 = vmatpush2.msra.mxu0 %v357
    %611 = vmatprep.subr.mxu0 %v356
    %612 = vmatpush2.msra.mxu0 %v355
    %613 = vmatprep.subr.mxu0 %v354
    %614 = vmatpush2.msra.mxu0 %v353
    %615 = vmatprep.subr.mxu0 %v352
    %616 = vmatpush2.msra.mxu0 %v351
    %617 = vmatprep.subr.mxu0 %v350
    %618 = vmatpush2.msra.mxu0 %v349
    %619 = vmatprep.subr.mxu0 %v348
    %620 = vmatpush2.msra.mxu0 %v347
    %621 = vmatprep.subr.mxu0 %v346
    %622 = vmatpush2.msra.mxu0 %v345
    %623 = vmatprep.subr.mxu0 %v344
    %624 = vmatpush2.msra.mxu0 %v343
    %625 = vmatprep.subr.mxu0 %v342
    %626 = vmatpush2.msra.mxu0 %v341
    %627 = vmatprep.subr.mxu0 %v340
    %628 = vmatpush2.msra.mxu0 %v339
    %629 = vmatprep.subr.mxu0 %v338
    %630 = vmatpush2.msra.mxu0 %v337
    %631 = vmatprep.subr.mxu0 %v336
    %632 = vmatpush2.msra.mxu0 %v335
    %633 = vmatprep.subr.mxu0 %v334
    %634 = vmatpush2.msra.mxu0 %v333
    %635 = vmatprep.mubr.f32.mxu0 %v294
    %636 = vmatmul.mubr.f32.gmra.mxu0 %v293
    %v637 = vpop.f32.mrf.mxu0
    %v638 = vadd.f32 %v567, %v637
    %v639 = vpop.f32.mrf.mxu0
    %v640 = vadd.f32 %v569, %v639
    %641 = vdwg.mxu0
    %642 = vmatprep.subr.mxu0 %v396
    %643 = vmatpush1.msra.mxu0 %v395
    %644 = vmatprep.subr.mxu0 %v394
    %645 = vmatpush1.msra.mxu0 %v393
    %646 = vmatprep.subr.mxu0 %v392
    %647 = vmatpush1.msra.mxu0 %v391
    %648 = vmatprep.subr.mxu0 %v390
    %649 = vmatpush1.msra.mxu0 %v389
    %650 = vmatprep.subr.mxu0 %v388
    %651 = vmatpush1.msra.mxu0 %v387
    %652 = vmatprep.subr.mxu0 %v386
    %653 = vmatpush1.msra.mxu0 %v385
    %654 = vmatprep.subr.mxu0 %v384
    %655 = vmatpush1.msra.mxu0 %v383
    %656 = vmatprep.subr.mxu0 %v382
    %657 = vmatpush1.msra.mxu0 %v381
    %658 = vmatprep.subr.mxu0 %v380
    %659 = vmatpush1.msra.mxu0 %v379
    %660 = vmatprep.subr.mxu0 %v378
    %661 = vmatpush1.msra.mxu0 %v377
    %662 = vmatprep.subr.mxu0 %v376
    %663 = vmatpush1.msra.mxu0 %v375
    %664 = vmatprep.subr.mxu0 %v374
    %665 = vmatpush1.msra.mxu0 %v373
    %666 = vmatprep.subr.mxu0 %v372
    %667 = vmatpush1.msra.mxu0 %v371
    %668 = vmatprep.subr.mxu0 %v370
    %669 = vmatpush1.msra.mxu0 %v369
    %670 = vmatprep.subr.mxu0 %v368
    %671 = vmatpush1.msra.mxu0 %v367
    %672 = vmatprep.subr.mxu0 %v366
    %673 = vmatpush1.msra.mxu0 %v365
    %674 = vmatprep.subr.mxu0 %v428
    %675 = vmatpush2.msra.mxu0 %v427
    %676 = vmatprep.subr.mxu0 %v426
    %677 = vmatpush2.msra.mxu0 %v425
    %678 = vmatprep.subr.mxu0 %v424
    %679 = vmatpush2.msra.mxu0 %v423
    %680 = vmatprep.subr.mxu0 %v422
    %681 = vmatpush2.msra.mxu0 %v421
    %682 = vmatprep.subr.mxu0 %v420
    %683 = vmatpush2.msra.mxu0 %v419
    %684 = vmatprep.subr.mxu0 %v418
    %685 = vmatpush2.msra.mxu0 %v417
    %686 = vmatprep.subr.mxu0 %v416
    %687 = vmatpush2.msra.mxu0 %v415
    %688 = vmatprep.subr.mxu0 %v414
    %689 = vmatpush2.msra.mxu0 %v413
    %690 = vmatprep.subr.mxu0 %v412
    %691 = vmatpush2.msra.mxu0 %v411
    %692 = vmatprep.subr.mxu0 %v410
    %693 = vmatpush2.msra.mxu0 %v409
    %694 = vmatprep.subr.mxu0 %v408
    %695 = vmatpush2.msra.mxu0 %v407
    %696 = vmatprep.subr.mxu0 %v406
    %697 = vmatpush2.msra.mxu0 %v405
    %698 = vmatprep.subr.mxu0 %v404
    %699 = vmatpush2.msra.mxu0 %v403
    %700 = vmatprep.subr.mxu0 %v402
    %701 = vmatpush2.msra.mxu0 %v401
    %702 = vmatprep.subr.mxu0 %v400
    %703 = vmatpush2.msra.mxu0 %v399
    %704 = vmatprep.subr.mxu0 %v398
    %705 = vmatpush2.msra.mxu0 %v397
    %706 = vmatprep.mubr.f32.mxu0 %v296
    %707 = vmatmul.mubr.f32.gmra.mxu0 %v295
    %v708 = vpop.f32.mrf.mxu0
    %v709 = vadd.f32 %v638, %v708
    %v710 = vpop.f32.mrf.mxu0
    %v711 = vadd.f32 %v640, %v710
    %712 = vdwg.mxu0
    %v713 = vld [vmem:[#allocation4] sm:$0x3]
    %715 = vset.pattern.permute.xlu0 0
    %716 = vperm.xlu0 %715, %v288
    %v717 = vpop.permute.xlu0 %716
    %v720 = vlaneseq
    %v721 = vshrl.u32 %v720, 7
    %v722 = vsub.s32 0, %v721
    %v723 = vrot.slane %v713, %v722
    %v724 = vlaneseq
    %v725 = vshrl.u32 %v724, 7
    %v726 = vsub.s32 1, %v725
    %v727 = vrot.slane %v713, %v726
    %v730 = vmul.f32 %v717, %v723
    %v731 = vmul.f32 %v717, %v727
    %v732 = vadd.f32 %v709, %v730
    %v733 = vadd.f32 %v711, %v731
    %s734 = scalar_lea.vmem [#allocation2], 1024
    %v735 = vld [vmem:[%s734] sm:$0xff]
    %v736 = vld [vmem:[%s734 + $0x8] sm:$0xff]
    %v737 = vld [vmem:[%s734 + $0x10] sm:$0xff]
    %v738 = vld [vmem:[%s734 + $0x18] sm:$0xff]
    %v739 = vld [vmem:[%s734 + $0x20] sm:$0xff]
    %v740 = vld [vmem:[%s734 + $0x28] sm:$0xff]
    %v741 = vld [vmem:[%s734 + $0x30] sm:$0xff]
    %v742 = vld [vmem:[%s734 + $0x38] sm:$0xff]
    %v743 = vld [vmem:[%s734 + $0x40] sm:$0xff]
    %v744 = vld [vmem:[%s734 + $0x48] sm:$0xff]
    %v745 = vld [vmem:[%s734 + $0x50] sm:$0xff]
    %v746 = vld [vmem:[%s734 + $0x58] sm:$0xff]
    %v747 = vld [vmem:[%s734 + $0x60] sm:$0xff]
    %v748 = vld [vmem:[%s734 + $0x68] sm:$0xff]
    %v749 = vld [vmem:[%s734 + $0x70] sm:$0xff]
    %v750 = vld [vmem:[%s734 + $0x78] sm:$0xff]
    %v751 = vld [vmem:[%s734 + $0x80] sm:$0xff]
    %v752 = vld [vmem:[%s734 + $0x88] sm:$0xff]
    %v753 = vld [vmem:[%s734 + $0x90] sm:$0xff]
    %v754 = vld [vmem:[%s734 + $0x98] sm:$0xff]
    %v755 = vld [vmem:[%s734 + $0xa0] sm:$0xff]
    %v756 = vld [vmem:[%s734 + $0xa8] sm:$0xff]
    %v757 = vld [vmem:[%s734 + $0xb0] sm:$0xff]
    %v758 = vld [vmem:[%s734 + $0xb8] sm:$0xff]
    %v759 = vld [vmem:[%s734 + $0xc0] sm:$0xff]
    %v760 = vld [vmem:[%s734 + $0xc8] sm:$0xff]
    %v761 = vld [vmem:[%s734 + $0xd0] sm:$0xff]
    %v762 = vld [vmem:[%s734 + $0xd8] sm:$0xff]
    %v763 = vld [vmem:[%s734 + $0xe0] sm:$0xff]
    %v764 = vld [vmem:[%s734 + $0xe8] sm:$0xff]
    %v765 = vld [vmem:[%s734 + $0xf0] sm:$0xff]
    %v766 = vld [vmem:[%s734 + $0xf8] sm:$0xff]
    %v767 = vld [vmem:[%s734 + $0x100] sm:$0xff]
    %v768 = vld [vmem:[%s734 + $0x108] sm:$0xff]
    %v769 = vld [vmem:[%s734 + $0x110] sm:$0xff]
    %v770 = vld [vmem:[%s734 + $0x118] sm:$0xff]
    %v771 = vld [vmem:[%s734 + $0x120] sm:$0xff]
    %v772 = vld [vmem:[%s734 + $0x128] sm:$0xff]
    %v773 = vld [vmem:[%s734 + $0x130] sm:$0xff]
    %v774 = vld [vmem:[%s734 + $0x138] sm:$0xff]
    %v775 = vld [vmem:[%s734 + $0x140] sm:$0xff]
    %v776 = vld [vmem:[%s734 + $0x148] sm:$0xff]
    %v777 = vld [vmem:[%s734 + $0x150] sm:$0xff]
    %v778 = vld [vmem:[%s734 + $0x158] sm:$0xff]
    %v779 = vld [vmem:[%s734 + $0x160] sm:$0xff]
    %v780 = vld [vmem:[%s734 + $0x168] sm:$0xff]
    %v781 = vld [vmem:[%s734 + $0x170] sm:$0xff]
    %v782 = vld [vmem:[%s734 + $0x178] sm:$0xff]
    %v783 = vld [vmem:[%s734 + $0x180] sm:$0xff]
    %v784 = vld [vmem:[%s734 + $0x188] sm:$0xff]
    %v785 = vld [vmem:[%s734 + $0x190] sm:$0xff]
    %v786 = vld [vmem:[%s734 + $0x198] sm:$0xff]
    %v787 = vld [vmem:[%s734 + $0x1a0] sm:$0xff]
    %v788 = vld [vmem:[%s734 + $0x1a8] sm:$0xff]
    %v789 = vld [vmem:[%s734 + $0x1b0] sm:$0xff]
    %v790 = vld [vmem:[%s734 + $0x1b8] sm:$0xff]
    %v791 = vld [vmem:[%s734 + $0x1c0] sm:$0xff]
    %v792 = vld [vmem:[%s734 + $0x1c8] sm:$0xff]
    %v793 = vld [vmem:[%s734 + $0x1d0] sm:$0xff]
    %v794 = vld [vmem:[%s734 + $0x1d8] sm:$0xff]
    %v795 = vld [vmem:[%s734 + $0x1e0] sm:$0xff]
    %v796 = vld [vmem:[%s734 + $0x1e8] sm:$0xff]
    %v797 = vld [vmem:[%s734 + $0x1f0] sm:$0xff]
    %v798 = vld [vmem:[%s734 + $0x1f8] sm:$0xff]
    %v799 = vld [vmem:[%s734 + $0x200] sm:$0xff]
    %v800 = vld [vmem:[%s734 + $0x208] sm:$0xff]
    %v801 = vld [vmem:[%s734 + $0x210] sm:$0xff]
    %v802 = vld [vmem:[%s734 + $0x218] sm:$0xff]
    %v803 = vld [vmem:[%s734 + $0x220] sm:$0xff]
    %v804 = vld [vmem:[%s734 + $0x228] sm:$0xff]
    %v805 = vld [vmem:[%s734 + $0x230] sm:$0xff]
    %v806 = vld [vmem:[%s734 + $0x238] sm:$0xff]
    %v807 = vld [vmem:[%s734 + $0x240] sm:$0xff]
    %v808 = vld [vmem:[%s734 + $0x248] sm:$0xff]
    %v809 = vld [vmem:[%s734 + $0x250] sm:$0xff]
    %v810 = vld [vmem:[%s734 + $0x258] sm:$0xff]
    %v811 = vld [vmem:[%s734 + $0x260] sm:$0xff]
    %v812 = vld [vmem:[%s734 + $0x268] sm:$0xff]
    %v813 = vld [vmem:[%s734 + $0x270] sm:$0xff]
    %v814 = vld [vmem:[%s734 + $0x278] sm:$0xff]
    %v815 = vld [vmem:[%s734 + $0x280] sm:$0xff]
    %v816 = vld [vmem:[%s734 + $0x288] sm:$0xff]
    %v817 = vld [vmem:[%s734 + $0x290] sm:$0xff]
    %v818 = vld [vmem:[%s734 + $0x298] sm:$0xff]
    %v819 = vld [vmem:[%s734 + $0x2a0] sm:$0xff]
    %v820 = vld [vmem:[%s734 + $0x2a8] sm:$0xff]
    %v821 = vld [vmem:[%s734 + $0x2b0] sm:$0xff]
    %v822 = vld [vmem:[%s734 + $0x2b8] sm:$0xff]
    %v823 = vld [vmem:[%s734 + $0x2c0] sm:$0xff]
    %v824 = vld [vmem:[%s734 + $0x2c8] sm:$0xff]
    %v825 = vld [vmem:[%s734 + $0x2d0] sm:$0xff]
    %v826 = vld [vmem:[%s734 + $0x2d8] sm:$0xff]
    %v827 = vld [vmem:[%s734 + $0x2e0] sm:$0xff]
    %v828 = vld [vmem:[%s734 + $0x2e8] sm:$0xff]
    %v829 = vld [vmem:[%s734 + $0x2f0] sm:$0xff]
    %v830 = vld [vmem:[%s734 + $0x2f8] sm:$0xff]
    %v831 = vld [vmem:[%s734 + $0x300] sm:$0xff]
    %v832 = vld [vmem:[%s734 + $0x308] sm:$0xff]
    %v833 = vld [vmem:[%s734 + $0x310] sm:$0xff]
    %v834 = vld [vmem:[%s734 + $0x318] sm:$0xff]
    %v835 = vld [vmem:[%s734 + $0x320] sm:$0xff]
    %v836 = vld [vmem:[%s734 + $0x328] sm:$0xff]
    %v837 = vld [vmem:[%s734 + $0x330] sm:$0xff]
    %v838 = vld [vmem:[%s734 + $0x338] sm:$0xff]
    %v839 = vld [vmem:[%s734 + $0x340] sm:$0xff]
    %v840 = vld [vmem:[%s734 + $0x348] sm:$0xff]
    %v841 = vld [vmem:[%s734 + $0x350] sm:$0xff]
    %v842 = vld [vmem:[%s734 + $0x358] sm:$0xff]
    %v843 = vld [vmem:[%s734 + $0x360] sm:$0xff]
    %v844 = vld [vmem:[%s734 + $0x368] sm:$0xff]
    %v845 = vld [vmem:[%s734 + $0x370] sm:$0xff]
    %v846 = vld [vmem:[%s734 + $0x378] sm:$0xff]
    %v847 = vld [vmem:[%s734 + $0x380] sm:$0xff]
    %v848 = vld [vmem:[%s734 + $0x388] sm:$0xff]
    %v849 = vld [vmem:[%s734 + $0x390] sm:$0xff]
    %v850 = vld [vmem:[%s734 + $0x398] sm:$0xff]
    %v851 = vld [vmem:[%s734 + $0x3a0] sm:$0xff]
    %v852 = vld [vmem:[%s734 + $0x3a8] sm:$0xff]
    %v853 = vld [vmem:[%s734 + $0x3b0] sm:$0xff]
    %v854 = vld [vmem:[%s734 + $0x3b8] sm:$0xff]
    %v855 = vld [vmem:[%s734 + $0x3c0] sm:$0xff]
    %v856 = vld [vmem:[%s734 + $0x3c8] sm:$0xff]
    %v857 = vld [vmem:[%s734 + $0x3d0] sm:$0xff]
    %v858 = vld [vmem:[%s734 + $0x3d8] sm:$0xff]
    %v859 = vld [vmem:[%s734 + $0x3e0] sm:$0xff]
    %v860 = vld [vmem:[%s734 + $0x3e8] sm:$0xff]
    %v861 = vld [vmem:[%s734 + $0x3f0] sm:$0xff]
    %v862 = vld [vmem:[%s734 + $0x3f8] sm:$0xff]
    %863 = vmatprep.subr.mxu0 %v766
    %864 = vmatpush1.msra.mxu0 %v765
    %865 = vmatprep.subr.mxu0 %v764
    %866 = vmatpush1.msra.mxu0 %v763
    %867 = vmatprep.subr.mxu0 %v762
    %868 = vmatpush1.msra.mxu0 %v761
    %869 = vmatprep.subr.mxu0 %v760
    %870 = vmatpush1.msra.mxu0 %v759
    %871 = vmatprep.subr.mxu0 %v758
    %872 = vmatpush1.msra.mxu0 %v757
    %873 = vmatprep.subr.mxu0 %v756
    %874 = vmatpush1.msra.mxu0 %v755
    %875 = vmatprep.subr.mxu0 %v754
    %876 = vmatpush1.msra.mxu0 %v753
    %877 = vmatprep.subr.mxu0 %v752
    %878 = vmatpush1.msra.mxu0 %v751
    %879 = vmatprep.subr.mxu0 %v750
    %880 = vmatpush1.msra.mxu0 %v749
    %881 = vmatprep.subr.mxu0 %v748
    %882 = vmatpush1.msra.mxu0 %v747
    %883 = vmatprep.subr.mxu0 %v746
    %884 = vmatpush1.msra.mxu0 %v745
    %885 = vmatprep.subr.mxu0 %v744
    %886 = vmatpush1.msra.mxu0 %v743
    %887 = vmatprep.subr.mxu0 %v742
    %888 = vmatpush1.msra.mxu0 %v741
    %889 = vmatprep.subr.mxu0 %v740
    %890 = vmatpush1.msra.mxu0 %v739
    %891 = vmatprep.subr.mxu0 %v738
    %892 = vmatpush1.msra.mxu0 %v737
    %893 = vmatprep.subr.mxu0 %v736
    %894 = vmatpush1.msra.mxu0 %v735
    %895 = vmatprep.subr.mxu0 %v798
    %896 = vmatpush2.msra.mxu0 %v797
    %897 = vmatprep.subr.mxu0 %v796
    %898 = vmatpush2.msra.mxu0 %v795
    %899 = vmatprep.subr.mxu0 %v794
    %900 = vmatpush2.msra.mxu0 %v793
    %901 = vmatprep.subr.mxu0 %v792
    %902 = vmatpush2.msra.mxu0 %v791
    %903 = vmatprep.subr.mxu0 %v790
    %904 = vmatpush2.msra.mxu0 %v789
    %905 = vmatprep.subr.mxu0 %v788
    %906 = vmatpush2.msra.mxu0 %v787
    %907 = vmatprep.subr.mxu0 %v786
    %908 = vmatpush2.msra.mxu0 %v785
    %909 = vmatprep.subr.mxu0 %v784
    %910 = vmatpush2.msra.mxu0 %v783
    %911 = vmatprep.subr.mxu0 %v782
    %912 = vmatpush2.msra.mxu0 %v781
    %913 = vmatprep.subr.mxu0 %v780
    %914 = vmatpush2.msra.mxu0 %v779
    %915 = vmatprep.subr.mxu0 %v778
    %916 = vmatpush2.msra.mxu0 %v777
    %917 = vmatprep.subr.mxu0 %v776
    %918 = vmatpush2.msra.mxu0 %v775
    %919 = vmatprep.subr.mxu0 %v774
    %920 = vmatpush2.msra.mxu0 %v773
    %921 = vmatprep.subr.mxu0 %v772
    %922 = vmatpush2.msra.mxu0 %v771
    %923 = vmatprep.subr.mxu0 %v770
    %924 = vmatpush2.msra.mxu0 %v769
    %925 = vmatprep.subr.mxu0 %v768
    %926 = vmatpush2.msra.mxu0 %v767
    %927 = vmatprep.mubr.f32.mxu0 %v298
    %928 = vmatmul.mubr.f32.gmra.mxu0 %v297
    %v929 = vpop.f32.mrf.mxu0
    %v930 = vadd.f32 0.0, %v929
    %v931 = vpop.f32.mrf.mxu0
    %v932 = vadd.f32 0.0, %v931
    %933 = vdwg.mxu0
    %934 = vmatprep.subr.mxu0 %v830
    %935 = vmatpush1.msra.mxu0 %v829
    %936 = vmatprep.subr.mxu0 %v828
    %937 = vmatpush1.msra.mxu0 %v827
    %938 = vmatprep.subr.mxu0 %v826
    %939 = vmatpush1.msra.mxu0 %v825
    %940 = vmatprep.subr.mxu0 %v824
    %941 = vmatpush1.msra.mxu0 %v823
    %942 = vmatprep.subr.mxu0 %v822
    %943 = vmatpush1.msra.mxu0 %v821
    %944 = vmatprep.subr.mxu0 %v820
    %945 = vmatpush1.msra.mxu0 %v819
    %946 = vmatprep.subr.mxu0 %v818
    %947 = vmatpush1.msra.mxu0 %v817
    %948 = vmatprep.subr.mxu0 %v816
    %949 = vmatpush1.msra.mxu0 %v815
    %950 = vmatprep.subr.mxu0 %v814
    %951 = vmatpush1.msra.mxu0 %v813
    %952 = vmatprep.subr.mxu0 %v812
    %953 = vmatpush1.msra.mxu0 %v811
    %954 = vmatprep.subr.mxu0 %v810
    %955 = vmatpush1.msra.mxu0 %v809
    %956 = vmatprep.subr.mxu0 %v808
    %957 = vmatpush1.msra.mxu0 %v807
    %958 = vmatprep.subr.mxu0 %v806
    %959 = vmatpush1.msra.mxu0 %v805
    %960 = vmatprep.subr.mxu0 %v804
    %961 = vmatpush1.msra.mxu0 %v803
    %962 = vmatprep.subr.mxu0 %v802
    %963 = vmatpush1.msra.mxu0 %v801
    %964 = vmatprep.subr.mxu0 %v800
    %965 = vmatpush1.msra.mxu0 %v799
    %966 = vmatprep.subr.mxu0 %v862
    %967 = vmatpush2.msra.mxu0 %v861
    %968 = vmatprep.subr.mxu0 %v860
    %969 = vmatpush2.msra.mxu0 %v859
    %970 = vmatprep.subr.mxu0 %v858
    %971 = vmatpush2.msra.mxu0 %v857
    %972 = vmatprep.subr.mxu0 %v856
    %973 = vmatpush2.msra.mxu0 %v855
    %974 = vmatprep.subr.mxu0 %v854
    %975 = vmatpush2.msra.mxu0 %v853
    %976 = vmatprep.subr.mxu0 %v852
    %977 = vmatpush2.msra.mxu0 %v851
    %978 = vmatprep.subr.mxu0 %v850
    %979 = vmatpush2.msra.mxu0 %v849
    %980 = vmatprep.subr.mxu0 %v848
    %981 = vmatpush2.msra.mxu0 %v847
    %982 = vmatprep.subr.mxu0 %v846
    %983 = vmatpush2.msra.mxu0 %v845
    %984 = vmatprep.subr.mxu0 %v844
    %985 = vmatpush2.msra.mxu0 %v843
    %986 = vmatprep.subr.mxu0 %v842
    %987 = vmatpush2.msra.mxu0 %v841
    %988 = vmatprep.subr.mxu0 %v840
    %989 = vmatpush2.msra.mxu0 %v839
    %990 = vmatprep.subr.mxu0 %v838
    %991 = vmatpush2.msra.mxu0 %v837
    %992 = vmatprep.subr.mxu0 %v836
    %993 = vmatpush2.msra.mxu0 %v835
    %994 = vmatprep.subr.mxu0 %v834
    %995 = vmatpush2.msra.mxu0 %v833
    %996 = vmatprep.subr.mxu0 %v832
    %997 = vmatpush2.msra.mxu0 %v831
    %998 = vmatprep.mubr.f32.mxu0 %v300
    %999 = vmatmul.mubr.f32.gmra.mxu0 %v299
    %v1000 = vpop.f32.mrf.mxu0
    %v1001 = vadd.f32 %v930, %v1000
    %v1002 = vpop.f32.mrf.mxu0
    %v1003 = vadd.f32 %v932, %v1002
    %1004 = vdwg.mxu0
    %1005 = vmatprep.subr.mxu0 %v766
    %1006 = vmatpush1.msra.mxu0 %v765
    %1007 = vmatprep.subr.mxu0 %v764
    %1008 = vmatpush1.msra.mxu0 %v763
    %1009 = vmatprep.subr.mxu0 %v762
    %1010 = vmatpush1.msra.mxu0 %v761
    %1011 = vmatprep.subr.mxu0 %v760
    %1012 = vmatpush1.msra.mxu0 %v759
    %1013 = vmatprep.subr.mxu0 %v758
    %1014 = vmatpush1.msra.mxu0 %v757
    %1015 = vmatprep.subr.mxu0 %v756
    %1016 = vmatpush1.msra.mxu0 %v755
    %1017 = vmatprep.subr.mxu0 %v754
    %1018 = vmatpush1.msra.mxu0 %v753
    %1019 = vmatprep.subr.mxu0 %v752
    %1020 = vmatpush1.msra.mxu0 %v751
    %1021 = vmatprep.subr.mxu0 %v750
    %1022 = vmatpush1.msra.mxu0 %v749
    %1023 = vmatprep.subr.mxu0 %v748
    %1024 = vmatpush1.msra.mxu0 %v747
    %1025 = vmatprep.subr.mxu0 %v746
    %1026 = vmatpush1.msra.mxu0 %v745
    %1027 = vmatprep.subr.mxu0 %v744
    %1028 = vmatpush1.msra.mxu0 %v743
    %1029 = vmatprep.subr.mxu0 %v742
    %1030 = vmatpush1.msra.mxu0 %v741
    %1031 = vmatprep.subr.mxu0 %v740
    %1032 = vmatpush1.msra.mxu0 %v739
    %1033 = vmatprep.subr.mxu0 %v738
    %1034 = vmatpush1.msra.mxu0 %v737
    %1035 = vmatprep.subr.mxu0 %v736
    %1036 = vmatpush1.msra.mxu0 %v735
    %1037 = vmatprep.subr.mxu0 %v798
    %1038 = vmatpush2.msra.mxu0 %v797
    %1039 = vmatprep.subr.mxu0 %v796
    %1040 = vmatpush2.msra.mxu0 %v795
    %1041 = vmatprep.subr.mxu0 %v794
    %1042 = vmatpush2.msra.mxu0 %v793
    %1043 = vmatprep.subr.mxu0 %v792
    %1044 = vmatpush2.msra.mxu0 %v791
    %1045 = vmatprep.subr.mxu0 %v790
    %1046 = vmatpush2.msra.mxu0 %v789
    %1047 = vmatprep.subr.mxu0 %v788
    %1048 = vmatpush2.msra.mxu0 %v787
    %1049 = vmatprep.subr.mxu0 %v786
    %1050 = vmatpush2.msra.mxu0 %v785
    %1051 = vmatprep.subr.mxu0 %v784
    %1052 = vmatpush2.msra.mxu0 %v783
    %1053 = vmatprep.subr.mxu0 %v782
    %1054 = vmatpush2.msra.mxu0 %v781
    %1055 = vmatprep.subr.mxu0 %v780
    %1056 = vmatpush2.msra.mxu0 %v779
    %1057 = vmatprep.subr.mxu0 %v778
    %1058 = vmatpush2.msra.mxu0 %v777
    %1059 = vmatprep.subr.mxu0 %v776
    %1060 = vmatpush2.msra.mxu0 %v775
    %1061 = vmatprep.subr.mxu0 %v774
    %1062 = vmatpush2.msra.mxu0 %v773
    %1063 = vmatprep.subr.mxu0 %v772
    %1064 = vmatpush2.msra.mxu0 %v771
    %1065 = vmatprep.subr.mxu0 %v770
    %1066 = vmatpush2.msra.mxu0 %v769
    %1067 = vmatprep.subr.mxu0 %v768
    %1068 = vmatpush2.msra.mxu0 %v767
    %1069 = vmatprep.mubr.f32.mxu0 %v294
    %1070 = vmatmul.mubr.f32.gmra.mxu0 %v293
    %v1071 = vpop.f32.mrf.mxu0
    %v1072 = vadd.f32 %v1001, %v1071
    %v1073 = vpop.f32.mrf.mxu0
    %v1074 = vadd.f32 %v1003, %v1073
    %1075 = vdwg.mxu0
    %1076 = vmatprep.subr.mxu0 %v830
    %1077 = vmatpush1.msra.mxu0 %v829
    %1078 = vmatprep.subr.mxu0 %v828
    %1079 = vmatpush1.msra.mxu0 %v827
    %1080 = vmatprep.subr.mxu0 %v826
    %1081 = vmatpush1.msra.mxu0 %v825
    %1082 = vmatprep.subr.mxu0 %v824
    %1083 = vmatpush1.msra.mxu0 %v823
    %1084 = vmatprep.subr.mxu0 %v822
    %1085 = vmatpush1.msra.mxu0 %v821
    %1086 = vmatprep.subr.mxu0 %v820
    %1087 = vmatpush1.msra.mxu0 %v819
    %1088 = vmatprep.subr.mxu0 %v818
    %1089 = vmatpush1.msra.mxu0 %v817
    %1090 = vmatprep.subr.mxu0 %v816
    %1091 = vmatpush1.msra.mxu0 %v815
    %1092 = vmatprep.subr.mxu0 %v814
    %1093 = vmatpush1.msra.mxu0 %v813
    %1094 = vmatprep.subr.mxu0 %v812
    %1095 = vmatpush1.msra.mxu0 %v811
    %1096 = vmatprep.subr.mxu0 %v810
    %1097 = vmatpush1.msra.mxu0 %v809
    %1098 = vmatprep.subr.mxu0 %v808
    %1099 = vmatpush1.msra.mxu0 %v807
    %1100 = vmatprep.subr.mxu0 %v806
    %1101 = vmatpush1.msra.mxu0 %v805
    %1102 = vmatprep.subr.mxu0 %v804
    %1103 = vmatpush1.msra.mxu0 %v803
    %1104 = vmatprep.subr.mxu0 %v802
    %1105 = vmatpush1.msra.mxu0 %v801
    %1106 = vmatprep.subr.mxu0 %v800
    %1107 = vmatpush1.msra.mxu0 %v799
    %1108 = vmatprep.subr.mxu0 %v862
    %1109 = vmatpush2.msra.mxu0 %v861
    %1110 = vmatprep.subr.mxu0 %v860
    %1111 = vmatpush2.msra.mxu0 %v859
    %1112 = vmatprep.subr.mxu0 %v858
    %1113 = vmatpush2.msra.mxu0 %v857
    %1114 = vmatprep.subr.mxu0 %v856
    %1115 = vmatpush2.msra.mxu0 %v855
    %1116 = vmatprep.subr.mxu0 %v854
    %1117 = vmatpush2.msra.mxu0 %v853
    %1118 = vmatprep.subr.mxu0 %v852
    %1119 = vmatpush2.msra.mxu0 %v851
    %1120 = vmatprep.subr.mxu0 %v850
    %1121 = vmatpush2.msra.mxu0 %v849
    %1122 = vmatprep.subr.mxu0 %v848
    %1123 = vmatpush2.msra.mxu0 %v847
    %1124 = vmatprep.subr.mxu0 %v846
    %1125 = vmatpush2.msra.mxu0 %v845
    %1126 = vmatprep.subr.mxu0 %v844
    %1127 = vmatpush2.msra.mxu0 %v843
    %1128 = vmatprep.subr.mxu0 %v842
    %1129 = vmatpush2.msra.mxu0 %v841
    %1130 = vmatprep.subr.mxu0 %v840
    %1131 = vmatpush2.msra.mxu0 %v839
    %1132 = vmatprep.subr.mxu0 %v838
    %1133 = vmatpush2.msra.mxu0 %v837
    %1134 = vmatprep.subr.mxu0 %v836
    %1135 = vmatpush2.msra.mxu0 %v835
    %1136 = vmatprep.subr.mxu0 %v834
    %1137 = vmatpush2.msra.mxu0 %v833
    %1138 = vmatprep.subr.mxu0 %v832
    %1139 = vmatpush2.msra.mxu0 %v831
    %1140 = vmatprep.mubr.f32.mxu0 %v296
    %1141 = vmatmul.mubr.f32.gmra.mxu0 %v295
    %v1142 = vpop.f32.mrf.mxu0
    %v1143 = vadd.f32 %v1072, %v1142
    %v1144 = vpop.f32.mrf.mxu0
    %v1145 = vadd.f32 %v1074, %v1144
    %1146 = vdwg.mxu0
    %s1147 = scalar_lea.vmem [#allocation4], 2
    %v1148 = vld [vmem:[%s1147] sm:$0x3]
    %v1150 = vlaneseq
    %v1151 = vshrl.u32 %v1150, 7
    %v1152 = vsub.s32 0, %v1151
    %v1153 = vrot.slane %v1148, %v1152
    %v1154 = vlaneseq
    %v1155 = vshrl.u32 %v1154, 7
    %v1156 = vsub.s32 1, %v1155
    %v1157 = vrot.slane %v1148, %v1156
    %v1160 = vmul.f32 %v717, %v1153
    %v1161 = vmul.f32 %v717, %v1157
    %v1162 = vadd.f32 %v1143, %v1160
    %v1163 = vadd.f32 %v1145, %v1161
    %v1164 = vmax.f32 %v732, %v1162
    %v1165 = vmax.f32 %v733, %v1163
    %s1166 = scalar_lea.vmem [#allocation2], 2048
    %v1167 = vld [vmem:[%s1166] sm:$0xff]
    %v1168 = vld [vmem:[%s1166 + $0x8] sm:$0xff]
    %v1169 = vld [vmem:[%s1166 + $0x10] sm:$0xff]
    %v1170 = vld [vmem:[%s1166 + $0x18] sm:$0xff]
    %v1171 = vld [vmem:[%s1166 + $0x20] sm:$0xff]
    %v1172 = vld [vmem:[%s1166 + $0x28] sm:$0xff]
    %v1173 = vld [vmem:[%s1166 + $0x30] sm:$0xff]
    %v1174 = vld [vmem:[%s1166 + $0x38] sm:$0xff]
    %v1175 = vld [vmem:[%s1166 + $0x40] sm:$0xff]
    %v1176 = vld [vmem:[%s1166 + $0x48] sm:$0xff]
    %v1177 = vld [vmem:[%s1166 + $0x50] sm:$0xff]
    %v1178 = vld [vmem:[%s1166 + $0x58] sm:$0xff]
    %v1179 = vld [vmem:[%s1166 + $0x60] sm:$0xff]
    %v1180 = vld [vmem:[%s1166 + $0x68] sm:$0xff]
    %v1181 = vld [vmem:[%s1166 + $0x70] sm:$0xff]
    %v1182 = vld [vmem:[%s1166 + $0x78] sm:$0xff]
    %v1183 = vld [vmem:[%s1166 + $0x80] sm:$0xff]
    %v1184 = vld [vmem:[%s1166 + $0x88] sm:$0xff]
    %v1185 = vld [vmem:[%s1166 + $0x90] sm:$0xff]
    %v1186 = vld [vmem:[%s1166 + $0x98] sm:$0xff]
    %v1187 = vld [vmem:[%s1166 + $0xa0] sm:$0xff]
    %v1188 = vld [vmem:[%s1166 + $0xa8] sm:$0xff]
    %v1189 = vld [vmem:[%s1166 + $0xb0] sm:$0xff]
    %v1190 = vld [vmem:[%s1166 + $0xb8] sm:$0xff]
    %v1191 = vld [vmem:[%s1166 + $0xc0] sm:$0xff]
    %v1192 = vld [vmem:[%s1166 + $0xc8] sm:$0xff]
    %v1193 = vld [vmem:[%s1166 + $0xd0] sm:$0xff]
    %v1194 = vld [vmem:[%s1166 + $0xd8] sm:$0xff]
    %v1195 = vld [vmem:[%s1166 + $0xe0] sm:$0xff]
    %v1196 = vld [vmem:[%s1166 + $0xe8] sm:$0xff]
    %v1197 = vld [vmem:[%s1166 + $0xf0] sm:$0xff]
    %v1198 = vld [vmem:[%s1166 + $0xf8] sm:$0xff]
    %v1199 = vld [vmem:[%s1166 + $0x100] sm:$0xff]
    %v1200 = vld [vmem:[%s1166 + $0x108] sm:$0xff]
    %v1201 = vld [vmem:[%s1166 + $0x110] sm:$0xff]
    %v1202 = vld [vmem:[%s1166 + $0x118] sm:$0xff]
    %v1203 = vld [vmem:[%s1166 + $0x120] sm:$0xff]
    %v1204 = vld [vmem:[%s1166 + $0x128] sm:$0xff]
    %v1205 = vld [vmem:[%s1166 + $0x130] sm:$0xff]
    %v1206 = vld [vmem:[%s1166 + $0x138] sm:$0xff]
    %v1207 = vld [vmem:[%s1166 + $0x140] sm:$0xff]
    %v1208 = vld [vmem:[%s1166 + $0x148] sm:$0xff]
    %v1209 = vld [vmem:[%s1166 + $0x150] sm:$0xff]
    %v1210 = vld [vmem:[%s1166 + $0x158] sm:$0xff]
    %v1211 = vld [vmem:[%s1166 + $0x160] sm:$0xff]
    %v1212 = vld [vmem:[%s1166 + $0x168] sm:$0xff]
    %v1213 = vld [vmem:[%s1166 + $0x170] sm:$0xff]
    %v1214 = vld [vmem:[%s1166 + $0x178] sm:$0xff]
    %v1215 = vld [vmem:[%s1166 + $0x180] sm:$0xff]
    %v1216 = vld [vmem:[%s1166 + $0x188] sm:$0xff]
    %v1217 = vld [vmem:[%s1166 + $0x190] sm:$0xff]
    %v1218 = vld [vmem:[%s1166 + $0x198] sm:$0xff]
    %v1219 = vld [vmem:[%s1166 + $0x1a0] sm:$0xff]
    %v1220 = vld [vmem:[%s1166 + $0x1a8] sm:$0xff]
    %v1221 = vld [vmem:[%s1166 + $0x1b0] sm:$0xff]
    %v1222 = vld [vmem:[%s1166 + $0x1b8] sm:$0xff]
    %v1223 = vld [vmem:[%s1166 + $0x1c0] sm:$0xff]
    %v1224 = vld [vmem:[%s1166 + $0x1c8] sm:$0xff]
    %v1225 = vld [vmem:[%s1166 + $0x1d0] sm:$0xff]
    %v1226 = vld [vmem:[%s1166 + $0x1d8] sm:$0xff]
    %v1227 = vld [vmem:[%s1166 + $0x1e0] sm:$0xff]
    %v1228 = vld [vmem:[%s1166 + $0x1e8] sm:$0xff]
    %v1229 = vld [vmem:[%s1166 + $0x1f0] sm:$0xff]
    %v1230 = vld [vmem:[%s1166 + $0x1f8] sm:$0xff]
    %v1231 = vld [vmem:[%s1166 + $0x200] sm:$0xff]
    %v1232 = vld [vmem:[%s1166 + $0x208] sm:$0xff]
    %v1233 = vld [vmem:[%s1166 + $0x210] sm:$0xff]
    %v1234 = vld [vmem:[%s1166 + $0x218] sm:$0xff]
    %v1235 = vld [vmem:[%s1166 + $0x220] sm:$0xff]
    %v1236 = vld [vmem:[%s1166 + $0x228] sm:$0xff]
    %v1237 = vld [vmem:[%s1166 + $0x230] sm:$0xff]
    %v1238 = vld [vmem:[%s1166 + $0x238] sm:$0xff]
    %v1239 = vld [vmem:[%s1166 + $0x240] sm:$0xff]
    %v1240 = vld [vmem:[%s1166 + $0x248] sm:$0xff]
    %v1241 = vld [vmem:[%s1166 + $0x250] sm:$0xff]
    %v1242 = vld [vmem:[%s1166 + $0x258] sm:$0xff]
    %v1243 = vld [vmem:[%s1166 + $0x260] sm:$0xff]
    %v1244 = vld [vmem:[%s1166 + $0x268] sm:$0xff]
    %v1245 = vld [vmem:[%s1166 + $0x270] sm:$0xff]
    %v1246 = vld [vmem:[%s1166 + $0x278] sm:$0xff]
    %v1247 = vld [vmem:[%s1166 + $0x280] sm:$0xff]
    %v1248 = vld [vmem:[%s1166 + $0x288] sm:$0xff]
    %v1249 = vld [vmem:[%s1166 + $0x290] sm:$0xff]
    %v1250 = vld [vmem:[%s1166 + $0x298] sm:$0xff]
    %v1251 = vld [vmem:[%s1166 + $0x2a0] sm:$0xff]
    %v1252 = vld [vmem:[%s1166 + $0x2a8] sm:$0xff]
    %v1253 = vld [vmem:[%s1166 + $0x2b0] sm:$0xff]
    %v1254 = vld [vmem:[%s1166 + $0x2b8] sm:$0xff]
    %v1255 = vld [vmem:[%s1166 + $0x2c0] sm:$0xff]
    %v1256 = vld [vmem:[%s1166 + $0x2c8] sm:$0xff]
    %v1257 = vld [vmem:[%s1166 + $0x2d0] sm:$0xff]
    %v1258 = vld [vmem:[%s1166 + $0x2d8] sm:$0xff]
    %v1259 = vld [vmem:[%s1166 + $0x2e0] sm:$0xff]
    %v1260 = vld [vmem:[%s1166 + $0x2e8] sm:$0xff]
    %v1261 = vld [vmem:[%s1166 + $0x2f0] sm:$0xff]
    %v1262 = vld [vmem:[%s1166 + $0x2f8] sm:$0xff]
    %v1263 = vld [vmem:[%s1166 + $0x300] sm:$0xff]
    %v1264 = vld [vmem:[%s1166 + $0x308] sm:$0xff]
    %v1265 = vld [vmem:[%s1166 + $0x310] sm:$0xff]
    %v1266 = vld [vmem:[%s1166 + $0x318] sm:$0xff]
    %v1267 = vld [vmem:[%s1166 + $0x320] sm:$0xff]
    %v1268 = vld [vmem:[%s1166 + $0x328] sm:$0xff]
    %v1269 = vld [vmem:[%s1166 + $0x330] sm:$0xff]
    %v1270 = vld [vmem:[%s1166 + $0x338] sm:$0xff]
    %v1271 = vld [vmem:[%s1166 + $0x340] sm:$0xff]
    %v1272 = vld [vmem:[%s1166 + $0x348] sm:$0xff]
    %v1273 = vld [vmem:[%s1166 + $0x350] sm:$0xff]
    %v1274 = vld [vmem:[%s1166 + $0x358] sm:$0xff]
    %v1275 = vld [vmem:[%s1166 + $0x360] sm:$0xff]
    %v1276 = vld [vmem:[%s1166 + $0x368] sm:$0xff]
    %v1277 = vld [vmem:[%s1166 + $0x370] sm:$0xff]
    %v1278 = vld [vmem:[%s1166 + $0x378] sm:$0xff]
    %v1279 = vld [vmem:[%s1166 + $0x380] sm:$0xff]
    %v1280 = vld [vmem:[%s1166 + $0x388] sm:$0xff]
    %v1281 = vld [vmem:[%s1166 + $0x390] sm:$0xff]
    %v1282 = vld [vmem:[%s1166 + $0x398] sm:$0xff]
    %v1283 = vld [vmem:[%s1166 + $0x3a0] sm:$0xff]
    %v1284 = vld [vmem:[%s1166 + $0x3a8] sm:$0xff]
    %v1285 = vld [vmem:[%s1166 + $0x3b0] sm:$0xff]
    %v1286 = vld [vmem:[%s1166 + $0x3b8] sm:$0xff]
    %v1287 = vld [vmem:[%s1166 + $0x3c0] sm:$0xff]
    %v1288 = vld [vmem:[%s1166 + $0x3c8] sm:$0xff]
    %v1289 = vld [vmem:[%s1166 + $0x3d0] sm:$0xff]
    %v1290 = vld [vmem:[%s1166 + $0x3d8] sm:$0xff]
    %v1291 = vld [vmem:[%s1166 + $0x3e0] sm:$0xff]
    %v1292 = vld [vmem:[%s1166 + $0x3e8] sm:$0xff]
    %v1293 = vld [vmem:[%s1166 + $0x3f0] sm:$0xff]
    %v1294 = vld [vmem:[%s1166 + $0x3f8] sm:$0xff]
    %1295 = vmatprep.subr.mxu0 %v1198
    %1296 = vmatpush1.msra.mxu0 %v1197
    %1297 = vmatprep.subr.mxu0 %v1196
    %1298 = vmatpush1.msra.mxu0 %v1195
    %1299 = vmatprep.subr.mxu0 %v1194
    %1300 = vmatpush1.msra.mxu0 %v1193
    %1301 = vmatprep.subr.mxu0 %v1192
    %1302 = vmatpush1.msra.mxu0 %v1191
    %1303 = vmatprep.subr.mxu0 %v1190
    %1304 = vmatpush1.msra.mxu0 %v1189
    %1305 = vmatprep.subr.mxu0 %v1188
    %1306 = vmatpush1.msra.mxu0 %v1187
    %1307 = vmatprep.subr.mxu0 %v1186
    %1308 = vmatpush1.msra.mxu0 %v1185
    %1309 = vmatprep.subr.mxu0 %v1184
    %1310 = vmatpush1.msra.mxu0 %v1183
    %1311 = vmatprep.subr.mxu0 %v1182
    %1312 = vmatpush1.msra.mxu0 %v1181
    %1313 = vmatprep.subr.mxu0 %v1180
    %1314 = vmatpush1.msra.mxu0 %v1179
    %1315 = vmatprep.subr.mxu0 %v1178
    %1316 = vmatpush1.msra.mxu0 %v1177
    %1317 = vmatprep.subr.mxu0 %v1176
    %1318 = vmatpush1.msra.mxu0 %v1175
    %1319 = vmatprep.subr.mxu0 %v1174
    %1320 = vmatpush1.msra.mxu0 %v1173
    %1321 = vmatprep.subr.mxu0 %v1172
    %1322 = vmatpush1.msra.mxu0 %v1171
    %1323 = vmatprep.subr.mxu0 %v1170
    %1324 = vmatpush1.msra.mxu0 %v1169
    %1325 = vmatprep.subr.mxu0 %v1168
    %1326 = vmatpush1.msra.mxu0 %v1167
    %1327 = vmatprep.subr.mxu0 %v1230
    %1328 = vmatpush2.msra.mxu0 %v1229
    %1329 = vmatprep.subr.mxu0 %v1228
    %1330 = vmatpush2.msra.mxu0 %v1227
    %1331 = vmatprep.subr.mxu0 %v1226
    %1332 = vmatpush2.msra.mxu0 %v1225
    %1333 = vmatprep.subr.mxu0 %v1224
    %1334 = vmatpush2.msra.mxu0 %v1223
    %1335 = vmatprep.subr.mxu0 %v1222
    %1336 = vmatpush2.msra.mxu0 %v1221
    %1337 = vmatprep.subr.mxu0 %v1220
    %1338 = vmatpush2.msra.mxu0 %v1219
    %1339 = vmatprep.subr.mxu0 %v1218
    %1340 = vmatpush2.msra.mxu0 %v1217
    %1341 = vmatprep.subr.mxu0 %v1216
    %1342 = vmatpush2.msra.mxu0 %v1215
    %1343 = vmatprep.subr.mxu0 %v1214
    %1344 = vmatpush2.msra.mxu0 %v1213
    %1345 = vmatprep.subr.mxu0 %v1212
    %1346 = vmatpush2.msra.mxu0 %v1211
    %1347 = vmatprep.subr.mxu0 %v1210
    %1348 = vmatpush2.msra.mxu0 %v1209
    %1349 = vmatprep.subr.mxu0 %v1208
    %1350 = vmatpush2.msra.mxu0 %v1207
    %1351 = vmatprep.subr.mxu0 %v1206
    %1352 = vmatpush2.msra.mxu0 %v1205
    %1353 = vmatprep.subr.mxu0 %v1204
    %1354 = vmatpush2.msra.mxu0 %v1203
    %1355 = vmatprep.subr.mxu0 %v1202
    %1356 = vmatpush2.msra.mxu0 %v1201
    %1357 = vmatprep.subr.mxu0 %v1200
    %1358 = vmatpush2.msra.mxu0 %v1199
    %1359 = vmatprep.mubr.f32.mxu0 %v298
    %1360 = vmatmul.mubr.f32.gmra.mxu0 %v297
    %v1361 = vpop.f32.mrf.mxu0
    %v1362 = vadd.f32 0.0, %v1361
    %v1363 = vpop.f32.mrf.mxu0
    %v1364 = vadd.f32 0.0, %v1363
    %1365 = vdwg.mxu0
    %1366 = vmatprep.subr.mxu0 %v1262
    %1367 = vmatpush1.msra.mxu0 %v1261
    %1368 = vmatprep.subr.mxu0 %v1260
    %1369 = vmatpush1.msra.mxu0 %v1259
    %1370 = vmatprep.subr.mxu0 %v1258
    %1371 = vmatpush1.msra.mxu0 %v1257
    %1372 = vmatprep.subr.mxu0 %v1256
    %1373 = vmatpush1.msra.mxu0 %v1255
    %1374 = vmatprep.subr.mxu0 %v1254
    %1375 = vmatpush1.msra.mxu0 %v1253
    %1376 = vmatprep.subr.mxu0 %v1252
    %1377 = vmatpush1.msra.mxu0 %v1251
    %1378 = vmatprep.subr.mxu0 %v1250
    %1379 = vmatpush1.msra.mxu0 %v1249
    %1380 = vmatprep.subr.mxu0 %v1248
    %1381 = vmatpush1.msra.mxu0 %v1247
    %1382 = vmatprep.subr.mxu0 %v1246
    %1383 = vmatpush1.msra.mxu0 %v1245
    %1384 = vmatprep.subr.mxu0 %v1244
    %1385 = vmatpush1.msra.mxu0 %v1243
    %1386 = vmatprep.subr.mxu0 %v1242
    %1387 = vmatpush1.msra.mxu0 %v1241
    %1388 = vmatprep.subr.mxu0 %v1240
    %1389 = vmatpush1.msra.mxu0 %v1239
    %1390 = vmatprep.subr.mxu0 %v1238
    %1391 = vmatpush1.msra.mxu0 %v1237
    %1392 = vmatprep.subr.mxu0 %v1236
    %1393 = vmatpush1.msra.mxu0 %v1235
    %1394 = vmatprep.subr.mxu0 %v1234
    %1395 = vmatpush1.msra.mxu0 %v1233
    %1396 = vmatprep.subr.mxu0 %v1232
    %1397 = vmatpush1.msra.mxu0 %v1231
    %1398 = vmatprep.subr.mxu0 %v1294
    %1399 = vmatpush2.msra.mxu0 %v1293
    %1400 = vmatprep.subr.mxu0 %v1292
    %1401 = vmatpush2.msra.mxu0 %v1291
    %1402 = vmatprep.subr.mxu0 %v1290
    %1403 = vmatpush2.msra.mxu0 %v1289
    %1404 = vmatprep.subr.mxu0 %v1288
    %1405 = vmatpush2.msra.mxu0 %v1287
    %1406 = vmatprep.subr.mxu0 %v1286
    %1407 = vmatpush2.msra.mxu0 %v1285
    %1408 = vmatprep.subr.mxu0 %v1284
    %1409 = vmatpush2.msra.mxu0 %v1283
    %1410 = vmatprep.subr.mxu0 %v1282
    %1411 = vmatpush2.msra.mxu0 %v1281
    %1412 = vmatprep.subr.mxu0 %v1280
    %1413 = vmatpush2.msra.mxu0 %v1279
    %1414 = vmatprep.subr.mxu0 %v1278
    %1415 = vmatpush2.msra.mxu0 %v1277
    %1416 = vmatprep.subr.mxu0 %v1276
    %1417 = vmatpush2.msra.mxu0 %v1275
    %1418 = vmatprep.subr.mxu0 %v1274
    %1419 = vmatpush2.msra.mxu0 %v1273
    %1420 = vmatprep.subr.mxu0 %v1272
    %1421 = vmatpush2.msra.mxu0 %v1271
    %1422 = vmatprep.subr.mxu0 %v1270
    %1423 = vmatpush2.msra.mxu0 %v1269
    %1424 = vmatprep.subr.mxu0 %v1268
    %1425 = vmatpush2.msra.mxu0 %v1267
    %1426 = vmatprep.subr.mxu0 %v1266
    %1427 = vmatpush2.msra.mxu0 %v1265
    %1428 = vmatprep.subr.mxu0 %v1264
    %1429 = vmatpush2.msra.mxu0 %v1263
    %1430 = vmatprep.mubr.f32.mxu0 %v300
    %1431 = vmatmul.mubr.f32.gmra.mxu0 %v299
    %v1432 = vpop.f32.mrf.mxu0
    %v1433 = vadd.f32 %v1362, %v1432
    %v1434 = vpop.f32.mrf.mxu0
    %v1435 = vadd.f32 %v1364, %v1434
    %1436 = vdwg.mxu0
    %1437 = vmatprep.subr.mxu0 %v1198
    %1438 = vmatpush1.msra.mxu0 %v1197
    %1439 = vmatprep.subr.mxu0 %v1196
    %1440 = vmatpush1.msra.mxu0 %v1195
    %1441 = vmatprep.subr.mxu0 %v1194
    %1442 = vmatpush1.msra.mxu0 %v1193
    %1443 = vmatprep.subr.mxu0 %v1192
    %1444 = vmatpush1.msra.mxu0 %v1191
    %1445 = vmatprep.subr.mxu0 %v1190
    %1446 = vmatpush1.msra.mxu0 %v1189
    %1447 = vmatprep.subr.mxu0 %v1188
    %1448 = vmatpush1.msra.mxu0 %v1187
    %1449 = vmatprep.subr.mxu0 %v1186
    %1450 = vmatpush1.msra.mxu0 %v1185
    %1451 = vmatprep.subr.mxu0 %v1184
    %1452 = vmatpush1.msra.mxu0 %v1183
    %1453 = vmatprep.subr.mxu0 %v1182
    %1454 = vmatpush1.msra.mxu0 %v1181
    %1455 = vmatprep.subr.mxu0 %v1180
    %1456 = vmatpush1.msra.mxu0 %v1179
    %1457 = vmatprep.subr.mxu0 %v1178
    %1458 = vmatpush1.msra.mxu0 %v1177
    %1459 = vmatprep.subr.mxu0 %v1176
    %1460 = vmatpush1.msra.mxu0 %v1175
    %1461 = vmatprep.subr.mxu0 %v1174
    %1462 = vmatpush1.msra.mxu0 %v1173
    %1463 = vmatprep.subr.mxu0 %v1172
    %1464 = vmatpush1.msra.mxu0 %v1171
    %1465 = vmatprep.subr.mxu0 %v1170
    %1466 = vmatpush1.msra.mxu0 %v1169
    %1467 = vmatprep.subr.mxu0 %v1168
    %1468 = vmatpush1.msra.mxu0 %v1167
    %1469 = vmatprep.subr.mxu0 %v1230
    %1470 = vmatpush2.msra.mxu0 %v1229
    %1471 = vmatprep.subr.mxu0 %v1228
    %1472 = vmatpush2.msra.mxu0 %v1227
    %1473 = vmatprep.subr.mxu0 %v1226
    %1474 = vmatpush2.msra.mxu0 %v1225
    %1475 = vmatprep.subr.mxu0 %v1224
    %1476 = vmatpush2.msra.mxu0 %v1223
    %1477 = vmatprep.subr.mxu0 %v1222
    %1478 = vmatpush2.msra.mxu0 %v1221
    %1479 = vmatprep.subr.mxu0 %v1220
    %1480 = vmatpush2.msra.mxu0 %v1219
    %1481 = vmatprep.subr.mxu0 %v1218
    %1482 = vmatpush2.msra.mxu0 %v1217
    %1483 = vmatprep.subr.mxu0 %v1216
    %1484 = vmatpush2.msra.mxu0 %v1215
    %1485 = vmatprep.subr.mxu0 %v1214
    %1486 = vmatpush2.msra.mxu0 %v1213
    %1487 = vmatprep.subr.mxu0 %v1212
    %1488 = vmatpush2.msra.mxu0 %v1211
    %1489 = vmatprep.subr.mxu0 %v1210
    %1490 = vmatpush2.msra.mxu0 %v1209
    %1491 = vmatprep.subr.mxu0 %v1208
    %1492 = vmatpush2.msra.mxu0 %v1207
    %1493 = vmatprep.subr.mxu0 %v1206
    %1494 = vmatpush2.msra.mxu0 %v1205
    %1495 = vmatprep.subr.mxu0 %v1204
    %1496 = vmatpush2.msra.mxu0 %v1203
    %1497 = vmatprep.subr.mxu0 %v1202
    %1498 = vmatpush2.msra.mxu0 %v1201
    %1499 = vmatprep.subr.mxu0 %v1200
    %1500 = vmatpush2.msra.mxu0 %v1199
    %1501 = vmatprep.mubr.f32.mxu0 %v294
    %1502 = vmatmul.mubr.f32.gmra.mxu0 %v293
    %v1503 = vpop.f32.mrf.mxu0
    %v1504 = vadd.f32 %v1433, %v1503
    %v1505 = vpop.f32.mrf.mxu0
    %v1506 = vadd.f32 %v1435, %v1505
    %1507 = vdwg.mxu0
    %1508 = vmatprep.subr.mxu0 %v1262
    %1509 = vmatpush1.msra.mxu0 %v1261
    %1510 = vmatprep.subr.mxu0 %v1260
    %1511 = vmatpush1.msra.mxu0 %v1259
    %1512 = vmatprep.subr.mxu0 %v1258
    %1513 = vmatpush1.msra.mxu0 %v1257
    %1514 = vmatprep.subr.mxu0 %v1256
    %1515 = vmatpush1.msra.mxu0 %v1255
    %1516 = vmatprep.subr.mxu0 %v1254
    %1517 = vmatpush1.msra.mxu0 %v1253
    %1518 = vmatprep.subr.mxu0 %v1252
    %1519 = vmatpush1.msra.mxu0 %v1251
    %1520 = vmatprep.subr.mxu0 %v1250
    %1521 = vmatpush1.msra.mxu0 %v1249
    %1522 = vmatprep.subr.mxu0 %v1248
    %1523 = vmatpush1.msra.mxu0 %v1247
    %1524 = vmatprep.subr.mxu0 %v1246
    %1525 = vmatpush1.msra.mxu0 %v1245
    %1526 = vmatprep.subr.mxu0 %v1244
    %1527 = vmatpush1.msra.mxu0 %v1243
    %1528 = vmatprep.subr.mxu0 %v1242
    %1529 = vmatpush1.msra.mxu0 %v1241
    %1530 = vmatprep.subr.mxu0 %v1240
    %1531 = vmatpush1.msra.mxu0 %v1239
    %1532 = vmatprep.subr.mxu0 %v1238
    %1533 = vmatpush1.msra.mxu0 %v1237
    %1534 = vmatprep.subr.mxu0 %v1236
    %1535 = vmatpush1.msra.mxu0 %v1235
    %1536 = vmatprep.subr.mxu0 %v1234
    %1537 = vmatpush1.msra.mxu0 %v1233
    %1538 = vmatprep.subr.mxu0 %v1232
    %1539 = vmatpush1.msra.mxu0 %v1231
    %1540 = vmatprep.subr.mxu0 %v1294
    %1541 = vmatpush2.msra.mxu0 %v1293
    %1542 = vmatprep.subr.mxu0 %v1292
    %1543 = vmatpush2.msra.mxu0 %v1291
    %1544 = vmatprep.subr.mxu0 %v1290
    %1545 = vmatpush2.msra.mxu0 %v1289
    %1546 = vmatprep.subr.mxu0 %v1288
    %1547 = vmatpush2.msra.mxu0 %v1287
    %1548 = vmatprep.subr.mxu0 %v1286
    %1549 = vmatpush2.msra.mxu0 %v1285
    %1550 = vmatprep.subr.mxu0 %v1284
    %1551 = vmatpush2.msra.mxu0 %v1283
    %1552 = vmatprep.subr.mxu0 %v1282
    %1553 = vmatpush2.msra.mxu0 %v1281
    %1554 = vmatprep.subr.mxu0 %v1280
    %1555 = vmatpush2.msra.mxu0 %v1279
    %1556 = vmatprep.subr.mxu0 %v1278
    %1557 = vmatpush2.msra.mxu0 %v1277
    %1558 = vmatprep.subr.mxu0 %v1276
    %1559 = vmatpush2.msra.mxu0 %v1275
    %1560 = vmatprep.subr.mxu0 %v1274
    %1561 = vmatpush2.msra.mxu0 %v1273
    %1562 = vmatprep.subr.mxu0 %v1272
    %1563 = vmatpush2.msra.mxu0 %v1271
    %1564 = vmatprep.subr.mxu0 %v1270
    %1565 = vmatpush2.msra.mxu0 %v1269
    %1566 = vmatprep.subr.mxu0 %v1268
    %1567 = vmatpush2.msra.mxu0 %v1267
    %1568 = vmatprep.subr.mxu0 %v1266
    %1569 = vmatpush2.msra.mxu0 %v1265
    %1570 = vmatprep.subr.mxu0 %v1264
    %1571 = vmatpush2.msra.mxu0 %v1263
    %1572 = vmatprep.mubr.f32.mxu0 %v296
    %1573 = vmatmul.mubr.f32.gmra.mxu0 %v295
    %v1574 = vpop.f32.mrf.mxu0
    %v1575 = vadd.f32 %v1504, %v1574
    %v1576 = vpop.f32.mrf.mxu0
    %v1577 = vadd.f32 %v1506, %v1576
    %1578 = vdwg.mxu0
    %s1579 = scalar_lea.vmem [#allocation4], 4
    %v1580 = vld [vmem:[%s1579] sm:$0x3]
    %v1582 = vlaneseq
    %v1583 = vshrl.u32 %v1582, 7
    %v1584 = vsub.s32 0, %v1583
    %v1585 = vrot.slane %v1580, %v1584
    %v1586 = vlaneseq
    %v1587 = vshrl.u32 %v1586, 7
    %v1588 = vsub.s32 1, %v1587
    %v1589 = vrot.slane %v1580, %v1588
    %v1592 = vmul.f32 %v717, %v1585
    %v1593 = vmul.f32 %v717, %v1589
    %v1594 = vadd.f32 %v1575, %v1592
    %v1595 = vadd.f32 %v1577, %v1593
    %v1596 = vmax.f32 %v1164, %v1594
    %v1597 = vmax.f32 %v1165, %v1595
    %s1598 = scalar_lea.vmem [#allocation2], 3072
    %v1599 = vld [vmem:[%s1598] sm:$0xff]
    %v1600 = vld [vmem:[%s1598 + $0x8] sm:$0xff]
    %v1601 = vld [vmem:[%s1598 + $0x10] sm:$0xff]
    %v1602 = vld [vmem:[%s1598 + $0x18] sm:$0xff]
    %v1603 = vld [vmem:[%s1598 + $0x20] sm:$0xff]
    %v1604 = vld [vmem:[%s1598 + $0x28] sm:$0xff]
    %v1605 = vld [vmem:[%s1598 + $0x30] sm:$0xff]
    %v1606 = vld [vmem:[%s1598 + $0x38] sm:$0xff]
    %v1607 = vld [vmem:[%s1598 + $0x40] sm:$0xff]
    %v1608 = vld [vmem:[%s1598 + $0x48] sm:$0xff]
    %v1609 = vld [vmem:[%s1598 + $0x50] sm:$0xff]
    %v1610 = vld [vmem:[%s1598 + $0x58] sm:$0xff]
    %v1611 = vld [vmem:[%s1598 + $0x60] sm:$0xff]
    %v1612 = vld [vmem:[%s1598 + $0x68] sm:$0xff]
    %v1613 = vld [vmem:[%s1598 + $0x70] sm:$0xff]
    %v1614 = vld [vmem:[%s1598 + $0x78] sm:$0xff]
    %v1615 = vld [vmem:[%s1598 + $0x80] sm:$0xff]
    %v1616 = vld [vmem:[%s1598 + $0x88] sm:$0xff]
    %v1617 = vld [vmem:[%s1598 + $0x90] sm:$0xff]
    %v1618 = vld [vmem:[%s1598 + $0x98] sm:$0xff]
    %v1619 = vld [vmem:[%s1598 + $0xa0] sm:$0xff]
    %v1620 = vld [vmem:[%s1598 + $0xa8] sm:$0xff]
    %v1621 = vld [vmem:[%s1598 + $0xb0] sm:$0xff]
    %v1622 = vld [vmem:[%s1598 + $0xb8] sm:$0xff]
    %v1623 = vld [vmem:[%s1598 + $0xc0] sm:$0xff]
    %v1624 = vld [vmem:[%s1598 + $0xc8] sm:$0xff]
    %v1625 = vld [vmem:[%s1598 + $0xd0] sm:$0xff]
    %v1626 = vld [vmem:[%s1598 + $0xd8] sm:$0xff]
    %v1627 = vld [vmem:[%s1598 + $0xe0] sm:$0xff]
    %v1628 = vld [vmem:[%s1598 + $0xe8] sm:$0xff]
    %v1629 = vld [vmem:[%s1598 + $0xf0] sm:$0xff]
    %v1630 = vld [vmem:[%s1598 + $0xf8] sm:$0xff]
    %v1631 = vld [vmem:[%s1598 + $0x100] sm:$0xff]
    %v1632 = vld [vmem:[%s1598 + $0x108] sm:$0xff]
    %v1633 = vld [vmem:[%s1598 + $0x110] sm:$0xff]
    %v1634 = vld [vmem:[%s1598 + $0x118] sm:$0xff]
    %v1635 = vld [vmem:[%s1598 + $0x120] sm:$0xff]
    %v1636 = vld [vmem:[%s1598 + $0x128] sm:$0xff]
    %v1637 = vld [vmem:[%s1598 + $0x130] sm:$0xff]
    %v1638 = vld [vmem:[%s1598 + $0x138] sm:$0xff]
    %v1639 = vld [vmem:[%s1598 + $0x140] sm:$0xff]
    %v1640 = vld [vmem:[%s1598 + $0x148] sm:$0xff]
    %v1641 = vld [vmem:[%s1598 + $0x150] sm:$0xff]
    %v1642 = vld [vmem:[%s1598 + $0x158] sm:$0xff]
    %v1643 = vld [vmem:[%s1598 + $0x160] sm:$0xff]
    %v1644 = vld [vmem:[%s1598 + $0x168] sm:$0xff]
    %v1645 = vld [vmem:[%s1598 + $0x170] sm:$0xff]
    %v1646 = vld [vmem:[%s1598 + $0x178] sm:$0xff]
    %v1647 = vld [vmem:[%s1598 + $0x180] sm:$0xff]
    %v1648 = vld [vmem:[%s1598 + $0x188] sm:$0xff]
    %v1649 = vld [vmem:[%s1598 + $0x190] sm:$0xff]
    %v1650 = vld [vmem:[%s1598 + $0x198] sm:$0xff]
    %v1651 = vld [vmem:[%s1598 + $0x1a0] sm:$0xff]
    %v1652 = vld [vmem:[%s1598 + $0x1a8] sm:$0xff]
    %v1653 = vld [vmem:[%s1598 + $0x1b0] sm:$0xff]
    %v1654 = vld [vmem:[%s1598 + $0x1b8] sm:$0xff]
    %v1655 = vld [vmem:[%s1598 + $0x1c0] sm:$0xff]
    %v1656 = vld [vmem:[%s1598 + $0x1c8] sm:$0xff]
    %v1657 = vld [vmem:[%s1598 + $0x1d0] sm:$0xff]
    %v1658 = vld [vmem:[%s1598 + $0x1d8] sm:$0xff]
    %v1659 = vld [vmem:[%s1598 + $0x1e0] sm:$0xff]
    %v1660 = vld [vmem:[%s1598 + $0x1e8] sm:$0xff]
    %v1661 = vld [vmem:[%s1598 + $0x1f0] sm:$0xff]
    %v1662 = vld [vmem:[%s1598 + $0x1f8] sm:$0xff]
    %v1663 = vld [vmem:[%s1598 + $0x200] sm:$0xff]
    %v1664 = vld [vmem:[%s1598 + $0x208] sm:$0xff]
    %v1665 = vld [vmem:[%s1598 + $0x210] sm:$0xff]
    %v1666 = vld [vmem:[%s1598 + $0x218] sm:$0xff]
    %v1667 = vld [vmem:[%s1598 + $0x220] sm:$0xff]
    %v1668 = vld [vmem:[%s1598 + $0x228] sm:$0xff]
    %v1669 = vld [vmem:[%s1598 + $0x230] sm:$0xff]
    %v1670 = vld [vmem:[%s1598 + $0x238] sm:$0xff]
    %v1671 = vld [vmem:[%s1598 + $0x240] sm:$0xff]
    %v1672 = vld [vmem:[%s1598 + $0x248] sm:$0xff]
    %v1673 = vld [vmem:[%s1598 + $0x250] sm:$0xff]
    %v1674 = vld [vmem:[%s1598 + $0x258] sm:$0xff]
    %v1675 = vld [vmem:[%s1598 + $0x260] sm:$0xff]
    %v1676 = vld [vmem:[%s1598 + $0x268] sm:$0xff]
    %v1677 = vld [vmem:[%s1598 + $0x270] sm:$0xff]
    %v1678 = vld [vmem:[%s1598 + $0x278] sm:$0xff]
    %v1679 = vld [vmem:[%s1598 + $0x280] sm:$0xff]
    %v1680 = vld [vmem:[%s1598 + $0x288] sm:$0xff]
    %v1681 = vld [vmem:[%s1598 + $0x290] sm:$0xff]
    %v1682 = vld [vmem:[%s1598 + $0x298] sm:$0xff]
    %v1683 = vld [vmem:[%s1598 + $0x2a0] sm:$0xff]
    %v1684 = vld [vmem:[%s1598 + $0x2a8] sm:$0xff]
    %v1685 = vld [vmem:[%s1598 + $0x2b0] sm:$0xff]
    %v1686 = vld [vmem:[%s1598 + $0x2b8] sm:$0xff]
    %v1687 = vld [vmem:[%s1598 + $0x2c0] sm:$0xff]
    %v1688 = vld [vmem:[%s1598 + $0x2c8] sm:$0xff]
    %v1689 = vld [vmem:[%s1598 + $0x2d0] sm:$0xff]
    %v1690 = vld [vmem:[%s1598 + $0x2d8] sm:$0xff]
    %v1691 = vld [vmem:[%s1598 + $0x2e0] sm:$0xff]
    %v1692 = vld [vmem:[%s1598 + $0x2e8] sm:$0xff]
    %v1693 = vld [vmem:[%s1598 + $0x2f0] sm:$0xff]
    %v1694 = vld [vmem:[%s1598 + $0x2f8] sm:$0xff]
    %v1695 = vld [vmem:[%s1598 + $0x300] sm:$0xff]
    %v1696 = vld [vmem:[%s1598 + $0x308] sm:$0xff]
    %v1697 = vld [vmem:[%s1598 + $0x310] sm:$0xff]
    %v1698 = vld [vmem:[%s1598 + $0x318] sm:$0xff]
    %v1699 = vld [vmem:[%s1598 + $0x320] sm:$0xff]
    %v1700 = vld [vmem:[%s1598 + $0x328] sm:$0xff]
    %v1701 = vld [vmem:[%s1598 + $0x330] sm:$0xff]
    %v1702 = vld [vmem:[%s1598 + $0x338] sm:$0xff]
    %v1703 = vld [vmem:[%s1598 + $0x340] sm:$0xff]
    %v1704 = vld [vmem:[%s1598 + $0x348] sm:$0xff]
    %v1705 = vld [vmem:[%s1598 + $0x350] sm:$0xff]
    %v1706 = vld [vmem:[%s1598 + $0x358] sm:$0xff]
    %v1707 = vld [vmem:[%s1598 + $0x360] sm:$0xff]
    %v1708 = vld [vmem:[%s1598 + $0x368] sm:$0xff]
    %v1709 = vld [vmem:[%s1598 + $0x370] sm:$0xff]
    %v1710 = vld [vmem:[%s1598 + $0x378] sm:$0xff]
    %v1711 = vld [vmem:[%s1598 + $0x380] sm:$0xff]
    %v1712 = vld [vmem:[%s1598 + $0x388] sm:$0xff]
    %v1713 = vld [vmem:[%s1598 + $0x390] sm:$0xff]
    %v1714 = vld [vmem:[%s1598 + $0x398] sm:$0xff]
    %v1715 = vld [vmem:[%s1598 + $0x3a0] sm:$0xff]
    %v1716 = vld [vmem:[%s1598 + $0x3a8] sm:$0xff]
    %v1717 = vld [vmem:[%s1598 + $0x3b0] sm:$0xff]
    %v1718 = vld [vmem:[%s1598 + $0x3b8] sm:$0xff]
    %v1719 = vld [vmem:[%s1598 + $0x3c0] sm:$0xff]
    %v1720 = vld [vmem:[%s1598 + $0x3c8] sm:$0xff]
    %v1721 = vld [vmem:[%s1598 + $0x3d0] sm:$0xff]
    %v1722 = vld [vmem:[%s1598 + $0x3d8] sm:$0xff]
    %v1723 = vld [vmem:[%s1598 + $0x3e0] sm:$0xff]
    %v1724 = vld [vmem:[%s1598 + $0x3e8] sm:$0xff]
    %v1725 = vld [vmem:[%s1598 + $0x3f0] sm:$0xff]
    %v1726 = vld [vmem:[%s1598 + $0x3f8] sm:$0xff]
    %1727 = vmatprep.subr.mxu0 %v1630
    %1728 = vmatpush1.msra.mxu0 %v1629
    %1729 = vmatprep.subr.mxu0 %v1628
    %1730 = vmatpush1.msra.mxu0 %v1627
    %1731 = vmatprep.subr.mxu0 %v1626
    %1732 = vmatpush1.msra.mxu0 %v1625
    %1733 = vmatprep.subr.mxu0 %v1624
    %1734 = vmatpush1.msra.mxu0 %v1623
    %1735 = vmatprep.subr.mxu0 %v1622
    %1736 = vmatpush1.msra.mxu0 %v1621
    %1737 = vmatprep.subr.mxu0 %v1620
    %1738 = vmatpush1.msra.mxu0 %v1619
    %1739 = vmatprep.subr.mxu0 %v1618
    %1740 = vmatpush1.msra.mxu0 %v1617
    %1741 = vmatprep.subr.mxu0 %v1616
    %1742 = vmatpush1.msra.mxu0 %v1615
    %1743 = vmatprep.subr.mxu0 %v1614
    %1744 = vmatpush1.msra.mxu0 %v1613
    %1745 = vmatprep.subr.mxu0 %v1612
    %1746 = vmatpush1.msra.mxu0 %v1611
    %1747 = vmatprep.subr.mxu0 %v1610
    %1748 = vmatpush1.msra.mxu0 %v1609
    %1749 = vmatprep.subr.mxu0 %v1608
    %1750 = vmatpush1.msra.mxu0 %v1607
    %1751 = vmatprep.subr.mxu0 %v1606
    %1752 = vmatpush1.msra.mxu0 %v1605
    %1753 = vmatprep.subr.mxu0 %v1604
    %1754 = vmatpush1.msra.mxu0 %v1603
    %1755 = vmatprep.subr.mxu0 %v1602
    %1756 = vmatpush1.msra.mxu0 %v1601
    %1757 = vmatprep.subr.mxu0 %v1600
    %1758 = vmatpush1.msra.mxu0 %v1599
    %1759 = vmatprep.subr.mxu0 %v1662
    %1760 = vmatpush2.msra.mxu0 %v1661
    %1761 = vmatprep.subr.mxu0 %v1660
    %1762 = vmatpush2.msra.mxu0 %v1659
    %1763 = vmatprep.subr.mxu0 %v1658
    %1764 = vmatpush2.msra.mxu0 %v1657
    %1765 = vmatprep.subr.mxu0 %v1656
    %1766 = vmatpush2.msra.mxu0 %v1655
    %1767 = vmatprep.subr.mxu0 %v1654
    %1768 = vmatpush2.msra.mxu0 %v1653
    %1769 = vmatprep.subr.mxu0 %v1652
    %1770 = vmatpush2.msra.mxu0 %v1651
    %1771 = vmatprep.subr.mxu0 %v1650
    %1772 = vmatpush2.msra.mxu0 %v1649
    %1773 = vmatprep.subr.mxu0 %v1648
    %1774 = vmatpush2.msra.mxu0 %v1647
    %1775 = vmatprep.subr.mxu0 %v1646
    %1776 = vmatpush2.msra.mxu0 %v1645
    %1777 = vmatprep.subr.mxu0 %v1644
    %1778 = vmatpush2.msra.mxu0 %v1643
    %1779 = vmatprep.subr.mxu0 %v1642
    %1780 = vmatpush2.msra.mxu0 %v1641
    %1781 = vmatprep.subr.mxu0 %v1640
    %1782 = vmatpush2.msra.mxu0 %v1639
    %1783 = vmatprep.subr.mxu0 %v1638
    %1784 = vmatpush2.msra.mxu0 %v1637
    %1785 = vmatprep.subr.mxu0 %v1636
    %1786 = vmatpush2.msra.mxu0 %v1635
    %1787 = vmatprep.subr.mxu0 %v1634
    %1788 = vmatpush2.msra.mxu0 %v1633
    %1789 = vmatprep.subr.mxu0 %v1632
    %1790 = vmatpush2.msra.mxu0 %v1631
    %1791 = vmatprep.mubr.f32.mxu0 %v298
    %1792 = vmatmul.mubr.f32.gmra.mxu0 %v297
    %v1793 = vpop.f32.mrf.mxu0
    %v1794 = vadd.f32 0.0, %v1793
    %v1795 = vpop.f32.mrf.mxu0
    %v1796 = vadd.f32 0.0, %v1795
    %1797 = vdwg.mxu0
    %1798 = vmatprep.subr.mxu0 %v1694
    %1799 = vmatpush1.msra.mxu0 %v1693
    %1800 = vmatprep.subr.mxu0 %v1692
    %1801 = vmatpush1.msra.mxu0 %v1691
    %1802 = vmatprep.subr.mxu0 %v1690
    %1803 = vmatpush1.msra.mxu0 %v1689
    %1804 = vmatprep.subr.mxu0 %v1688
    %1805 = vmatpush1.msra.mxu0 %v1687
    %1806 = vmatprep.subr.mxu0 %v1686
    %1807 = vmatpush1.msra.mxu0 %v1685
    %1808 = vmatprep.subr.mxu0 %v1684
    %1809 = vmatpush1.msra.mxu0 %v1683
    %1810 = vmatprep.subr.mxu0 %v1682
    %1811 = vmatpush1.msra.mxu0 %v1681
    %1812 = vmatprep.subr.mxu0 %v1680
    %1813 = vmatpush1.msra.mxu0 %v1679
    %1814 = vmatprep.subr.mxu0 %v1678
    %1815 = vmatpush1.msra.mxu0 %v1677
    %1816 = vmatprep.subr.mxu0 %v1676
    %1817 = vmatpush1.msra.mxu0 %v1675
    %1818 = vmatprep.subr.mxu0 %v1674
    %1819 = vmatpush1.msra.mxu0 %v1673
    %1820 = vmatprep.subr.mxu0 %v1672
    %1821 = vmatpush1.msra.mxu0 %v1671
    %1822 = vmatprep.subr.mxu0 %v1670
    %1823 = vmatpush1.msra.mxu0 %v1669
    %1824 = vmatprep.subr.mxu0 %v1668
    %1825 = vmatpush1.msra.mxu0 %v1667
    %1826 = vmatprep.subr.mxu0 %v1666
    %1827 = vmatpush1.msra.mxu0 %v1665
    %1828 = vmatprep.subr.mxu0 %v1664
    %1829 = vmatpush1.msra.mxu0 %v1663
    %1830 = vmatprep.subr.mxu0 %v1726
    %1831 = vmatpush2.msra.mxu0 %v1725
    %1832 = vmatprep.subr.mxu0 %v1724
    %1833 = vmatpush2.msra.mxu0 %v1723
    %1834 = vmatprep.subr.mxu0 %v1722
    %1835 = vmatpush2.msra.mxu0 %v1721
    %1836 = vmatprep.subr.mxu0 %v1720
    %1837 = vmatpush2.msra.mxu0 %v1719
    %1838 = vmatprep.subr.mxu0 %v1718
    %1839 = vmatpush2.msra.mxu0 %v1717
    %1840 = vmatprep.subr.mxu0 %v1716
    %1841 = vmatpush2.msra.mxu0 %v1715
    %1842 = vmatprep.subr.mxu0 %v1714
    %1843 = vmatpush2.msra.mxu0 %v1713
    %1844 = vmatprep.subr.mxu0 %v1712
    %1845 = vmatpush2.msra.mxu0 %v1711
    %1846 = vmatprep.subr.mxu0 %v1710
    %1847 = vmatpush2.msra.mxu0 %v1709
    %1848 = vmatprep.subr.mxu0 %v1708
    %1849 = vmatpush2.msra.mxu0 %v1707
    %1850 = vmatprep.subr.mxu0 %v1706
    %1851 = vmatpush2.msra.mxu0 %v1705
    %1852 = vmatprep.subr.mxu0 %v1704
    %1853 = vmatpush2.msra.mxu0 %v1703
    %1854 = vmatprep.subr.mxu0 %v1702
    %1855 = vmatpush2.msra.mxu0 %v1701
    %1856 = vmatprep.subr.mxu0 %v1700
    %1857 = vmatpush2.msra.mxu0 %v1699
    %1858 = vmatprep.subr.mxu0 %v1698
    %1859 = vmatpush2.msra.mxu0 %v1697
    %1860 = vmatprep.subr.mxu0 %v1696
    %1861 = vmatpush2.msra.mxu0 %v1695
    %1862 = vmatprep.mubr.f32.mxu0 %v300
    %1863 = vmatmul.mubr.f32.gmra.mxu0 %v299
    %v1864 = vpop.f32.mrf.mxu0
    %v1865 = vadd.f32 %v1794, %v1864
    %v1866 = vpop.f32.mrf.mxu0
    %v1867 = vadd.f32 %v1796, %v1866
    %1868 = vdwg.mxu0
    %1869 = vmatprep.subr.mxu0 %v1630
    %1870 = vmatpush1.msra.mxu0 %v1629
    %1871 = vmatprep.subr.mxu0 %v1628
    %1872 = vmatpush1.msra.mxu0 %v1627
    %1873 = vmatprep.subr.mxu0 %v1626
    %1874 = vmatpush1.msra.mxu0 %v1625
    %1875 = vmatprep.subr.mxu0 %v1624
    %1876 = vmatpush1.msra.mxu0 %v1623
    %1877 = vmatprep.subr.mxu0 %v1622
    %1878 = vmatpush1.msra.mxu0 %v1621
    %1879 = vmatprep.subr.mxu0 %v1620
    %1880 = vmatpush1.msra.mxu0 %v1619
    %1881 = vmatprep.subr.mxu0 %v1618
    %1882 = vmatpush1.msra.mxu0 %v1617
    %1883 = vmatprep.subr.mxu0 %v1616
    %1884 = vmatpush1.msra.mxu0 %v1615
    %1885 = vmatprep.subr.mxu0 %v1614
    %1886 = vmatpush1.msra.mxu0 %v1613
    %1887 = vmatprep.subr.mxu0 %v1612
    %1888 = vmatpush1.msra.mxu0 %v1611
    %1889 = vmatprep.subr.mxu0 %v1610
    %1890 = vmatpush1.msra.mxu0 %v1609
    %1891 = vmatprep.subr.mxu0 %v1608
    %1892 = vmatpush1.msra.mxu0 %v1607
    %1893 = vmatprep.subr.mxu0 %v1606
    %1894 = vmatpush1.msra.mxu0 %v1605
    %1895 = vmatprep.subr.mxu0 %v1604
    %1896 = vmatpush1.msra.mxu0 %v1603
    %1897 = vmatprep.subr.mxu0 %v1602
    %1898 = vmatpush1.msra.mxu0 %v1601
    %1899 = vmatprep.subr.mxu0 %v1600
    %1900 = vmatpush1.msra.mxu0 %v1599
    %1901 = vmatprep.subr.mxu0 %v1662
    %1902 = vmatpush2.msra.mxu0 %v1661
    %1903 = vmatprep.subr.mxu0 %v1660
    %1904 = vmatpush2.msra.mxu0 %v1659
    %1905 = vmatprep.subr.mxu0 %v1658
    %1906 = vmatpush2.msra.mxu0 %v1657
    %1907 = vmatprep.subr.mxu0 %v1656
    %1908 = vmatpush2.msra.mxu0 %v1655
    %1909 = vmatprep.subr.mxu0 %v1654
    %1910 = vmatpush2.msra.mxu0 %v1653
    %1911 = vmatprep.subr.mxu0 %v1652
    %1912 = vmatpush2.msra.mxu0 %v1651
    %1913 = vmatprep.subr.mxu0 %v1650
    %1914 = vmatpush2.msra.mxu0 %v1649
    %1915 = vmatprep.subr.mxu0 %v1648
    %1916 = vmatpush2.msra.mxu0 %v1647
    %1917 = vmatprep.subr.mxu0 %v1646
    %1918 = vmatpush2.msra.mxu0 %v1645
    %1919 = vmatprep.subr.mxu0 %v1644
    %1920 = vmatpush2.msra.mxu0 %v1643
    %1921 = vmatprep.subr.mxu0 %v1642
    %1922 = vmatpush2.msra.mxu0 %v1641
    %1923 = vmatprep.subr.mxu0 %v1640
    %1924 = vmatpush2.msra.mxu0 %v1639
    %1925 = vmatprep.subr.mxu0 %v1638
    %1926 = vmatpush2.msra.mxu0 %v1637
    %1927 = vmatprep.subr.mxu0 %v1636
    %1928 = vmatpush2.msra.mxu0 %v1635
    %1929 = vmatprep.subr.mxu0 %v1634
    %1930 = vmatpush2.msra.mxu0 %v1633
    %1931 = vmatprep.subr.mxu0 %v1632
    %1932 = vmatpush2.msra.mxu0 %v1631
    %1933 = vmatprep.mubr.f32.mxu0 %v294
    %1934 = vmatmul.mubr.f32.gmra.mxu0 %v293
    %v1935 = vpop.f32.mrf.mxu0
    %v1936 = vadd.f32 %v1865, %v1935
    %v1937 = vpop.f32.mrf.mxu0
    %v1938 = vadd.f32 %v1867, %v1937
    %1939 = vdwg.mxu0
    %1940 = vmatprep.subr.mxu0 %v1694
    %1941 = vmatpush1.msra.mxu0 %v1693
    %1942 = vmatprep.subr.mxu0 %v1692
    %1943 = vmatpush1.msra.mxu0 %v1691
    %1944 = vmatprep.subr.mxu0 %v1690
    %1945 = vmatpush1.msra.mxu0 %v1689
    %1946 = vmatprep.subr.mxu0 %v1688
    %1947 = vmatpush1.msra.mxu0 %v1687
    %1948 = vmatprep.subr.mxu0 %v1686
    %1949 = vmatpush1.msra.mxu0 %v1685
    %1950 = vmatprep.subr.mxu0 %v1684
    %1951 = vmatpush1.msra.mxu0 %v1683
    %1952 = vmatprep.subr.mxu0 %v1682
    %1953 = vmatpush1.msra.mxu0 %v1681
    %1954 = vmatprep.subr.mxu0 %v1680
    %1955 = vmatpush1.msra.mxu0 %v1679
    %1956 = vmatprep.subr.mxu0 %v1678
    %1957 = vmatpush1.msra.mxu0 %v1677
    %1958 = vmatprep.subr.mxu0 %v1676
    %1959 = vmatpush1.msra.mxu0 %v1675
    %1960 = vmatprep.subr.mxu0 %v1674
    %1961 = vmatpush1.msra.mxu0 %v1673
    %1962 = vmatprep.subr.mxu0 %v1672
    %1963 = vmatpush1.msra.mxu0 %v1671
    %1964 = vmatprep.subr.mxu0 %v1670
    %1965 = vmatpush1.msra.mxu0 %v1669
    %1966 = vmatprep.subr.mxu0 %v1668
    %1967 = vmatpush1.msra.mxu0 %v1667
    %1968 = vmatprep.subr.mxu0 %v1666
    %1969 = vmatpush1.msra.mxu0 %v1665
    %1970 = vmatprep.subr.mxu0 %v1664
    %1971 = vmatpush1.msra.mxu0 %v1663
    %1972 = vmatprep.subr.mxu0 %v1726
    %1973 = vmatpush2.msra.mxu0 %v1725
    %1974 = vmatprep.subr.mxu0 %v1724
    %1975 = vmatpush2.msra.mxu0 %v1723
    %1976 = vmatprep.subr.mxu0 %v1722
    %1977 = vmatpush2.msra.mxu0 %v1721
    %1978 = vmatprep.subr.mxu0 %v1720
    %1979 = vmatpush2.msra.mxu0 %v1719
    %1980 = vmatprep.subr.mxu0 %v1718
    %1981 = vmatpush2.msra.mxu0 %v1717
    %1982 = vmatprep.subr.mxu0 %v1716
    %1983 = vmatpush2.msra.mxu0 %v1715
    %1984 = vmatprep.subr.mxu0 %v1714
    %1985 = vmatpush2.msra.mxu0 %v1713
    %1986 = vmatprep.subr.mxu0 %v1712
    %1987 = vmatpush2.msra.mxu0 %v1711
    %1988 = vmatprep.subr.mxu0 %v1710
    %1989 = vmatpush2.msra.mxu0 %v1709
    %1990 = vmatprep.subr.mxu0 %v1708
    %1991 = vmatpush2.msra.mxu0 %v1707
    %1992 = vmatprep.subr.mxu0 %v1706
    %1993 = vmatpush2.msra.mxu0 %v1705
    %1994 = vmatprep.subr.mxu0 %v1704
    %1995 = vmatpush2.msra.mxu0 %v1703
    %1996 = vmatprep.subr.mxu0 %v1702
    %1997 = vmatpush2.msra.mxu0 %v1701
    %1998 = vmatprep.subr.mxu0 %v1700
    %1999 = vmatpush2.msra.mxu0 %v1699
    %2000 = vmatprep.subr.mxu0 %v1698
    %2001 = vmatpush2.msra.mxu0 %v1697
    %2002 = vmatprep.subr.mxu0 %v1696
    %2003 = vmatpush2.msra.mxu0 %v1695
    %2004 = vmatprep.mubr.f32.mxu0 %v296
    %2005 = vmatmul.mubr.f32.gmra.mxu0 %v295
    %v2006 = vpop.f32.mrf.mxu0
    %v2007 = vadd.f32 %v1936, %v2006
    %v2008 = vpop.f32.mrf.mxu0
    %v2009 = vadd.f32 %v1938, %v2008
    %2010 = vdwg.mxu0
    %s2011 = scalar_lea.vmem [#allocation4], 6
    %v2012 = vld [vmem:[%s2011] sm:$0x3]
    %v2014 = vlaneseq
    %v2015 = vshrl.u32 %v2014, 7
    %v2016 = vsub.s32 0, %v2015
    %v2017 = vrot.slane %v2012, %v2016
    %v2018 = vlaneseq
    %v2019 = vshrl.u32 %v2018, 7
    %v2020 = vsub.s32 1, %v2019
    %v2021 = vrot.slane %v2012, %v2020
    %v2024 = vmul.f32 %v717, %v2017
    %v2025 = vmul.f32 %v717, %v2021
    %v2026 = vadd.f32 %v2007, %v2024
    %v2027 = vadd.f32 %v2009, %v2025
    %v2028 = vmax.f32 %v1596, %v2026
    %v2029 = vmax.f32 %v1597, %v2027
    %v2030 = vld [vmem:[%s5] sm:$0xff]
    %v2031 = vld [vmem:[%s6] sm:$0xff]
    %2033 = vset.pattern.permute.xlu0 0
    %2034 = vperm.xlu0 %2033, %v2030
    %v2035 = vpop.permute.xlu0 %2034
    %v2037 = vlaneseq
    %v2038 = vshrl.u32 %v2037, 7
    %v2039 = vsub.s32 0, %v2038
    %v2040 = vrot.slane %v2028, %v2039
    %v2041 = vlaneseq
    %v2042 = vshrl.u32 %v2041, 7
    %v2043 = vsub.s32 0, %v2042
    %v2044 = vrot.slane %v2029, %v2043
    %v2045 = vmul.f32 %v2035, %v2040
    %v2046 = vmul.f32 %v2035, %v2044
    %2047 = vset.pattern.permute.xlu0 1
    %2048 = vperm.xlu0 %2047, %v2030
    %v2049 = vpop.permute.xlu0 %2048
    %v2051 = vlaneseq
    %v2052 = vshrl.u32 %v2051, 7
    %v2053 = vsub.s32 1, %v2052
    %v2054 = vrot.slane %v2028, %v2053
    %v2055 = vlaneseq
    %v2056 = vshrl.u32 %v2055, 7
    %v2057 = vsub.s32 1, %v2056
    %v2058 = vrot.slane %v2029, %v2057
    %v2059 = vmul.f32 %v2049, %v2054
    %v2060 = vmul.f32 %v2049, %v2058
    %2061 = vset.pattern.permute.xlu0 2
    %2062 = vperm.xlu0 %2061, %v2030
    %v2063 = vpop.permute.xlu0 %2062
    %v2065 = vlaneseq
    %v2066 = vshrl.u32 %v2065, 7
    %v2067 = vsub.s32 2, %v2066
    %v2068 = vrot.slane %v2028, %v2067
    %v2069 = vlaneseq
    %v2070 = vshrl.u32 %v2069, 7
    %v2071 = vsub.s32 2, %v2070
    %v2072 = vrot.slane %v2029, %v2071
    %v2073 = vmul.f32 %v2063, %v2068
    %v2074 = vmul.f32 %v2063, %v2072
    %2075 = vset.pattern.permute.xlu0 3
    %2076 = vperm.xlu0 %2075, %v2030
    %v2077 = vpop.permute.xlu0 %2076
    %v2079 = vlaneseq
    %v2080 = vshrl.u32 %v2079, 7
    %v2081 = vsub.s32 3, %v2080
    %v2082 = vrot.slane %v2028, %v2081
    %v2083 = vlaneseq
    %v2084 = vshrl.u32 %v2083, 7
    %v2085 = vsub.s32 3, %v2084
    %v2086 = vrot.slane %v2029, %v2085
    %v2087 = vmul.f32 %v2077, %v2082
    %v2088 = vmul.f32 %v2077, %v2086
    %v2089 = vadd.f32 %v2045, %v2059
    %v2090 = vadd.f32 %v2046, %v2060
    %v2091 = vadd.f32 %v2073, %v2087
    %v2092 = vadd.f32 %v2074, %v2088
    %v2093 = vadd.f32 %v2089, %v2091
    %v2094 = vadd.f32 %v2090, %v2092
    %2096 = vset.pattern.permute.xlu0 0
    %2097 = vperm.xlu0 %2096, %v2031
    %v2098 = vpop.permute.xlu0 %2097
    %v2100 = vadd.f32 %v2093, %v2098
    %v2101 = vadd.f32 %v2094, %v2098
    %v2102 = vadd.f32 %v2100, %v2101
    %2103 = vadd.xlane.f32.xlu0 %v2102
    %v2104 = vpop.xlane.xlu0 %2103
    %v2105 = vmul.f32 %v2031, -14.0
    %v2106 = vadd.f32 %v2104, %v2105
    %v2107 = vmul.f32 %v2106, 0.004132231
    %2109 = vset.pattern.permute.xlu0 0
    %2110 = vperm.xlu0 %2109, %v2107
    %v2111 = vpop.permute.xlu0 %2110
    %v2113 = vsub.f32 %v2100, %v2111
    %v2114 = vsub.f32 %v2101, %v2111
    %v2115 = vsub.f32 %v2031, %v2107
    %v2116 = vmul.f32 %v2113, %v2113
    %v2117 = vmul.f32 %v2114, %v2114
    %v2118 = vadd.f32 %v2116, %v2117
    %2119 = vadd.xlane.f32.xlu0 %v2118
    %v2120 = vpop.xlane.xlu0 %2119
    %v2121 = vmul.f32 %v2115, %v2115
    %v2122 = vmul.f32 %v2121, -14.0
    %v2123 = vadd.f32 %v2120, %v2122
    %v2124 = vmul.f32 %v2123, 0.004132231
    %v2125 = vadd.f32 %v2124, 0.001
    %v2126 = vrsqrt.pop %v2125
    %v2127 = vmul.f32 %v2125, 0.5
    %v2128 = vmul.f32 %v2127, %v2126
    %v2129 = vmul.f32 %v2128, %v2126
    %v2130 = vsub.f32 1.5, %v2129
    %v2131 = vmul.f32 %v2126, %v2130
    %2133 = vrot.lane.b32.xlu0 %v2131, 1
    %v2134 = vpop.permute.xlu0 %2133
    %v2136 = vmul.f32 %v2031, %v2134
    %2138 = vset.pattern.permute.xlu0 1
    %2139 = vperm.xlu0 %2138, %v2136
    %v2140 = vpop.permute.xlu0 %2139
    %v2142 = vmul.f32 %v2113, %v2140
    %v2143 = vmul.f32 %v2114, %v2140
    %2144 = vset.pattern.permute.xlu0 2
    %2145 = vperm.xlu0 %2144, %v2031
    %v2146 = vpop.permute.xlu0 %2145
    %v2148 = vadd.f32 %v2142, %v2146
    %v2149 = vadd.f32 %v2143, %v2146
    %v2150 = vmax.f32 %v2148, 0.0
    %v2151 = vmax.f32 %v2149, 0.0
    %2152 = vrot.lane.b32.xlu0 %v2136, 127
    %v2153 = vpop.permute.xlu0 %2152
    %v2155 = vmul.f32 %v2115, %v2153
    %2156 = vrot.lane.b32.xlu0 %v2031, 126
    %v2157 = vpop.permute.xlu0 %2156
    %v2159 = vadd.f32 %v2155, %v2157
    %v2160 = vmax.f32 %v2159, 0.0
    %v2161 = vpack.c.bf16 %v2150, %v2150
    %v2162 = vpack.c.bf16 %v2151, %v2151
    %v2163 = vunpack.c.l.bf16 %v2161
    %v2164 = vunpack.c.l.bf16 %v2162
    %v2165 = vsub.f32 %v2150, %v2163
    %v2166 = vsub.f32 %v2151, %v2164
    %v2167 = vld [vmem:[#allocation6] sm:$0xff]
    %v2168 = vld [vmem:[#allocation6 + $0x8] sm:$0xff]
    %v2169 = vld [vmem:[#allocation6 + $0x10] sm:$0xff]
    %v2170 = vld [vmem:[#allocation6 + $0x18] sm:$0xff]
    %v2171 = vld [vmem:[#allocation6 + $0x20] sm:$0xff]
    %v2172 = vld [vmem:[#allocation6 + $0x28] sm:$0xff]
    %v2173 = vld [vmem:[#allocation6 + $0x30] sm:$0xff]
    %v2174 = vld [vmem:[#allocation6 + $0x38] sm:$0xff]
    %v2175 = vld [vmem:[#allocation6 + $0x40] sm:$0xff]
    %v2176 = vld [vmem:[#allocation6 + $0x48] sm:$0xff]
    %v2177 = vld [vmem:[#allocation6 + $0x50] sm:$0xff]
    %v2178 = vld [vmem:[#allocation6 + $0x58] sm:$0xff]
    %v2179 = vld [vmem:[#allocation6 + $0x60] sm:$0xff]
    %v2180 = vld [vmem:[#allocation6 + $0x68] sm:$0xff]
    %v2181 = vld [vmem:[#allocation6 + $0x70] sm:$0xff]
    %v2182 = vld [vmem:[#allocation6 + $0x78] sm:$0xff]
    %v2183 = vld [vmem:[#allocation6 + $0x80] sm:$0xff]
    %v2184 = vld [vmem:[#allocation6 + $0x88] sm:$0xff]
    %v2185 = vld [vmem:[#allocation6 + $0x90] sm:$0xff]
    %v2186 = vld [vmem:[#allocation6 + $0x98] sm:$0xff]
    %v2187 = vld [vmem:[#allocation6 + $0xa0] sm:$0xff]
    %v2188 = vld [vmem:[#allocation6 + $0xa8] sm:$0xff]
    %v2189 = vld [vmem:[#allocation6 + $0xb0] sm:$0xff]
    %v2190 = vld [vmem:[#allocation6 + $0xb8] sm:$0xff]
    %v2191 = vld [vmem:[#allocation6 + $0xc0] sm:$0xff]
    %v2192 = vld [vmem:[#allocation6 + $0xc8] sm:$0xff]
    %v2193 = vld [vmem:[#allocation6 + $0xd0] sm:$0xff]
    %v2194 = vld [vmem:[#allocation6 + $0xd8] sm:$0xff]
    %v2195 = vld [vmem:[#allocation6 + $0xe0] sm:$0xff]
    %v2196 = vld [vmem:[#allocation6 + $0xe8] sm:$0xff]
    %v2197 = vld [vmem:[#allocation6 + $0xf0] sm:$0xff]
    %v2198 = vld [vmem:[#allocation6 + $0xf8] sm:$0xff]
    %2199 = vmatprep.subr.mxu0 0.0
    %2200 = vmatpush1.msra.mxu0 %v2182
    %2201 = vmatprep.subr.mxu0 0.0
    %2202 = vmatpush1.msra.mxu0 %v2181
    %2203 = vmatprep.subr.mxu0 0.0
    %2204 = vmatpush1.msra.mxu0 %v2180
    %2205 = vmatprep.subr.mxu0 0.0
    %2206 = vmatpush1.msra.mxu0 %v2179
    %2207 = vmatprep.subr.mxu0 0.0
    %2208 = vmatpush1.msra.mxu0 %v2178
    %2209 = vmatprep.subr.mxu0 0.0
    %2210 = vmatpush1.msra.mxu0 %v2177
    %2211 = vmatprep.subr.mxu0 0.0
    %2212 = vmatpush1.msra.mxu0 %v2176
    %2213 = vmatprep.subr.mxu0 0.0
    %2214 = vmatpush1.msra.mxu0 %v2175
    %2215 = vmatprep.subr.mxu0 0.0
    %2216 = vmatpush1.msra.mxu0 %v2174
    %2217 = vmatprep.subr.mxu0 0.0
    %2218 = vmatpush1.msra.mxu0 %v2173
    %2219 = vmatprep.subr.mxu0 0.0
    %2220 = vmatpush1.msra.mxu0 %v2172
    %2221 = vmatprep.subr.mxu0 0.0
    %2222 = vmatpush1.msra.mxu0 %v2171
    %2223 = vmatprep.subr.mxu0 0.0
    %2224 = vmatpush1.msra.mxu0 %v2170
    %2225 = vmatprep.subr.mxu0 0.0
    %2226 = vmatpush1.msra.mxu0 %v2169
    %2227 = vmatprep.subr.mxu0 0.0
    %2228 = vmatpush1.msra.mxu0 %v2168
    %2229 = vmatprep.subr.mxu0 0.0
    %2230 = vmatpush1.msra.mxu0 %v2167
    %2231 = vmatprep.subr.mxu0 0.0
    %2232 = vmatpush2.msra.mxu0 %v2198
    %2233 = vmatprep.subr.mxu0 0.0
    %2234 = vmatpush2.msra.mxu0 %v2197
    %2235 = vmatprep.subr.mxu0 0.0
    %2236 = vmatpush2.msra.mxu0 %v2196
    %2237 = vmatprep.subr.mxu0 0.0
    %2238 = vmatpush2.msra.mxu0 %v2195
    %2239 = vmatprep.subr.mxu0 0.0
    %2240 = vmatpush2.msra.mxu0 %v2194
    %2241 = vmatprep.subr.mxu0 0.0
    %2242 = vmatpush2.msra.mxu0 %v2193
    %2243 = vmatprep.subr.mxu0 0.0
    %2244 = vmatpush2.msra.mxu0 %v2192
    %2245 = vmatprep.subr.mxu0 0.0
    %2246 = vmatpush2.msra.mxu0 %v2191
    %2247 = vmatprep.subr.mxu0 0.0
    %2248 = vmatpush2.msra.mxu0 %v2190
    %2249 = vmatprep.subr.mxu0 0.0
    %2250 = vmatpush2.msra.mxu0 %v2189
    %2251 = vmatprep.subr.mxu0 0.0
    %2252 = vmatpush2.msra.mxu0 %v2188
    %2253 = vmatprep.subr.mxu0 0.0
    %2254 = vmatpush2.msra.mxu0 %v2187
    %2255 = vmatprep.subr.mxu0 0.0
    %2256 = vmatpush2.msra.mxu0 %v2186
    %2257 = vmatprep.subr.mxu0 0.0
    %2258 = vmatpush2.msra.mxu0 %v2185
    %2259 = vmatprep.subr.mxu0 0.0
    %2260 = vmatpush2.msra.mxu0 %v2184
    %2261 = vmatprep.subr.mxu0 0.0
    %2262 = vmatpush2.msra.mxu0 %v2183
    %2263 = vmatprep.mubr.f32.mxu0 %v2166
    %2264 = vmatmul.mubr.f32.gmra.mxu0 %v2165
    %v2265 = vpop.f32.mrf.mxu0
    %v2266 = vadd.f32 0.0, %v2265
    %v2267 = vpop.f32.mrf.mxu0
    %2268 = vdwg.mxu0
    %2269 = vmatprep.subr.mxu0 0.0
    %2270 = vmatpush1.msra.mxu0 %v2182
    %2271 = vmatprep.subr.mxu0 0.0
    %2272 = vmatpush1.msra.mxu0 %v2181
    %2273 = vmatprep.subr.mxu0 0.0
    %2274 = vmatpush1.msra.mxu0 %v2180
    %2275 = vmatprep.subr.mxu0 0.0
    %2276 = vmatpush1.msra.mxu0 %v2179
    %2277 = vmatprep.subr.mxu0 0.0
    %2278 = vmatpush1.msra.mxu0 %v2178
    %2279 = vmatprep.subr.mxu0 0.0
    %2280 = vmatpush1.msra.mxu0 %v2177
    %2281 = vmatprep.subr.mxu0 0.0
    %2282 = vmatpush1.msra.mxu0 %v2176
    %2283 = vmatprep.subr.mxu0 0.0
    %2284 = vmatpush1.msra.mxu0 %v2175
    %2285 = vmatprep.subr.mxu0 0.0
    %2286 = vmatpush1.msra.mxu0 %v2174
    %2287 = vmatprep.subr.mxu0 0.0
    %2288 = vmatpush1.msra.mxu0 %v2173
    %2289 = vmatprep.subr.mxu0 0.0
    %2290 = vmatpush1.msra.mxu0 %v2172
    %2291 = vmatprep.subr.mxu0 0.0
    %2292 = vmatpush1.msra.mxu0 %v2171
    %2293 = vmatprep.subr.mxu0 0.0
    %2294 = vmatpush1.msra.mxu0 %v2170
    %2295 = vmatprep.subr.mxu0 0.0
    %2296 = vmatpush1.msra.mxu0 %v2169
    %2297 = vmatprep.subr.mxu0 0.0
    %2298 = vmatpush1.msra.mxu0 %v2168
    %2299 = vmatprep.subr.mxu0 0.0
    %2300 = vmatpush1.msra.mxu0 %v2167
    %2301 = vmatprep.subr.mxu0 0.0
    %2302 = vmatpush2.msra.mxu0 %v2198
    %2303 = vmatprep.subr.mxu0 0.0
    %2304 = vmatpush2.msra.mxu0 %v2197
    %2305 = vmatprep.subr.mxu0 0.0
    %2306 = vmatpush2.msra.mxu0 %v2196
    %2307 = vmatprep.subr.mxu0 0.0
    %2308 = vmatpush2.msra.mxu0 %v2195
    %2309 = vmatprep.subr.mxu0 0.0
    %2310 = vmatpush2.msra.mxu0 %v2194
    %2311 = vmatprep.subr.mxu0 0.0
    %2312 = vmatpush2.msra.mxu0 %v2193
    %2313 = vmatprep.subr.mxu0 0.0
    %2314 = vmatpush2.msra.mxu0 %v2192
    %2315 = vmatprep.subr.mxu0 0.0
    %2316 = vmatpush2.msra.mxu0 %v2191
    %2317 = vmatprep.subr.mxu0 0.0
    %2318 = vmatpush2.msra.mxu0 %v2190
    %2319 = vmatprep.subr.mxu0 0.0
    %2320 = vmatpush2.msra.mxu0 %v2189
    %2321 = vmatprep.subr.mxu0 0.0
    %2322 = vmatpush2.msra.mxu0 %v2188
    %2323 = vmatprep.subr.mxu0 0.0
    %2324 = vmatpush2.msra.mxu0 %v2187
    %2325 = vmatprep.subr.mxu0 0.0
    %2326 = vmatpush2.msra.mxu0 %v2186
    %2327 = vmatprep.subr.mxu0 0.0
    %2328 = vmatpush2.msra.mxu0 %v2185
    %2329 = vmatprep.subr.mxu0 0.0
    %2330 = vmatpush2.msra.mxu0 %v2184
    %2331 = vmatprep.subr.mxu0 0.0
    %2332 = vmatpush2.msra.mxu0 %v2183
    %2333 = vmatprep.mubr.f32.mxu0 %v2164
    %2334 = vmatmul.mubr.f32.gmra.mxu0 %v2163
    %v2335 = vpop.f32.mrf.mxu0
    %v2336 = vadd.f32 %v2266, %v2335
    %v2337 = vpop.f32.mrf.mxu0
    %2338 = vdwg.mxu0
    %v2339 = vld [vmem:[#allocation7] sm:$0x1]
    %2341 = vset.pattern.permute.xlu0 0
    %2342 = vperm.xlu0 %2341, %v2160
    %v2343 = vpop.permute.xlu0 %2342
    %v2346 = vlaneseq
    %v2347 = vshrl.u32 %v2346, 7
    %v2348 = vsub.s32 0, %v2347
    %v2349 = vrot.slane %v2339, %v2348
    %v2351 = vmul.f32 %v2343, %v2349
    %v2352 = vadd.f32 %v2336, %v2351
    %s2353 = scalar_lea.vmem [#allocation6], 256
    %v2354 = vld [vmem:[%s2353] sm:$0xff]
    %v2355 = vld [vmem:[%s2353 + $0x8] sm:$0xff]
    %v2356 = vld [vmem:[%s2353 + $0x10] sm:$0xff]
    %v2357 = vld [vmem:[%s2353 + $0x18] sm:$0xff]
    %v2358 = vld [vmem:[%s2353 + $0x20] sm:$0xff]
    %v2359 = vld [vmem:[%s2353 + $0x28] sm:$0xff]
    %v2360 = vld [vmem:[%s2353 + $0x30] sm:$0xff]
    %v2361 = vld [vmem:[%s2353 + $0x38] sm:$0xff]
    %v2362 = vld [vmem:[%s2353 + $0x40] sm:$0xff]
    %v2363 = vld [vmem:[%s2353 + $0x48] sm:$0xff]
    %v2364 = vld [vmem:[%s2353 + $0x50] sm:$0xff]
    %v2365 = vld [vmem:[%s2353 + $0x58] sm:$0xff]
    %v2366 = vld [vmem:[%s2353 + $0x60] sm:$0xff]
    %v2367 = vld [vmem:[%s2353 + $0x68] sm:$0xff]
    %v2368 = vld [vmem:[%s2353 + $0x70] sm:$0xff]
    %v2369 = vld [vmem:[%s2353 + $0x78] sm:$0xff]
    %v2370 = vld [vmem:[%s2353 + $0x80] sm:$0xff]
    %v2371 = vld [vmem:[%s2353 + $0x88] sm:$0xff]
    %v2372 = vld [vmem:[%s2353 + $0x90] sm:$0xff]
    %v2373 = vld [vmem:[%s2353 + $0x98] sm:$0xff]
    %v2374 = vld [vmem:[%s2353 + $0xa0] sm:$0xff]
    %v2375 = vld [vmem:[%s2353 + $0xa8] sm:$0xff]
    %v2376 = vld [vmem:[%s2353 + $0xb0] sm:$0xff]
    %v2377 = vld [vmem:[%s2353 + $0xb8] sm:$0xff]
    %v2378 = vld [vmem:[%s2353 + $0xc0] sm:$0xff]
    %v2379 = vld [vmem:[%s2353 + $0xc8] sm:$0xff]
    %v2380 = vld [vmem:[%s2353 + $0xd0] sm:$0xff]
    %v2381 = vld [vmem:[%s2353 + $0xd8] sm:$0xff]
    %v2382 = vld [vmem:[%s2353 + $0xe0] sm:$0xff]
    %v2383 = vld [vmem:[%s2353 + $0xe8] sm:$0xff]
    %v2384 = vld [vmem:[%s2353 + $0xf0] sm:$0xff]
    %v2385 = vld [vmem:[%s2353 + $0xf8] sm:$0xff]
    %2386 = vmatprep.subr.mxu0 0.0
    %2387 = vmatpush1.msra.mxu0 %v2369
    %2388 = vmatprep.subr.mxu0 0.0
    %2389 = vmatpush1.msra.mxu0 %v2368
    %2390 = vmatprep.subr.mxu0 0.0
    %2391 = vmatpush1.msra.mxu0 %v2367
    %2392 = vmatprep.subr.mxu0 0.0
    %2393 = vmatpush1.msra.mxu0 %v2366
    %2394 = vmatprep.subr.mxu0 0.0
    %2395 = vmatpush1.msra.mxu0 %v2365
    %2396 = vmatprep.subr.mxu0 0.0
    %2397 = vmatpush1.msra.mxu0 %v2364
    %2398 = vmatprep.subr.mxu0 0.0
    %2399 = vmatpush1.msra.mxu0 %v2363
    %2400 = vmatprep.subr.mxu0 0.0
    %2401 = vmatpush1.msra.mxu0 %v2362
    %2402 = vmatprep.subr.mxu0 0.0
    %2403 = vmatpush1.msra.mxu0 %v2361
    %2404 = vmatprep.subr.mxu0 0.0
    %2405 = vmatpush1.msra.mxu0 %v2360
    %2406 = vmatprep.subr.mxu0 0.0
    %2407 = vmatpush1.msra.mxu0 %v2359
    %2408 = vmatprep.subr.mxu0 0.0
    %2409 = vmatpush1.msra.mxu0 %v2358
    %2410 = vmatprep.subr.mxu0 0.0
    %2411 = vmatpush1.msra.mxu0 %v2357
    %2412 = vmatprep.subr.mxu0 0.0
    %2413 = vmatpush1.msra.mxu0 %v2356
    %2414 = vmatprep.subr.mxu0 0.0
    %2415 = vmatpush1.msra.mxu0 %v2355
    %2416 = vmatprep.subr.mxu0 0.0
    %2417 = vmatpush1.msra.mxu0 %v2354
    %2418 = vmatprep.subr.mxu0 0.0
    %2419 = vmatpush2.msra.mxu0 %v2385
    %2420 = vmatprep.subr.mxu0 0.0
    %2421 = vmatpush2.msra.mxu0 %v2384
    %2422 = vmatprep.subr.mxu0 0.0
    %2423 = vmatpush2.msra.mxu0 %v2383
    %2424 = vmatprep.subr.mxu0 0.0
    %2425 = vmatpush2.msra.mxu0 %v2382
    %2426 = vmatprep.subr.mxu0 0.0
    %2427 = vmatpush2.msra.mxu0 %v2381
    %2428 = vmatprep.subr.mxu0 0.0
    %2429 = vmatpush2.msra.mxu0 %v2380
    %2430 = vmatprep.subr.mxu0 0.0
    %2431 = vmatpush2.msra.mxu0 %v2379
    %2432 = vmatprep.subr.mxu0 0.0
    %2433 = vmatpush2.msra.mxu0 %v2378
    %2434 = vmatprep.subr.mxu0 0.0
    %2435 = vmatpush2.msra.mxu0 %v2377
    %2436 = vmatprep.subr.mxu0 0.0
    %2437 = vmatpush2.msra.mxu0 %v2376
    %2438 = vmatprep.subr.mxu0 0.0
    %2439 = vmatpush2.msra.mxu0 %v2375
    %2440 = vmatprep.subr.mxu0 0.0
    %2441 = vmatpush2.msra.mxu0 %v2374
    %2442 = vmatprep.subr.mxu0 0.0
    %2443 = vmatpush2.msra.mxu0 %v2373
    %2444 = vmatprep.subr.mxu0 0.0
    %2445 = vmatpush2.msra.mxu0 %v2372
    %2446 = vmatprep.subr.mxu0 0.0
    %2447 = vmatpush2.msra.mxu0 %v2371
    %2448 = vmatprep.subr.mxu0 0.0
    %2449 = vmatpush2.msra.mxu0 %v2370
    %2450 = vmatprep.mubr.f32.mxu0 %v2166
    %2451 = vmatmul.mubr.f32.gmra.mxu0 %v2165
    %v2452 = vpop.f32.mrf.mxu0
    %v2453 = vadd.f32 0.0, %v2452
    %v2454 = vpop.f32.mrf.mxu0
    %2455 = vdwg.mxu0
    %2456 = vmatprep.subr.mxu0 0.0
    %2457 = vmatpush1.msra.mxu0 %v2369
    %2458 = vmatprep.subr.mxu0 0.0
    %2459 = vmatpush1.msra.mxu0 %v2368
    %2460 = vmatprep.subr.mxu0 0.0
    %2461 = vmatpush1.msra.mxu0 %v2367
    %2462 = vmatprep.subr.mxu0 0.0
    %2463 = vmatpush1.msra.mxu0 %v2366
    %2464 = vmatprep.subr.mxu0 0.0
    %2465 = vmatpush1.msra.mxu0 %v2365
    %2466 = vmatprep.subr.mxu0 0.0
    %2467 = vmatpush1.msra.mxu0 %v2364
    %2468 = vmatprep.subr.mxu0 0.0
    %2469 = vmatpush1.msra.mxu0 %v2363
    %2470 = vmatprep.subr.mxu0 0.0
    %2471 = vmatpush1.msra.mxu0 %v2362
    %2472 = vmatprep.subr.mxu0 0.0
    %2473 = vmatpush1.msra.mxu0 %v2361
    %2474 = vmatprep.subr.mxu0 0.0
    %2475 = vmatpush1.msra.mxu0 %v2360
    %2476 = vmatprep.subr.mxu0 0.0
    %2477 = vmatpush1.msra.mxu0 %v2359
    %2478 = vmatprep.subr.mxu0 0.0
    %2479 = vmatpush1.msra.mxu0 %v2358
    %2480 = vmatprep.subr.mxu0 0.0
    %2481 = vmatpush1.msra.mxu0 %v2357
    %2482 = vmatprep.subr.mxu0 0.0
    %2483 = vmatpush1.msra.mxu0 %v2356
    %2484 = vmatprep.subr.mxu0 0.0
    %2485 = vmatpush1.msra.mxu0 %v2355
    %2486 = vmatprep.subr.mxu0 0.0
    %2487 = vmatpush1.msra.mxu0 %v2354
    %2488 = vmatprep.subr.mxu0 0.0
    %2489 = vmatpush2.msra.mxu0 %v2385
    %2490 = vmatprep.subr.mxu0 0.0
    %2491 = vmatpush2.msra.mxu0 %v2384
    %2492 = vmatprep.subr.mxu0 0.0
    %2493 = vmatpush2.msra.mxu0 %v2383
    %2494 = vmatprep.subr.mxu0 0.0
    %2495 = vmatpush2.msra.mxu0 %v2382
    %2496 = vmatprep.subr.mxu0 0.0
    %2497 = vmatpush2.msra.mxu0 %v2381
    %2498 = vmatprep.subr.mxu0 0.0
    %2499 = vmatpush2.msra.mxu0 %v2380
    %2500 = vmatprep.subr.mxu0 0.0
    %2501 = vmatpush2.msra.mxu0 %v2379
    %2502 = vmatprep.subr.mxu0 0.0
    %2503 = vmatpush2.msra.mxu0 %v2378
    %2504 = vmatprep.subr.mxu0 0.0
    %2505 = vmatpush2.msra.mxu0 %v2377
    %2506 = vmatprep.subr.mxu0 0.0
    %2507 = vmatpush2.msra.mxu0 %v2376
    %2508 = vmatprep.subr.mxu0 0.0
    %2509 = vmatpush2.msra.mxu0 %v2375
    %2510 = vmatprep.subr.mxu0 0.0
    %2511 = vmatpush2.msra.mxu0 %v2374
    %2512 = vmatprep.subr.mxu0 0.0
    %2513 = vmatpush2.msra.mxu0 %v2373
    %2514 = vmatprep.subr.mxu0 0.0
    %2515 = vmatpush2.msra.mxu0 %v2372
    %2516 = vmatprep.subr.mxu0 0.0
    %2517 = vmatpush2.msra.mxu0 %v2371
    %2518 = vmatprep.subr.mxu0 0.0
    %2519 = vmatpush2.msra.mxu0 %v2370
    %2520 = vmatprep.mubr.f32.mxu0 %v2164
    %2521 = vmatmul.mubr.f32.gmra.mxu0 %v2163
    %v2522 = vpop.f32.mrf.mxu0
    %v2523 = vadd.f32 %v2453, %v2522
    %v2524 = vpop.f32.mrf.mxu0
    %2525 = vdwg.mxu0
    %s2526 = scalar_lea.vmem [#allocation7], 1
    %v2527 = vld [vmem:[%s2526] sm:$0x1]
    %v2529 = vlaneseq
    %v2530 = vshrl.u32 %v2529, 7
    %v2531 = vsub.s32 0, %v2530
    %v2532 = vrot.slane %v2527, %v2531
    %v2534 = vmul.f32 %v2343, %v2532
    %v2535 = vadd.f32 %v2523, %v2534
    %v2536 = vmax.f32 %v2352, %v2535
    %s2537 = scalar_lea.vmem [#allocation6], 512
    %v2538 = vld [vmem:[%s2537] sm:$0xff]
    %v2539 = vld [vmem:[%s2537 + $0x8] sm:$0xff]
    %v2540 = vld [vmem:[%s2537 + $0x10] sm:$0xff]
    %v2541 = vld [vmem:[%s2537 + $0x18] sm:$0xff]
    %v2542 = vld [vmem:[%s2537 + $0x20] sm:$0xff]
    %v2543 = vld [vmem:[%s2537 + $0x28] sm:$0xff]
    %v2544 = vld [vmem:[%s2537 + $0x30] sm:$0xff]
    %v2545 = vld [vmem:[%s2537 + $0x38] sm:$0xff]
    %v2546 = vld [vmem:[%s2537 + $0x40] sm:$0xff]
    %v2547 = vld [vmem:[%s2537 + $0x48] sm:$0xff]
    %v2548 = vld [vmem:[%s2537 + $0x50] sm:$0xff]
    %v2549 = vld [vmem:[%s2537 + $0x58] sm:$0xff]
    %v2550 = vld [vmem:[%s2537 + $0x60] sm:$0xff]
    %v2551 = vld [vmem:[%s2537 + $0x68] sm:$0xff]
    %v2552 = vld [vmem:[%s2537 + $0x70] sm:$0xff]
    %v2553 = vld [vmem:[%s2537 + $0x78] sm:$0xff]
    %v2554 = vld [vmem:[%s2537 + $0x80] sm:$0xff]
    %v2555 = vld [vmem:[%s2537 + $0x88] sm:$0xff]
    %v2556 = vld [vmem:[%s2537 + $0x90] sm:$0xff]
    %v2557 = vld [vmem:[%s2537 + $0x98] sm:$0xff]
    %v2558 = vld [vmem:[%s2537 + $0xa0] sm:$0xff]
    %v2559 = vld [vmem:[%s2537 + $0xa8] sm:$0xff]
    %v2560 = vld [vmem:[%s2537 + $0xb0] sm:$0xff]
    %v2561 = vld [vmem:[%s2537 + $0xb8] sm:$0xff]
    %v2562 = vld [vmem:[%s2537 + $0xc0] sm:$0xff]
    %v2563 = vld [vmem:[%s2537 + $0xc8] sm:$0xff]
    %v2564 = vld [vmem:[%s2537 + $0xd0] sm:$0xff]
    %v2565 = vld [vmem:[%s2537 + $0xd8] sm:$0xff]
    %v2566 = vld [vmem:[%s2537 + $0xe0] sm:$0xff]
    %v2567 = vld [vmem:[%s2537 + $0xe8] sm:$0xff]
    %v2568 = vld [vmem:[%s2537 + $0xf0] sm:$0xff]
    %v2569 = vld [vmem:[%s2537 + $0xf8] sm:$0xff]
    %2570 = vmatprep.subr.mxu0 0.0
    %2571 = vmatpush1.msra.mxu0 %v2553
    %2572 = vmatprep.subr.mxu0 0.0
    %2573 = vmatpush1.msra.mxu0 %v2552
    %2574 = vmatprep.subr.mxu0 0.0
    %2575 = vmatpush1.msra.mxu0 %v2551
    %2576 = vmatprep.subr.mxu0 0.0
    %2577 = vmatpush1.msra.mxu0 %v2550
    %2578 = vmatprep.subr.mxu0 0.0
    %2579 = vmatpush1.msra.mxu0 %v2549
    %2580 = vmatprep.subr.mxu0 0.0
    %2581 = vmatpush1.msra.mxu0 %v2548
    %2582 = vmatprep.subr.mxu0 0.0
    %2583 = vmatpush1.msra.mxu0 %v2547
    %2584 = vmatprep.subr.mxu0 0.0
    %2585 = vmatpush1.msra.mxu0 %v2546
    %2586 = vmatprep.subr.mxu0 0.0
    %2587 = vmatpush1.msra.mxu0 %v2545
    %2588 = vmatprep.subr.mxu0 0.0
    %2589 = vmatpush1.msra.mxu0 %v2544
    %2590 = vmatprep.subr.mxu0 0.0
    %2591 = vmatpush1.msra.mxu0 %v2543
    %2592 = vmatprep.subr.mxu0 0.0
    %2593 = vmatpush1.msra.mxu0 %v2542
    %2594 = vmatprep.subr.mxu0 0.0
    %2595 = vmatpush1.msra.mxu0 %v2541
    %2596 = vmatprep.subr.mxu0 0.0
    %2597 = vmatpush1.msra.mxu0 %v2540
    %2598 = vmatprep.subr.mxu0 0.0
    %2599 = vmatpush1.msra.mxu0 %v2539
    %2600 = vmatprep.subr.mxu0 0.0
    %2601 = vmatpush1.msra.mxu0 %v2538
    %2602 = vmatprep.subr.mxu0 0.0
    %2603 = vmatpush2.msra.mxu0 %v2569
    %2604 = vmatprep.subr.mxu0 0.0
    %2605 = vmatpush2.msra.mxu0 %v2568
    %2606 = vmatprep.subr.mxu0 0.0
    %2607 = vmatpush2.msra.mxu0 %v2567
    %2608 = vmatprep.subr.mxu0 0.0
    %2609 = vmatpush2.msra.mxu0 %v2566
    %2610 = vmatprep.subr.mxu0 0.0
    %2611 = vmatpush2.msra.mxu0 %v2565
    %2612 = vmatprep.subr.mxu0 0.0
    %2613 = vmatpush2.msra.mxu0 %v2564
    %2614 = vmatprep.subr.mxu0 0.0
    %2615 = vmatpush2.msra.mxu0 %v2563
    %2616 = vmatprep.subr.mxu0 0.0
    %2617 = vmatpush2.msra.mxu0 %v2562
    %2618 = vmatprep.subr.mxu0 0.0
    %2619 = vmatpush2.msra.mxu0 %v2561
    %2620 = vmatprep.subr.mxu0 0.0
    %2621 = vmatpush2.msra.mxu0 %v2560
    %2622 = vmatprep.subr.mxu0 0.0
    %2623 = vmatpush2.msra.mxu0 %v2559
    %2624 = vmatprep.subr.mxu0 0.0
    %2625 = vmatpush2.msra.mxu0 %v2558
    %2626 = vmatprep.subr.mxu0 0.0
    %2627 = vmatpush2.msra.mxu0 %v2557
    %2628 = vmatprep.subr.mxu0 0.0
    %2629 = vmatpush2.msra.mxu0 %v2556
    %2630 = vmatprep.subr.mxu0 0.0
    %2631 = vmatpush2.msra.mxu0 %v2555
    %2632 = vmatprep.subr.mxu0 0.0
    %2633 = vmatpush2.msra.mxu0 %v2554
    %2634 = vmatprep.mubr.f32.mxu0 %v2166
    %2635 = vmatmul.mubr.f32.gmra.mxu0 %v2165
    %v2636 = vpop.f32.mrf.mxu0
    %v2637 = vadd.f32 0.0, %v2636
    %v2638 = vpop.f32.mrf.mxu0
    %2639 = vdwg.mxu0
    %2640 = vmatprep.subr.mxu0 0.0
    %2641 = vmatpush1.msra.mxu0 %v2553
    %2642 = vmatprep.subr.mxu0 0.0
    %2643 = vmatpush1.msra.mxu0 %v2552
    %2644 = vmatprep.subr.mxu0 0.0
    %2645 = vmatpush1.msra.mxu0 %v2551
    %2646 = vmatprep.subr.mxu0 0.0
    %2647 = vmatpush1.msra.mxu0 %v2550
    %2648 = vmatprep.subr.mxu0 0.0
    %2649 = vmatpush1.msra.mxu0 %v2549
    %2650 = vmatprep.subr.mxu0 0.0
    %2651 = vmatpush1.msra.mxu0 %v2548
    %2652 = vmatprep.subr.mxu0 0.0
    %2653 = vmatpush1.msra.mxu0 %v2547
    %2654 = vmatprep.subr.mxu0 0.0
    %2655 = vmatpush1.msra.mxu0 %v2546
    %2656 = vmatprep.subr.mxu0 0.0
    %2657 = vmatpush1.msra.mxu0 %v2545
    %2658 = vmatprep.subr.mxu0 0.0
    %2659 = vmatpush1.msra.mxu0 %v2544
    %2660 = vmatprep.subr.mxu0 0.0
    %2661 = vmatpush1.msra.mxu0 %v2543
    %2662 = vmatprep.subr.mxu0 0.0
    %2663 = vmatpush1.msra.mxu0 %v2542
    %2664 = vmatprep.subr.mxu0 0.0
    %2665 = vmatpush1.msra.mxu0 %v2541
    %2666 = vmatprep.subr.mxu0 0.0
    %2667 = vmatpush1.msra.mxu0 %v2540
    %2668 = vmatprep.subr.mxu0 0.0
    %2669 = vmatpush1.msra.mxu0 %v2539
    %2670 = vmatprep.subr.mxu0 0.0
    %2671 = vmatpush1.msra.mxu0 %v2538
    %2672 = vmatprep.subr.mxu0 0.0
    %2673 = vmatpush2.msra.mxu0 %v2569
    %2674 = vmatprep.subr.mxu0 0.0
    %2675 = vmatpush2.msra.mxu0 %v2568
    %2676 = vmatprep.subr.mxu0 0.0
    %2677 = vmatpush2.msra.mxu0 %v2567
    %2678 = vmatprep.subr.mxu0 0.0
    %2679 = vmatpush2.msra.mxu0 %v2566
    %2680 = vmatprep.subr.mxu0 0.0
    %2681 = vmatpush2.msra.mxu0 %v2565
    %2682 = vmatprep.subr.mxu0 0.0
    %2683 = vmatpush2.msra.mxu0 %v2564
    %2684 = vmatprep.subr.mxu0 0.0
    %2685 = vmatpush2.msra.mxu0 %v2563
    %2686 = vmatprep.subr.mxu0 0.0
    %2687 = vmatpush2.msra.mxu0 %v2562
    %2688 = vmatprep.subr.mxu0 0.0
    %2689 = vmatpush2.msra.mxu0 %v2561
    %2690 = vmatprep.subr.mxu0 0.0
    %2691 = vmatpush2.msra.mxu0 %v2560
    %2692 = vmatprep.subr.mxu0 0.0
    %2693 = vmatpush2.msra.mxu0 %v2559
    %2694 = vmatprep.subr.mxu0 0.0
    %2695 = vmatpush2.msra.mxu0 %v2558
    %2696 = vmatprep.subr.mxu0 0.0
    %2697 = vmatpush2.msra.mxu0 %v2557
    %2698 = vmatprep.subr.mxu0 0.0
    %2699 = vmatpush2.msra.mxu0 %v2556
    %2700 = vmatprep.subr.mxu0 0.0
    %2701 = vmatpush2.msra.mxu0 %v2555
    %2702 = vmatprep.subr.mxu0 0.0
    %2703 = vmatpush2.msra.mxu0 %v2554
    %2704 = vmatprep.mubr.f32.mxu0 %v2164
    %2705 = vmatmul.mubr.f32.gmra.mxu0 %v2163
    %v2706 = vpop.f32.mrf.mxu0
    %v2707 = vadd.f32 %v2637, %v2706
    %v2708 = vpop.f32.mrf.mxu0
    %2709 = vdwg.mxu0
    %s2710 = scalar_lea.vmem [#allocation7], 2
    %v2711 = vld [vmem:[%s2710] sm:$0x1]
    %v2713 = vlaneseq
    %v2714 = vshrl.u32 %v2713, 7
    %v2715 = vsub.s32 0, %v2714
    %v2716 = vrot.slane %v2711, %v2715
    %v2718 = vmul.f32 %v2343, %v2716
    %v2719 = vadd.f32 %v2707, %v2718
    %v2720 = vmax.f32 %v2536, %v2719
    %s2721 = scalar_lea.vmem [#allocation6], 768
    %v2722 = vld [vmem:[%s2721] sm:$0xff]
    %v2723 = vld [vmem:[%s2721 + $0x8] sm:$0xff]
    %v2724 = vld [vmem:[%s2721 + $0x10] sm:$0xff]
    %v2725 = vld [vmem:[%s2721 + $0x18] sm:$0xff]
    %v2726 = vld [vmem:[%s2721 + $0x20] sm:$0xff]
    %v2727 = vld [vmem:[%s2721 + $0x28] sm:$0xff]
    %v2728 = vld [vmem:[%s2721 + $0x30] sm:$0xff]
    %v2729 = vld [vmem:[%s2721 + $0x38] sm:$0xff]
    %v2730 = vld [vmem:[%s2721 + $0x40] sm:$0xff]
    %v2731 = vld [vmem:[%s2721 + $0x48] sm:$0xff]
    %v2732 = vld [vmem:[%s2721 + $0x50] sm:$0xff]
    %v2733 = vld [vmem:[%s2721 + $0x58] sm:$0xff]
    %v2734 = vld [vmem:[%s2721 + $0x60] sm:$0xff]
    %v2735 = vld [vmem:[%s2721 + $0x68] sm:$0xff]
    %v2736 = vld [vmem:[%s2721 + $0x70] sm:$0xff]
    %v2737 = vld [vmem:[%s2721 + $0x78] sm:$0xff]
    %v2738 = vld [vmem:[%s2721 + $0x80] sm:$0xff]
    %v2739 = vld [vmem:[%s2721 + $0x88] sm:$0xff]
    %v2740 = vld [vmem:[%s2721 + $0x90] sm:$0xff]
    %v2741 = vld [vmem:[%s2721 + $0x98] sm:$0xff]
    %v2742 = vld [vmem:[%s2721 + $0xa0] sm:$0xff]
    %v2743 = vld [vmem:[%s2721 + $0xa8] sm:$0xff]
    %v2744 = vld [vmem:[%s2721 + $0xb0] sm:$0xff]
    %v2745 = vld [vmem:[%s2721 + $0xb8] sm:$0xff]
    %v2746 = vld [vmem:[%s2721 + $0xc0] sm:$0xff]
    %v2747 = vld [vmem:[%s2721 + $0xc8] sm:$0xff]
    %v2748 = vld [vmem:[%s2721 + $0xd0] sm:$0xff]
    %v2749 = vld [vmem:[%s2721 + $0xd8] sm:$0xff]
    %v2750 = vld [vmem:[%s2721 + $0xe0] sm:$0xff]
    %v2751 = vld [vmem:[%s2721 + $0xe8] sm:$0xff]
    %v2752 = vld [vmem:[%s2721 + $0xf0] sm:$0xff]
    %v2753 = vld [vmem:[%s2721 + $0xf8] sm:$0xff]
    %2754 = vmatprep.subr.mxu0 0.0
    %2755 = vmatpush1.msra.mxu0 %v2737
    %2756 = vmatprep.subr.mxu0 0.0
    %2757 = vmatpush1.msra.mxu0 %v2736
    %2758 = vmatprep.subr.mxu0 0.0
    %2759 = vmatpush1.msra.mxu0 %v2735
    %2760 = vmatprep.subr.mxu0 0.0
    %2761 = vmatpush1.msra.mxu0 %v2734
    %2762 = vmatprep.subr.mxu0 0.0
    %2763 = vmatpush1.msra.mxu0 %v2733
    %2764 = vmatprep.subr.mxu0 0.0
    %2765 = vmatpush1.msra.mxu0 %v2732
    %2766 = vmatprep.subr.mxu0 0.0
    %2767 = vmatpush1.msra.mxu0 %v2731
    %2768 = vmatprep.subr.mxu0 0.0
    %2769 = vmatpush1.msra.mxu0 %v2730
    %2770 = vmatprep.subr.mxu0 0.0
    %2771 = vmatpush1.msra.mxu0 %v2729
    %2772 = vmatprep.subr.mxu0 0.0
    %2773 = vmatpush1.msra.mxu0 %v2728
    %2774 = vmatprep.subr.mxu0 0.0
    %2775 = vmatpush1.msra.mxu0 %v2727
    %2776 = vmatprep.subr.mxu0 0.0
    %2777 = vmatpush1.msra.mxu0 %v2726
    %2778 = vmatprep.subr.mxu0 0.0
    %2779 = vmatpush1.msra.mxu0 %v2725
    %2780 = vmatprep.subr.mxu0 0.0
    %2781 = vmatpush1.msra.mxu0 %v2724
    %2782 = vmatprep.subr.mxu0 0.0
    %2783 = vmatpush1.msra.mxu0 %v2723
    %2784 = vmatprep.subr.mxu0 0.0
    %2785 = vmatpush1.msra.mxu0 %v2722
    %2786 = vmatprep.subr.mxu0 0.0
    %2787 = vmatpush2.msra.mxu0 %v2753
    %2788 = vmatprep.subr.mxu0 0.0
    %2789 = vmatpush2.msra.mxu0 %v2752
    %2790 = vmatprep.subr.mxu0 0.0
    %2791 = vmatpush2.msra.mxu0 %v2751
    %2792 = vmatprep.subr.mxu0 0.0
    %2793 = vmatpush2.msra.mxu0 %v2750
    %2794 = vmatprep.subr.mxu0 0.0
    %2795 = vmatpush2.msra.mxu0 %v2749
    %2796 = vmatprep.subr.mxu0 0.0
    %2797 = vmatpush2.msra.mxu0 %v2748
    %2798 = vmatprep.subr.mxu0 0.0
    %2799 = vmatpush2.msra.mxu0 %v2747
    %2800 = vmatprep.subr.mxu0 0.0
    %2801 = vmatpush2.msra.mxu0 %v2746
    %2802 = vmatprep.subr.mxu0 0.0
    %2803 = vmatpush2.msra.mxu0 %v2745
    %2804 = vmatprep.subr.mxu0 0.0
    %2805 = vmatpush2.msra.mxu0 %v2744
    %2806 = vmatprep.subr.mxu0 0.0
    %2807 = vmatpush2.msra.mxu0 %v2743
    %2808 = vmatprep.subr.mxu0 0.0
    %2809 = vmatpush2.msra.mxu0 %v2742
    %2810 = vmatprep.subr.mxu0 0.0
    %2811 = vmatpush2.msra.mxu0 %v2741
    %2812 = vmatprep.subr.mxu0 0.0
    %2813 = vmatpush2.msra.mxu0 %v2740
    %2814 = vmatprep.subr.mxu0 0.0
    %2815 = vmatpush2.msra.mxu0 %v2739
    %2816 = vmatprep.subr.mxu0 0.0
    %2817 = vmatpush2.msra.mxu0 %v2738
    %2818 = vmatprep.mubr.f32.mxu0 %v2166
    %2819 = vmatmul.mubr.f32.gmra.mxu0 %v2165
    %v2820 = vpop.f32.mrf.mxu0
    %v2821 = vadd.f32 0.0, %v2820
    %v2822 = vpop.f32.mrf.mxu0
    %2823 = vdwg.mxu0
    %2824 = vmatprep.subr.mxu0 0.0
    %2825 = vmatpush1.msra.mxu0 %v2737
    %2826 = vmatprep.subr.mxu0 0.0
    %2827 = vmatpush1.msra.mxu0 %v2736
    %2828 = vmatprep.subr.mxu0 0.0
    %2829 = vmatpush1.msra.mxu0 %v2735
    %2830 = vmatprep.subr.mxu0 0.0
    %2831 = vmatpush1.msra.mxu0 %v2734
    %2832 = vmatprep.subr.mxu0 0.0
    %2833 = vmatpush1.msra.mxu0 %v2733
    %2834 = vmatprep.subr.mxu0 0.0
    %2835 = vmatpush1.msra.mxu0 %v2732
    %2836 = vmatprep.subr.mxu0 0.0
    %2837 = vmatpush1.msra.mxu0 %v2731
    %2838 = vmatprep.subr.mxu0 0.0
    %2839 = vmatpush1.msra.mxu0 %v2730
    %2840 = vmatprep.subr.mxu0 0.0
    %2841 = vmatpush1.msra.mxu0 %v2729
    %2842 = vmatprep.subr.mxu0 0.0
    %2843 = vmatpush1.msra.mxu0 %v2728
    %2844 = vmatprep.subr.mxu0 0.0
    %2845 = vmatpush1.msra.mxu0 %v2727
    %2846 = vmatprep.subr.mxu0 0.0
    %2847 = vmatpush1.msra.mxu0 %v2726
    %2848 = vmatprep.subr.mxu0 0.0
    %2849 = vmatpush1.msra.mxu0 %v2725
    %2850 = vmatprep.subr.mxu0 0.0
    %2851 = vmatpush1.msra.mxu0 %v2724
    %2852 = vmatprep.subr.mxu0 0.0
    %2853 = vmatpush1.msra.mxu0 %v2723
    %2854 = vmatprep.subr.mxu0 0.0
    %2855 = vmatpush1.msra.mxu0 %v2722
    %2856 = vmatprep.subr.mxu0 0.0
    %2857 = vmatpush2.msra.mxu0 %v2753
    %2858 = vmatprep.subr.mxu0 0.0
    %2859 = vmatpush2.msra.mxu0 %v2752
    %2860 = vmatprep.subr.mxu0 0.0
    %2861 = vmatpush2.msra.mxu0 %v2751
    %2862 = vmatprep.subr.mxu0 0.0
    %2863 = vmatpush2.msra.mxu0 %v2750
    %2864 = vmatprep.subr.mxu0 0.0
    %2865 = vmatpush2.msra.mxu0 %v2749
    %2866 = vmatprep.subr.mxu0 0.0
    %2867 = vmatpush2.msra.mxu0 %v2748
    %2868 = vmatprep.subr.mxu0 0.0
    %2869 = vmatpush2.msra.mxu0 %v2747
    %2870 = vmatprep.subr.mxu0 0.0
    %2871 = vmatpush2.msra.mxu0 %v2746
    %2872 = vmatprep.subr.mxu0 0.0
    %2873 = vmatpush2.msra.mxu0 %v2745
    %2874 = vmatprep.subr.mxu0 0.0
    %2875 = vmatpush2.msra.mxu0 %v2744
    %2876 = vmatprep.subr.mxu0 0.0
    %2877 = vmatpush2.msra.mxu0 %v2743
    %2878 = vmatprep.subr.mxu0 0.0
    %2879 = vmatpush2.msra.mxu0 %v2742
    %2880 = vmatprep.subr.mxu0 0.0
    %2881 = vmatpush2.msra.mxu0 %v2741
    %2882 = vmatprep.subr.mxu0 0.0
    %2883 = vmatpush2.msra.mxu0 %v2740
    %2884 = vmatprep.subr.mxu0 0.0
    %2885 = vmatpush2.msra.mxu0 %v2739
    %2886 = vmatprep.subr.mxu0 0.0
    %2887 = vmatpush2.msra.mxu0 %v2738
    %2888 = vmatprep.mubr.f32.mxu0 %v2164
    %2889 = vmatmul.mubr.f32.gmra.mxu0 %v2163
    %v2890 = vpop.f32.mrf.mxu0
    %v2891 = vadd.f32 %v2821, %v2890
    %v2892 = vpop.f32.mrf.mxu0
    %2893 = vdwg.mxu0
    %s2894 = scalar_lea.vmem [#allocation7], 3
    %v2895 = vld [vmem:[%s2894] sm:$0x1]
    %v2897 = vlaneseq
    %v2898 = vshrl.u32 %v2897, 7
    %v2899 = vsub.s32 0, %v2898
    %v2900 = vrot.slane %v2895, %v2899
    %v2902 = vmul.f32 %v2343, %v2900
    %v2903 = vadd.f32 %v2891, %v2902
    %v2904 = vmax.f32 %v2720, %v2903
    %v2905 = vld [vmem:[%s9] sm:$0xff]
    %v2906 = vld [vmem:[%s9 + $0x8] sm:$0xff]
    %v2907 = vld [vmem:[%s10] sm:$0xff]
    %v2908 = vld [vmem:[%s10 + $0x8] sm:$0xff]
    %2910 = vset.pattern.permute.xlu0 0
    %2911 = vperm.xlu0 %2910, %v2905
    %v2912 = vpop.permute.xlu0 %2911
    %2915 = vset.pattern.permute.xlu0 0
    %2916 = vperm.xlu0 %2915, %v2906
    %v2917 = vpop.permute.xlu0 %2916
    %v2919 = vlaneseq
    %v2920 = vshrl.u32 %v2919, 7
    %v2921 = vsub.s32 0, %v2920
    %v2922 = vrot.slane %v2904, %v2921
    %v2923 = vmul.f32 %v2912, %v2922
    %v2924 = vmul.f32 %v2917, %v2922
    %2925 = vset.pattern.permute.xlu0 1
    %2926 = vperm.xlu0 %2925, %v2905
    %v2927 = vpop.permute.xlu0 %2926
    %2929 = vset.pattern.permute.xlu0 1
    %2930 = vperm.xlu0 %2929, %v2906
    %v2931 = vpop.permute.xlu0 %2930
    %v2933 = vlaneseq
    %v2934 = vshrl.u32 %v2933, 7
    %v2935 = vsub.s32 1, %v2934
    %v2936 = vrot.slane %v2904, %v2935
    %v2937 = vmul.f32 %v2927, %v2936
    %v2938 = vmul.f32 %v2931, %v2936
    %2939 = vset.pattern.permute.xlu0 2
    %2940 = vperm.xlu0 %2939, %v2905
    %v2941 = vpop.permute.xlu0 %2940
    %2943 = vset.pattern.permute.xlu0 2
    %2944 = vperm.xlu0 %2943, %v2906
    %v2945 = vpop.permute.xlu0 %2944
    %v2947 = vlaneseq
    %v2948 = vshrl.u32 %v2947, 7
    %v2949 = vsub.s32 2, %v2948
    %v2950 = vrot.slane %v2904, %v2949
    %v2951 = vmul.f32 %v2941, %v2950
    %v2952 = vmul.f32 %v2945, %v2950
    %2953 = vset.pattern.permute.xlu0 3
    %2954 = vperm.xlu0 %2953, %v2905
    %v2955 = vpop.permute.xlu0 %2954
    %2957 = vset.pattern.permute.xlu0 3
    %2958 = vperm.xlu0 %2957, %v2906
    %v2959 = vpop.permute.xlu0 %2958
    %v2961 = vlaneseq
    %v2962 = vshrl.u32 %v2961, 7
    %v2963 = vsub.s32 3, %v2962
    %v2964 = vrot.slane %v2904, %v2963
    %v2965 = vmul.f32 %v2955, %v2964
    %v2966 = vmul.f32 %v2959, %v2964
    %2967 = vset.pattern.permute.xlu0 4
    %2968 = vperm.xlu0 %2967, %v2905
    %v2969 = vpop.permute.xlu0 %2968
    %2971 = vset.pattern.permute.xlu0 4
    %2972 = vperm.xlu0 %2971, %v2906
    %v2973 = vpop.permute.xlu0 %2972
    %v2975 = vlaneseq
    %v2976 = vshrl.u32 %v2975, 7
    %v2977 = vsub.s32 4, %v2976
    %v2978 = vrot.slane %v2904, %v2977
    %v2979 = vmul.f32 %v2969, %v2978
    %v2980 = vmul.f32 %v2973, %v2978
    %2981 = vset.pattern.permute.xlu0 5
    %2982 = vperm.xlu0 %2981, %v2905
    %v2983 = vpop.permute.xlu0 %2982
    %2985 = vset.pattern.permute.xlu0 5
    %2986 = vperm.xlu0 %2985, %v2906
    %v2987 = vpop.permute.xlu0 %2986
    %v2989 = vlaneseq
    %v2990 = vshrl.u32 %v2989, 7
    %v2991 = vsub.s32 5, %v2990
    %v2992 = vrot.slane %v2904, %v2991
    %v2993 = vmul.f32 %v2983, %v2992
    %v2994 = vmul.f32 %v2987, %v2992
    %2995 = vset.pattern.permute.xlu0 6
    %2996 = vperm.xlu0 %2995, %v2905
    %v2997 = vpop.permute.xlu0 %2996
    %2999 = vset.pattern.permute.xlu0 6
    %3000 = vperm.xlu0 %2999, %v2906
    %v3001 = vpop.permute.xlu0 %3000
    %v3003 = vlaneseq
    %v3004 = vshrl.u32 %v3003, 7
    %v3005 = vsub.s32 6, %v3004
    %v3006 = vrot.slane %v2904, %v3005
    %v3007 = vmul.f32 %v2997, %v3006
    %v3008 = vmul.f32 %v3001, %v3006
    %3009 = vset.pattern.permute.xlu0 7
    %3010 = vperm.xlu0 %3009, %v2905
    %v3011 = vpop.permute.xlu0 %3010
    %3013 = vset.pattern.permute.xlu0 7
    %3014 = vperm.xlu0 %3013, %v2906
    %v3015 = vpop.permute.xlu0 %3014
    %v3017 = vlaneseq
    %v3018 = vshrl.u32 %v3017, 7
    %v3019 = vsub.s32 7, %v3018
    %v3020 = vrot.slane %v2904, %v3019
    %v3021 = vmul.f32 %v3011, %v3020
    %v3022 = vmul.f32 %v3015, %v3020
    %v3023 = vadd.f32 %v2923, %v2937
    %v3024 = vadd.f32 %v2924, %v2938
    %v3025 = vadd.f32 %v2951, %v2965
    %v3026 = vadd.f32 %v2952, %v2966
    %v3027 = vadd.f32 %v2979, %v2993
    %v3028 = vadd.f32 %v2980, %v2994
    %v3029 = vadd.f32 %v3007, %v3021
    %v3030 = vadd.f32 %v3008, %v3022
    %v3031 = vadd.f32 %v3023, %v3025
    %v3032 = vadd.f32 %v3024, %v3026
    %v3033 = vadd.f32 %v3027, %v3029
    %v3034 = vadd.f32 %v3028, %v3030
    %v3035 = vadd.f32 %v3031, %v3033
    %v3036 = vadd.f32 %v3032, %v3034
    %3038 = vset.pattern.permute.xlu0 0
    %3039 = vperm.xlu0 %3038, %v2907
    %v3040 = vpop.permute.xlu0 %3039
    %3043 = vset.pattern.permute.xlu0 0
    %3044 = vperm.xlu0 %3043, %v2908
    %v3045 = vpop.permute.xlu0 %3044
    %v3047 = vadd.f32 %v3035, %v3040
    %v3048 = vadd.f32 %v3036, %v3045
    %3049 = vadd.xlane.f32.xlu0 %v3047
    %v3050 = vpop.xlane.xlu0 %3049
    %3051 = vadd.xlane.f32.xlu0 %v3048
    %v3052 = vpop.xlane.xlu0 %3051
    %v3053 = vmul.f32 %v2907, -30.0
    %v3054 = vmul.f32 %v2908, -30.0
    %v3055 = vadd.f32 %v3050, %v3053
    %v3056 = vadd.f32 %v3052, %v3054
    %v3057 = vmul.f32 %v3055, 0.010204081
    %v3058 = vmul.f32 %v3056, 0.010204081
    %3060 = vset.pattern.permute.xlu0 0
    %3061 = vperm.xlu0 %3060, %v3057
    %v3062 = vpop.permute.xlu0 %3061
    %3065 = vset.pattern.permute.xlu0 0
    %3066 = vperm.xlu0 %3065, %v3058
    %v3067 = vpop.permute.xlu0 %3066
    %v3069 = vsub.f32 %v3047, %v3062
    %v3070 = vsub.f32 %v3048, %v3067
    %v3071 = vsub.f32 %v2907, %v3057
    %v3072 = vsub.f32 %v2908, %v3058
    %v3073 = vmul.f32 %v3069, %v3069
    %v3074 = vmul.f32 %v3070, %v3070
    %3075 = vadd.xlane.f32.xlu0 %v3073
    %v3076 = vpop.xlane.xlu0 %3075
    %3077 = vadd.xlane.f32.xlu0 %v3074
    %v3078 = vpop.xlane.xlu0 %3077
    %v3079 = vmul.f32 %v3071, %v3071
    %v3080 = vmul.f32 %v3072, %v3072
    %v3081 = vmul.f32 %v3079, -30.0
    %v3082 = vmul.f32 %v3080, -30.0
    %v3083 = vadd.f32 %v3076, %v3081
    %v3084 = vadd.f32 %v3078, %v3082
    %v3085 = vmul.f32 %v3083, 0.010204081
    %v3086 = vmul.f32 %v3084, 0.010204081
    %v3087 = vadd.f32 %v3085, 0.001
    %v3088 = vadd.f32 %v3086, 0.001
    %v3089 = vrsqrt.pop %v3087
    %v3090 = vrsqrt.pop %v3088
    %v3091 = vmul.f32 %v3087, 0.5
    %v3092 = vmul.f32 %v3088, 0.5
    %v3093 = vmul.f32 %v3091, %v3089
    %v3094 = vmul.f32 %v3092, %v3090
    %v3095 = vmul.f32 %v3093, %v3089
    %v3096 = vmul.f32 %v3094, %v3090
    %v3097 = vsub.f32 1.5, %v3095
    %v3098 = vsub.f32 1.5, %v3096
    %v3099 = vmul.f32 %v3089, %v3097
    %v3100 = vmul.f32 %v3090, %v3098
    %3103 = vrot.lane.b32.xlu0 %v3099, 1
    %v3104 = vpop.permute.xlu0 %3103
    %3105 = vrot.lane.b32.xlu0 %v3100, 1
    %v3106 = vpop.permute.xlu0 %3105
    %v3109 = vmul.f32 %v2907, %v3104
    %v3110 = vmul.f32 %v2908, %v3106
    %3112 = vset.pattern.permute.xlu0 1
    %3113 = vperm.xlu0 %3112, %v3109
    %v3114 = vpop.permute.xlu0 %3113
    %3117 = vset.pattern.permute.xlu0 1
    %3118 = vperm.xlu0 %3117, %v3110
    %v3119 = vpop.permute.xlu0 %3118
    %v3121 = vmul.f32 %v3069, %v3114
    %v3122 = vmul.f32 %v3070, %v3119
    %3123 = vset.pattern.permute.xlu0 2
    %3124 = vperm.xlu0 %3123, %v2907
    %v3125 = vpop.permute.xlu0 %3124
    %3127 = vset.pattern.permute.xlu0 2
    %3128 = vperm.xlu0 %3127, %v2908
    %v3129 = vpop.permute.xlu0 %3128
    %v3131 = vadd.f32 %v3121, %v3125
    %v3132 = vadd.f32 %v3122, %v3129
    %v3133 = vmax.f32 %v3131, 0.0
    %v3134 = vmax.f32 %v3132, 0.0
    %3135 = vrot.lane.b32.xlu0 %v3109, 127
    %v3136 = vpop.permute.xlu0 %3135
    %3137 = vrot.lane.b32.xlu0 %v3110, 127
    %v3138 = vpop.permute.xlu0 %3137
    %v3141 = vmul.f32 %v3071, %v3136
    %v3142 = vmul.f32 %v3072, %v3138
    %3143 = vrot.lane.b32.xlu0 %v2907, 126
    %v3144 = vpop.permute.xlu0 %3143
    %3145 = vrot.lane.b32.xlu0 %v2908, 126
    %v3146 = vpop.permute.xlu0 %3145
    %v3149 = vadd.f32 %v3141, %v3144
    %v3150 = vadd.f32 %v3142, %v3146
    %v3151 = vmax.f32 %v3149, 0.0
    %v3152 = vmax.f32 %v3150, 0.0
    %v3153 = vpack.c.bf16 %v3134, %v3133
    %v3154 = vunpack.c.l.bf16 %v3153
    %v3155 = vunpack.c.h.bf16 %v3153
    %v3156 = vsub.f32 %v3133, %v3154
    %v3157 = vsub.f32 %v3134, %v3155
    %v3158 = vld [vmem:[#allocation9] sm:$0xff]
    %v3159 = vld [vmem:[#allocation9 + $0x8] sm:$0xff]
    %v3160 = vld [vmem:[#allocation9 + $0x10] sm:$0xff]
    %v3161 = vld [vmem:[#allocation9 + $0x18] sm:$0xff]
    %v3162 = vld [vmem:[#allocation9 + $0x20] sm:$0xff]
    %v3163 = vld [vmem:[#allocation9 + $0x28] sm:$0xff]
    %v3164 = vld [vmem:[#allocation9 + $0x30] sm:$0xff]
    %v3165 = vld [vmem:[#allocation9 + $0x38] sm:$0xff]
    %v3166 = vld [vmem:[#allocation9 + $0x40] sm:$0xff]
    %v3167 = vld [vmem:[#allocation9 + $0x48] sm:$0xff]
    %v3168 = vld [vmem:[#allocation9 + $0x50] sm:$0xff]
    %v3169 = vld [vmem:[#allocation9 + $0x58] sm:$0xff]
    %v3170 = vld [vmem:[#allocation9 + $0x60] sm:$0xff]
    %v3171 = vld [vmem:[#allocation9 + $0x68] sm:$0xff]
    %v3172 = vld [vmem:[#allocation9 + $0x70] sm:$0xff]
    %v3173 = vld [vmem:[#allocation9 + $0x78] sm:$0xff]
    %3174 = vmatprep.subr.mxu0 0.0
    %3175 = vmatpush1.msra.mxu0 %v3173
    %3176 = vmatprep.subr.mxu0 0.0
    %3177 = vmatpush1.msra.mxu0 %v3172
    %3178 = vmatprep.subr.mxu0 0.0
    %3179 = vmatpush1.msra.mxu0 %v3171
    %3180 = vmatprep.subr.mxu0 0.0
    %3181 = vmatpush1.msra.mxu0 %v3170
    %3182 = vmatprep.subr.mxu0 0.0
    %3183 = vmatpush1.msra.mxu0 %v3169
    %3184 = vmatprep.subr.mxu0 0.0
    %3185 = vmatpush1.msra.mxu0 %v3168
    %3186 = vmatprep.subr.mxu0 0.0
    %3187 = vmatpush1.msra.mxu0 %v3167
    %3188 = vmatprep.subr.mxu0 0.0
    %3189 = vmatpush1.msra.mxu0 %v3166
    %3190 = vmatprep.subr.mxu0 0.0
    %3191 = vmatpush1.msra.mxu0 %v3165
    %3192 = vmatprep.subr.mxu0 0.0
    %3193 = vmatpush1.msra.mxu0 %v3164
    %3194 = vmatprep.subr.mxu0 0.0
    %3195 = vmatpush1.msra.mxu0 %v3163
    %3196 = vmatprep.subr.mxu0 0.0
    %3197 = vmatpush1.msra.mxu0 %v3162
    %3198 = vmatprep.subr.mxu0 0.0
    %3199 = vmatpush1.msra.mxu0 %v3161
    %3200 = vmatprep.subr.mxu0 0.0
    %3201 = vmatpush1.msra.mxu0 %v3160
    %3202 = vmatprep.subr.mxu0 0.0
    %3203 = vmatpush1.msra.mxu0 %v3159
    %3204 = vmatprep.subr.mxu0 0.0
    %3205 = vmatpush1.msra.mxu0 %v3158
    %3206 = vmatprep.subr.mxu0 0.0
    %3207 = vmatpush2.msra.mxu0 0.0
    %3208 = vmatprep.subr.mxu0 0.0
    %3209 = vmatpush2.msra.mxu0 0.0
    %3210 = vmatprep.subr.mxu0 0.0
    %3211 = vmatpush2.msra.mxu0 0.0
    %3212 = vmatprep.subr.mxu0 0.0
    %3213 = vmatpush2.msra.mxu0 0.0
    %3214 = vmatprep.subr.mxu0 0.0
    %3215 = vmatpush2.msra.mxu0 0.0
    %3216 = vmatprep.subr.mxu0 0.0
    %3217 = vmatpush2.msra.mxu0 0.0
    %3218 = vmatprep.subr.mxu0 0.0
    %3219 = vmatpush2.msra.mxu0 0.0
    %3220 = vmatprep.subr.mxu0 0.0
    %3221 = vmatpush2.msra.mxu0 0.0
    %3222 = vmatprep.subr.mxu0 0.0
    %3223 = vmatpush2.msra.mxu0 0.0
    %3224 = vmatprep.subr.mxu0 0.0
    %3225 = vmatpush2.msra.mxu0 0.0
    %3226 = vmatprep.subr.mxu0 0.0
    %3227 = vmatpush2.msra.mxu0 0.0
    %3228 = vmatprep.subr.mxu0 0.0
    %3229 = vmatpush2.msra.mxu0 0.0
    %3230 = vmatprep.subr.mxu0 0.0
    %3231 = vmatpush2.msra.mxu0 0.0
    %3232 = vmatprep.subr.mxu0 0.0
    %3233 = vmatpush2.msra.mxu0 0.0
    %3234 = vmatprep.subr.mxu0 0.0
    %3235 = vmatpush2.msra.mxu0 0.0
    %3236 = vmatprep.subr.mxu0 0.0
    %3237 = vmatpush2.msra.mxu0 0.0
    %3238 = vmatprep.mubr.f32.mxu0 0.0
    %3239 = vmatmul.mubr.f32.gmra.mxu0 %v3156
    %v3240 = vpop.f32.mrf.mxu0
    %v3241 = vadd.f32 0.0, %v3240
    %v3242 = vpop.f32.mrf.mxu0
    %3243 = vmatprep.mubr.f32.mxu0 0.0
    %3244 = vmatmul.mubr.f32.gmra.mxu0 %v3157
    %v3245 = vpop.f32.mrf.mxu0
    %v3246 = vadd.f32 0.0, %v3245
    %v3247 = vpop.f32.mrf.mxu0
    %3248 = vdwg.mxu0
    %3249 = vmatprep.subr.mxu0 0.0
    %3250 = vmatpush1.msra.mxu0 %v3173
    %3251 = vmatprep.subr.mxu0 0.0
    %3252 = vmatpush1.msra.mxu0 %v3172
    %3253 = vmatprep.subr.mxu0 0.0
    %3254 = vmatpush1.msra.mxu0 %v3171
    %3255 = vmatprep.subr.mxu0 0.0
    %3256 = vmatpush1.msra.mxu0 %v3170
    %3257 = vmatprep.subr.mxu0 0.0
    %3258 = vmatpush1.msra.mxu0 %v3169
    %3259 = vmatprep.subr.mxu0 0.0
    %3260 = vmatpush1.msra.mxu0 %v3168
    %3261 = vmatprep.subr.mxu0 0.0
    %3262 = vmatpush1.msra.mxu0 %v3167
    %3263 = vmatprep.subr.mxu0 0.0
    %3264 = vmatpush1.msra.mxu0 %v3166
    %3265 = vmatprep.subr.mxu0 0.0
    %3266 = vmatpush1.msra.mxu0 %v3165
    %3267 = vmatprep.subr.mxu0 0.0
    %3268 = vmatpush1.msra.mxu0 %v3164
    %3269 = vmatprep.subr.mxu0 0.0
    %3270 = vmatpush1.msra.mxu0 %v3163
    %3271 = vmatprep.subr.mxu0 0.0
    %3272 = vmatpush1.msra.mxu0 %v3162
    %3273 = vmatprep.subr.mxu0 0.0
    %3274 = vmatpush1.msra.mxu0 %v3161
    %3275 = vmatprep.subr.mxu0 0.0
    %3276 = vmatpush1.msra.mxu0 %v3160
    %3277 = vmatprep.subr.mxu0 0.0
    %3278 = vmatpush1.msra.mxu0 %v3159
    %3279 = vmatprep.subr.mxu0 0.0
    %3280 = vmatpush1.msra.mxu0 %v3158
    %3281 = vmatprep.subr.mxu0 0.0
    %3282 = vmatpush2.msra.mxu0 0.0
    %3283 = vmatprep.subr.mxu0 0.0
    %3284 = vmatpush2.msra.mxu0 0.0
    %3285 = vmatprep.subr.mxu0 0.0
    %3286 = vmatpush2.msra.mxu0 0.0
    %3287 = vmatprep.subr.mxu0 0.0
    %3288 = vmatpush2.msra.mxu0 0.0
    %3289 = vmatprep.subr.mxu0 0.0
    %3290 = vmatpush2.msra.mxu0 0.0
    %3291 = vmatprep.subr.mxu0 0.0
    %3292 = vmatpush2.msra.mxu0 0.0
    %3293 = vmatprep.subr.mxu0 0.0
    %3294 = vmatpush2.msra.mxu0 0.0
    %3295 = vmatprep.subr.mxu0 0.0
    %3296 = vmatpush2.msra.mxu0 0.0
    %3297 = vmatprep.subr.mxu0 0.0
    %3298 = vmatpush2.msra.mxu0 0.0
    %3299 = vmatprep.subr.mxu0 0.0
    %3300 = vmatpush2.msra.mxu0 0.0
    %3301 = vmatprep.subr.mxu0 0.0
    %3302 = vmatpush2.msra.mxu0 0.0
    %3303 = vmatprep.subr.mxu0 0.0
    %3304 = vmatpush2.msra.mxu0 0.0
    %3305 = vmatprep.subr.mxu0 0.0
    %3306 = vmatpush2.msra.mxu0 0.0
    %3307 = vmatprep.subr.mxu0 0.0
    %3308 = vmatpush2.msra.mxu0 0.0
    %3309 = vmatprep.subr.mxu0 0.0
    %3310 = vmatpush2.msra.mxu0 0.0
    %3311 = vmatprep.subr.mxu0 0.0
    %3312 = vmatpush2.msra.mxu0 0.0
    %3313 = vmatprep.mubr.f32.mxu0 0.0
    %3314 = vmatmul.mubr.f32.gmra.mxu0 %v3154
    %v3315 = vpop.f32.mrf.mxu0
    %v3316 = vadd.f32 %v3241, %v3315
    %v3317 = vpop.f32.mrf.mxu0
    %3318 = vmatprep.mubr.f32.mxu0 0.0
    %3319 = vmatmul.mubr.f32.gmra.mxu0 %v3155
    %v3320 = vpop.f32.mrf.mxu0
    %v3321 = vadd.f32 %v3246, %v3320
    %v3322 = vpop.f32.mrf.mxu0
    %3323 = vdwg.mxu0
    %v3324 = vld [vmem:[#allocation10] sm:$0x1]
    %3326 = vset.pattern.permute.xlu0 0
    %3327 = vperm.xlu0 %3326, %v3151
    %v3328 = vpop.permute.xlu0 %3327
    %3331 = vset.pattern.permute.xlu0 0
    %3332 = vperm.xlu0 %3331, %v3152
    %v3333 = vpop.permute.xlu0 %3332
    %v3336 = vlaneseq
    %v3337 = vshrl.u32 %v3336, 7
    %v3338 = vsub.s32 0, %v3337
    %v3339 = vrot.slane %v3324, %v3338
    %v3341 = vmul.f32 %v3328, %v3339
    %v3342 = vmul.f32 %v3333, %v3339
    %v3343 = vadd.f32 %v3316, %v3341
    %v3344 = vadd.f32 %v3321, %v3342
    %s3345 = scalar_lea.vmem [#allocation9], 128
    %v3346 = vld [vmem:[%s3345] sm:$0xff]
    %v3347 = vld [vmem:[%s3345 + $0x8] sm:$0xff]
    %v3348 = vld [vmem:[%s3345 + $0x10] sm:$0xff]
    %v3349 = vld [vmem:[%s3345 + $0x18] sm:$0xff]
    %v3350 = vld [vmem:[%s3345 + $0x20] sm:$0xff]
    %v3351 = vld [vmem:[%s3345 + $0x28] sm:$0xff]
    %v3352 = vld [vmem:[%s3345 + $0x30] sm:$0xff]
    %v3353 = vld [vmem:[%s3345 + $0x38] sm:$0xff]
    %v3354 = vld [vmem:[%s3345 + $0x40] sm:$0xff]
    %v3355 = vld [vmem:[%s3345 + $0x48] sm:$0xff]
    %v3356 = vld [vmem:[%s3345 + $0x50] sm:$0xff]
    %v3357 = vld [vmem:[%s3345 + $0x58] sm:$0xff]
    %v3358 = vld [vmem:[%s3345 + $0x60] sm:$0xff]
    %v3359 = vld [vmem:[%s3345 + $0x68] sm:$0xff]
    %v3360 = vld [vmem:[%s3345 + $0x70] sm:$0xff]
    %v3361 = vld [vmem:[%s3345 + $0x78] sm:$0xff]
    %3362 = vmatprep.subr.mxu0 0.0
    %3363 = vmatpush1.msra.mxu0 %v3361
    %3364 = vmatprep.subr.mxu0 0.0
    %3365 = vmatpush1.msra.mxu0 %v3360
    %3366 = vmatprep.subr.mxu0 0.0
    %3367 = vmatpush1.msra.mxu0 %v3359
    %3368 = vmatprep.subr.mxu0 0.0
    %3369 = vmatpush1.msra.mxu0 %v3358
    %3370 = vmatprep.subr.mxu0 0.0
    %3371 = vmatpush1.msra.mxu0 %v3357
    %3372 = vmatprep.subr.mxu0 0.0
    %3373 = vmatpush1.msra.mxu0 %v3356
    %3374 = vmatprep.subr.mxu0 0.0
    %3375 = vmatpush1.msra.mxu0 %v3355
    %3376 = vmatprep.subr.mxu0 0.0
    %3377 = vmatpush1.msra.mxu0 %v3354
    %3378 = vmatprep.subr.mxu0 0.0
    %3379 = vmatpush1.msra.mxu0 %v3353
    %3380 = vmatprep.subr.mxu0 0.0
    %3381 = vmatpush1.msra.mxu0 %v3352
    %3382 = vmatprep.subr.mxu0 0.0
    %3383 = vmatpush1.msra.mxu0 %v3351
    %3384 = vmatprep.subr.mxu0 0.0
    %3385 = vmatpush1.msra.mxu0 %v3350
    %3386 = vmatprep.subr.mxu0 0.0
    %3387 = vmatpush1.msra.mxu0 %v3349
    %3388 = vmatprep.subr.mxu0 0.0
    %3389 = vmatpush1.msra.mxu0 %v3348
    %3390 = vmatprep.subr.mxu0 0.0
    %3391 = vmatpush1.msra.mxu0 %v3347
    %3392 = vmatprep.subr.mxu0 0.0
    %3393 = vmatpush1.msra.mxu0 %v3346
    %3394 = vmatprep.subr.mxu0 0.0
    %3395 = vmatpush2.msra.mxu0 0.0
    %3396 = vmatprep.subr.mxu0 0.0
    %3397 = vmatpush2.msra.mxu0 0.0
    %3398 = vmatprep.subr.mxu0 0.0
    %3399 = vmatpush2.msra.mxu0 0.0
    %3400 = vmatprep.subr.mxu0 0.0
    %3401 = vmatpush2.msra.mxu0 0.0
    %3402 = vmatprep.subr.mxu0 0.0
    %3403 = vmatpush2.msra.mxu0 0.0
    %3404 = vmatprep.subr.mxu0 0.0
    %3405 = vmatpush2.msra.mxu0 0.0
    %3406 = vmatprep.subr.mxu0 0.0
    %3407 = vmatpush2.msra.mxu0 0.0
    %3408 = vmatprep.subr.mxu0 0.0
    %3409 = vmatpush2.msra.mxu0 0.0
    %3410 = vmatprep.subr.mxu0 0.0
    %3411 = vmatpush2.msra.mxu0 0.0
    %3412 = vmatprep.subr.mxu0 0.0
    %3413 = vmatpush2.msra.mxu0 0.0
    %3414 = vmatprep.subr.mxu0 0.0
    %3415 = vmatpush2.msra.mxu0 0.0
    %3416 = vmatprep.subr.mxu0 0.0
    %3417 = vmatpush2.msra.mxu0 0.0
    %3418 = vmatprep.subr.mxu0 0.0
    %3419 = vmatpush2.msra.mxu0 0.0
    %3420 = vmatprep.subr.mxu0 0.0
    %3421 = vmatpush2.msra.mxu0 0.0
    %3422 = vmatprep.subr.mxu0 0.0
    %3423 = vmatpush2.msra.mxu0 0.0
    %3424 = vmatprep.subr.mxu0 0.0
    %3425 = vmatpush2.msra.mxu0 0.0
    %3426 = vmatprep.mubr.f32.mxu0 0.0
    %3427 = vmatmul.mubr.f32.gmra.mxu0 %v3156
    %v3428 = vpop.f32.mrf.mxu0
    %v3429 = vadd.f32 0.0, %v3428
    %v3430 = vpop.f32.mrf.mxu0
    %3431 = vmatprep.mubr.f32.mxu0 0.0
    %3432 = vmatmul.mubr.f32.gmra.mxu0 %v3157
    %v3433 = vpop.f32.mrf.mxu0
    %v3434 = vadd.f32 0.0, %v3433
    %v3435 = vpop.f32.mrf.mxu0
    %3436 = vdwg.mxu0
    %3437 = vmatprep.subr.mxu0 0.0
    %3438 = vmatpush1.msra.mxu0 %v3361
    %3439 = vmatprep.subr.mxu0 0.0
    %3440 = vmatpush1.msra.mxu0 %v3360
    %3441 = vmatprep.subr.mxu0 0.0
    %3442 = vmatpush1.msra.mxu0 %v3359
    %3443 = vmatprep.subr.mxu0 0.0
    %3444 = vmatpush1.msra.mxu0 %v3358
    %3445 = vmatprep.subr.mxu0 0.0
    %3446 = vmatpush1.msra.mxu0 %v3357
    %3447 = vmatprep.subr.mxu0 0.0
    %3448 = vmatpush1.msra.mxu0 %v3356
    %3449 = vmatprep.subr.mxu0 0.0
    %3450 = vmatpush1.msra.mxu0 %v3355
    %3451 = vmatprep.subr.mxu0 0.0
    %3452 = vmatpush1.msra.mxu0 %v3354
    %3453 = vmatprep.subr.mxu0 0.0
    %3454 = vmatpush1.msra.mxu0 %v3353
    %3455 = vmatprep.subr.mxu0 0.0
    %3456 = vmatpush1.msra.mxu0 %v3352
    %3457 = vmatprep.subr.mxu0 0.0
    %3458 = vmatpush1.msra.mxu0 %v3351
    %3459 = vmatprep.subr.mxu0 0.0
    %3460 = vmatpush1.msra.mxu0 %v3350
    %3461 = vmatprep.subr.mxu0 0.0
    %3462 = vmatpush1.msra.mxu0 %v3349
    %3463 = vmatprep.subr.mxu0 0.0
    %3464 = vmatpush1.msra.mxu0 %v3348
    %3465 = vmatprep.subr.mxu0 0.0
    %3466 = vmatpush1.msra.mxu0 %v3347
    %3467 = vmatprep.subr.mxu0 0.0
    %3468 = vmatpush1.msra.mxu0 %v3346
    %3469 = vmatprep.subr.mxu0 0.0
    %3470 = vmatpush2.msra.mxu0 0.0
    %3471 = vmatprep.subr.mxu0 0.0
    %3472 = vmatpush2.msra.mxu0 0.0
    %3473 = vmatprep.subr.mxu0 0.0
    %3474 = vmatpush2.msra.mxu0 0.0
    %3475 = vmatprep.subr.mxu0 0.0
    %3476 = vmatpush2.msra.mxu0 0.0
    %3477 = vmatprep.subr.mxu0 0.0
    %3478 = vmatpush2.msra.mxu0 0.0
    %3479 = vmatprep.subr.mxu0 0.0
    %3480 = vmatpush2.msra.mxu0 0.0
    %3481 = vmatprep.subr.mxu0 0.0
    %3482 = vmatpush2.msra.mxu0 0.0
    %3483 = vmatprep.subr.mxu0 0.0
    %3484 = vmatpush2.msra.mxu0 0.0
    %3485 = vmatprep.subr.mxu0 0.0
    %3486 = vmatpush2.msra.mxu0 0.0
    %3487 = vmatprep.subr.mxu0 0.0
    %3488 = vmatpush2.msra.mxu0 0.0
    %3489 = vmatprep.subr.mxu0 0.0
    %3490 = vmatpush2.msra.mxu0 0.0
    %3491 = vmatprep.subr.mxu0 0.0
    %3492 = vmatpush2.msra.mxu0 0.0
    %3493 = vmatprep.subr.mxu0 0.0
    %3494 = vmatpush2.msra.mxu0 0.0
    %3495 = vmatprep.subr.mxu0 0.0
    %3496 = vmatpush2.msra.mxu0 0.0
    %3497 = vmatprep.subr.mxu0 0.0
    %3498 = vmatpush2.msra.mxu0 0.0
    %3499 = vmatprep.subr.mxu0 0.0
    %3500 = vmatpush2.msra.mxu0 0.0
    %3501 = vmatprep.mubr.f32.mxu0 0.0
    %3502 = vmatmul.mubr.f32.gmra.mxu0 %v3154
    %v3503 = vpop.f32.mrf.mxu0
    %v3504 = vadd.f32 %v3429, %v3503
    %v3505 = vpop.f32.mrf.mxu0
    %3506 = vmatprep.mubr.f32.mxu0 0.0
    %3507 = vmatmul.mubr.f32.gmra.mxu0 %v3155
    %v3508 = vpop.f32.mrf.mxu0
    %v3509 = vadd.f32 %v3434, %v3508
    %v3510 = vpop.f32.mrf.mxu0
    %3511 = vdwg.mxu0
    %s3512 = scalar_lea.vmem [#allocation10], 1
    %v3513 = vld [vmem:[%s3512] sm:$0x1]
    %v3515 = vlaneseq
    %v3516 = vshrl.u32 %v3515, 7
    %v3517 = vsub.s32 0, %v3516
    %v3518 = vrot.slane %v3513, %v3517
    %v3520 = vmul.f32 %v3328, %v3518
    %v3521 = vmul.f32 %v3333, %v3518
    %v3522 = vadd.f32 %v3504, %v3520
    %v3523 = vadd.f32 %v3509, %v3521
    %v3524 = vmax.f32 %v3343, %v3522
    %v3525 = vmax.f32 %v3344, %v3523
    %s3526 = scalar_lea.vmem [#allocation9], 256
    %v3527 = vld [vmem:[%s3526] sm:$0xff]
    %v3528 = vld [vmem:[%s3526 + $0x8] sm:$0xff]
    %v3529 = vld [vmem:[%s3526 + $0x10] sm:$0xff]
    %v3530 = vld [vmem:[%s3526 + $0x18] sm:$0xff]
    %v3531 = vld [vmem:[%s3526 + $0x20] sm:$0xff]
    %v3532 = vld [vmem:[%s3526 + $0x28] sm:$0xff]
    %v3533 = vld [vmem:[%s3526 + $0x30] sm:$0xff]
    %v3534 = vld [vmem:[%s3526 + $0x38] sm:$0xff]
    %v3535 = vld [vmem:[%s3526 + $0x40] sm:$0xff]
    %v3536 = vld [vmem:[%s3526 + $0x48] sm:$0xff]
    %v3537 = vld [vmem:[%s3526 + $0x50] sm:$0xff]
    %v3538 = vld [vmem:[%s3526 + $0x58] sm:$0xff]
    %v3539 = vld [vmem:[%s3526 + $0x60] sm:$0xff]
    %v3540 = vld [vmem:[%s3526 + $0x68] sm:$0xff]
    %v3541 = vld [vmem:[%s3526 + $0x70] sm:$0xff]
    %v3542 = vld [vmem:[%s3526 + $0x78] sm:$0xff]
    %3543 = vmatprep.subr.mxu0 0.0
    %3544 = vmatpush1.msra.mxu0 %v3542
    %3545 = vmatprep.subr.mxu0 0.0
    %3546 = vmatpush1.msra.mxu0 %v3541
    %3547 = vmatprep.subr.mxu0 0.0
    %3548 = vmatpush1.msra.mxu0 %v3540
    %3549 = vmatprep.subr.mxu0 0.0
    %3550 = vmatpush1.msra.mxu0 %v3539
    %3551 = vmatprep.subr.mxu0 0.0
    %3552 = vmatpush1.msra.mxu0 %v3538
    %3553 = vmatprep.subr.mxu0 0.0
    %3554 = vmatpush1.msra.mxu0 %v3537
    %3555 = vmatprep.subr.mxu0 0.0
    %3556 = vmatpush1.msra.mxu0 %v3536
    %3557 = vmatprep.subr.mxu0 0.0
    %3558 = vmatpush1.msra.mxu0 %v3535
    %3559 = vmatprep.subr.mxu0 0.0
    %3560 = vmatpush1.msra.mxu0 %v3534
    %3561 = vmatprep.subr.mxu0 0.0
    %3562 = vmatpush1.msra.mxu0 %v3533
    %3563 = vmatprep.subr.mxu0 0.0
    %3564 = vmatpush1.msra.mxu0 %v3532
    %3565 = vmatprep.subr.mxu0 0.0
    %3566 = vmatpush1.msra.mxu0 %v3531
    %3567 = vmatprep.subr.mxu0 0.0
    %3568 = vmatpush1.msra.mxu0 %v3530
    %3569 = vmatprep.subr.mxu0 0.0
    %3570 = vmatpush1.msra.mxu0 %v3529
    %3571 = vmatprep.subr.mxu0 0.0
    %3572 = vmatpush1.msra.mxu0 %v3528
    %3573 = vmatprep.subr.mxu0 0.0
    %3574 = vmatpush1.msra.mxu0 %v3527
    %3575 = vmatprep.subr.mxu0 0.0
    %3576 = vmatpush2.msra.mxu0 0.0
    %3577 = vmatprep.subr.mxu0 0.0
    %3578 = vmatpush2.msra.mxu0 0.0
    %3579 = vmatprep.subr.mxu0 0.0
    %3580 = vmatpush2.msra.mxu0 0.0
    %3581 = vmatprep.subr.mxu0 0.0
    %3582 = vmatpush2.msra.mxu0 0.0
    %3583 = vmatprep.subr.mxu0 0.0
    %3584 = vmatpush2.msra.mxu0 0.0
    %3585 = vmatprep.subr.mxu0 0.0
    %3586 = vmatpush2.msra.mxu0 0.0
    %3587 = vmatprep.subr.mxu0 0.0
    %3588 = vmatpush2.msra.mxu0 0.0
    %3589 = vmatprep.subr.mxu0 0.0
    %3590 = vmatpush2.msra.mxu0 0.0
    %3591 = vmatprep.subr.mxu0 0.0
    %3592 = vmatpush2.msra.mxu0 0.0
    %3593 = vmatprep.subr.mxu0 0.0
    %3594 = vmatpush2.msra.mxu0 0.0
    %3595 = vmatprep.subr.mxu0 0.0
    %3596 = vmatpush2.msra.mxu0 0.0
    %3597 = vmatprep.subr.mxu0 0.0
    %3598 = vmatpush2.msra.mxu0 0.0
    %3599 = vmatprep.subr.mxu0 0.0
    %3600 = vmatpush2.msra.mxu0 0.0
    %3601 = vmatprep.subr.mxu0 0.0
    %3602 = vmatpush2.msra.mxu0 0.0
    %3603 = vmatprep.subr.mxu0 0.0
    %3604 = vmatpush2.msra.mxu0 0.0
    %3605 = vmatprep.subr.mxu0 0.0
    %3606 = vmatpush2.msra.mxu0 0.0
    %3607 = vmatprep.mubr.f32.mxu0 0.0
    %3608 = vmatmul.mubr.f32.gmra.mxu0 %v3156
    %v3609 = vpop.f32.mrf.mxu0
    %v3610 = vadd.f32 0.0, %v3609
    %v3611 = vpop.f32.mrf.mxu0
    %3612 = vmatprep.mubr.f32.mxu0 0.0
    %3613 = vmatmul.mubr.f32.gmra.mxu0 %v3157
    %v3614 = vpop.f32.mrf.mxu0
    %v3615 = vadd.f32 0.0, %v3614
    %v3616 = vpop.f32.mrf.mxu0
    %3617 = vdwg.mxu0
    %3618 = vmatprep.subr.mxu0 0.0
    %3619 = vmatpush1.msra.mxu0 %v3542
    %3620 = vmatprep.subr.mxu0 0.0
    %3621 = vmatpush1.msra.mxu0 %v3541
    %3622 = vmatprep.subr.mxu0 0.0
    %3623 = vmatpush1.msra.mxu0 %v3540
    %3624 = vmatprep.subr.mxu0 0.0
    %3625 = vmatpush1.msra.mxu0 %v3539
    %3626 = vmatprep.subr.mxu0 0.0
    %3627 = vmatpush1.msra.mxu0 %v3538
    %3628 = vmatprep.subr.mxu0 0.0
    %3629 = vmatpush1.msra.mxu0 %v3537
    %3630 = vmatprep.subr.mxu0 0.0
    %3631 = vmatpush1.msra.mxu0 %v3536
    %3632 = vmatprep.subr.mxu0 0.0
    %3633 = vmatpush1.msra.mxu0 %v3535
    %3634 = vmatprep.subr.mxu0 0.0
    %3635 = vmatpush1.msra.mxu0 %v3534
    %3636 = vmatprep.subr.mxu0 0.0
    %3637 = vmatpush1.msra.mxu0 %v3533
    %3638 = vmatprep.subr.mxu0 0.0
    %3639 = vmatpush1.msra.mxu0 %v3532
    %3640 = vmatprep.subr.mxu0 0.0
    %3641 = vmatpush1.msra.mxu0 %v3531
    %3642 = vmatprep.subr.mxu0 0.0
    %3643 = vmatpush1.msra.mxu0 %v3530
    %3644 = vmatprep.subr.mxu0 0.0
    %3645 = vmatpush1.msra.mxu0 %v3529
    %3646 = vmatprep.subr.mxu0 0.0
    %3647 = vmatpush1.msra.mxu0 %v3528
    %3648 = vmatprep.subr.mxu0 0.0
    %3649 = vmatpush1.msra.mxu0 %v3527
    %3650 = vmatprep.subr.mxu0 0.0
    %3651 = vmatpush2.msra.mxu0 0.0
    %3652 = vmatprep.subr.mxu0 0.0
    %3653 = vmatpush2.msra.mxu0 0.0
    %3654 = vmatprep.subr.mxu0 0.0
    %3655 = vmatpush2.msra.mxu0 0.0
    %3656 = vmatprep.subr.mxu0 0.0
    %3657 = vmatpush2.msra.mxu0 0.0
    %3658 = vmatprep.subr.mxu0 0.0
    %3659 = vmatpush2.msra.mxu0 0.0
    %3660 = vmatprep.subr.mxu0 0.0
    %3661 = vmatpush2.msra.mxu0 0.0
    %3662 = vmatprep.subr.mxu0 0.0
    %3663 = vmatpush2.msra.mxu0 0.0
    %3664 = vmatprep.subr.mxu0 0.0
    %3665 = vmatpush2.msra.mxu0 0.0
    %3666 = vmatprep.subr.mxu0 0.0
    %3667 = vmatpush2.msra.mxu0 0.0
    %3668 = vmatprep.subr.mxu0 0.0
    %3669 = vmatpush2.msra.mxu0 0.0
    %3670 = vmatprep.subr.mxu0 0.0
    %3671 = vmatpush2.msra.mxu0 0.0
    %3672 = vmatprep.subr.mxu0 0.0
    %3673 = vmatpush2.msra.mxu0 0.0
    %3674 = vmatprep.subr.mxu0 0.0
    %3675 = vmatpush2.msra.mxu0 0.0
    %3676 = vmatprep.subr.mxu0 0.0
    %3677 = vmatpush2.msra.mxu0 0.0
    %3678 = vmatprep.subr.mxu0 0.0
    %3679 = vmatpush2.msra.mxu0 0.0
    %3680 = vmatprep.subr.mxu0 0.0
    %3681 = vmatpush2.msra.mxu0 0.0
    %3682 = vmatprep.mubr.f32.mxu0 0.0
    %3683 = vmatmul.mubr.f32.gmra.mxu0 %v3154
    %v3684 = vpop.f32.mrf.mxu0
    %v3685 = vadd.f32 %v3610, %v3684
    %v3686 = vpop.f32.mrf.mxu0
    %3687 = vmatprep.mubr.f32.mxu0 0.0
    %3688 = vmatmul.mubr.f32.gmra.mxu0 %v3155
    %v3689 = vpop.f32.mrf.mxu0
    %v3690 = vadd.f32 %v3615, %v3689
    %v3691 = vpop.f32.mrf.mxu0
    %3692 = vdwg.mxu0
    %s3693 = scalar_lea.vmem [#allocation10], 2
    %v3694 = vld [vmem:[%s3693] sm:$0x1]
    %v3696 = vlaneseq
    %v3697 = vshrl.u32 %v3696, 7
    %v3698 = vsub.s32 0, %v3697
    %v3699 = vrot.slane %v3694, %v3698
    %v3701 = vmul.f32 %v3328, %v3699
    %v3702 = vmul.f32 %v3333, %v3699
    %v3703 = vadd.f32 %v3685, %v3701
    %v3704 = vadd.f32 %v3690, %v3702
    %v3705 = vmax.f32 %v3524, %v3703
    %v3706 = vmax.f32 %v3525, %v3704
    %s3707 = scalar_lea.vmem [#allocation9], 384
    %v3708 = vld [vmem:[%s3707] sm:$0xff]
    %v3709 = vld [vmem:[%s3707 + $0x8] sm:$0xff]
    %v3710 = vld [vmem:[%s3707 + $0x10] sm:$0xff]
    %v3711 = vld [vmem:[%s3707 + $0x18] sm:$0xff]
    %v3712 = vld [vmem:[%s3707 + $0x20] sm:$0xff]
    %v3713 = vld [vmem:[%s3707 + $0x28] sm:$0xff]
    %v3714 = vld [vmem:[%s3707 + $0x30] sm:$0xff]
    %v3715 = vld [vmem:[%s3707 + $0x38] sm:$0xff]
    %v3716 = vld [vmem:[%s3707 + $0x40] sm:$0xff]
    %v3717 = vld [vmem:[%s3707 + $0x48] sm:$0xff]
    %v3718 = vld [vmem:[%s3707 + $0x50] sm:$0xff]
    %v3719 = vld [vmem:[%s3707 + $0x58] sm:$0xff]
    %v3720 = vld [vmem:[%s3707 + $0x60] sm:$0xff]
    %v3721 = vld [vmem:[%s3707 + $0x68] sm:$0xff]
    %v3722 = vld [vmem:[%s3707 + $0x70] sm:$0xff]
    %v3723 = vld [vmem:[%s3707 + $0x78] sm:$0xff]
    %3724 = vmatprep.subr.mxu0 0.0
    %3725 = vmatpush1.msra.mxu0 %v3723
    %3726 = vmatprep.subr.mxu0 0.0
    %3727 = vmatpush1.msra.mxu0 %v3722
    %3728 = vmatprep.subr.mxu0 0.0
    %3729 = vmatpush1.msra.mxu0 %v3721
    %3730 = vmatprep.subr.mxu0 0.0
    %3731 = vmatpush1.msra.mxu0 %v3720
    %3732 = vmatprep.subr.mxu0 0.0
    %3733 = vmatpush1.msra.mxu0 %v3719
    %3734 = vmatprep.subr.mxu0 0.0
    %3735 = vmatpush1.msra.mxu0 %v3718
    %3736 = vmatprep.subr.mxu0 0.0
    %3737 = vmatpush1.msra.mxu0 %v3717
    %3738 = vmatprep.subr.mxu0 0.0
    %3739 = vmatpush1.msra.mxu0 %v3716
    %3740 = vmatprep.subr.mxu0 0.0
    %3741 = vmatpush1.msra.mxu0 %v3715
    %3742 = vmatprep.subr.mxu0 0.0
    %3743 = vmatpush1.msra.mxu0 %v3714
    %3744 = vmatprep.subr.mxu0 0.0
    %3745 = vmatpush1.msra.mxu0 %v3713
    %3746 = vmatprep.subr.mxu0 0.0
    %3747 = vmatpush1.msra.mxu0 %v3712
    %3748 = vmatprep.subr.mxu0 0.0
    %3749 = vmatpush1.msra.mxu0 %v3711
    %3750 = vmatprep.subr.mxu0 0.0
    %3751 = vmatpush1.msra.mxu0 %v3710
    %3752 = vmatprep.subr.mxu0 0.0
    %3753 = vmatpush1.msra.mxu0 %v3709
    %3754 = vmatprep.subr.mxu0 0.0
    %3755 = vmatpush1.msra.mxu0 %v3708
    %3756 = vmatprep.subr.mxu0 0.0
    %3757 = vmatpush2.msra.mxu0 0.0
    %3758 = vmatprep.subr.mxu0 0.0
    %3759 = vmatpush2.msra.mxu0 0.0
    %3760 = vmatprep.subr.mxu0 0.0
    %3761 = vmatpush2.msra.mxu0 0.0
    %3762 = vmatprep.subr.mxu0 0.0
    %3763 = vmatpush2.msra.mxu0 0.0
    %3764 = vmatprep.subr.mxu0 0.0
    %3765 = vmatpush2.msra.mxu0 0.0
    %3766 = vmatprep.subr.mxu0 0.0
    %3767 = vmatpush2.msra.mxu0 0.0
    %3768 = vmatprep.subr.mxu0 0.0
    %3769 = vmatpush2.msra.mxu0 0.0
    %3770 = vmatprep.subr.mxu0 0.0
    %3771 = vmatpush2.msra.mxu0 0.0
    %3772 = vmatprep.subr.mxu0 0.0
    %3773 = vmatpush2.msra.mxu0 0.0
    %3774 = vmatprep.subr.mxu0 0.0
    %3775 = vmatpush2.msra.mxu0 0.0
    %3776 = vmatprep.subr.mxu0 0.0
    %3777 = vmatpush2.msra.mxu0 0.0
    %3778 = vmatprep.subr.mxu0 0.0
    %3779 = vmatpush2.msra.mxu0 0.0
    %3780 = vmatprep.subr.mxu0 0.0
    %3781 = vmatpush2.msra.mxu0 0.0
    %3782 = vmatprep.subr.mxu0 0.0
    %3783 = vmatpush2.msra.mxu0 0.0
    %3784 = vmatprep.subr.mxu0 0.0
    %3785 = vmatpush2.msra.mxu0 0.0
    %3786 = vmatprep.subr.mxu0 0.0
    %3787 = vmatpush2.msra.mxu0 0.0
    %3788 = vmatprep.mubr.f32.mxu0 0.0
    %3789 = vmatmul.mubr.f32.gmra.mxu0 %v3156
    %v3790 = vpop.f32.mrf.mxu0
    %v3791 = vadd.f32 0.0, %v3790
    %v3792 = vpop.f32.mrf.mxu0
    %3793 = vmatprep.mubr.f32.mxu0 0.0
    %3794 = vmatmul.mubr.f32.gmra.mxu0 %v3157
    %v3795 = vpop.f32.mrf.mxu0
    %v3796 = vadd.f32 0.0, %v3795
    %v3797 = vpop.f32.mrf.mxu0
    %3798 = vdwg.mxu0
    %3799 = vmatprep.subr.mxu0 0.0
    %3800 = vmatpush1.msra.mxu0 %v3723
    %3801 = vmatprep.subr.mxu0 0.0
    %3802 = vmatpush1.msra.mxu0 %v3722
    %3803 = vmatprep.subr.mxu0 0.0
    %3804 = vmatpush1.msra.mxu0 %v3721
    %3805 = vmatprep.subr.mxu0 0.0
    %3806 = vmatpush1.msra.mxu0 %v3720
    %3807 = vmatprep.subr.mxu0 0.0
    %3808 = vmatpush1.msra.mxu0 %v3719
    %3809 = vmatprep.subr.mxu0 0.0
    %3810 = vmatpush1.msra.mxu0 %v3718
    %3811 = vmatprep.subr.mxu0 0.0
    %3812 = vmatpush1.msra.mxu0 %v3717
    %3813 = vmatprep.subr.mxu0 0.0
    %3814 = vmatpush1.msra.mxu0 %v3716
    %3815 = vmatprep.subr.mxu0 0.0
    %3816 = vmatpush1.msra.mxu0 %v3715
    %3817 = vmatprep.subr.mxu0 0.0
    %3818 = vmatpush1.msra.mxu0 %v3714
    %3819 = vmatprep.subr.mxu0 0.0
    %3820 = vmatpush1.msra.mxu0 %v3713
    %3821 = vmatprep.subr.mxu0 0.0
    %3822 = vmatpush1.msra.mxu0 %v3712
    %3823 = vmatprep.subr.mxu0 0.0
    %3824 = vmatpush1.msra.mxu0 %v3711
    %3825 = vmatprep.subr.mxu0 0.0
    %3826 = vmatpush1.msra.mxu0 %v3710
    %3827 = vmatprep.subr.mxu0 0.0
    %3828 = vmatpush1.msra.mxu0 %v3709
    %3829 = vmatprep.subr.mxu0 0.0
    %3830 = vmatpush1.msra.mxu0 %v3708
    %3831 = vmatprep.subr.mxu0 0.0
    %3832 = vmatpush2.msra.mxu0 0.0
    %3833 = vmatprep.subr.mxu0 0.0
    %3834 = vmatpush2.msra.mxu0 0.0
    %3835 = vmatprep.subr.mxu0 0.0
    %3836 = vmatpush2.msra.mxu0 0.0
    %3837 = vmatprep.subr.mxu0 0.0
    %3838 = vmatpush2.msra.mxu0 0.0
    %3839 = vmatprep.subr.mxu0 0.0
    %3840 = vmatpush2.msra.mxu0 0.0
    %3841 = vmatprep.subr.mxu0 0.0
    %3842 = vmatpush2.msra.mxu0 0.0
    %3843 = vmatprep.subr.mxu0 0.0
    %3844 = vmatpush2.msra.mxu0 0.0
    %3845 = vmatprep.subr.mxu0 0.0
    %3846 = vmatpush2.msra.mxu0 0.0
    %3847 = vmatprep.subr.mxu0 0.0
    %3848 = vmatpush2.msra.mxu0 0.0
    %3849 = vmatprep.subr.mxu0 0.0
    %3850 = vmatpush2.msra.mxu0 0.0
    %3851 = vmatprep.subr.mxu0 0.0
    %3852 = vmatpush2.msra.mxu0 0.0
    %3853 = vmatprep.subr.mxu0 0.0
    %3854 = vmatpush2.msra.mxu0 0.0
    %3855 = vmatprep.subr.mxu0 0.0
    %3856 = vmatpush2.msra.mxu0 0.0
    %3857 = vmatprep.subr.mxu0 0.0
    %3858 = vmatpush2.msra.mxu0 0.0
    %3859 = vmatprep.subr.mxu0 0.0
    %3860 = vmatpush2.msra.mxu0 0.0
    %3861 = vmatprep.subr.mxu0 0.0
    %3862 = vmatpush2.msra.mxu0 0.0
    %3863 = vmatprep.mubr.f32.mxu0 0.0
    %3864 = vmatmul.mubr.f32.gmra.mxu0 %v3154
    %v3865 = vpop.f32.mrf.mxu0
    %v3866 = vadd.f32 %v3791, %v3865
    %v3867 = vpop.f32.mrf.mxu0
    %3868 = vmatprep.mubr.f32.mxu0 0.0
    %3869 = vmatmul.mubr.f32.gmra.mxu0 %v3155
    %v3870 = vpop.f32.mrf.mxu0
    %v3871 = vadd.f32 %v3796, %v3870
    %v3872 = vpop.f32.mrf.mxu0
    %3873 = vdwg.mxu0
    %s3874 = scalar_lea.vmem [#allocation10], 3
    %v3875 = vld [vmem:[%s3874] sm:$0x1]
    %v3877 = vlaneseq
    %v3878 = vshrl.u32 %v3877, 7
    %v3879 = vsub.s32 0, %v3878
    %v3880 = vrot.slane %v3875, %v3879
    %v3882 = vmul.f32 %v3328, %v3880
    %v3883 = vmul.f32 %v3333, %v3880
    %v3884 = vadd.f32 %v3866, %v3882
    %v3885 = vadd.f32 %v3871, %v3883
    %v3886 = vmax.f32 %v3705, %v3884
    %v3887 = vmax.f32 %v3706, %v3885
    %v3888 = vld [vmem:[%s13] sm:$0xff]
    %v3889 = vld [vmem:[%s13 + $0x8] sm:$0xff]
    %v3890 = vld [vmem:[%s13 + $0x10] sm:$0xff]
    %v3891 = vld [vmem:[%s13 + $0x18] sm:$0xff]
    %v3892 = vld [vmem:[%s14] sm:$0xff]
    %v3893 = vld [vmem:[%s14 + $0x8] sm:$0xff]
    %v3894 = vld [vmem:[%s14 + $0x10] sm:$0xff]
    %v3895 = vld [vmem:[%s14 + $0x18] sm:$0xff]
    %3897 = vset.pattern.permute.xlu0 0
    %3898 = vperm.xlu0 %3897, %v3888
    %v3899 = vpop.permute.xlu0 %3898
    %3902 = vset.pattern.permute.xlu0 0
    %3903 = vperm.xlu0 %3902, %v3889
    %v3904 = vpop.permute.xlu0 %3903
    %3907 = vset.pattern.permute.xlu0 0
    %3908 = vperm.xlu0 %3907, %v3890
    %v3909 = vpop.permute.xlu0 %3908
    %3912 = vset.pattern.permute.xlu0 0
    %3913 = vperm.xlu0 %3912, %v3891
    %v3914 = vpop.permute.xlu0 %3913
    %v3916 = vlaneseq
    %v3917 = vshrl.u32 %v3916, 7
    %v3918 = vsub.s32 0, %v3917
    %v3919 = vrot.slane %v3886, %v3918
    %v3920 = vmul.f32 %v3899, %v3919
    %v3921 = vmul.f32 %v3904, %v3919
    %v3922 = vmul.f32 %v3909, %v3919
    %v3923 = vmul.f32 %v3914, %v3919
    %3924 = vset.pattern.permute.xlu0 1
    %3925 = vperm.xlu0 %3924, %v3888
    %v3926 = vpop.permute.xlu0 %3925
    %3928 = vset.pattern.permute.xlu0 1
    %3929 = vperm.xlu0 %3928, %v3889
    %v3930 = vpop.permute.xlu0 %3929
    %3932 = vset.pattern.permute.xlu0 1
    %3933 = vperm.xlu0 %3932, %v3890
    %v3934 = vpop.permute.xlu0 %3933
    %3936 = vset.pattern.permute.xlu0 1
    %3937 = vperm.xlu0 %3936, %v3891
    %v3938 = vpop.permute.xlu0 %3937
    %v3940 = vlaneseq
    %v3941 = vshrl.u32 %v3940, 7
    %v3942 = vsub.s32 1, %v3941
    %v3943 = vrot.slane %v3886, %v3942
    %v3944 = vmul.f32 %v3926, %v3943
    %v3945 = vmul.f32 %v3930, %v3943
    %v3946 = vmul.f32 %v3934, %v3943
    %v3947 = vmul.f32 %v3938, %v3943
    %3948 = vset.pattern.permute.xlu0 2
    %3949 = vperm.xlu0 %3948, %v3888
    %v3950 = vpop.permute.xlu0 %3949
    %3952 = vset.pattern.permute.xlu0 2
    %3953 = vperm.xlu0 %3952, %v3889
    %v3954 = vpop.permute.xlu0 %3953
    %3956 = vset.pattern.permute.xlu0 2
    %3957 = vperm.xlu0 %3956, %v3890
    %v3958 = vpop.permute.xlu0 %3957
    %3960 = vset.pattern.permute.xlu0 2
    %3961 = vperm.xlu0 %3960, %v3891
    %v3962 = vpop.permute.xlu0 %3961
    %v3964 = vlaneseq
    %v3965 = vshrl.u32 %v3964, 7
    %v3966 = vsub.s32 2, %v3965
    %v3967 = vrot.slane %v3886, %v3966
    %v3968 = vmul.f32 %v3950, %v3967
    %v3969 = vmul.f32 %v3954, %v3967
    %v3970 = vmul.f32 %v3958, %v3967
    %v3971 = vmul.f32 %v3962, %v3967
    %3972 = vset.pattern.permute.xlu0 3
    %3973 = vperm.xlu0 %3972, %v3888
    %v3974 = vpop.permute.xlu0 %3973
    %3976 = vset.pattern.permute.xlu0 3
    %3977 = vperm.xlu0 %3976, %v3889
    %v3978 = vpop.permute.xlu0 %3977
    %3980 = vset.pattern.permute.xlu0 3
    %3981 = vperm.xlu0 %3980, %v3890
    %v3982 = vpop.permute.xlu0 %3981
    %3984 = vset.pattern.permute.xlu0 3
    %3985 = vperm.xlu0 %3984, %v3891
    %v3986 = vpop.permute.xlu0 %3985
    %v3988 = vlaneseq
    %v3989 = vshrl.u32 %v3988, 7
    %v3990 = vsub.s32 3, %v3989
    %v3991 = vrot.slane %v3886, %v3990
    %v3992 = vmul.f32 %v3974, %v3991
    %v3993 = vmul.f32 %v3978, %v3991
    %v3994 = vmul.f32 %v3982, %v3991
    %v3995 = vmul.f32 %v3986, %v3991
    %3996 = vset.pattern.permute.xlu0 4
    %3997 = vperm.xlu0 %3996, %v3888
    %v3998 = vpop.permute.xlu0 %3997
    %4000 = vset.pattern.permute.xlu0 4
    %4001 = vperm.xlu0 %4000, %v3889
    %v4002 = vpop.permute.xlu0 %4001
    %4004 = vset.pattern.permute.xlu0 4
    %4005 = vperm.xlu0 %4004, %v3890
    %v4006 = vpop.permute.xlu0 %4005
    %4008 = vset.pattern.permute.xlu0 4
    %4009 = vperm.xlu0 %4008, %v3891
    %v4010 = vpop.permute.xlu0 %4009
    %v4012 = vlaneseq
    %v4013 = vshrl.u32 %v4012, 7
    %v4014 = vsub.s32 4, %v4013
    %v4015 = vrot.slane %v3886, %v4014
    %v4016 = vmul.f32 %v3998, %v4015
    %v4017 = vmul.f32 %v4002, %v4015
    %v4018 = vmul.f32 %v4006, %v4015
    %v4019 = vmul.f32 %v4010, %v4015
    %4020 = vset.pattern.permute.xlu0 5
    %4021 = vperm.xlu0 %4020, %v3888
    %v4022 = vpop.permute.xlu0 %4021
    %4024 = vset.pattern.permute.xlu0 5
    %4025 = vperm.xlu0 %4024, %v3889
    %v4026 = vpop.permute.xlu0 %4025
    %4028 = vset.pattern.permute.xlu0 5
    %4029 = vperm.xlu0 %4028, %v3890
    %v4030 = vpop.permute.xlu0 %4029
    %4032 = vset.pattern.permute.xlu0 5
    %4033 = vperm.xlu0 %4032, %v3891
    %v4034 = vpop.permute.xlu0 %4033
    %v4036 = vlaneseq
    %v4037 = vshrl.u32 %v4036, 7
    %v4038 = vsub.s32 5, %v4037
    %v4039 = vrot.slane %v3886, %v4038
    %v4040 = vmul.f32 %v4022, %v4039
    %v4041 = vmul.f32 %v4026, %v4039
    %v4042 = vmul.f32 %v4030, %v4039
    %v4043 = vmul.f32 %v4034, %v4039
    %4044 = vset.pattern.permute.xlu0 6
    %4045 = vperm.xlu0 %4044, %v3888
    %v4046 = vpop.permute.xlu0 %4045
    %4048 = vset.pattern.permute.xlu0 6
    %4049 = vperm.xlu0 %4048, %v3889
    %v4050 = vpop.permute.xlu0 %4049
    %4052 = vset.pattern.permute.xlu0 6
    %4053 = vperm.xlu0 %4052, %v3890
    %v4054 = vpop.permute.xlu0 %4053
    %4056 = vset.pattern.permute.xlu0 6
    %4057 = vperm.xlu0 %4056, %v3891
    %v4058 = vpop.permute.xlu0 %4057
    %v4060 = vlaneseq
    %v4061 = vshrl.u32 %v4060, 7
    %v4062 = vsub.s32 6, %v4061
    %v4063 = vrot.slane %v3886, %v4062
    %v4064 = vmul.f32 %v4046, %v4063
    %v4065 = vmul.f32 %v4050, %v4063
    %v4066 = vmul.f32 %v4054, %v4063
    %v4067 = vmul.f32 %v4058, %v4063
    %4068 = vset.pattern.permute.xlu0 7
    %4069 = vperm.xlu0 %4068, %v3888
    %v4070 = vpop.permute.xlu0 %4069
    %4072 = vset.pattern.permute.xlu0 7
    %4073 = vperm.xlu0 %4072, %v3889
    %v4074 = vpop.permute.xlu0 %4073
    %4076 = vset.pattern.permute.xlu0 7
    %4077 = vperm.xlu0 %4076, %v3890
    %v4078 = vpop.permute.xlu0 %4077
    %4080 = vset.pattern.permute.xlu0 7
    %4081 = vperm.xlu0 %4080, %v3891
    %v4082 = vpop.permute.xlu0 %4081
    %v4084 = vlaneseq
    %v4085 = vshrl.u32 %v4084, 7
    %v4086 = vsub.s32 7, %v4085
    %v4087 = vrot.slane %v3886, %v4086
    %v4088 = vmul.f32 %v4070, %v4087
    %v4089 = vmul.f32 %v4074, %v4087
    %v4090 = vmul.f32 %v4078, %v4087
    %v4091 = vmul.f32 %v4082, %v4087
    %4092 = vset.pattern.permute.xlu0 8
    %4093 = vperm.xlu0 %4092, %v3888
    %v4094 = vpop.permute.xlu0 %4093
    %4096 = vset.pattern.permute.xlu0 8
    %4097 = vperm.xlu0 %4096, %v3889
    %v4098 = vpop.permute.xlu0 %4097
    %4100 = vset.pattern.permute.xlu0 8
    %4101 = vperm.xlu0 %4100, %v3890
    %v4102 = vpop.permute.xlu0 %4101
    %4104 = vset.pattern.permute.xlu0 8
    %4105 = vperm.xlu0 %4104, %v3891
    %v4106 = vpop.permute.xlu0 %4105
    %v4108 = vlaneseq
    %v4109 = vshrl.u32 %v4108, 7
    %v4110 = vsub.s32 0, %v4109
    %v4111 = vrot.slane %v3887, %v4110
    %v4112 = vmul.f32 %v4094, %v4111
    %v4113 = vmul.f32 %v4098, %v4111
    %v4114 = vmul.f32 %v4102, %v4111
    %v4115 = vmul.f32 %v4106, %v4111
    %4116 = vset.pattern.permute.xlu0 9
    %4117 = vperm.xlu0 %4116, %v3888
    %v4118 = vpop.permute.xlu0 %4117
    %4120 = vset.pattern.permute.xlu0 9
    %4121 = vperm.xlu0 %4120, %v3889
    %v4122 = vpop.permute.xlu0 %4121
    %4124 = vset.pattern.permute.xlu0 9
    %4125 = vperm.xlu0 %4124, %v3890
    %v4126 = vpop.permute.xlu0 %4125
    %4128 = vset.pattern.permute.xlu0 9
    %4129 = vperm.xlu0 %4128, %v3891
    %v4130 = vpop.permute.xlu0 %4129
    %v4132 = vlaneseq
    %v4133 = vshrl.u32 %v4132, 7
    %v4134 = vsub.s32 1, %v4133
    %v4135 = vrot.slane %v3887, %v4134
    %v4136 = vmul.f32 %v4118, %v4135
    %v4137 = vmul.f32 %v4122, %v4135
    %v4138 = vmul.f32 %v4126, %v4135
    %v4139 = vmul.f32 %v4130, %v4135
    %4140 = vset.pattern.permute.xlu0 10
    %4141 = vperm.xlu0 %4140, %v3888
    %v4142 = vpop.permute.xlu0 %4141
    %4144 = vset.pattern.permute.xlu0 10
    %4145 = vperm.xlu0 %4144, %v3889
    %v4146 = vpop.permute.xlu0 %4145
    %4148 = vset.pattern.permute.xlu0 10
    %4149 = vperm.xlu0 %4148, %v3890
    %v4150 = vpop.permute.xlu0 %4149
    %4152 = vset.pattern.permute.xlu0 10
    %4153 = vperm.xlu0 %4152, %v3891
    %v4154 = vpop.permute.xlu0 %4153
    %v4156 = vlaneseq
    %v4157 = vshrl.u32 %v4156, 7
    %v4158 = vsub.s32 2, %v4157
    %v4159 = vrot.slane %v3887, %v4158
    %v4160 = vmul.f32 %v4142, %v4159
    %v4161 = vmul.f32 %v4146, %v4159
    %v4162 = vmul.f32 %v4150, %v4159
    %v4163 = vmul.f32 %v4154, %v4159
    %4164 = vset.pattern.permute.xlu0 11
    %4165 = vperm.xlu0 %4164, %v3888
    %v4166 = vpop.permute.xlu0 %4165
    %4168 = vset.pattern.permute.xlu0 11
    %4169 = vperm.xlu0 %4168, %v3889
    %v4170 = vpop.permute.xlu0 %4169
    %4172 = vset.pattern.permute.xlu0 11
    %4173 = vperm.xlu0 %4172, %v3890
    %v4174 = vpop.permute.xlu0 %4173
    %4176 = vset.pattern.permute.xlu0 11
    %4177 = vperm.xlu0 %4176, %v3891
    %v4178 = vpop.permute.xlu0 %4177
    %v4180 = vlaneseq
    %v4181 = vshrl.u32 %v4180, 7
    %v4182 = vsub.s32 3, %v4181
    %v4183 = vrot.slane %v3887, %v4182
    %v4184 = vmul.f32 %v4166, %v4183
    %v4185 = vmul.f32 %v4170, %v4183
    %v4186 = vmul.f32 %v4174, %v4183
    %v4187 = vmul.f32 %v4178, %v4183
    %4188 = vset.pattern.permute.xlu0 12
    %4189 = vperm.xlu0 %4188, %v3888
    %v4190 = vpop.permute.xlu0 %4189
    %4192 = vset.pattern.permute.xlu0 12
    %4193 = vperm.xlu0 %4192, %v3889
    %v4194 = vpop.permute.xlu0 %4193
    %4196 = vset.pattern.permute.xlu0 12
    %4197 = vperm.xlu0 %4196, %v3890
    %v4198 = vpop.permute.xlu0 %4197
    %4200 = vset.pattern.permute.xlu0 12
    %4201 = vperm.xlu0 %4200, %v3891
    %v4202 = vpop.permute.xlu0 %4201
    %v4204 = vlaneseq
    %v4205 = vshrl.u32 %v4204, 7
    %v4206 = vsub.s32 4, %v4205
    %v4207 = vrot.slane %v3887, %v4206
    %v4208 = vmul.f32 %v4190, %v4207
    %v4209 = vmul.f32 %v4194, %v4207
    %v4210 = vmul.f32 %v4198, %v4207
    %v4211 = vmul.f32 %v4202, %v4207
    %4212 = vset.pattern.permute.xlu0 13
    %4213 = vperm.xlu0 %4212, %v3888
    %v4214 = vpop.permute.xlu0 %4213
    %4216 = vset.pattern.permute.xlu0 13
    %4217 = vperm.xlu0 %4216, %v3889
    %v4218 = vpop.permute.xlu0 %4217
    %4220 = vset.pattern.permute.xlu0 13
    %4221 = vperm.xlu0 %4220, %v3890
    %v4222 = vpop.permute.xlu0 %4221
    %4224 = vset.pattern.permute.xlu0 13
    %4225 = vperm.xlu0 %4224, %v3891
    %v4226 = vpop.permute.xlu0 %4225
    %v4228 = vlaneseq
    %v4229 = vshrl.u32 %v4228, 7
    %v4230 = vsub.s32 5, %v4229
    %v4231 = vrot.slane %v3887, %v4230
    %v4232 = vmul.f32 %v4214, %v4231
    %v4233 = vmul.f32 %v4218, %v4231
    %v4234 = vmul.f32 %v4222, %v4231
    %v4235 = vmul.f32 %v4226, %v4231
    %4236 = vset.pattern.permute.xlu0 14
    %4237 = vperm.xlu0 %4236, %v3888
    %v4238 = vpop.permute.xlu0 %4237
    %4240 = vset.pattern.permute.xlu0 14
    %4241 = vperm.xlu0 %4240, %v3889
    %v4242 = vpop.permute.xlu0 %4241
    %4244 = vset.pattern.permute.xlu0 14
    %4245 = vperm.xlu0 %4244, %v3890
    %v4246 = vpop.permute.xlu0 %4245
    %4248 = vset.pattern.permute.xlu0 14
    %4249 = vperm.xlu0 %4248, %v3891
    %v4250 = vpop.permute.xlu0 %4249
    %v4252 = vlaneseq
    %v4253 = vshrl.u32 %v4252, 7
    %v4254 = vsub.s32 6, %v4253
    %v4255 = vrot.slane %v3887, %v4254
    %v4256 = vmul.f32 %v4238, %v4255
    %v4257 = vmul.f32 %v4242, %v4255
    %v4258 = vmul.f32 %v4246, %v4255
    %v4259 = vmul.f32 %v4250, %v4255
    %4260 = vset.pattern.permute.xlu0 15
    %4261 = vperm.xlu0 %4260, %v3888
    %v4262 = vpop.permute.xlu0 %4261
    %4264 = vset.pattern.permute.xlu0 15
    %4265 = vperm.xlu0 %4264, %v3889
    %v4266 = vpop.permute.xlu0 %4265
    %4268 = vset.pattern.permute.xlu0 15
    %4269 = vperm.xlu0 %4268, %v3890
    %v4270 = vpop.permute.xlu0 %4269
    %4272 = vset.pattern.permute.xlu0 15
    %4273 = vperm.xlu0 %4272, %v3891
    %v4274 = vpop.permute.xlu0 %4273
    %v4276 = vlaneseq
    %v4277 = vshrl.u32 %v4276, 7
    %v4278 = vsub.s32 7, %v4277
    %v4279 = vrot.slane %v3887, %v4278
    %v4280 = vmul.f32 %v4262, %v4279
    %v4281 = vmul.f32 %v4266, %v4279
    %v4282 = vmul.f32 %v4270, %v4279
    %v4283 = vmul.f32 %v4274, %v4279
    %v4284 = vadd.f32 %v3920, %v3944
    %v4285 = vadd.f32 %v3921, %v3945
    %v4286 = vadd.f32 %v3922, %v3946
    %v4287 = vadd.f32 %v3923, %v3947
    %v4288 = vadd.f32 %v3968, %v3992
    %v4289 = vadd.f32 %v3969, %v3993
    %v4290 = vadd.f32 %v3970, %v3994
    %v4291 = vadd.f32 %v3971, %v3995
    %v4292 = vadd.f32 %v4016, %v4040
    %v4293 = vadd.f32 %v4017, %v4041
    %v4294 = vadd.f32 %v4018, %v4042
    %v4295 = vadd.f32 %v4019, %v4043
    %v4296 = vadd.f32 %v4064, %v4088
    %v4297 = vadd.f32 %v4065, %v4089
    %v4298 = vadd.f32 %v4066, %v4090
    %v4299 = vadd.f32 %v4067, %v4091
    %v4300 = vadd.f32 %v4112, %v4136
    %v4301 = vadd.f32 %v4113, %v4137
    %v4302 = vadd.f32 %v4114, %v4138
    %v4303 = vadd.f32 %v4115, %v4139
    %v4304 = vadd.f32 %v4160, %v4184
    %v4305 = vadd.f32 %v4161, %v4185
    %v4306 = vadd.f32 %v4162, %v4186
    %v4307 = vadd.f32 %v4163, %v4187
    %v4308 = vadd.f32 %v4208, %v4232
    %v4309 = vadd.f32 %v4209, %v4233
    %v4310 = vadd.f32 %v4210, %v4234
    %v4311 = vadd.f32 %v4211, %v4235
    %v4312 = vadd.f32 %v4256, %v4280
    %v4313 = vadd.f32 %v4257, %v4281
    %v4314 = vadd.f32 %v4258, %v4282
    %v4315 = vadd.f32 %v4259, %v4283
    %v4316 = vadd.f32 %v4284, %v4288
    %v4317 = vadd.f32 %v4285, %v4289
    %v4318 = vadd.f32 %v4286, %v4290
    %v4319 = vadd.f32 %v4287, %v4291
    %v4320 = vadd.f32 %v4292, %v4296
    %v4321 = vadd.f32 %v4293, %v4297
    %v4322 = vadd.f32 %v4294, %v4298
    %v4323 = vadd.f32 %v4295, %v4299
    %v4324 = vadd.f32 %v4300, %v4304
    %v4325 = vadd.f32 %v4301, %v4305
    %v4326 = vadd.f32 %v4302, %v4306
    %v4327 = vadd.f32 %v4303, %v4307
    %v4328 = vadd.f32 %v4308, %v4312
    %v4329 = vadd.f32 %v4309, %v4313
    %v4330 = vadd.f32 %v4310, %v4314
    %v4331 = vadd.f32 %v4311, %v4315
    %v4332 = vadd.f32 %v4316, %v4320
    %v4333 = vadd.f32 %v4317, %v4321
    %v4334 = vadd.f32 %v4318, %v4322
    %v4335 = vadd.f32 %v4319, %v4323
    %v4336 = vadd.f32 %v4324, %v4328
    %v4337 = vadd.f32 %v4325, %v4329
    %v4338 = vadd.f32 %v4326, %v4330
    %v4339 = vadd.f32 %v4327, %v4331
    %v4340 = vadd.f32 %v4332, %v4336
    %v4341 = vadd.f32 %v4333, %v4337
    %v4342 = vadd.f32 %v4334, %v4338
    %v4343 = vadd.f32 %v4335, %v4339
    %4345 = vset.pattern.permute.xlu0 0
    %4346 = vperm.xlu0 %4345, %v3892
    %v4347 = vpop.permute.xlu0 %4346
    %4350 = vset.pattern.permute.xlu0 0
    %4351 = vperm.xlu0 %4350, %v3893
    %v4352 = vpop.permute.xlu0 %4351
    %4355 = vset.pattern.permute.xlu0 0
    %4356 = vperm.xlu0 %4355, %v3894
    %v4357 = vpop.permute.xlu0 %4356
    %4360 = vset.pattern.permute.xlu0 0
    %4361 = vperm.xlu0 %4360, %v3895
    %v4362 = vpop.permute.xlu0 %4361
    %v4364 = vadd.f32 %v4340, %v4347
    %v4365 = vadd.f32 %v4341, %v4352
    %v4366 = vadd.f32 %v4342, %v4357
    %v4367 = vadd.f32 %v4343, %v4362
    %4368 = vadd.xlane.f32.xlu0 %v4364
    %v4369 = vpop.xlane.xlu0 %4368
    %4370 = vadd.xlane.f32.xlu0 %v4365
    %v4371 = vpop.xlane.xlu0 %4370
    %4372 = vadd.xlane.f32.xlu0 %v4366
    %v4373 = vpop.xlane.xlu0 %4372
    %4374 = vadd.xlane.f32.xlu0 %v4367
    %v4375 = vpop.xlane.xlu0 %4374
    %v4376 = vmul.f32 %v3892, -78.0
    %v4377 = vmul.f32 %v3893, -78.0
    %v4378 = vmul.f32 %v3894, -78.0
    %v4379 = vmul.f32 %v3895, -78.0
    %v4380 = vadd.f32 %v4369, %v4376
    %v4381 = vadd.f32 %v4371, %v4377
    %v4382 = vadd.f32 %v4373, %v4378
    %v4383 = vadd.f32 %v4375, %v4379
    %v4384 = vmul.f32 %v4380, 0.02
    %v4385 = vmul.f32 %v4381, 0.02
    %v4386 = vmul.f32 %v4382, 0.02
    %v4387 = vmul.f32 %v4383, 0.02
    %4389 = vset.pattern.permute.xlu0 0
    %4390 = vperm.xlu0 %4389, %v4384
    %v4391 = vpop.permute.xlu0 %4390
    %4394 = vset.pattern.permute.xlu0 0
    %4395 = vperm.xlu0 %4394, %v4385
    %v4396 = vpop.permute.xlu0 %4395
    %4399 = vset.pattern.permute.xlu0 0
    %4400 = vperm.xlu0 %4399, %v4386
    %v4401 = vpop.permute.xlu0 %4400
    %4404 = vset.pattern.permute.xlu0 0
    %4405 = vperm.xlu0 %4404, %v4387
    %v4406 = vpop.permute.xlu0 %4405
    %v4408 = vsub.f32 %v4364, %v4391
    %v4409 = vsub.f32 %v4365, %v4396
    %v4410 = vsub.f32 %v4366, %v4401
    %v4411 = vsub.f32 %v4367, %v4406
    %v4412 = vsub.f32 %v3892, %v4384
    %v4413 = vsub.f32 %v3893, %v4385
    %v4414 = vsub.f32 %v3894, %v4386
    %v4415 = vsub.f32 %v3895, %v4387
    %v4416 = vmul.f32 %v4408, %v4408
    %v4417 = vmul.f32 %v4409, %v4409
    %v4418 = vmul.f32 %v4410, %v4410
    %v4419 = vmul.f32 %v4411, %v4411
    %4420 = vadd.xlane.f32.xlu0 %v4416
    %v4421 = vpop.xlane.xlu0 %4420
    %4422 = vadd.xlane.f32.xlu0 %v4417
    %v4423 = vpop.xlane.xlu0 %4422
    %4424 = vadd.xlane.f32.xlu0 %v4418
    %v4425 = vpop.xlane.xlu0 %4424
    %4426 = vadd.xlane.f32.xlu0 %v4419
    %v4427 = vpop.xlane.xlu0 %4426
    %v4428 = vmul.f32 %v4412, %v4412
    %v4429 = vmul.f32 %v4413, %v4413
    %v4430 = vmul.f32 %v4414, %v4414
    %v4431 = vmul.f32 %v4415, %v4415
    %v4432 = vmul.f32 %v4428, -78.0
    %v4433 = vmul.f32 %v4429, -78.0
    %v4434 = vmul.f32 %v4430, -78.0
    %v4435 = vmul.f32 %v4431, -78.0
    %v4436 = vadd.f32 %v4421, %v4432
    %v4437 = vadd.f32 %v4423, %v4433
    %v4438 = vadd.f32 %v4425, %v4434
    %v4439 = vadd.f32 %v4427, %v4435
    %v4440 = vmul.f32 %v4436, 0.02
    %v4441 = vmul.f32 %v4437, 0.02
    %v4442 = vmul.f32 %v4438, 0.02
    %v4443 = vmul.f32 %v4439, 0.02
    %v4444 = vadd.f32 %v4440, 0.001
    %v4445 = vadd.f32 %v4441, 0.001
    %v4446 = vadd.f32 %v4442, 0.001
    %v4447 = vadd.f32 %v4443, 0.001
    %v4448 = vrsqrt.pop %v4444
    %v4449 = vrsqrt.pop %v4445
    %v4450 = vrsqrt.pop %v4446
    %v4451 = vrsqrt.pop %v4447
    %v4452 = vmul.f32 %v4444, 0.5
    %v4453 = vmul.f32 %v4445, 0.5
    %v4454 = vmul.f32 %v4446, 0.5
    %v4455 = vmul.f32 %v4447, 0.5
    %v4456 = vmul.f32 %v4452, %v4448
    %v4457 = vmul.f32 %v4453, %v4449
    %v4458 = vmul.f32 %v4454, %v4450
    %v4459 = vmul.f32 %v4455, %v4451
    %v4460 = vmul.f32 %v4456, %v4448
    %v4461 = vmul.f32 %v4457, %v4449
    %v4462 = vmul.f32 %v4458, %v4450
    %v4463 = vmul.f32 %v4459, %v4451
    %v4464 = vsub.f32 1.5, %v4460
    %v4465 = vsub.f32 1.5, %v4461
    %v4466 = vsub.f32 1.5, %v4462
    %v4467 = vsub.f32 1.5, %v4463
    %v4468 = vmul.f32 %v4448, %v4464
    %v4469 = vmul.f32 %v4449, %v4465
    %v4470 = vmul.f32 %v4450, %v4466
    %v4471 = vmul.f32 %v4451, %v4467
    %4476 = vrot.lane.b32.xlu0 %v4468, 1
    %v4477 = vpop.permute.xlu0 %4476
    %4478 = vrot.lane.b32.xlu0 %v4469, 1
    %v4479 = vpop.permute.xlu0 %4478
    %4480 = vrot.lane.b32.xlu0 %v4470, 1
    %v4481 = vpop.permute.xlu0 %4480
    %4482 = vrot.lane.b32.xlu0 %v4471, 1
    %v4483 = vpop.permute.xlu0 %4482
    %v4488 = vmul.f32 %v3892, %v4477
    %v4489 = vmul.f32 %v3893, %v4479
    %v4490 = vmul.f32 %v3894, %v4481
    %v4491 = vmul.f32 %v3895, %v4483
    %4493 = vset.pattern.permute.xlu0 1
    %4494 = vperm.xlu0 %4493, %v4488
    %v4495 = vpop.permute.xlu0 %4494
    %4498 = vset.pattern.permute.xlu0 1
    %4499 = vperm.xlu0 %4498, %v4489
    %v4500 = vpop.permute.xlu0 %4499
    %4503 = vset.pattern.permute.xlu0 1
    %4504 = vperm.xlu0 %4503, %v4490
    %v4505 = vpop.permute.xlu0 %4504
    %4508 = vset.pattern.permute.xlu0 1
    %4509 = vperm.xlu0 %4508, %v4491
    %v4510 = vpop.permute.xlu0 %4509
    %v4512 = vmul.f32 %v4408, %v4495
    %v4513 = vmul.f32 %v4409, %v4500
    %v4514 = vmul.f32 %v4410, %v4505
    %v4515 = vmul.f32 %v4411, %v4510
    %4516 = vset.pattern.permute.xlu0 2
    %4517 = vperm.xlu0 %4516, %v3892
    %v4518 = vpop.permute.xlu0 %4517
    %4520 = vset.pattern.permute.xlu0 2
    %4521 = vperm.xlu0 %4520, %v3893
    %v4522 = vpop.permute.xlu0 %4521
    %4524 = vset.pattern.permute.xlu0 2
    %4525 = vperm.xlu0 %4524, %v3894
    %v4526 = vpop.permute.xlu0 %4525
    %4528 = vset.pattern.permute.xlu0 2
    %4529 = vperm.xlu0 %4528, %v3895
    %v4530 = vpop.permute.xlu0 %4529
    %v4532 = vadd.f32 %v4512, %v4518
    %v4533 = vadd.f32 %v4513, %v4522
    %v4534 = vadd.f32 %v4514, %v4526
    %v4535 = vadd.f32 %v4515, %v4530
    %v4536 = vmax.f32 %v4532, 0.0
    %v4537 = vmax.f32 %v4533, 0.0
    %v4538 = vmax.f32 %v4534, 0.0
    %v4539 = vmax.f32 %v4535, 0.0
    %4540 = vrot.lane.b32.xlu0 %v4488, 127
    %v4541 = vpop.permute.xlu0 %4540
    %4542 = vrot.lane.b32.xlu0 %v4489, 127
    %v4543 = vpop.permute.xlu0 %4542
    %4544 = vrot.lane.b32.xlu0 %v4490, 127
    %v4545 = vpop.permute.xlu0 %4544
    %4546 = vrot.lane.b32.xlu0 %v4491, 127
    %v4547 = vpop.permute.xlu0 %4546
    %v4552 = vmul.f32 %v4412, %v4541
    %v4553 = vmul.f32 %v4413, %v4543
    %v4554 = vmul.f32 %v4414, %v4545
    %v4555 = vmul.f32 %v4415, %v4547
    %4556 = vrot.lane.b32.xlu0 %v3892, 126
    %v4557 = vpop.permute.xlu0 %4556
    %4558 = vrot.lane.b32.xlu0 %v3893, 126
    %v4559 = vpop.permute.xlu0 %4558
    %4560 = vrot.lane.b32.xlu0 %v3894, 126
    %v4561 = vpop.permute.xlu0 %4560
    %4562 = vrot.lane.b32.xlu0 %v3895, 126
    %v4563 = vpop.permute.xlu0 %4562
    %v4568 = vadd.f32 %v4552, %v4557
    %v4569 = vadd.f32 %v4553, %v4559
    %v4570 = vadd.f32 %v4554, %v4561
    %v4571 = vadd.f32 %v4555, %v4563
    %v4572 = vmax.f32 %v4568, 0.0
    %v4573 = vmax.f32 %v4569, 0.0
    %v4574 = vmax.f32 %v4570, 0.0
    %v4575 = vmax.f32 %v4571, 0.0
    %v4576 = vpack.c.bf16 %v4537, %v4536
    %v4577 = vpack.c.bf16 %v4539, %v4538
    %v4578 = vunpack.c.l.bf16 %v4576
    %v4579 = vunpack.c.h.bf16 %v4576
    %v4580 = vunpack.c.l.bf16 %v4577
    %v4581 = vunpack.c.h.bf16 %v4577
    %v4582 = vsub.f32 %v4536, %v4578
    %v4583 = vsub.f32 %v4537, %v4579
    %v4584 = vsub.f32 %v4538, %v4580
    %v4585 = vsub.f32 %v4539, %v4581
    %v4586 = vld [vmem:[#allocation12] sm:$0xff]
    %v4587 = vld [vmem:[#allocation12 + $0x8] sm:$0xff]
    %v4588 = vld [vmem:[#allocation12 + $0x10] sm:$0xff]
    %v4589 = vld [vmem:[#allocation12 + $0x18] sm:$0xff]
    %v4590 = vld [vmem:[#allocation12 + $0x20] sm:$0xff]
    %v4591 = vld [vmem:[#allocation12 + $0x28] sm:$0xff]
    %v4592 = vld [vmem:[#allocation12 + $0x30] sm:$0xff]
    %v4593 = vld [vmem:[#allocation12 + $0x38] sm:$0xff]
    %v4594 = vld [vmem:[#allocation12 + $0x40] sm:$0xff]
    %v4595 = vld [vmem:[#allocation12 + $0x48] sm:$0xff]
    %v4596 = vld [vmem:[#allocation12 + $0x50] sm:$0xff]
    %v4597 = vld [vmem:[#allocation12 + $0x58] sm:$0xff]
    %v4598 = vld [vmem:[#allocation12 + $0x60] sm:$0xff]
    %v4599 = vld [vmem:[#allocation12 + $0x68] sm:$0xff]
    %v4600 = vld [vmem:[#allocation12 + $0x70] sm:$0xff]
    %v4601 = vld [vmem:[#allocation12 + $0x78] sm:$0xff]
    %4602 = vmatprep.subr.mxu0 0.0
    %4603 = vmatpush1.msra.mxu0 %v4601
    %4604 = vmatprep.subr.mxu0 0.0
    %4605 = vmatpush1.msra.mxu0 %v4600
    %4606 = vmatprep.subr.mxu0 0.0
    %4607 = vmatpush1.msra.mxu0 %v4599
    %4608 = vmatprep.subr.mxu0 0.0
    %4609 = vmatpush1.msra.mxu0 %v4598
    %4610 = vmatprep.subr.mxu0 0.0
    %4611 = vmatpush1.msra.mxu0 %v4597
    %4612 = vmatprep.subr.mxu0 0.0
    %4613 = vmatpush1.msra.mxu0 %v4596
    %4614 = vmatprep.subr.mxu0 0.0
    %4615 = vmatpush1.msra.mxu0 %v4595
    %4616 = vmatprep.subr.mxu0 0.0
    %4617 = vmatpush1.msra.mxu0 %v4594
    %4618 = vmatprep.subr.mxu0 0.0
    %4619 = vmatpush1.msra.mxu0 %v4593
    %4620 = vmatprep.subr.mxu0 0.0
    %4621 = vmatpush1.msra.mxu0 %v4592
    %4622 = vmatprep.subr.mxu0 0.0
    %4623 = vmatpush1.msra.mxu0 %v4591
    %4624 = vmatprep.subr.mxu0 0.0
    %4625 = vmatpush1.msra.mxu0 %v4590
    %4626 = vmatprep.subr.mxu0 0.0
    %4627 = vmatpush1.msra.mxu0 %v4589
    %4628 = vmatprep.subr.mxu0 0.0
    %4629 = vmatpush1.msra.mxu0 %v4588
    %4630 = vmatprep.subr.mxu0 0.0
    %4631 = vmatpush1.msra.mxu0 %v4587
    %4632 = vmatprep.subr.mxu0 0.0
    %4633 = vmatpush1.msra.mxu0 %v4586
    %4634 = vmatprep.subr.mxu0 0.0
    %4635 = vmatpush2.msra.mxu0 0.0
    %4636 = vmatprep.subr.mxu0 0.0
    %4637 = vmatpush2.msra.mxu0 0.0
    %4638 = vmatprep.subr.mxu0 0.0
    %4639 = vmatpush2.msra.mxu0 0.0
    %4640 = vmatprep.subr.mxu0 0.0
    %4641 = vmatpush2.msra.mxu0 0.0
    %4642 = vmatprep.subr.mxu0 0.0
    %4643 = vmatpush2.msra.mxu0 0.0
    %4644 = vmatprep.subr.mxu0 0.0
    %4645 = vmatpush2.msra.mxu0 0.0
    %4646 = vmatprep.subr.mxu0 0.0
    %4647 = vmatpush2.msra.mxu0 0.0
    %4648 = vmatprep.subr.mxu0 0.0
    %4649 = vmatpush2.msra.mxu0 0.0
    %4650 = vmatprep.subr.mxu0 0.0
    %4651 = vmatpush2.msra.mxu0 0.0
    %4652 = vmatprep.subr.mxu0 0.0
    %4653 = vmatpush2.msra.mxu0 0.0
    %4654 = vmatprep.subr.mxu0 0.0
    %4655 = vmatpush2.msra.mxu0 0.0
    %4656 = vmatprep.subr.mxu0 0.0
    %4657 = vmatpush2.msra.mxu0 0.0
    %4658 = vmatprep.subr.mxu0 0.0
    %4659 = vmatpush2.msra.mxu0 0.0
    %4660 = vmatprep.subr.mxu0 0.0
    %4661 = vmatpush2.msra.mxu0 0.0
    %4662 = vmatprep.subr.mxu0 0.0
    %4663 = vmatpush2.msra.mxu0 0.0
    %4664 = vmatprep.subr.mxu0 0.0
    %4665 = vmatpush2.msra.mxu0 0.0
    %4666 = vmatprep.mubr.f32.mxu0 0.0
    %4667 = vmatmul.mubr.f32.gmra.mxu0 %v4582
    %v4668 = vpop.f32.mrf.mxu0
    %v4669 = vadd.f32 0.0, %v4668
    %v4670 = vpop.f32.mrf.mxu0
    %4671 = vmatprep.mubr.f32.mxu0 0.0
    %4672 = vmatmul.mubr.f32.gmra.mxu0 %v4583
    %v4673 = vpop.f32.mrf.mxu0
    %v4674 = vadd.f32 0.0, %v4673
    %v4675 = vpop.f32.mrf.mxu0
    %4676 = vmatprep.mubr.f32.mxu0 0.0
    %4677 = vmatmul.mubr.f32.gmra.mxu0 %v4584
    %v4678 = vpop.f32.mrf.mxu0
    %v4679 = vadd.f32 0.0, %v4678
    %v4680 = vpop.f32.mrf.mxu0
    %4681 = vmatprep.mubr.f32.mxu0 0.0
    %4682 = vmatmul.mubr.f32.gmra.mxu0 %v4585
    %v4683 = vpop.f32.mrf.mxu0
    %v4684 = vadd.f32 0.0, %v4683
    %v4685 = vpop.f32.mrf.mxu0
    %4686 = vdwg.mxu0
    %4687 = vmatprep.subr.mxu0 0.0
    %4688 = vmatpush1.msra.mxu0 %v4601
    %4689 = vmatprep.subr.mxu0 0.0
    %4690 = vmatpush1.msra.mxu0 %v4600
    %4691 = vmatprep.subr.mxu0 0.0
    %4692 = vmatpush1.msra.mxu0 %v4599
    %4693 = vmatprep.subr.mxu0 0.0
    %4694 = vmatpush1.msra.mxu0 %v4598
    %4695 = vmatprep.subr.mxu0 0.0
    %4696 = vmatpush1.msra.mxu0 %v4597
    %4697 = vmatprep.subr.mxu0 0.0
    %4698 = vmatpush1.msra.mxu0 %v4596
    %4699 = vmatprep.subr.mxu0 0.0
    %4700 = vmatpush1.msra.mxu0 %v4595
    %4701 = vmatprep.subr.mxu0 0.0
    %4702 = vmatpush1.msra.mxu0 %v4594
    %4703 = vmatprep.subr.mxu0 0.0
    %4704 = vmatpush1.msra.mxu0 %v4593
    %4705 = vmatprep.subr.mxu0 0.0
    %4706 = vmatpush1.msra.mxu0 %v4592
    %4707 = vmatprep.subr.mxu0 0.0
    %4708 = vmatpush1.msra.mxu0 %v4591
    %4709 = vmatprep.subr.mxu0 0.0
    %4710 = vmatpush1.msra.mxu0 %v4590
    %4711 = vmatprep.subr.mxu0 0.0
    %4712 = vmatpush1.msra.mxu0 %v4589
    %4713 = vmatprep.subr.mxu0 0.0
    %4714 = vmatpush1.msra.mxu0 %v4588
    %4715 = vmatprep.subr.mxu0 0.0
    %4716 = vmatpush1.msra.mxu0 %v4587
    %4717 = vmatprep.subr.mxu0 0.0
    %4718 = vmatpush1.msra.mxu0 %v4586
    %4719 = vmatprep.subr.mxu0 0.0
    %4720 = vmatpush2.msra.mxu0 0.0
    %4721 = vmatprep.subr.mxu0 0.0
    %4722 = vmatpush2.msra.mxu0 0.0
    %4723 = vmatprep.subr.mxu0 0.0
    %4724 = vmatpush2.msra.mxu0 0.0
    %4725 = vmatprep.subr.mxu0 0.0
    %4726 = vmatpush2.msra.mxu0 0.0
    %4727 = vmatprep.subr.mxu0 0.0
    %4728 = vmatpush2.msra.mxu0 0.0
    %4729 = vmatprep.subr.mxu0 0.0
    %4730 = vmatpush2.msra.mxu0 0.0
    %4731 = vmatprep.subr.mxu0 0.0
    %4732 = vmatpush2.msra.mxu0 0.0
    %4733 = vmatprep.subr.mxu0 0.0
    %4734 = vmatpush2.msra.mxu0 0.0
    %4735 = vmatprep.subr.mxu0 0.0
    %4736 = vmatpush2.msra.mxu0 0.0
    %4737 = vmatprep.subr.mxu0 0.0
    %4738 = vmatpush2.msra.mxu0 0.0
    %4739 = vmatprep.subr.mxu0 0.0
    %4740 = vmatpush2.msra.mxu0 0.0
    %4741 = vmatprep.subr.mxu0 0.0
    %4742 = vmatpush2.msra.mxu0 0.0
    %4743 = vmatprep.subr.mxu0 0.0
    %4744 = vmatpush2.msra.mxu0 0.0
    %4745 = vmatprep.subr.mxu0 0.0
    %4746 = vmatpush2.msra.mxu0 0.0
    %4747 = vmatprep.subr.mxu0 0.0
    %4748 = vmatpush2.msra.mxu0 0.0
    %4749 = vmatprep.subr.mxu0 0.0
    %4750 = vmatpush2.msra.mxu0 0.0
    %4751 = vmatprep.mubr.f32.mxu0 0.0
    %4752 = vmatmul.mubr.f32.gmra.mxu0 %v4578
    %v4753 = vpop.f32.mrf.mxu0
    %v4754 = vadd.f32 %v4669, %v4753
    %v4755 = vpop.f32.mrf.mxu0
    %4756 = vmatprep.mubr.f32.mxu0 0.0
    %4757 = vmatmul.mubr.f32.gmra.mxu0 %v4579
    %v4758 = vpop.f32.mrf.mxu0
    %v4759 = vadd.f32 %v4674, %v4758
    %v4760 = vpop.f32.mrf.mxu0
    %4761 = vmatprep.mubr.f32.mxu0 0.0
    %4762 = vmatmul.mubr.f32.gmra.mxu0 %v4580
    %v4763 = vpop.f32.mrf.mxu0
    %v4764 = vadd.f32 %v4679, %v4763
    %v4765 = vpop.f32.mrf.mxu0
    %4766 = vmatprep.mubr.f32.mxu0 0.0
    %4767 = vmatmul.mubr.f32.gmra.mxu0 %v4581
    %v4768 = vpop.f32.mrf.mxu0
    %v4769 = vadd.f32 %v4684, %v4768
    %v4770 = vpop.f32.mrf.mxu0
    %4771 = vdwg.mxu0
    %v4772 = vld [vmem:[#allocation13] sm:$0x1]
    %4774 = vset.pattern.permute.xlu0 0
    %4775 = vperm.xlu0 %4774, %v4572
    %v4776 = vpop.permute.xlu0 %4775
    %4779 = vset.pattern.permute.xlu0 0
    %4780 = vperm.xlu0 %4779, %v4573
    %v4781 = vpop.permute.xlu0 %4780
    %4784 = vset.pattern.permute.xlu0 0
    %4785 = vperm.xlu0 %4784, %v4574
    %v4786 = vpop.permute.xlu0 %4785
    %4789 = vset.pattern.permute.xlu0 0
    %4790 = vperm.xlu0 %4789, %v4575
    %v4791 = vpop.permute.xlu0 %4790
    %v4794 = vlaneseq
    %v4795 = vshrl.u32 %v4794, 7
    %v4796 = vsub.s32 0, %v4795
    %v4797 = vrot.slane %v4772, %v4796
    %v4799 = vmul.f32 %v4776, %v4797
    %v4800 = vmul.f32 %v4781, %v4797
    %v4801 = vmul.f32 %v4786, %v4797
    %v4802 = vmul.f32 %v4791, %v4797
    %v4803 = vadd.f32 %v4754, %v4799
    %v4804 = vadd.f32 %v4759, %v4800
    %v4805 = vadd.f32 %v4764, %v4801
    %v4806 = vadd.f32 %v4769, %v4802
    %s4807 = scalar_lea.vmem [#allocation12], 128
    %v4808 = vld [vmem:[%s4807] sm:$0xff]
    %v4809 = vld [vmem:[%s4807 + $0x8] sm:$0xff]
    %v4810 = vld [vmem:[%s4807 + $0x10] sm:$0xff]
    %v4811 = vld [vmem:[%s4807 + $0x18] sm:$0xff]
    %v4812 = vld [vmem:[%s4807 + $0x20] sm:$0xff]
    %v4813 = vld [vmem:[%s4807 + $0x28] sm:$0xff]
    %v4814 = vld [vmem:[%s4807 + $0x30] sm:$0xff]
    %v4815 = vld [vmem:[%s4807 + $0x38] sm:$0xff]
    %v4816 = vld [vmem:[%s4807 + $0x40] sm:$0xff]
    %v4817 = vld [vmem:[%s4807 + $0x48] sm:$0xff]
    %v4818 = vld [vmem:[%s4807 + $0x50] sm:$0xff]
    %v4819 = vld [vmem:[%s4807 + $0x58] sm:$0xff]
    %v4820 = vld [vmem:[%s4807 + $0x60] sm:$0xff]
    %v4821 = vld [vmem:[%s4807 + $0x68] sm:$0xff]
    %v4822 = vld [vmem:[%s4807 + $0x70] sm:$0xff]
    %v4823 = vld [vmem:[%s4807 + $0x78] sm:$0xff]
    %4824 = vmatprep.subr.mxu0 0.0
    %4825 = vmatpush1.msra.mxu0 %v4823
    %4826 = vmatprep.subr.mxu0 0.0
    %4827 = vmatpush1.msra.mxu0 %v4822
    %4828 = vmatprep.subr.mxu0 0.0
    %4829 = vmatpush1.msra.mxu0 %v4821
    %4830 = vmatprep.subr.mxu0 0.0
    %4831 = vmatpush1.msra.mxu0 %v4820
    %4832 = vmatprep.subr.mxu0 0.0
    %4833 = vmatpush1.msra.mxu0 %v4819
    %4834 = vmatprep.subr.mxu0 0.0
    %4835 = vmatpush1.msra.mxu0 %v4818
    %4836 = vmatprep.subr.mxu0 0.0
    %4837 = vmatpush1.msra.mxu0 %v4817
    %4838 = vmatprep.subr.mxu0 0.0
    %4839 = vmatpush1.msra.mxu0 %v4816
    %4840 = vmatprep.subr.mxu0 0.0
    %4841 = vmatpush1.msra.mxu0 %v4815
    %4842 = vmatprep.subr.mxu0 0.0
    %4843 = vmatpush1.msra.mxu0 %v4814
    %4844 = vmatprep.subr.mxu0 0.0
    %4845 = vmatpush1.msra.mxu0 %v4813
    %4846 = vmatprep.subr.mxu0 0.0
    %4847 = vmatpush1.msra.mxu0 %v4812
    %4848 = vmatprep.subr.mxu0 0.0
    %4849 = vmatpush1.msra.mxu0 %v4811
    %4850 = vmatprep.subr.mxu0 0.0
    %4851 = vmatpush1.msra.mxu0 %v4810
    %4852 = vmatprep.subr.mxu0 0.0
    %4853 = vmatpush1.msra.mxu0 %v4809
    %4854 = vmatprep.subr.mxu0 0.0
    %4855 = vmatpush1.msra.mxu0 %v4808
    %4856 = vmatprep.subr.mxu0 0.0
    %4857 = vmatpush2.msra.mxu0 0.0
    %4858 = vmatprep.subr.mxu0 0.0
    %4859 = vmatpush2.msra.mxu0 0.0
    %4860 = vmatprep.subr.mxu0 0.0
    %4861 = vmatpush2.msra.mxu0 0.0
    %4862 = vmatprep.subr.mxu0 0.0
    %4863 = vmatpush2.msra.mxu0 0.0
    %4864 = vmatprep.subr.mxu0 0.0
    %4865 = vmatpush2.msra.mxu0 0.0
    %4866 = vmatprep.subr.mxu0 0.0
    %4867 = vmatpush2.msra.mxu0 0.0
    %4868 = vmatprep.subr.mxu0 0.0
    %4869 = vmatpush2.msra.mxu0 0.0
    %4870 = vmatprep.subr.mxu0 0.0
    %4871 = vmatpush2.msra.mxu0 0.0
    %4872 = vmatprep.subr.mxu0 0.0
    %4873 = vmatpush2.msra.mxu0 0.0
    %4874 = vmatprep.subr.mxu0 0.0
    %4875 = vmatpush2.msra.mxu0 0.0
    %4876 = vmatprep.subr.mxu0 0.0
    %4877 = vmatpush2.msra.mxu0 0.0
    %4878 = vmatprep.subr.mxu0 0.0
    %4879 = vmatpush2.msra.mxu0 0.0
    %4880 = vmatprep.subr.mxu0 0.0
    %4881 = vmatpush2.msra.mxu0 0.0
    %4882 = vmatprep.subr.mxu0 0.0
    %4883 = vmatpush2.msra.mxu0 0.0
    %4884 = vmatprep.subr.mxu0 0.0
    %4885 = vmatpush2.msra.mxu0 0.0
    %4886 = vmatprep.subr.mxu0 0.0
    %4887 = vmatpush2.msra.mxu0 0.0
    %4888 = vmatprep.mubr.f32.mxu0 0.0
    %4889 = vmatmul.mubr.f32.gmra.mxu0 %v4582
    %v4890 = vpop.f32.mrf.mxu0
    %v4891 = vadd.f32 0.0, %v4890
    %v4892 = vpop.f32.mrf.mxu0
    %4893 = vmatprep.mubr.f32.mxu0 0.0
    %4894 = vmatmul.mubr.f32.gmra.mxu0 %v4583
    %v4895 = vpop.f32.mrf.mxu0
    %v4896 = vadd.f32 0.0, %v4895
    %v4897 = vpop.f32.mrf.mxu0
    %4898 = vmatprep.mubr.f32.mxu0 0.0
    %4899 = vmatmul.mubr.f32.gmra.mxu0 %v4584
    %v4900 = vpop.f32.mrf.mxu0
    %v4901 = vadd.f32 0.0, %v4900
    %v4902 = vpop.f32.mrf.mxu0
    %4903 = vmatprep.mubr.f32.mxu0 0.0
    %4904 = vmatmul.mubr.f32.gmra.mxu0 %v4585
    %v4905 = vpop.f32.mrf.mxu0
    %v4906 = vadd.f32 0.0, %v4905
    %v4907 = vpop.f32.mrf.mxu0
    %4908 = vdwg.mxu0
    %4909 = vmatprep.subr.mxu0 0.0
    %4910 = vmatpush1.msra.mxu0 %v4823
    %4911 = vmatprep.subr.mxu0 0.0
    %4912 = vmatpush1.msra.mxu0 %v4822
    %4913 = vmatprep.subr.mxu0 0.0
    %4914 = vmatpush1.msra.mxu0 %v4821
    %4915 = vmatprep.subr.mxu0 0.0
    %4916 = vmatpush1.msra.mxu0 %v4820
    %4917 = vmatprep.subr.mxu0 0.0
    %4918 = vmatpush1.msra.mxu0 %v4819
    %4919 = vmatprep.subr.mxu0 0.0
    %4920 = vmatpush1.msra.mxu0 %v4818
    %4921 = vmatprep.subr.mxu0 0.0
    %4922 = vmatpush1.msra.mxu0 %v4817
    %4923 = vmatprep.subr.mxu0 0.0
    %4924 = vmatpush1.msra.mxu0 %v4816
    %4925 = vmatprep.subr.mxu0 0.0
    %4926 = vmatpush1.msra.mxu0 %v4815
    %4927 = vmatprep.subr.mxu0 0.0
    %4928 = vmatpush1.msra.mxu0 %v4814
    %4929 = vmatprep.subr.mxu0 0.0
    %4930 = vmatpush1.msra.mxu0 %v4813
    %4931 = vmatprep.subr.mxu0 0.0
    %4932 = vmatpush1.msra.mxu0 %v4812
    %4933 = vmatprep.subr.mxu0 0.0
    %4934 = vmatpush1.msra.mxu0 %v4811
    %4935 = vmatprep.subr.mxu0 0.0
    %4936 = vmatpush1.msra.mxu0 %v4810
    %4937 = vmatprep.subr.mxu0 0.0
    %4938 = vmatpush1.msra.mxu0 %v4809
    %4939 = vmatprep.subr.mxu0 0.0
    %4940 = vmatpush1.msra.mxu0 %v4808
    %4941 = vmatprep.subr.mxu0 0.0
    %4942 = vmatpush2.msra.mxu0 0.0
    %4943 = vmatprep.subr.mxu0 0.0
    %4944 = vmatpush2.msra.mxu0 0.0
    %4945 = vmatprep.subr.mxu0 0.0
    %4946 = vmatpush2.msra.mxu0 0.0
    %4947 = vmatprep.subr.mxu0 0.0
    %4948 = vmatpush2.msra.mxu0 0.0
    %4949 = vmatprep.subr.mxu0 0.0
    %4950 = vmatpush2.msra.mxu0 0.0
    %4951 = vmatprep.subr.mxu0 0.0
    %4952 = vmatpush2.msra.mxu0 0.0
    %4953 = vmatprep.subr.mxu0 0.0
    %4954 = vmatpush2.msra.mxu0 0.0
    %4955 = vmatprep.subr.mxu0 0.0
    %4956 = vmatpush2.msra.mxu0 0.0
    %4957 = vmatprep.subr.mxu0 0.0
    %4958 = vmatpush2.msra.mxu0 0.0
    %4959 = vmatprep.subr.mxu0 0.0
    %4960 = vmatpush2.msra.mxu0 0.0
    %4961 = vmatprep.subr.mxu0 0.0
    %4962 = vmatpush2.msra.mxu0 0.0
    %4963 = vmatprep.subr.mxu0 0.0
    %4964 = vmatpush2.msra.mxu0 0.0
    %4965 = vmatprep.subr.mxu0 0.0
    %4966 = vmatpush2.msra.mxu0 0.0
    %4967 = vmatprep.subr.mxu0 0.0
    %4968 = vmatpush2.msra.mxu0 0.0
    %4969 = vmatprep.subr.mxu0 0.0
    %4970 = vmatpush2.msra.mxu0 0.0
    %4971 = vmatprep.subr.mxu0 0.0
    %4972 = vmatpush2.msra.mxu0 0.0
    %4973 = vmatprep.mubr.f32.mxu0 0.0
    %4974 = vmatmul.mubr.f32.gmra.mxu0 %v4578
    %v4975 = vpop.f32.mrf.mxu0
    %v4976 = vadd.f32 %v4891, %v4975
    %v4977 = vpop.f32.mrf.mxu0
    %4978 = vmatprep.mubr.f32.mxu0 0.0
    %4979 = vmatmul.mubr.f32.gmra.mxu0 %v4579
    %v4980 = vpop.f32.mrf.mxu0
    %v4981 = vadd.f32 %v4896, %v4980
    %v4982 = vpop.f32.mrf.mxu0
    %4983 = vmatprep.mubr.f32.mxu0 0.0
    %4984 = vmatmul.mubr.f32.gmra.mxu0 %v4580
    %v4985 = vpop.f32.mrf.mxu0
    %v4986 = vadd.f32 %v4901, %v4985
    %v4987 = vpop.f32.mrf.mxu0
    %4988 = vmatprep.mubr.f32.mxu0 0.0
    %4989 = vmatmul.mubr.f32.gmra.mxu0 %v4581
    %v4990 = vpop.f32.mrf.mxu0
    %v4991 = vadd.f32 %v4906, %v4990
    %v4992 = vpop.f32.mrf.mxu0
    %4993 = vdwg.mxu0
    %s4994 = scalar_lea.vmem [#allocation13], 1
    %v4995 = vld [vmem:[%s4994] sm:$0x1]
    %v4997 = vlaneseq
    %v4998 = vshrl.u32 %v4997, 7
    %v4999 = vsub.s32 0, %v4998
    %v5000 = vrot.slane %v4995, %v4999
    %v5002 = vmul.f32 %v4776, %v5000
    %v5003 = vmul.f32 %v4781, %v5000
    %v5004 = vmul.f32 %v4786, %v5000
    %v5005 = vmul.f32 %v4791, %v5000
    %v5006 = vadd.f32 %v4976, %v5002
    %v5007 = vadd.f32 %v4981, %v5003
    %v5008 = vadd.f32 %v4986, %v5004
    %v5009 = vadd.f32 %v4991, %v5005
    %v5010 = vmax.f32 %v4803, %v5006
    %v5011 = vmax.f32 %v4804, %v5007
    %v5012 = vmax.f32 %v4805, %v5008
    %v5013 = vmax.f32 %v4806, %v5009
    %s5014 = scalar_lea.vmem [#allocation12], 256
    %v5015 = vld [vmem:[%s5014] sm:$0xff]
    %v5016 = vld [vmem:[%s5014 + $0x8] sm:$0xff]
    %v5017 = vld [vmem:[%s5014 + $0x10] sm:$0xff]
    %v5018 = vld [vmem:[%s5014 + $0x18] sm:$0xff]
    %v5019 = vld [vmem:[%s5014 + $0x20] sm:$0xff]
    %v5020 = vld [vmem:[%s5014 + $0x28] sm:$0xff]
    %v5021 = vld [vmem:[%s5014 + $0x30] sm:$0xff]
    %v5022 = vld [vmem:[%s5014 + $0x38] sm:$0xff]
    %v5023 = vld [vmem:[%s5014 + $0x40] sm:$0xff]
    %v5024 = vld [vmem:[%s5014 + $0x48] sm:$0xff]
    %v5025 = vld [vmem:[%s5014 + $0x50] sm:$0xff]
    %v5026 = vld [vmem:[%s5014 + $0x58] sm:$0xff]
    %v5027 = vld [vmem:[%s5014 + $0x60] sm:$0xff]
    %v5028 = vld [vmem:[%s5014 + $0x68] sm:$0xff]
    %v5029 = vld [vmem:[%s5014 + $0x70] sm:$0xff]
    %v5030 = vld [vmem:[%s5014 + $0x78] sm:$0xff]
    %5031 = vmatprep.subr.mxu0 0.0
    %5032 = vmatpush1.msra.mxu0 %v5030
    %5033 = vmatprep.subr.mxu0 0.0
    %5034 = vmatpush1.msra.mxu0 %v5029
    %5035 = vmatprep.subr.mxu0 0.0
    %5036 = vmatpush1.msra.mxu0 %v5028
    %5037 = vmatprep.subr.mxu0 0.0
    %5038 = vmatpush1.msra.mxu0 %v5027
    %5039 = vmatprep.subr.mxu0 0.0
    %5040 = vmatpush1.msra.mxu0 %v5026
    %5041 = vmatprep.subr.mxu0 0.0
    %5042 = vmatpush1.msra.mxu0 %v5025
    %5043 = vmatprep.subr.mxu0 0.0
    %5044 = vmatpush1.msra.mxu0 %v5024
    %5045 = vmatprep.subr.mxu0 0.0
    %5046 = vmatpush1.msra.mxu0 %v5023
    %5047 = vmatprep.subr.mxu0 0.0
    %5048 = vmatpush1.msra.mxu0 %v5022
    %5049 = vmatprep.subr.mxu0 0.0
    %5050 = vmatpush1.msra.mxu0 %v5021
    %5051 = vmatprep.subr.mxu0 0.0
    %5052 = vmatpush1.msra.mxu0 %v5020
    %5053 = vmatprep.subr.mxu0 0.0
    %5054 = vmatpush1.msra.mxu0 %v5019
    %5055 = vmatprep.subr.mxu0 0.0
    %5056 = vmatpush1.msra.mxu0 %v5018
    %5057 = vmatprep.subr.mxu0 0.0
    %5058 = vmatpush1.msra.mxu0 %v5017
    %5059 = vmatprep.subr.mxu0 0.0
    %5060 = vmatpush1.msra.mxu0 %v5016
    %5061 = vmatprep.subr.mxu0 0.0
    %5062 = vmatpush1.msra.mxu0 %v5015
    %5063 = vmatprep.subr.mxu0 0.0
    %5064 = vmatpush2.msra.mxu0 0.0
    %5065 = vmatprep.subr.mxu0 0.0
    %5066 = vmatpush2.msra.mxu0 0.0
    %5067 = vmatprep.subr.mxu0 0.0
    %5068 = vmatpush2.msra.mxu0 0.0
    %5069 = vmatprep.subr.mxu0 0.0
    %5070 = vmatpush2.msra.mxu0 0.0
    %5071 = vmatprep.subr.mxu0 0.0
    %5072 = vmatpush2.msra.mxu0 0.0
    %5073 = vmatprep.subr.mxu0 0.0
    %5074 = vmatpush2.msra.mxu0 0.0
    %5075 = vmatprep.subr.mxu0 0.0
    %5076 = vmatpush2.msra.mxu0 0.0
    %5077 = vmatprep.subr.mxu0 0.0
    %5078 = vmatpush2.msra.mxu0 0.0
    %5079 = vmatprep.subr.mxu0 0.0
    %5080 = vmatpush2.msra.mxu0 0.0
    %5081 = vmatprep.subr.mxu0 0.0
    %5082 = vmatpush2.msra.mxu0 0.0
    %5083 = vmatprep.subr.mxu0 0.0
    %5084 = vmatpush2.msra.mxu0 0.0
    %5085 = vmatprep.subr.mxu0 0.0
    %5086 = vmatpush2.msra.mxu0 0.0
    %5087 = vmatprep.subr.mxu0 0.0
    %5088 = vmatpush2.msra.mxu0 0.0
    %5089 = vmatprep.subr.mxu0 0.0
    %5090 = vmatpush2.msra.mxu0 0.0
    %5091 = vmatprep.subr.mxu0 0.0
    %5092 = vmatpush2.msra.mxu0 0.0
    %5093 = vmatprep.subr.mxu0 0.0
    %5094 = vmatpush2.msra.mxu0 0.0
    %5095 = vmatprep.mubr.f32.mxu0 0.0
    %5096 = vmatmul.mubr.f32.gmra.mxu0 %v4582
    %v5097 = vpop.f32.mrf.mxu0
    %v5098 = vadd.f32 0.0, %v5097
    %v5099 = vpop.f32.mrf.mxu0
    %5100 = vmatprep.mubr.f32.mxu0 0.0
    %5101 = vmatmul.mubr.f32.gmra.mxu0 %v4583
    %v5102 = vpop.f32.mrf.mxu0
    %v5103 = vadd.f32 0.0, %v5102
    %v5104 = vpop.f32.mrf.mxu0
    %5105 = vmatprep.mubr.f32.mxu0 0.0
    %5106 = vmatmul.mubr.f32.gmra.mxu0 %v4584
    %v5107 = vpop.f32.mrf.mxu0
    %v5108 = vadd.f32 0.0, %v5107
    %v5109 = vpop.f32.mrf.mxu0
    %5110 = vmatprep.mubr.f32.mxu0 0.0
    %5111 = vmatmul.mubr.f32.gmra.mxu0 %v4585
    %v5112 = vpop.f32.mrf.mxu0
    %v5113 = vadd.f32 0.0, %v5112
    %v5114 = vpop.f32.mrf.mxu0
    %5115 = vdwg.mxu0
    %5116 = vmatprep.subr.mxu0 0.0
    %5117 = vmatpush1.msra.mxu0 %v5030
    %5118 = vmatprep.subr.mxu0 0.0
    %5119 = vmatpush1.msra.mxu0 %v5029
    %5120 = vmatprep.subr.mxu0 0.0
    %5121 = vmatpush1.msra.mxu0 %v5028
    %5122 = vmatprep.subr.mxu0 0.0
    %5123 = vmatpush1.msra.mxu0 %v5027
    %5124 = vmatprep.subr.mxu0 0.0
    %5125 = vmatpush1.msra.mxu0 %v5026
    %5126 = vmatprep.subr.mxu0 0.0
    %5127 = vmatpush1.msra.mxu0 %v5025
    %5128 = vmatprep.subr.mxu0 0.0
    %5129 = vmatpush1.msra.mxu0 %v5024
    %5130 = vmatprep.subr.mxu0 0.0
    %5131 = vmatpush1.msra.mxu0 %v5023
    %5132 = vmatprep.subr.mxu0 0.0
    %5133 = vmatpush1.msra.mxu0 %v5022
    %5134 = vmatprep.subr.mxu0 0.0
    %5135 = vmatpush1.msra.mxu0 %v5021
    %5136 = vmatprep.subr.mxu0 0.0
    %5137 = vmatpush1.msra.mxu0 %v5020
    %5138 = vmatprep.subr.mxu0 0.0
    %5139 = vmatpush1.msra.mxu0 %v5019
    %5140 = vmatprep.subr.mxu0 0.0
    %5141 = vmatpush1.msra.mxu0 %v5018
    %5142 = vmatprep.subr.mxu0 0.0
    %5143 = vmatpush1.msra.mxu0 %v5017
    %5144 = vmatprep.subr.mxu0 0.0
    %5145 = vmatpush1.msra.mxu0 %v5016
    %5146 = vmatprep.subr.mxu0 0.0
    %5147 = vmatpush1.msra.mxu0 %v5015
    %5148 = vmatprep.subr.mxu0 0.0
    %5149 = vmatpush2.msra.mxu0 0.0
    %5150 = vmatprep.subr.mxu0 0.0
    %5151 = vmatpush2.msra.mxu0 0.0
    %5152 = vmatprep.subr.mxu0 0.0
    %5153 = vmatpush2.msra.mxu0 0.0
    %5154 = vmatprep.subr.mxu0 0.0
    %5155 = vmatpush2.msra.mxu0 0.0
    %5156 = vmatprep.subr.mxu0 0.0
    %5157 = vmatpush2.msra.mxu0 0.0
    %5158 = vmatprep.subr.mxu0 0.0
    %5159 = vmatpush2.msra.mxu0 0.0
    %5160 = vmatprep.subr.mxu0 0.0
    %5161 = vmatpush2.msra.mxu0 0.0
    %5162 = vmatprep.subr.mxu0 0.0
    %5163 = vmatpush2.msra.mxu0 0.0
    %5164 = vmatprep.subr.mxu0 0.0
    %5165 = vmatpush2.msra.mxu0 0.0
    %5166 = vmatprep.subr.mxu0 0.0
    %5167 = vmatpush2.msra.mxu0 0.0
    %5168 = vmatprep.subr.mxu0 0.0
    %5169 = vmatpush2.msra.mxu0 0.0
    %5170 = vmatprep.subr.mxu0 0.0
    %5171 = vmatpush2.msra.mxu0 0.0
    %5172 = vmatprep.subr.mxu0 0.0
    %5173 = vmatpush2.msra.mxu0 0.0
    %5174 = vmatprep.subr.mxu0 0.0
    %5175 = vmatpush2.msra.mxu0 0.0
    %5176 = vmatprep.subr.mxu0 0.0
    %5177 = vmatpush2.msra.mxu0 0.0
    %5178 = vmatprep.subr.mxu0 0.0
    %5179 = vmatpush2.msra.mxu0 0.0
    %5180 = vmatprep.mubr.f32.mxu0 0.0
    %5181 = vmatmul.mubr.f32.gmra.mxu0 %v4578
    %v5182 = vpop.f32.mrf.mxu0
    %v5183 = vadd.f32 %v5098, %v5182
    %v5184 = vpop.f32.mrf.mxu0
    %5185 = vmatprep.mubr.f32.mxu0 0.0
    %5186 = vmatmul.mubr.f32.gmra.mxu0 %v4579
    %v5187 = vpop.f32.mrf.mxu0
    %v5188 = vadd.f32 %v5103, %v5187
    %v5189 = vpop.f32.mrf.mxu0
    %5190 = vmatprep.mubr.f32.mxu0 0.0
    %5191 = vmatmul.mubr.f32.gmra.mxu0 %v4580
    %v5192 = vpop.f32.mrf.mxu0
    %v5193 = vadd.f32 %v5108, %v5192
    %v5194 = vpop.f32.mrf.mxu0
    %5195 = vmatprep.mubr.f32.mxu0 0.0
    %5196 = vmatmul.mubr.f32.gmra.mxu0 %v4581
    %v5197 = vpop.f32.mrf.mxu0
    %v5198 = vadd.f32 %v5113, %v5197
    %v5199 = vpop.f32.mrf.mxu0
    %5200 = vdwg.mxu0
    %s5201 = scalar_lea.vmem [#allocation13], 2
    %v5202 = vld [vmem:[%s5201] sm:$0x1]
    %v5204 = vlaneseq
    %v5205 = vshrl.u32 %v5204, 7
    %v5206 = vsub.s32 0, %v5205
    %v5207 = vrot.slane %v5202, %v5206
    %v5209 = vmul.f32 %v4776, %v5207
    %v5210 = vmul.f32 %v4781, %v5207
    %v5211 = vmul.f32 %v4786, %v5207
    %v5212 = vmul.f32 %v4791, %v5207
    %v5213 = vadd.f32 %v5183, %v5209
    %v5214 = vadd.f32 %v5188, %v5210
    %v5215 = vadd.f32 %v5193, %v5211
    %v5216 = vadd.f32 %v5198, %v5212
    %v5217 = vmax.f32 %v5010, %v5213
    %v5218 = vmax.f32 %v5011, %v5214
    %v5219 = vmax.f32 %v5012, %v5215
    %v5220 = vmax.f32 %v5013, %v5216
    %s5221 = scalar_lea.vmem [#allocation12], 384
    %v5222 = vld [vmem:[%s5221] sm:$0xff]
    %v5223 = vld [vmem:[%s5221 + $0x8] sm:$0xff]
    %v5224 = vld [vmem:[%s5221 + $0x10] sm:$0xff]
    %v5225 = vld [vmem:[%s5221 + $0x18] sm:$0xff]
    %v5226 = vld [vmem:[%s5221 + $0x20] sm:$0xff]
    %v5227 = vld [vmem:[%s5221 + $0x28] sm:$0xff]
    %v5228 = vld [vmem:[%s5221 + $0x30] sm:$0xff]
    %v5229 = vld [vmem:[%s5221 + $0x38] sm:$0xff]
    %v5230 = vld [vmem:[%s5221 + $0x40] sm:$0xff]
    %v5231 = vld [vmem:[%s5221 + $0x48] sm:$0xff]
    %v5232 = vld [vmem:[%s5221 + $0x50] sm:$0xff]
    %v5233 = vld [vmem:[%s5221 + $0x58] sm:$0xff]
    %v5234 = vld [vmem:[%s5221 + $0x60] sm:$0xff]
    %v5235 = vld [vmem:[%s5221 + $0x68] sm:$0xff]
    %v5236 = vld [vmem:[%s5221 + $0x70] sm:$0xff]
    %v5237 = vld [vmem:[%s5221 + $0x78] sm:$0xff]
    %5238 = vmatprep.subr.mxu0 0.0
    %5239 = vmatpush1.msra.mxu0 %v5237
    %5240 = vmatprep.subr.mxu0 0.0
    %5241 = vmatpush1.msra.mxu0 %v5236
    %5242 = vmatprep.subr.mxu0 0.0
    %5243 = vmatpush1.msra.mxu0 %v5235
    %5244 = vmatprep.subr.mxu0 0.0
    %5245 = vmatpush1.msra.mxu0 %v5234
    %5246 = vmatprep.subr.mxu0 0.0
    %5247 = vmatpush1.msra.mxu0 %v5233
    %5248 = vmatprep.subr.mxu0 0.0
    %5249 = vmatpush1.msra.mxu0 %v5232
    %5250 = vmatprep.subr.mxu0 0.0
    %5251 = vmatpush1.msra.mxu0 %v5231
    %5252 = vmatprep.subr.mxu0 0.0
    %5253 = vmatpush1.msra.mxu0 %v5230
    %5254 = vmatprep.subr.mxu0 0.0
    %5255 = vmatpush1.msra.mxu0 %v5229
    %5256 = vmatprep.subr.mxu0 0.0
    %5257 = vmatpush1.msra.mxu0 %v5228
    %5258 = vmatprep.subr.mxu0 0.0
    %5259 = vmatpush1.msra.mxu0 %v5227
    %5260 = vmatprep.subr.mxu0 0.0
    %5261 = vmatpush1.msra.mxu0 %v5226
    %5262 = vmatprep.subr.mxu0 0.0
    %5263 = vmatpush1.msra.mxu0 %v5225
    %5264 = vmatprep.subr.mxu0 0.0
    %5265 = vmatpush1.msra.mxu0 %v5224
    %5266 = vmatprep.subr.mxu0 0.0
    %5267 = vmatpush1.msra.mxu0 %v5223
    %5268 = vmatprep.subr.mxu0 0.0
    %5269 = vmatpush1.msra.mxu0 %v5222
    %5270 = vmatprep.subr.mxu0 0.0
    %5271 = vmatpush2.msra.mxu0 0.0
    %5272 = vmatprep.subr.mxu0 0.0
    %5273 = vmatpush2.msra.mxu0 0.0
    %5274 = vmatprep.subr.mxu0 0.0
    %5275 = vmatpush2.msra.mxu0 0.0
    %5276 = vmatprep.subr.mxu0 0.0
    %5277 = vmatpush2.msra.mxu0 0.0
    %5278 = vmatprep.subr.mxu0 0.0
    %5279 = vmatpush2.msra.mxu0 0.0
    %5280 = vmatprep.subr.mxu0 0.0
    %5281 = vmatpush2.msra.mxu0 0.0
    %5282 = vmatprep.subr.mxu0 0.0
    %5283 = vmatpush2.msra.mxu0 0.0
    %5284 = vmatprep.subr.mxu0 0.0
    %5285 = vmatpush2.msra.mxu0 0.0
    %5286 = vmatprep.subr.mxu0 0.0
    %5287 = vmatpush2.msra.mxu0 0.0
    %5288 = vmatprep.subr.mxu0 0.0
    %5289 = vmatpush2.msra.mxu0 0.0
    %5290 = vmatprep.subr.mxu0 0.0
    %5291 = vmatpush2.msra.mxu0 0.0
    %5292 = vmatprep.subr.mxu0 0.0
    %5293 = vmatpush2.msra.mxu0 0.0
    %5294 = vmatprep.subr.mxu0 0.0
    %5295 = vmatpush2.msra.mxu0 0.0
    %5296 = vmatprep.subr.mxu0 0.0
    %5297 = vmatpush2.msra.mxu0 0.0
    %5298 = vmatprep.subr.mxu0 0.0
    %5299 = vmatpush2.msra.mxu0 0.0
    %5300 = vmatprep.subr.mxu0 0.0
    %5301 = vmatpush2.msra.mxu0 0.0
    %5302 = vmatprep.mubr.f32.mxu0 0.0
    %5303 = vmatmul.mubr.f32.gmra.mxu0 %v4582
    %v5304 = vpop.f32.mrf.mxu0
    %v5305 = vadd.f32 0.0, %v5304
    %v5306 = vpop.f32.mrf.mxu0
    %5307 = vmatprep.mubr.f32.mxu0 0.0
    %5308 = vmatmul.mubr.f32.gmra.mxu0 %v4583
    %v5309 = vpop.f32.mrf.mxu0
    %v5310 = vadd.f32 0.0, %v5309
    %v5311 = vpop.f32.mrf.mxu0
    %5312 = vmatprep.mubr.f32.mxu0 0.0
    %5313 = vmatmul.mubr.f32.gmra.mxu0 %v4584
    %v5314 = vpop.f32.mrf.mxu0
    %v5315 = vadd.f32 0.0, %v5314
    %v5316 = vpop.f32.mrf.mxu0
    %5317 = vmatprep.mubr.f32.mxu0 0.0
    %5318 = vmatmul.mubr.f32.gmra.mxu0 %v4585
    %v5319 = vpop.f32.mrf.mxu0
    %v5320 = vadd.f32 0.0, %v5319
    %v5321 = vpop.f32.mrf.mxu0
    %5322 = vdwg.mxu0
    %5323 = vmatprep.subr.mxu0 0.0
    %5324 = vmatpush1.msra.mxu0 %v5237
    %5325 = vmatprep.subr.mxu0 0.0
    %5326 = vmatpush1.msra.mxu0 %v5236
    %5327 = vmatprep.subr.mxu0 0.0
    %5328 = vmatpush1.msra.mxu0 %v5235
    %5329 = vmatprep.subr.mxu0 0.0
    %5330 = vmatpush1.msra.mxu0 %v5234
    %5331 = vmatprep.subr.mxu0 0.0
    %5332 = vmatpush1.msra.mxu0 %v5233
    %5333 = vmatprep.subr.mxu0 0.0
    %5334 = vmatpush1.msra.mxu0 %v5232
    %5335 = vmatprep.subr.mxu0 0.0
    %5336 = vmatpush1.msra.mxu0 %v5231
    %5337 = vmatprep.subr.mxu0 0.0
    %5338 = vmatpush1.msra.mxu0 %v5230
    %5339 = vmatprep.subr.mxu0 0.0
    %5340 = vmatpush1.msra.mxu0 %v5229
    %5341 = vmatprep.subr.mxu0 0.0
    %5342 = vmatpush1.msra.mxu0 %v5228
    %5343 = vmatprep.subr.mxu0 0.0
    %5344 = vmatpush1.msra.mxu0 %v5227
    %5345 = vmatprep.subr.mxu0 0.0
    %5346 = vmatpush1.msra.mxu0 %v5226
    %5347 = vmatprep.subr.mxu0 0.0
    %5348 = vmatpush1.msra.mxu0 %v5225
    %5349 = vmatprep.subr.mxu0 0.0
    %5350 = vmatpush1.msra.mxu0 %v5224
    %5351 = vmatprep.subr.mxu0 0.0
    %5352 = vmatpush1.msra.mxu0 %v5223
    %5353 = vmatprep.subr.mxu0 0.0
    %5354 = vmatpush1.msra.mxu0 %v5222
    %5355 = vmatprep.subr.mxu0 0.0
    %5356 = vmatpush2.msra.mxu0 0.0
    %5357 = vmatprep.subr.mxu0 0.0
    %5358 = vmatpush2.msra.mxu0 0.0
    %5359 = vmatprep.subr.mxu0 0.0
    %5360 = vmatpush2.msra.mxu0 0.0
    %5361 = vmatprep.subr.mxu0 0.0
    %5362 = vmatpush2.msra.mxu0 0.0
    %5363 = vmatprep.subr.mxu0 0.0
    %5364 = vmatpush2.msra.mxu0 0.0
    %5365 = vmatprep.subr.mxu0 0.0
    %5366 = vmatpush2.msra.mxu0 0.0
    %5367 = vmatprep.subr.mxu0 0.0
    %5368 = vmatpush2.msra.mxu0 0.0
    %5369 = vmatprep.subr.mxu0 0.0
    %5370 = vmatpush2.msra.mxu0 0.0
    %5371 = vmatprep.subr.mxu0 0.0
    %5372 = vmatpush2.msra.mxu0 0.0
    %5373 = vmatprep.subr.mxu0 0.0
    %5374 = vmatpush2.msra.mxu0 0.0
    %5375 = vmatprep.subr.mxu0 0.0
    %5376 = vmatpush2.msra.mxu0 0.0
    %5377 = vmatprep.subr.mxu0 0.0
    %5378 = vmatpush2.msra.mxu0 0.0
    %5379 = vmatprep.subr.mxu0 0.0
    %5380 = vmatpush2.msra.mxu0 0.0
    %5381 = vmatprep.subr.mxu0 0.0
    %5382 = vmatpush2.msra.mxu0 0.0
    %5383 = vmatprep.subr.mxu0 0.0
    %5384 = vmatpush2.msra.mxu0 0.0
    %5385 = vmatprep.subr.mxu0 0.0
    %5386 = vmatpush2.msra.mxu0 0.0
    %5387 = vmatprep.mubr.f32.mxu0 0.0
    %5388 = vmatmul.mubr.f32.gmra.mxu0 %v4578
    %v5389 = vpop.f32.mrf.mxu0
    %v5390 = vadd.f32 %v5305, %v5389
    %v5391 = vpop.f32.mrf.mxu0
    %5392 = vmatprep.mubr.f32.mxu0 0.0
    %5393 = vmatmul.mubr.f32.gmra.mxu0 %v4579
    %v5394 = vpop.f32.mrf.mxu0
    %v5395 = vadd.f32 %v5310, %v5394
    %v5396 = vpop.f32.mrf.mxu0
    %5397 = vmatprep.mubr.f32.mxu0 0.0
    %5398 = vmatmul.mubr.f32.gmra.mxu0 %v4580
    %v5399 = vpop.f32.mrf.mxu0
    %v5400 = vadd.f32 %v5315, %v5399
    %v5401 = vpop.f32.mrf.mxu0
    %5402 = vmatprep.mubr.f32.mxu0 0.0
    %5403 = vmatmul.mubr.f32.gmra.mxu0 %v4581
    %v5404 = vpop.f32.mrf.mxu0
    %v5405 = vadd.f32 %v5320, %v5404
    %v5406 = vpop.f32.mrf.mxu0
    %5407 = vdwg.mxu0
    %s5408 = scalar_lea.vmem [#allocation13], 3
    %v5409 = vld [vmem:[%s5408] sm:$0x1]
    %v5411 = vlaneseq
    %v5412 = vshrl.u32 %v5411, 7
    %v5413 = vsub.s32 0, %v5412
    %v5414 = vrot.slane %v5409, %v5413
    %v5416 = vmul.f32 %v4776, %v5414
    %v5417 = vmul.f32 %v4781, %v5414
    %v5418 = vmul.f32 %v4786, %v5414
    %v5419 = vmul.f32 %v4791, %v5414
    %v5420 = vadd.f32 %v5390, %v5416
    %v5421 = vadd.f32 %v5395, %v5417
    %v5422 = vadd.f32 %v5400, %v5418
    %v5423 = vadd.f32 %v5405, %v5419
    %v5424 = vmax.f32 %v5217, %v5420
    %v5425 = vmax.f32 %v5218, %v5421
    %v5426 = vmax.f32 %v5219, %v5422
    %v5427 = vmax.f32 %v5220, %v5423
    %5428 = vst [vmem:[%s17] sm:$0xff] %v5424
    %5429 = vst [vmem:[%s17 + $0x8] sm:$0xff] %v5425
    %5430 = vst [vmem:[%s17 + $0x10] sm:$0xff] %v5426
    %5431 = vst [vmem:[%s17 + $0x18] sm:$0xff] %v5427
    // Predicated region
    $region102: #{encoder_subtrack_d_forward.1} parent=1 // pred_check
      _
    $region103: #{encoder_subtrack_d_forward.1} parent=1 // pred_check_branch
      %5433 = sbr.rel (0) target = $region105
    $region104: #{encoder_subtrack_d_forward.1} parent=1 // pred_region
      _
    $region105: #{encoder_subtrack_d_forward.1} parent=1 // pred_fallthru
      _
    // Predicated region
    $region106: #{encoder_subtrack_d_forward.1} parent=1 // pred_check
      _
    $region107: #{encoder_subtrack_d_forward.1} parent=1 // pred_check_branch
      %5435 = sbr.rel (0) target = $region109
    $region108: #{encoder_subtrack_d_forward.1} parent=1 // pred_region
      _
    $region109: #{encoder_subtrack_d_forward.1} parent=1 // pred_fallthru
      _
    %5436 = vsyncpa [#allocation3], 1
    %5437 = vsyncpa [#allocation5], 1
    %5438 = vsyncpa [#allocation8], 1
    %5439 = vsyncpa [#allocation11], 1
    %5440 = vsyncpa [#allocation14], 1

</llo_original>
